<compile_context>
chip_gen: v7x
topology: tpu7x:2x2x1
jax: 0.10.0
libtpu: 0.0.40
codegen_flags: <defaults>
</compile_context>

<pallas_src>
import functools

import jax
import jax.numpy as jnp
import numpy as np
from jax.experimental import pallas as pl
from jax.experimental.pallas import tpu as pltpu


def _encoding_block_kernel(alpha_ref, x_ref,
                           w1_ref, b1_ref, w2_ref, b2_ref, w3_ref, b3_ref,
                           w4_ref, b4_ref, w5_ref, b5_ref,
                           fe_ref, down_ref,
                           pad_in, pad_a, pad_b, pad_fe,
                           *, use_bf16):
    H, W, Cin = x_ref.shape[1], x_ref.shape[2], x_ref.shape[3]
    Ho, Wo = H // 2, W // 2
    alpha = alpha_ref[0]                      # shared PReLU slope (SMEM scalar)

    def mm(a, w):
        if use_bf16:                          # optional bf16 MXU path (v6e/v7x)
            a = a.astype(jnp.bfloat16)
            w = w.astype(jnp.bfloat16)
        return jnp.dot(a, w, preferred_element_type=jnp.float32)

    def prelu(v):
        return jnp.where(v >= 0, v, alpha * v)

    # Zero padded scratch buffers (only the 1-px borders actually need to stay
    # zero; interiors are always overwritten).  Done unconditionally so it is
    # correct regardless of how the parallel batch grid is sharded over cores.
    pad_in[...] = jnp.zeros_like(pad_in)
    pad_a[...] = jnp.zeros_like(pad_a)
    pad_b[...] = jnp.zeros_like(pad_b)
    pad_fe[...] = jnp.zeros_like(pad_fe)

    # ---- conv1 (Cin -> 64) + PReLU.  Cin is tiny (e.g. 4), so the 9-tap
    # accumulation is as good as im2col; accumulator starts from the bias.
    pad_in[1:H + 1, 1:W + 1, :] = x_ref[0]
    xp = pad_in[...]                                        # (H+2, W+2, Cin)
    acc = jnp.broadcast_to(b1_ref[...], (H * W, 64))
    for kh in range(3):
        for kw in range(3):
            patch = xp[kh:kh + H, kw:kw + W, :].reshape(H * W, Cin)
            acc = acc + mm(patch, w1_ref[kh, kw])
    out1 = prelu(acc)                                       # (H*W, 64)

    # ---- conv2..conv4: one im2col matmul per layer (K = 9*Cin).
    def conv_im2col(pad_ref, w_ref, b_ref):
        cin = pad_ref.shape[-1]
        v = pad_ref[...]                                    # (H+2, W+2, cin)
        cols = []
        for kh in range(3):
            for kw in range(3):
                cols.append(v[kh:kh + H, kw:kw + W, :].reshape(H * W, cin))
        im2col = jnp.concatenate(cols, axis=-1)             # (H*W, 9*cin)
        return mm(im2col, w_ref[...]) + b_ref[...]

    pad_a[1:H + 1, 1:W + 1, :] = out1.reshape(H, W, 64)
    out2 = prelu(conv_im2col(pad_a, w2_ref, b2_ref))        # (H*W, 64)

    pad_b[1:H + 1, 1:W + 1, :] = out2.reshape(H, W, 64)
    out3 = prelu(conv_im2col(pad_b, w3_ref, b3_ref))        # (H*W, 64)

    pad_a[1:H + 1, 1:W + 1, :] = out3.reshape(H, W, 64)     # reuse pad_a
    f_e = conv_im2col(pad_a, w4_ref, b4_ref)                # (H*W, 128), no act
    f_e_hwc = f_e.reshape(H, W, 128)
    fe_ref[0] = f_e_hwc.astype(fe_ref.dtype)                # lane-dense (128)
    pad_fe[1:H + 1, 1:W + 1, :] = f_e_hwc

    # ---- conv5 (128 -> 64, stride 2) + PReLU, computed at true stride 2.
    # Output (i, j) reads padded rows 2i+kh and cols 2j+kw.  Columns are
    # subsampled with strided VMEM loads; rows with a leading-dim reshape.
    slabs = [pad_fe[:, pl.ds(kw, Wo, stride=2), :] for kw in range(3)]
    cols = []
    for kh in range(3):
        for kw in range(3):
            t = slabs[kw][kh:kh + H]                        # (H, Wo, 128)
            t = t.reshape(Ho, 2, Wo, 128)[:, 0]             # rows kh, kh+2, ...
            cols.append(t.reshape(Ho * Wo, 128))
    im2col5 = jnp.concatenate(cols, axis=-1)                # (Ho*Wo, 9*128)
    down = prelu(mm(im2col5, w5_ref[...]) + b5_ref[...])    # (Ho*Wo, 64)
    down_ref[0] = down.reshape(Ho, Wo, 64).astype(down_ref.dtype)


def encoding_block_forward(params, x_nchw, *, use_bf16=False):
    """f_e, down = Encoding_Block(x); NCHW in / NCHW out (PyTorch layout)."""
    x = jnp.transpose(x_nchw, (0, 2, 3, 1)).astype(jnp.float32)   # NHWC
    N, H, W, Cin = x.shape
    assert H % 2 == 0 and W % 2 == 0, "stride-2 path assumes even H, W"
    Ho, Wo = H // 2, W // 2

    alpha = jnp.asarray(params["alpha"], jnp.float32).reshape(1)
    w1, b1 = params["conv1"]
    w2, b2 = params["conv2"]
    w3, b3 = params["conv3"]
    w4, b4 = params["conv4"]
    w5, b5 = params["conv5"]

    # im2col weight layout: (3,3,Cin,Cout) -> (9*Cin, Cout).  Row index
    # kh*3*Cin + kw*Cin + ci matches the in-kernel patch concat order.
    w1h = w1.astype(jnp.float32)                            # conv1 stays HWIO
    w2r = w2.astype(jnp.float32).reshape(9 * 64, 64)
    w3r = w3.astype(jnp.float32).reshape(9 * 64, 64)
    w4r = w4.astype(jnp.float32).reshape(9 * 64, 128)
    w5r = w5.astype(jnp.float32).reshape(9 * 128, 64)
    _b2d = lambda v: v.reshape(1, -1).astype(jnp.float32)

    flops = 2 * 9 * N * (H * W * (Cin * 64 + 64 * 64 + 64 * 64 + 64 * 128)
                         + Ho * Wo * 128 * 64)
    bytes_accessed = 4 * (
        N * H * W * Cin
        + 9 * (Cin * 64 + 64 * 64 + 64 * 64 + 64 * 128 + 128 * 64)
        + (3 * 64 + 128 + 64)
        + N * H * W * 128
        + N * Ho * Wo * 64)

    kernel = functools.partial(_encoding_block_kernel, use_bf16=use_bf16)
    f_e, down = pl.pallas_call(
        kernel,
        out_shape=(jax.ShapeDtypeStruct((N, H, W, 128), jnp.float32),
                   jax.ShapeDtypeStruct((N, Ho, Wo, 64), jnp.float32)),
        grid_spec=pltpu.PrefetchScalarGridSpec(
            num_scalar_prefetch=0,
            grid=(N,),
            in_specs=[
                pl.BlockSpec(memory_space=pltpu.MemorySpace.SMEM),        # alpha
                pl.BlockSpec((1, H, W, Cin), lambda n: (n, 0, 0, 0)),     # x
                pl.BlockSpec((3, 3, Cin, 64), lambda n: (0, 0, 0, 0)),    # w1
                pl.BlockSpec((1, 64), lambda n: (0, 0)),                  # b1
                pl.BlockSpec((9 * 64, 64), lambda n: (0, 0)),             # w2
                pl.BlockSpec((1, 64), lambda n: (0, 0)),                  # b2
                pl.BlockSpec((9 * 64, 64), lambda n: (0, 0)),             # w3
                pl.BlockSpec((1, 64), lambda n: (0, 0)),                  # b3
                pl.BlockSpec((9 * 64, 128), lambda n: (0, 0)),            # w4
                pl.BlockSpec((1, 128), lambda n: (0, 0)),                 # b4
                pl.BlockSpec((9 * 128, 64), lambda n: (0, 0)),            # w5
                pl.BlockSpec((1, 64), lambda n: (0, 0)),                  # b5
            ],
            out_specs=(
                pl.BlockSpec((1, H, W, 128), lambda n: (n, 0, 0, 0)),     # f_e
                pl.BlockSpec((1, Ho, Wo, 64), lambda n: (n, 0, 0, 0)),    # down
            ),
            scratch_shapes=[
                pltpu.VMEM((H + 2, W + 2, Cin), jnp.float32),   # padded input
                pltpu.VMEM((H + 2, W + 2, 64), jnp.float32),    # padded out1/out3
                pltpu.VMEM((H + 2, W + 2, 64), jnp.float32),    # padded out2
                pltpu.VMEM((H + 2, W + 2, 128), jnp.float32),   # padded f_e
            ],
        ),
        compiler_params=pltpu.CompilerParams(
            dimension_semantics=("parallel",),
            vmem_limit_bytes=48 * 1024 * 1024),
        cost_estimate=pl.CostEstimate(flops=flops, transcendentals=0,
                                      bytes_accessed=bytes_accessed),
    )(alpha, x, w1h, _b2d(b1), w2r, _b2d(b2), w3r, _b2d(b3),
      w4r, _b2d(b4), w5r, _b2d(b5))

    return jnp.transpose(f_e, (0, 3, 1, 2)), jnp.transpose(down, (0, 3, 1, 2))


# ----------------------------------------------------------------------------
# Parameter init matching the PyTorch module (xavier_normal_ weights,
# default Conv2d bias init, PReLU alpha = 0.25), stored in HWIO layout.
def _xavier_normal(key, shape_hwio):
    kh, kw, cin, cout = shape_hwio
    fan_in = kh * kw * cin
    fan_out = kh * kw * cout
    std = (2.0 / (fan_in + fan_out)) ** 0.5
    return std * jax.random.normal(key, shape_hwio, jnp.float32)


def init_params(key, c_in):
    specs = [(c_in, 64), (64, 64), (64, 64), (64, 128), (128, 64)]
    keys = jax.random.split(key, 2 * len(specs))
    params = {}
    for i, (ci, co) in enumerate(specs):
        w = _xavier_normal(keys[2 * i], (3, 3, ci, co))
        bound = 1.0 / (ci * 9) ** 0.5
        bb = jax.random.uniform(keys[2 * i + 1], (co,), jnp.float32,
                                -bound, bound)
        params[f"conv{i + 1}"] = (w, bb)
    params["alpha"] = jnp.float32(0.25)
    return params


# Pure-JAX (XLA) reference for numerical validation of the fused kernel.
def _reference_forward(params, x_nchw):
    x = jnp.transpose(x_nchw, (0, 2, 3, 1)).astype(jnp.float32)
    a = params["alpha"]

    def conv(v, w, b, stride):
        y = jax.lax.conv_general_dilated(
            v, w, window_strides=(stride, stride), padding=((1, 1), (1, 1)),
            dimension_numbers=("NHWC", "HWIO", "NHWC"))
        return y + b.reshape(1, 1, 1, -1)

    act = lambda v: jnp.where(v >= 0, v, a * v)
    w1, b1 = params["conv1"]
    w2, b2 = params["conv2"]
    w3, b3 = params["conv3"]
    w4, b4 = params["conv4"]
    w5, b5 = params["conv5"]
    o1 = act(conv(x, w1, b1, 1))
    o2 = act(conv(o1, w2, b2, 1))
    o3 = act(conv(o2, w3, b3, 1))
    fe = conv(o3, w4, b4, 1)
    dn = act(conv(fe, w5, b5, 2))
    return jnp.transpose(fe, (0, 3, 1, 2)), jnp.transpose(dn, (0, 3, 1, 2))


if __name__ == "__main__":
    key = jax.random.PRNGKey(0)
    kp, kx = jax.random.split(key)
    c_in, N, H, W = 4, 2, 16, 16

    params = init_params(kp, c_in)
    x = jax.random.normal(kx, (N, c_in, H, W), jnp.float32)

    fwd = jax.jit(encoding_block_forward)
    f_e, down = fwd(params, x)
    jax.block_until_ready((f_e, down))

    assert f_e.shape == (N, 128, H, W), f_e.shape
    assert down.shape == (N, 64, H // 2, W // 2), down.shape
    assert f_e.dtype == jnp.float32 and down.dtype == jnp.float32

    # Numerical check against the XLA reference (loose tolerance to allow for
    # MXU matmul precision differences).
    fe_ref, down_ref = jax.jit(_reference_forward)(params, x)
    np.testing.assert_allclose(np.asarray(f_e), np.asarray(fe_ref),
                               rtol=5e-2, atol=5e-2)
    np.testing.assert_allclose(np.asarray(down), np.asarray(down_ref),
                               rtol=5e-2, atol=5e-2)
    print("KERNEL_OK")
</pallas_src>

<mosaic_0001>
module attributes {stable_mosaic.version = 11 : i64} {
  func.func @_encoding_block_kernel(%arg0: i32, %arg1: memref<1xf32, #tpu.memory_space<smem>>, %arg2: memref<1x16x16x4xf32, #tpu.memory_space<vmem>>, %arg3: memref<3x3x4x64xf32, #tpu.memory_space<vmem>>, %arg4: memref<1x64xf32, #tpu.memory_space<vmem>>, %arg5: memref<576x64xf32, #tpu.memory_space<vmem>>, %arg6: memref<1x64xf32, #tpu.memory_space<vmem>>, %arg7: memref<576x64xf32, #tpu.memory_space<vmem>>, %arg8: memref<1x64xf32, #tpu.memory_space<vmem>>, %arg9: memref<576x128xf32, #tpu.memory_space<vmem>>, %arg10: memref<1x128xf32, #tpu.memory_space<vmem>>, %arg11: memref<1152x64xf32, #tpu.memory_space<vmem>>, %arg12: memref<1x64xf32, #tpu.memory_space<vmem>>, %arg13: memref<1x16x16x128xf32, #tpu.memory_space<vmem>>, %arg14: memref<1x8x8x64xf32, #tpu.memory_space<vmem>>, %arg15: memref<18x18x4xf32, #tpu.memory_space<vmem>>, %arg16: memref<18x18x64xf32, #tpu.memory_space<vmem>>, %arg17: memref<18x18x64xf32, #tpu.memory_space<vmem>>, %arg18: memref<18x18x128xf32, #tpu.memory_space<vmem>>) attributes {dimension_semantics = [#tpu.dimension_semantics<parallel>], iteration_bounds = array<i64: 2>, scalar_prefetch = 0 : i64, scratch_operands = 4 : i64, tpu.core_type = #tpu.core_type<tc>, window_params = [{transform_indices = @transform_0, window_bounds = array<i64: 1>}, {transform_indices = @transform_1, window_bounds = array<i64: 1, 16, 16, 4>}, {pipeline_mode = #tpu.pipeline_mode<synchronous>, transform_indices = @transform_2, window_bounds = array<i64: 3, 3, 4, 64>}, {pipeline_mode = #tpu.pipeline_mode<synchronous>, transform_indices = @transform_3, window_bounds = array<i64: 1, 64>}, {pipeline_mode = #tpu.pipeline_mode<synchronous>, transform_indices = @transform_4, window_bounds = array<i64: 576, 64>}, {pipeline_mode = #tpu.pipeline_mode<synchronous>, transform_indices = @transform_5, window_bounds = array<i64: 1, 64>}, {pipeline_mode = #tpu.pipeline_mode<synchronous>, transform_indices = @transform_6, window_bounds = array<i64: 576, 64>}, {pipeline_mode = #tpu.pipeline_mode<synchronous>, transform_indices = @transform_7, window_bounds = array<i64: 1, 64>}, {pipeline_mode = #tpu.pipeline_mode<synchronous>, transform_indices = @transform_8, window_bounds = array<i64: 576, 128>}, {pipeline_mode = #tpu.pipeline_mode<synchronous>, transform_indices = @transform_9, window_bounds = array<i64: 1, 128>}, {pipeline_mode = #tpu.pipeline_mode<synchronous>, transform_indices = @transform_10, window_bounds = array<i64: 1152, 64>}, {pipeline_mode = #tpu.pipeline_mode<synchronous>, transform_indices = @transform_11, window_bounds = array<i64: 1, 64>}, {transform_indices = @transform_12, window_bounds = array<i64: 1, 16, 16, 128>}, {transform_indices = @transform_13, window_bounds = array<i64: 1, 8, 8, 64>}]} {
    %c0 = arith.constant 0 : index
    %0 = memref.load %arg1[%c0] : memref<1xf32, #tpu.memory_space<smem>>
    %cst = arith.constant 0.000000e+00 : f32
    %1 = vector.broadcast %cst : f32 to vector<18x18x4xf32>
    %c0_0 = arith.constant 0 : index
    %c0_1 = arith.constant 0 : index
    %c0_2 = arith.constant 0 : index
    %2 = vector.load %arg15[%c0_0, %c0_1, %c0_2] : memref<18x18x4xf32, #tpu.memory_space<vmem>>, vector<18x18x4xf32>
    tpu.vector_store %arg15[%c0_0, %c0_1, %c0_2], %1 {strides = array<i32>} : memref<18x18x4xf32, #tpu.memory_space<vmem>>, vector<18x18x4xf32>,
    %cst_3 = arith.constant 0.000000e+00 : f32
    %3 = vector.broadcast %cst_3 : f32 to vector<18x18x64xf32>
    %c0_4 = arith.constant 0 : index
    %c0_5 = arith.constant 0 : index
    %c0_6 = arith.constant 0 : index
    %4 = vector.load %arg16[%c0_4, %c0_5, %c0_6] : memref<18x18x64xf32, #tpu.memory_space<vmem>>, vector<18x18x64xf32>
    tpu.vector_store %arg16[%c0_4, %c0_5, %c0_6], %3 {strides = array<i32>} : memref<18x18x64xf32, #tpu.memory_space<vmem>>, vector<18x18x64xf32>,
    %cst_7 = arith.constant 0.000000e+00 : f32
    %5 = vector.broadcast %cst_7 : f32 to vector<18x18x64xf32>
    %c0_8 = arith.constant 0 : index
    %c0_9 = arith.constant 0 : index
    %c0_10 = arith.constant 0 : index
    %6 = vector.load %arg17[%c0_8, %c0_9, %c0_10] : memref<18x18x64xf32, #tpu.memory_space<vmem>>, vector<18x18x64xf32>
    tpu.vector_store %arg17[%c0_8, %c0_9, %c0_10], %5 {strides = array<i32>} : memref<18x18x64xf32, #tpu.memory_space<vmem>>, vector<18x18x64xf32>,
    %cst_11 = arith.constant 0.000000e+00 : f32
    %7 = vector.broadcast %cst_11 : f32 to vector<18x18x128xf32>
    %c0_12 = arith.constant 0 : index
    %c0_13 = arith.constant 0 : index
    %c0_14 = arith.constant 0 : index
    %8 = vector.load %arg18[%c0_12, %c0_13, %c0_14] : memref<18x18x128xf32, #tpu.memory_space<vmem>>, vector<18x18x128xf32>
    tpu.vector_store %arg18[%c0_12, %c0_13, %c0_14], %7 {strides = array<i32>} : memref<18x18x128xf32, #tpu.memory_space<vmem>>, vector<18x18x128xf32>,
    %c0_15 = arith.constant 0 : index
    %c0_16 = arith.constant 0 : index
    %c0_17 = arith.constant 0 : index
    %c0_18 = arith.constant 0 : index
    %9 = vector.load %arg2[%c0_15, %c0_16, %c0_17, %c0_18] : memref<1x16x16x4xf32, #tpu.memory_space<vmem>>, vector<1x16x16x4xf32>
    %10 = vector.shape_cast %9 : vector<1x16x16x4xf32> to vector<16x16x4xf32>
    %c1 = arith.constant 1 : index
    %c1_19 = arith.constant 1 : index
    %c0_20 = arith.constant 0 : index
    %11 = vector.load %arg15[%c1, %c1_19, %c0_20] : memref<18x18x4xf32, #tpu.memory_space<vmem>>, vector<16x16x4xf32>
    tpu.vector_store %arg15[%c1, %c1_19, %c0_20], %10 {strides = array<i32>} : memref<18x18x4xf32, #tpu.memory_space<vmem>>, vector<16x16x4xf32>,
    %c0_21 = arith.constant 0 : index
    %c0_22 = arith.constant 0 : index
    %c0_23 = arith.constant 0 : index
    %12 = vector.load %arg15[%c0_21, %c0_22, %c0_23] : memref<18x18x4xf32, #tpu.memory_space<vmem>>, vector<18x18x4xf32>
    %c0_24 = arith.constant 0 : index
    %c0_25 = arith.constant 0 : index
    %13 = vector.load %arg4[%c0_24, %c0_25] : memref<1x64xf32, #tpu.memory_space<vmem>>, vector<1x64xf32>
    %14 = vector.shape_cast %13 : vector<1x64xf32> to vector<1x64xf32>
    %15 = vector.broadcast %14 : vector<1x64xf32> to vector<256x64xf32>
    %16 = vector.extract_strided_slice %12 {offsets = [0, 0, 0], sizes = [16, 16, 4], strides = [1, 1, 1]} : vector<18x18x4xf32> to vector<16x16x4xf32>
    %17 = vector.shape_cast %16 : vector<16x16x4xf32> to vector<256x4xf32>
    %c0_26 = arith.constant 0 : index
    %c0_27 = arith.constant 0 : index
    %c0_28 = arith.constant 0 : index
    %c0_29 = arith.constant 0 : index
    %18 = vector.load %arg3[%c0_26, %c0_27, %c0_28, %c0_29] : memref<3x3x4x64xf32, #tpu.memory_space<vmem>>, vector<1x1x4x64xf32>
    %19 = vector.shape_cast %18 : vector<1x1x4x64xf32> to vector<4x64xf32>
    %cst_30 = arith.constant dense<0.000000e+00> : vector<256x64xf32>
    %20 = tpu.matmul %17, %19, %cst_30 {dimension_numbers = #tpu.dot_dimension_numbers<[1], [0], [0], [1], [0, 0, 1, 1], [], []>} : vector<256x4xf32>, vector<4x64xf32>, vector<256x64xf32> -> vector<256x64xf32>
    %21 = arith.addf %15, %20 : vector<256x64xf32>
    %22 = vector.extract_strided_slice %12 {offsets = [0, 1, 0], sizes = [16, 16, 4], strides = [1, 1, 1]} : vector<18x18x4xf32> to vector<16x16x4xf32>
    %23 = vector.shape_cast %22 : vector<16x16x4xf32> to vector<256x4xf32>
    %c0_31 = arith.constant 0 : index
    %c1_32 = arith.constant 1 : index
    %c0_33 = arith.constant 0 : index
    %c0_34 = arith.constant 0 : index
    %24 = vector.load %arg3[%c0_31, %c1_32, %c0_33, %c0_34] : memref<3x3x4x64xf32, #tpu.memory_space<vmem>>, vector<1x1x4x64xf32>
    %25 = vector.shape_cast %24 : vector<1x1x4x64xf32> to vector<4x64xf32>
    %cst_35 = arith.constant dense<0.000000e+00> : vector<256x64xf32>
    %26 = tpu.matmul %23, %25, %cst_35 {dimension_numbers = #tpu.dot_dimension_numbers<[1], [0], [0], [1], [0, 0, 1, 1], [], []>} : vector<256x4xf32>, vector<4x64xf32>, vector<256x64xf32> -> vector<256x64xf32>
    %27 = arith.addf %21, %26 : vector<256x64xf32>
    %28 = vector.extract_strided_slice %12 {offsets = [0, 2, 0], sizes = [16, 16, 4], strides = [1, 1, 1]} : vector<18x18x4xf32> to vector<16x16x4xf32>
    %29 = vector.shape_cast %28 : vector<16x16x4xf32> to vector<256x4xf32>
    %c0_36 = arith.constant 0 : index
    %c2 = arith.constant 2 : index
    %c0_37 = arith.constant 0 : index
    %c0_38 = arith.constant 0 : index
    %30 = vector.load %arg3[%c0_36, %c2, %c0_37, %c0_38] : memref<3x3x4x64xf32, #tpu.memory_space<vmem>>, vector<1x1x4x64xf32>
    %31 = vector.shape_cast %30 : vector<1x1x4x64xf32> to vector<4x64xf32>
    %cst_39 = arith.constant dense<0.000000e+00> : vector<256x64xf32>
    %32 = tpu.matmul %29, %31, %cst_39 {dimension_numbers = #tpu.dot_dimension_numbers<[1], [0], [0], [1], [0, 0, 1, 1], [], []>} : vector<256x4xf32>, vector<4x64xf32>, vector<256x64xf32> -> vector<256x64xf32>
    %33 = arith.addf %27, %32 : vector<256x64xf32>
    %34 = vector.extract_strided_slice %12 {offsets = [1, 0, 0], sizes = [16, 16, 4], strides = [1, 1, 1]} : vector<18x18x4xf32> to vector<16x16x4xf32>
    %35 = vector.shape_cast %34 : vector<16x16x4xf32> to vector<256x4xf32>
    %c1_40 = arith.constant 1 : index
    %c0_41 = arith.constant 0 : index
    %c0_42 = arith.constant 0 : index
    %c0_43 = arith.constant 0 : index
    %36 = vector.load %arg3[%c1_40, %c0_41, %c0_42, %c0_43] : memref<3x3x4x64xf32, #tpu.memory_space<vmem>>, vector<1x1x4x64xf32>
    %37 = vector.shape_cast %36 : vector<1x1x4x64xf32> to vector<4x64xf32>
    %cst_44 = arith.constant dense<0.000000e+00> : vector<256x64xf32>
    %38 = tpu.matmul %35, %37, %cst_44 {dimension_numbers = #tpu.dot_dimension_numbers<[1], [0], [0], [1], [0, 0, 1, 1], [], []>} : vector<256x4xf32>, vector<4x64xf32>, vector<256x64xf32> -> vector<256x64xf32>
    %39 = arith.addf %33, %38 : vector<256x64xf32>
    %40 = vector.extract_strided_slice %12 {offsets = [1, 1, 0], sizes = [16, 16, 4], strides = [1, 1, 1]} : vector<18x18x4xf32> to vector<16x16x4xf32>
    %41 = vector.shape_cast %40 : vector<16x16x4xf32> to vector<256x4xf32>
    %c1_45 = arith.constant 1 : index
    %c1_46 = arith.constant 1 : index
    %c0_47 = arith.constant 0 : index
    %c0_48 = arith.constant 0 : index
    %42 = vector.load %arg3[%c1_45, %c1_46, %c0_47, %c0_48] : memref<3x3x4x64xf32, #tpu.memory_space<vmem>>, vector<1x1x4x64xf32>
    %43 = vector.shape_cast %42 : vector<1x1x4x64xf32> to vector<4x64xf32>
    %cst_49 = arith.constant dense<0.000000e+00> : vector<256x64xf32>
    %44 = tpu.matmul %41, %43, %cst_49 {dimension_numbers = #tpu.dot_dimension_numbers<[1], [0], [0], [1], [0, 0, 1, 1], [], []>} : vector<256x4xf32>, vector<4x64xf32>, vector<256x64xf32> -> vector<256x64xf32>
    %45 = arith.addf %39, %44 : vector<256x64xf32>
    %46 = vector.extract_strided_slice %12 {offsets = [1, 2, 0], sizes = [16, 16, 4], strides = [1, 1, 1]} : vector<18x18x4xf32> to vector<16x16x4xf32>
    %47 = vector.shape_cast %46 : vector<16x16x4xf32> to vector<256x4xf32>
    %c1_50 = arith.constant 1 : index
    %c2_51 = arith.constant 2 : index
    %c0_52 = arith.constant 0 : index
    %c0_53 = arith.constant 0 : index
    %48 = vector.load %arg3[%c1_50, %c2_51, %c0_52, %c0_53] : memref<3x3x4x64xf32, #tpu.memory_space<vmem>>, vector<1x1x4x64xf32>
    %49 = vector.shape_cast %48 : vector<1x1x4x64xf32> to vector<4x64xf32>
    %cst_54 = arith.constant dense<0.000000e+00> : vector<256x64xf32>
    %50 = tpu.matmul %47, %49, %cst_54 {dimension_numbers = #tpu.dot_dimension_numbers<[1], [0], [0], [1], [0, 0, 1, 1], [], []>} : vector<256x4xf32>, vector<4x64xf32>, vector<256x64xf32> -> vector<256x64xf32>
    %51 = arith.addf %45, %50 : vector<256x64xf32>
    %52 = vector.extract_strided_slice %12 {offsets = [2, 0, 0], sizes = [16, 16, 4], strides = [1, 1, 1]} : vector<18x18x4xf32> to vector<16x16x4xf32>
    %53 = vector.shape_cast %52 : vector<16x16x4xf32> to vector<256x4xf32>
    %c2_55 = arith.constant 2 : index
    %c0_56 = arith.constant 0 : index
    %c0_57 = arith.constant 0 : index
    %c0_58 = arith.constant 0 : index
    %54 = vector.load %arg3[%c2_55, %c0_56, %c0_57, %c0_58] : memref<3x3x4x64xf32, #tpu.memory_space<vmem>>, vector<1x1x4x64xf32>
    %55 = vector.shape_cast %54 : vector<1x1x4x64xf32> to vector<4x64xf32>
    %cst_59 = arith.constant dense<0.000000e+00> : vector<256x64xf32>
    %56 = tpu.matmul %53, %55, %cst_59 {dimension_numbers = #tpu.dot_dimension_numbers<[1], [0], [0], [1], [0, 0, 1, 1], [], []>} : vector<256x4xf32>, vector<4x64xf32>, vector<256x64xf32> -> vector<256x64xf32>
    %57 = arith.addf %51, %56 : vector<256x64xf32>
    %58 = vector.extract_strided_slice %12 {offsets = [2, 1, 0], sizes = [16, 16, 4], strides = [1, 1, 1]} : vector<18x18x4xf32> to vector<16x16x4xf32>
    %59 = vector.shape_cast %58 : vector<16x16x4xf32> to vector<256x4xf32>
    %c2_60 = arith.constant 2 : index
    %c1_61 = arith.constant 1 : index
    %c0_62 = arith.constant 0 : index
    %c0_63 = arith.constant 0 : index
    %60 = vector.load %arg3[%c2_60, %c1_61, %c0_62, %c0_63] : memref<3x3x4x64xf32, #tpu.memory_space<vmem>>, vector<1x1x4x64xf32>
    %61 = vector.shape_cast %60 : vector<1x1x4x64xf32> to vector<4x64xf32>
    %cst_64 = arith.constant dense<0.000000e+00> : vector<256x64xf32>
    %62 = tpu.matmul %59, %61, %cst_64 {dimension_numbers = #tpu.dot_dimension_numbers<[1], [0], [0], [1], [0, 0, 1, 1], [], []>} : vector<256x4xf32>, vector<4x64xf32>, vector<256x64xf32> -> vector<256x64xf32>
    %63 = arith.addf %57, %62 : vector<256x64xf32>
    %64 = vector.extract_strided_slice %12 {offsets = [2, 2, 0], sizes = [16, 16, 4], strides = [1, 1, 1]} : vector<18x18x4xf32> to vector<16x16x4xf32>
    %65 = vector.shape_cast %64 : vector<16x16x4xf32> to vector<256x4xf32>
    %c2_65 = arith.constant 2 : index
    %c2_66 = arith.constant 2 : index
    %c0_67 = arith.constant 0 : index
    %c0_68 = arith.constant 0 : index
    %66 = vector.load %arg3[%c2_65, %c2_66, %c0_67, %c0_68] : memref<3x3x4x64xf32, #tpu.memory_space<vmem>>, vector<1x1x4x64xf32>
    %67 = vector.shape_cast %66 : vector<1x1x4x64xf32> to vector<4x64xf32>
    %cst_69 = arith.constant dense<0.000000e+00> : vector<256x64xf32>
    %68 = tpu.matmul %65, %67, %cst_69 {dimension_numbers = #tpu.dot_dimension_numbers<[1], [0], [0], [1], [0, 0, 1, 1], [], []>} : vector<256x4xf32>, vector<4x64xf32>, vector<256x64xf32> -> vector<256x64xf32>
    %69 = arith.addf %63, %68 : vector<256x64xf32>
    %cst_70 = arith.constant 0.000000e+00 : f32
    %70 = vector.broadcast %cst_70 : f32 to vector<256x64xf32>
    %71 = arith.cmpf oge, %69, %70 : vector<256x64xf32>
    %72 = vector.broadcast %0 : f32 to vector<256x64xf32>
    %73 = arith.mulf %72, %69 : vector<256x64xf32>
    %74 = arith.select %71, %69, %73 : vector<256x64xi1>, vector<256x64xf32>
    %75 = vector.shape_cast %74 : vector<256x64xf32> to vector<16x16x64xf32>
    %c1_71 = arith.constant 1 : index
    %c1_72 = arith.constant 1 : index
    %c0_73 = arith.constant 0 : index
    %76 = vector.load %arg16[%c1_71, %c1_72, %c0_73] : memref<18x18x64xf32, #tpu.memory_space<vmem>>, vector<16x16x64xf32>
    tpu.vector_store %arg16[%c1_71, %c1_72, %c0_73], %75 {strides = array<i32>} : memref<18x18x64xf32, #tpu.memory_space<vmem>>, vector<16x16x64xf32>,
    %c0_74 = arith.constant 0 : index
    %c0_75 = arith.constant 0 : index
    %c0_76 = arith.constant 0 : index
    %77 = vector.load %arg16[%c0_74, %c0_75, %c0_76] : memref<18x18x64xf32, #tpu.memory_space<vmem>>, vector<18x18x64xf32>
    %78 = vector.extract_strided_slice %77 {offsets = [0, 0, 0], sizes = [16, 16, 64], strides = [1, 1, 1]} : vector<18x18x64xf32> to vector<16x16x64xf32>
    %79 = vector.shape_cast %78 : vector<16x16x64xf32> to vector<256x64xf32>
    %80 = vector.extract_strided_slice %77 {offsets = [0, 1, 0], sizes = [16, 16, 64], strides = [1, 1, 1]} : vector<18x18x64xf32> to vector<16x16x64xf32>
    %81 = vector.shape_cast %80 : vector<16x16x64xf32> to vector<256x64xf32>
    %82 = vector.extract_strided_slice %77 {offsets = [0, 2, 0], sizes = [16, 16, 64], strides = [1, 1, 1]} : vector<18x18x64xf32> to vector<16x16x64xf32>
    %83 = vector.shape_cast %82 : vector<16x16x64xf32> to vector<256x64xf32>
    %84 = vector.extract_strided_slice %77 {offsets = [1, 0, 0], sizes = [16, 16, 64], strides = [1, 1, 1]} : vector<18x18x64xf32> to vector<16x16x64xf32>
    %85 = vector.shape_cast %84 : vector<16x16x64xf32> to vector<256x64xf32>
    %86 = vector.extract_strided_slice %77 {offsets = [1, 1, 0], sizes = [16, 16, 64], strides = [1, 1, 1]} : vector<18x18x64xf32> to vector<16x16x64xf32>
    %87 = vector.shape_cast %86 : vector<16x16x64xf32> to vector<256x64xf32>
    %88 = vector.extract_strided_slice %77 {offsets = [1, 2, 0], sizes = [16, 16, 64], strides = [1, 1, 1]} : vector<18x18x64xf32> to vector<16x16x64xf32>
    %89 = vector.shape_cast %88 : vector<16x16x64xf32> to vector<256x64xf32>
    %90 = vector.extract_strided_slice %77 {offsets = [2, 0, 0], sizes = [16, 16, 64], strides = [1, 1, 1]} : vector<18x18x64xf32> to vector<16x16x64xf32>
    %91 = vector.shape_cast %90 : vector<16x16x64xf32> to vector<256x64xf32>
    %92 = vector.extract_strided_slice %77 {offsets = [2, 1, 0], sizes = [16, 16, 64], strides = [1, 1, 1]} : vector<18x18x64xf32> to vector<16x16x64xf32>
    %93 = vector.shape_cast %92 : vector<16x16x64xf32> to vector<256x64xf32>
    %94 = vector.extract_strided_slice %77 {offsets = [2, 2, 0], sizes = [16, 16, 64], strides = [1, 1, 1]} : vector<18x18x64xf32> to vector<16x16x64xf32>
    %95 = vector.shape_cast %94 : vector<16x16x64xf32> to vector<256x64xf32>
    %96 = tpu.concatenate %79, %81, %83, %85, %87, %89, %91, %93, %95 in 1 : vector<256x64xf32>, vector<256x64xf32>, vector<256x64xf32>, vector<256x64xf32>, vector<256x64xf32>, vector<256x64xf32>, vector<256x64xf32>, vector<256x64xf32>, vector<256x64xf32> -> vector<256x576xf32>
    %c0_77 = arith.constant 0 : index
    %c0_78 = arith.constant 0 : index
    %97 = vector.load %arg5[%c0_77, %c0_78] : memref<576x64xf32, #tpu.memory_space<vmem>>, vector<576x64xf32>
    %cst_79 = arith.constant dense<0.000000e+00> : vector<256x64xf32>
    %98 = tpu.matmul %96, %97, %cst_79 {dimension_numbers = #tpu.dot_dimension_numbers<[1], [0], [0], [1], [0, 0, 1, 1], [], []>} : vector<256x576xf32>, vector<576x64xf32>, vector<256x64xf32> -> vector<256x64xf32>
    %c0_80 = arith.constant 0 : index
    %c0_81 = arith.constant 0 : index
    %99 = vector.load %arg6[%c0_80, %c0_81] : memref<1x64xf32, #tpu.memory_space<vmem>>, vector<1x64xf32>
    %100 = vector.broadcast %99 : vector<1x64xf32> to vector<256x64xf32>
    %101 = arith.addf %98, %100 : vector<256x64xf32>
    %cst_82 = arith.constant 0.000000e+00 : f32
    %102 = vector.broadcast %cst_82 : f32 to vector<256x64xf32>
    %103 = arith.cmpf oge, %101, %102 : vector<256x64xf32>
    %104 = vector.broadcast %0 : f32 to vector<256x64xf32>
    %105 = arith.mulf %104, %101 : vector<256x64xf32>
    %106 = arith.select %103, %101, %105 : vector<256x64xi1>, vector<256x64xf32>
    %107 = vector.shape_cast %106 : vector<256x64xf32> to vector<16x16x64xf32>
    %c1_83 = arith.constant 1 : index
    %c1_84 = arith.constant 1 : index
    %c0_85 = arith.constant 0 : index
    %108 = vector.load %arg17[%c1_83, %c1_84, %c0_85] : memref<18x18x64xf32, #tpu.memory_space<vmem>>, vector<16x16x64xf32>
    tpu.vector_store %arg17[%c1_83, %c1_84, %c0_85], %107 {strides = array<i32>} : memref<18x18x64xf32, #tpu.memory_space<vmem>>, vector<16x16x64xf32>,
    %c0_86 = arith.constant 0 : index
    %c0_87 = arith.constant 0 : index
    %c0_88 = arith.constant 0 : index
    %109 = vector.load %arg17[%c0_86, %c0_87, %c0_88] : memref<18x18x64xf32, #tpu.memory_space<vmem>>, vector<18x18x64xf32>
    %110 = vector.extract_strided_slice %109 {offsets = [0, 0, 0], sizes = [16, 16, 64], strides = [1, 1, 1]} : vector<18x18x64xf32> to vector<16x16x64xf32>
    %111 = vector.shape_cast %110 : vector<16x16x64xf32> to vector<256x64xf32>
    %112 = vector.extract_strided_slice %109 {offsets = [0, 1, 0], sizes = [16, 16, 64], strides = [1, 1, 1]} : vector<18x18x64xf32> to vector<16x16x64xf32>
    %113 = vector.shape_cast %112 : vector<16x16x64xf32> to vector<256x64xf32>
    %114 = vector.extract_strided_slice %109 {offsets = [0, 2, 0], sizes = [16, 16, 64], strides = [1, 1, 1]} : vector<18x18x64xf32> to vector<16x16x64xf32>
    %115 = vector.shape_cast %114 : vector<16x16x64xf32> to vector<256x64xf32>
    %116 = vector.extract_strided_slice %109 {offsets = [1, 0, 0], sizes = [16, 16, 64], strides = [1, 1, 1]} : vector<18x18x64xf32> to vector<16x16x64xf32>
    %117 = vector.shape_cast %116 : vector<16x16x64xf32> to vector<256x64xf32>
    %118 = vector.extract_strided_slice %109 {offsets = [1, 1, 0], sizes = [16, 16, 64], strides = [1, 1, 1]} : vector<18x18x64xf32> to vector<16x16x64xf32>
    %119 = vector.shape_cast %118 : vector<16x16x64xf32> to vector<256x64xf32>
    %120 = vector.extract_strided_slice %109 {offsets = [1, 2, 0], sizes = [16, 16, 64], strides = [1, 1, 1]} : vector<18x18x64xf32> to vector<16x16x64xf32>
    %121 = vector.shape_cast %120 : vector<16x16x64xf32> to vector<256x64xf32>
    %122 = vector.extract_strided_slice %109 {offsets = [2, 0, 0], sizes = [16, 16, 64], strides = [1, 1, 1]} : vector<18x18x64xf32> to vector<16x16x64xf32>
    %123 = vector.shape_cast %122 : vector<16x16x64xf32> to vector<256x64xf32>
    %124 = vector.extract_strided_slice %109 {offsets = [2, 1, 0], sizes = [16, 16, 64], strides = [1, 1, 1]} : vector<18x18x64xf32> to vector<16x16x64xf32>
    %125 = vector.shape_cast %124 : vector<16x16x64xf32> to vector<256x64xf32>
    %126 = vector.extract_strided_slice %109 {offsets = [2, 2, 0], sizes = [16, 16, 64], strides = [1, 1, 1]} : vector<18x18x64xf32> to vector<16x16x64xf32>
    %127 = vector.shape_cast %126 : vector<16x16x64xf32> to vector<256x64xf32>
    %128 = tpu.concatenate %111, %113, %115, %117, %119, %121, %123, %125, %127 in 1 : vector<256x64xf32>, vector<256x64xf32>, vector<256x64xf32>, vector<256x64xf32>, vector<256x64xf32>, vector<256x64xf32>, vector<256x64xf32>, vector<256x64xf32>, vector<256x64xf32> -> vector<256x576xf32>
    %c0_89 = arith.constant 0 : index
    %c0_90 = arith.constant 0 : index
    %129 = vector.load %arg7[%c0_89, %c0_90] : memref<576x64xf32, #tpu.memory_space<vmem>>, vector<576x64xf32>
    %cst_91 = arith.constant dense<0.000000e+00> : vector<256x64xf32>
    %130 = tpu.matmul %128, %129, %cst_91 {dimension_numbers = #tpu.dot_dimension_numbers<[1], [0], [0], [1], [0, 0, 1, 1], [], []>} : vector<256x576xf32>, vector<576x64xf32>, vector<256x64xf32> -> vector<256x64xf32>
    %c0_92 = arith.constant 0 : index
    %c0_93 = arith.constant 0 : index
    %131 = vector.load %arg8[%c0_92, %c0_93] : memref<1x64xf32, #tpu.memory_space<vmem>>, vector<1x64xf32>
    %132 = vector.broadcast %131 : vector<1x64xf32> to vector<256x64xf32>
    %133 = arith.addf %130, %132 : vector<256x64xf32>
    %cst_94 = arith.constant 0.000000e+00 : f32
    %134 = vector.broadcast %cst_94 : f32 to vector<256x64xf32>
    %135 = arith.cmpf oge, %133, %134 : vector<256x64xf32>
    %136 = vector.broadcast %0 : f32 to vector<256x64xf32>
    %137 = arith.mulf %136, %133 : vector<256x64xf32>
    %138 = arith.select %135, %133, %137 : vector<256x64xi1>, vector<256x64xf32>
    %139 = vector.shape_cast %138 : vector<256x64xf32> to vector<16x16x64xf32>
    %c1_95 = arith.constant 1 : index
    %c1_96 = arith.constant 1 : index
    %c0_97 = arith.constant 0 : index
    %140 = vector.load %arg16[%c1_95, %c1_96, %c0_97] : memref<18x18x64xf32, #tpu.memory_space<vmem>>, vector<16x16x64xf32>
    tpu.vector_store %arg16[%c1_95, %c1_96, %c0_97], %139 {strides = array<i32>} : memref<18x18x64xf32, #tpu.memory_space<vmem>>, vector<16x16x64xf32>,
    %c0_98 = arith.constant 0 : index
    %c0_99 = arith.constant 0 : index
    %c0_100 = arith.constant 0 : index
    %141 = vector.load %arg16[%c0_98, %c0_99, %c0_100] : memref<18x18x64xf32, #tpu.memory_space<vmem>>, vector<18x18x64xf32>
    %142 = vector.extract_strided_slice %141 {offsets = [0, 0, 0], sizes = [16, 16, 64], strides = [1, 1, 1]} : vector<18x18x64xf32> to vector<16x16x64xf32>
    %143 = vector.shape_cast %142 : vector<16x16x64xf32> to vector<256x64xf32>
    %144 = vector.extract_strided_slice %141 {offsets = [0, 1, 0], sizes = [16, 16, 64], strides = [1, 1, 1]} : vector<18x18x64xf32> to vector<16x16x64xf32>
    %145 = vector.shape_cast %144 : vector<16x16x64xf32> to vector<256x64xf32>
    %146 = vector.extract_strided_slice %141 {offsets = [0, 2, 0], sizes = [16, 16, 64], strides = [1, 1, 1]} : vector<18x18x64xf32> to vector<16x16x64xf32>
    %147 = vector.shape_cast %146 : vector<16x16x64xf32> to vector<256x64xf32>
    %148 = vector.extract_strided_slice %141 {offsets = [1, 0, 0], sizes = [16, 16, 64], strides = [1, 1, 1]} : vector<18x18x64xf32> to vector<16x16x64xf32>
    %149 = vector.shape_cast %148 : vector<16x16x64xf32> to vector<256x64xf32>
    %150 = vector.extract_strided_slice %141 {offsets = [1, 1, 0], sizes = [16, 16, 64], strides = [1, 1, 1]} : vector<18x18x64xf32> to vector<16x16x64xf32>
    %151 = vector.shape_cast %150 : vector<16x16x64xf32> to vector<256x64xf32>
    %152 = vector.extract_strided_slice %141 {offsets = [1, 2, 0], sizes = [16, 16, 64], strides = [1, 1, 1]} : vector<18x18x64xf32> to vector<16x16x64xf32>
    %153 = vector.shape_cast %152 : vector<16x16x64xf32> to vector<256x64xf32>
    %154 = vector.extract_strided_slice %141 {offsets = [2, 0, 0], sizes = [16, 16, 64], strides = [1, 1, 1]} : vector<18x18x64xf32> to vector<16x16x64xf32>
    %155 = vector.shape_cast %154 : vector<16x16x64xf32> to vector<256x64xf32>
    %156 = vector.extract_strided_slice %141 {offsets = [2, 1, 0], sizes = [16, 16, 64], strides = [1, 1, 1]} : vector<18x18x64xf32> to vector<16x16x64xf32>
    %157 = vector.shape_cast %156 : vector<16x16x64xf32> to vector<256x64xf32>
    %158 = vector.extract_strided_slice %141 {offsets = [2, 2, 0], sizes = [16, 16, 64], strides = [1, 1, 1]} : vector<18x18x64xf32> to vector<16x16x64xf32>
    %159 = vector.shape_cast %158 : vector<16x16x64xf32> to vector<256x64xf32>
    %160 = tpu.concatenate %143, %145, %147, %149, %151, %153, %155, %157, %159 in 1 : vector<256x64xf32>, vector<256x64xf32>, vector<256x64xf32>, vector<256x64xf32>, vector<256x64xf32>, vector<256x64xf32>, vector<256x64xf32>, vector<256x64xf32>, vector<256x64xf32> -> vector<256x576xf32>
    %c0_101 = arith.constant 0 : index
    %c0_102 = arith.constant 0 : index
    %161 = vector.load %arg9[%c0_101, %c0_102] : memref<576x128xf32, #tpu.memory_space<vmem>>, vector<576x128xf32>
    %cst_103 = arith.constant dense<0.000000e+00> : vector<256x128xf32>
    %162 = tpu.matmul %160, %161, %cst_103 {dimension_numbers = #tpu.dot_dimension_numbers<[1], [0], [0], [1], [0, 0, 1, 1], [], []>} : vector<256x576xf32>, vector<576x128xf32>, vector<256x128xf32> -> vector<256x128xf32>
    %c0_104 = arith.constant 0 : index
    %c0_105 = arith.constant 0 : index
    %163 = vector.load %arg10[%c0_104, %c0_105] : memref<1x128xf32, #tpu.memory_space<vmem>>, vector<1x128xf32>
    %164 = vector.broadcast %163 : vector<1x128xf32> to vector<256x128xf32>
    %165 = arith.addf %162, %164 : vector<256x128xf32>
    %166 = vector.shape_cast %165 : vector<256x128xf32> to vector<16x16x128xf32>
    %c0_106 = arith.constant 0 : index
    %c0_107 = arith.constant 0 : index
    %c0_108 = arith.constant 0 : index
    %c0_109 = arith.constant 0 : index
    %167 = vector.load %arg13[%c0_106, %c0_107, %c0_108, %c0_109] : memref<1x16x16x128xf32, #tpu.memory_space<vmem>>, vector<1x16x16x128xf32>
    %168 = vector.shape_cast %167 : vector<1x16x16x128xf32> to vector<16x16x128xf32>
    %169 = vector.shape_cast %166 : vector<16x16x128xf32> to vector<1x16x16x128xf32>
    tpu.vector_store %arg13[%c0_106, %c0_107, %c0_108, %c0_109], %169 {strides = array<i32>} : memref<1x16x16x128xf32, #tpu.memory_space<vmem>>, vector<1x16x16x128xf32>,
    %c1_110 = arith.constant 1 : index
    %c1_111 = arith.constant 1 : index
    %c0_112 = arith.constant 0 : index
    %170 = vector.load %arg18[%c1_110, %c1_111, %c0_112] : memref<18x18x128xf32, #tpu.memory_space<vmem>>, vector<16x16x128xf32>
    tpu.vector_store %arg18[%c1_110, %c1_111, %c0_112], %166 {strides = array<i32>} : memref<18x18x128xf32, #tpu.memory_space<vmem>>, vector<16x16x128xf32>,
    %c0_113 = arith.constant 0 : index
    %c0_114 = arith.constant 0 : index
    %c0_115 = arith.constant 0 : index
    %171 = tpu.strided_load %arg18[%c0_113, %c0_114, %c0_115] {strides = array<i32: 1, 2, 1>} : memref<18x18x128xf32, #tpu.memory_space<vmem>>, vector<18x8x128xf32>
    %c0_116 = arith.constant 0 : index
    %c1_117 = arith.constant 1 : index
    %c0_118 = arith.constant 0 : index
    %172 = tpu.strided_load %arg18[%c0_116, %c1_117, %c0_118] {strides = array<i32: 1, 2, 1>} : memref<18x18x128xf32, #tpu.memory_space<vmem>>, vector<18x8x128xf32>
    %c0_119 = arith.constant 0 : index
    %c2_120 = arith.constant 2 : index
    %c0_121 = arith.constant 0 : index
    %173 = tpu.strided_load %arg18[%c0_119, %c2_120, %c0_121] {strides = array<i32: 1, 2, 1>} : memref<18x18x128xf32, #tpu.memory_space<vmem>>, vector<18x8x128xf32>
    %174 = vector.extract_strided_slice %171 {offsets = [0, 0, 0], sizes = [16, 8, 128], strides = [1, 1, 1]} : vector<18x8x128xf32> to vector<16x8x128xf32>
    %175 = vector.shape_cast %174 : vector<16x8x128xf32> to vector<8x2x8x128xf32>
    %176 = vector.extract_strided_slice %175 {offsets = [0, 0, 0, 0], sizes = [8, 1, 8, 128], strides = [1, 1, 1, 1]} : vector<8x2x8x128xf32> to vector<8x1x8x128xf32>
    %177 = vector.shape_cast %176 : vector<8x1x8x128xf32> to vector<8x8x128xf32>
    %178 = vector.shape_cast %177 : vector<8x8x128xf32> to vector<64x128xf32>
    %179 = vector.extract_strided_slice %172 {offsets = [0, 0, 0], sizes = [16, 8, 128], strides = [1, 1, 1]} : vector<18x8x128xf32> to vector<16x8x128xf32>
    %180 = vector.shape_cast %179 : vector<16x8x128xf32> to vector<8x2x8x128xf32>
    %181 = vector.extract_strided_slice %180 {offsets = [0, 0, 0, 0], sizes = [8, 1, 8, 128], strides = [1, 1, 1, 1]} : vector<8x2x8x128xf32> to vector<8x1x8x128xf32>
    %182 = vector.shape_cast %181 : vector<8x1x8x128xf32> to vector<8x8x128xf32>
    %183 = vector.shape_cast %182 : vector<8x8x128xf32> to vector<64x128xf32>
    %184 = vector.extract_strided_slice %173 {offsets = [0, 0, 0], sizes = [16, 8, 128], strides = [1, 1, 1]} : vector<18x8x128xf32> to vector<16x8x128xf32>
    %185 = vector.shape_cast %184 : vector<16x8x128xf32> to vector<8x2x8x128xf32>
    %186 = vector.extract_strided_slice %185 {offsets = [0, 0, 0, 0], sizes = [8, 1, 8, 128], strides = [1, 1, 1, 1]} : vector<8x2x8x128xf32> to vector<8x1x8x128xf32>
    %187 = vector.shape_cast %186 : vector<8x1x8x128xf32> to vector<8x8x128xf32>
    %188 = vector.shape_cast %187 : vector<8x8x128xf32> to vector<64x128xf32>
    %189 = vector.extract_strided_slice %171 {offsets = [1, 0, 0], sizes = [16, 8, 128], strides = [1, 1, 1]} : vector<18x8x128xf32> to vector<16x8x128xf32>
    %190 = vector.shape_cast %189 : vector<16x8x128xf32> to vector<8x2x8x128xf32>
    %191 = vector.extract_strided_slice %190 {offsets = [0, 0, 0, 0], sizes = [8, 1, 8, 128], strides = [1, 1, 1, 1]} : vector<8x2x8x128xf32> to vector<8x1x8x128xf32>
    %192 = vector.shape_cast %191 : vector<8x1x8x128xf32> to vector<8x8x128xf32>
    %193 = vector.shape_cast %192 : vector<8x8x128xf32> to vector<64x128xf32>
    %194 = vector.extract_strided_slice %172 {offsets = [1, 0, 0], sizes = [16, 8, 128], strides = [1, 1, 1]} : vector<18x8x128xf32> to vector<16x8x128xf32>
    %195 = vector.shape_cast %194 : vector<16x8x128xf32> to vector<8x2x8x128xf32>
    %196 = vector.extract_strided_slice %195 {offsets = [0, 0, 0, 0], sizes = [8, 1, 8, 128], strides = [1, 1, 1, 1]} : vector<8x2x8x128xf32> to vector<8x1x8x128xf32>
    %197 = vector.shape_cast %196 : vector<8x1x8x128xf32> to vector<8x8x128xf32>
    %198 = vector.shape_cast %197 : vector<8x8x128xf32> to vector<64x128xf32>
    %199 = vector.extract_strided_slice %173 {offsets = [1, 0, 0], sizes = [16, 8, 128], strides = [1, 1, 1]} : vector<18x8x128xf32> to vector<16x8x128xf32>
    %200 = vector.shape_cast %199 : vector<16x8x128xf32> to vector<8x2x8x128xf32>
    %201 = vector.extract_strided_slice %200 {offsets = [0, 0, 0, 0], sizes = [8, 1, 8, 128], strides = [1, 1, 1, 1]} : vector<8x2x8x128xf32> to vector<8x1x8x128xf32>
    %202 = vector.shape_cast %201 : vector<8x1x8x128xf32> to vector<8x8x128xf32>
    %203 = vector.shape_cast %202 : vector<8x8x128xf32> to vector<64x128xf32>
    %204 = vector.extract_strided_slice %171 {offsets = [2, 0, 0], sizes = [16, 8, 128], strides = [1, 1, 1]} : vector<18x8x128xf32> to vector<16x8x128xf32>
    %205 = vector.shape_cast %204 : vector<16x8x128xf32> to vector<8x2x8x128xf32>
    %206 = vector.extract_strided_slice %205 {offsets = [0, 0, 0, 0], sizes = [8, 1, 8, 128], strides = [1, 1, 1, 1]} : vector<8x2x8x128xf32> to vector<8x1x8x128xf32>
    %207 = vector.shape_cast %206 : vector<8x1x8x128xf32> to vector<8x8x128xf32>
    %208 = vector.shape_cast %207 : vector<8x8x128xf32> to vector<64x128xf32>
    %209 = vector.extract_strided_slice %172 {offsets = [2, 0, 0], sizes = [16, 8, 128], strides = [1, 1, 1]} : vector<18x8x128xf32> to vector<16x8x128xf32>
    %210 = vector.shape_cast %209 : vector<16x8x128xf32> to vector<8x2x8x128xf32>
    %211 = vector.extract_strided_slice %210 {offsets = [0, 0, 0, 0], sizes = [8, 1, 8, 128], strides = [1, 1, 1, 1]} : vector<8x2x8x128xf32> to vector<8x1x8x128xf32>
    %212 = vector.shape_cast %211 : vector<8x1x8x128xf32> to vector<8x8x128xf32>
    %213 = vector.shape_cast %212 : vector<8x8x128xf32> to vector<64x128xf32>
    %214 = vector.extract_strided_slice %173 {offsets = [2, 0, 0], sizes = [16, 8, 128], strides = [1, 1, 1]} : vector<18x8x128xf32> to vector<16x8x128xf32>
    %215 = vector.shape_cast %214 : vector<16x8x128xf32> to vector<8x2x8x128xf32>
    %216 = vector.extract_strided_slice %215 {offsets = [0, 0, 0, 0], sizes = [8, 1, 8, 128], strides = [1, 1, 1, 1]} : vector<8x2x8x128xf32> to vector<8x1x8x128xf32>
    %217 = vector.shape_cast %216 : vector<8x1x8x128xf32> to vector<8x8x128xf32>
    %218 = vector.shape_cast %217 : vector<8x8x128xf32> to vector<64x128xf32>
    %219 = tpu.concatenate %178, %183, %188, %193, %198, %203, %208, %213, %218 in 1 : vector<64x128xf32>, vector<64x128xf32>, vector<64x128xf32>, vector<64x128xf32>, vector<64x128xf32>, vector<64x128xf32>, vector<64x128xf32>, vector<64x128xf32>, vector<64x128xf32> -> vector<64x1152xf32>
    %c0_122 = arith.constant 0 : index
    %c0_123 = arith.constant 0 : index
    %220 = vector.load %arg11[%c0_122, %c0_123] : memref<1152x64xf32, #tpu.memory_space<vmem>>, vector<1152x64xf32>
    %cst_124 = arith.constant dense<0.000000e+00> : vector<64x64xf32>
    %221 = tpu.matmul %219, %220, %cst_124 {dimension_numbers = #tpu.dot_dimension_numbers<[1], [0], [0], [1], [0, 0, 1, 1], [], []>} : vector<64x1152xf32>, vector<1152x64xf32>, vector<64x64xf32> -> vector<64x64xf32>
    %c0_125 = arith.constant 0 : index
    %c0_126 = arith.constant 0 : index
    %222 = vector.load %arg12[%c0_125, %c0_126] : memref<1x64xf32, #tpu.memory_space<vmem>>, vector<1x64xf32>
    %223 = vector.broadcast %222 : vector<1x64xf32> to vector<64x64xf32>
    %224 = arith.addf %221, %223 : vector<64x64xf32>
    %cst_127 = arith.constant 0.000000e+00 : f32
    %225 = vector.broadcast %cst_127 : f32 to vector<64x64xf32>
    %226 = arith.cmpf oge, %224, %225 : vector<64x64xf32>
    %227 = vector.broadcast %0 : f32 to vector<64x64xf32>
    %228 = arith.mulf %227, %224 : vector<64x64xf32>
    %229 = arith.select %226, %224, %228 : vector<64x64xi1>, vector<64x64xf32>
    %230 = vector.shape_cast %229 : vector<64x64xf32> to vector<8x8x64xf32>
    %c0_128 = arith.constant 0 : index
    %c0_129 = arith.constant 0 : index
    %c0_130 = arith.constant 0 : index
    %c0_131 = arith.constant 0 : index
    %231 = vector.load %arg14[%c0_128, %c0_129, %c0_130, %c0_131] : memref<1x8x8x64xf32, #tpu.memory_space<vmem>>, vector<1x8x8x64xf32>
    %232 = vector.shape_cast %231 : vector<1x8x8x64xf32> to vector<8x8x64xf32>
    %233 = vector.shape_cast %230 : vector<8x8x64xf32> to vector<1x8x8x64xf32>
    tpu.vector_store %arg14[%c0_128, %c0_129, %c0_130, %c0_131], %233 {strides = array<i32>} : memref<1x8x8x64xf32, #tpu.memory_space<vmem>>, vector<1x8x8x64xf32>,
    return
  }
  func.func @transform_0(%arg0: i32) -> i32 {
    %c0_i32 = arith.constant 0 : i32
    %c0_i32_0 = arith.constant 0 : i32
    return %c0_i32 : i32
  }
  func.func @transform_1(%arg0: i32) -> (i32, i32, i32, i32) {
    %c0_i32 = arith.constant 0 : i32
    %c0_i32_0 = arith.constant 0 : i32
    %c0_i32_1 = arith.constant 0 : i32
    %c0_i32_2 = arith.constant 0 : i32
    return %arg0, %c0_i32, %c0_i32_0, %c0_i32_1 : i32, i32, i32, i32
  }
  func.func @transform_2(%arg0: i32) -> (i32, i32, i32, i32) {
    %c0_i32 = arith.constant 0 : i32
    %c0_i32_0 = arith.constant 0 : i32
    %c0_i32_1 = arith.constant 0 : i32
    %c0_i32_2 = arith.constant 0 : i32
    %c0_i32_3 = arith.constant 0 : i32
    return %c0_i32, %c0_i32_0, %c0_i32_1, %c0_i32_2 : i32, i32, i32, i32
  }
  func.func @transform_3(%arg0: i32) -> (i32, i32) {
    %c0_i32 = arith.constant 0 : i32
    %c0_i32_0 = arith.constant 0 : i32
    %c0_i32_1 = arith.constant 0 : i32
    return %c0_i32, %c0_i32_0 : i32, i32
  }
  func.func @transform_4(%arg0: i32) -> (i32, i32) {
    %c0_i32 = arith.constant 0 : i32
    %c0_i32_0 = arith.constant 0 : i32
    %c0_i32_1 = arith.constant 0 : i32
    return %c0_i32, %c0_i32_0 : i32, i32
  }
  func.func @transform_5(%arg0: i32) -> (i32, i32) {
    %c0_i32 = arith.constant 0 : i32
    %c0_i32_0 = arith.constant 0 : i32
    %c0_i32_1 = arith.constant 0 : i32
    return %c0_i32, %c0_i32_0 : i32, i32
  }
  func.func @transform_6(%arg0: i32) -> (i32, i32) {
    %c0_i32 = arith.constant 0 : i32
    %c0_i32_0 = arith.constant 0 : i32
    %c0_i32_1 = arith.constant 0 : i32
    return %c0_i32, %c0_i32_0 : i32, i32
  }
  func.func @transform_7(%arg0: i32) -> (i32, i32) {
    %c0_i32 = arith.constant 0 : i32
    %c0_i32_0 = arith.constant 0 : i32
    %c0_i32_1 = arith.constant 0 : i32
    return %c0_i32, %c0_i32_0 : i32, i32
  }
  func.func @transform_8(%arg0: i32) -> (i32, i32) {
    %c0_i32 = arith.constant 0 : i32
    %c0_i32_0 = arith.constant 0 : i32
    %c0_i32_1 = arith.constant 0 : i32
    return %c0_i32, %c0_i32_0 : i32, i32
  }
  func.func @transform_9(%arg0: i32) -> (i32, i32) {
    %c0_i32 = arith.constant 0 : i32
    %c0_i32_0 = arith.constant 0 : i32
    %c0_i32_1 = arith.constant 0 : i32
    return %c0_i32, %c0_i32_0 : i32, i32
  }
  func.func @transform_10(%arg0: i32) -> (i32, i32) {
    %c0_i32 = arith.constant 0 : i32
    %c0_i32_0 = arith.constant 0 : i32
    %c0_i32_1 = arith.constant 0 : i32
    return %c0_i32, %c0_i32_0 : i32, i32
  }
  func.func @transform_11(%arg0: i32) -> (i32, i32) {
    %c0_i32 = arith.constant 0 : i32
    %c0_i32_0 = arith.constant 0 : i32
    %c0_i32_1 = arith.constant 0 : i32
    return %c0_i32, %c0_i32_0 : i32, i32
  }
  func.func @transform_12(%arg0: i32) -> (i32, i32, i32, i32) {
    %c0_i32 = arith.constant 0 : i32
    %c0_i32_0 = arith.constant 0 : i32
    %c0_i32_1 = arith.constant 0 : i32
    %c0_i32_2 = arith.constant 0 : i32
    return %arg0, %c0_i32, %c0_i32_0, %c0_i32_1 : i32, i32, i32, i32
  }
  func.func @transform_13(%arg0: i32) -> (i32, i32, i32, i32) {
    %c0_i32 = arith.constant 0 : i32
    %c0_i32_0 = arith.constant 0 : i32
    %c0_i32_1 = arith.constant 0 : i32
    %c0_i32_2 = arith.constant 0 : i32
    return %arg0, %c0_i32, %c0_i32_0, %c0_i32_1 : i32, i32, i32, i32
  }
}

</mosaic_0001>

<llo_original>
// kernel: encoding_block_forward.1
$region0: #{encoding_block_forward.1}
  #allocation0 [shape = 'u32[]', space=smem, size = 0x4, offset = 0x4, fixed_abs, tag = 'smem constant byte address 0x4 - core index']
  #allocation1 [shape = 'u32[144,128]{1,0:T(1,128)}', space=vmem, size = 0x12000, scoped, tag = 'internal scratch']
  #allocation2 [shape = 'f32[18,18,4]{2,1,0:T(8,128)}', space=vmem, size = 0x36000, scoped, tag = 'scratch operand']
  #allocation3 [shape = 'f32[18,18,64]{2,1,0:T(8,128)}', space=vmem, size = 0x36000, scoped, tag = 'scratch operand']
  #allocation4 [shape = 'f32[18,18,64]{2,1,0:T(8,128)}', space=vmem, size = 0x36000, scoped, tag = 'scratch operand']
  #allocation5 [shape = 'f32[18,18,128]{2,1,0:T(8,128)}', space=vmem, size = 0x36000, scoped, tag = 'scratch operand']
  #allocation6 [shape = 'f32[1]{0:T(128)S(6)}', space=smem, size = 0x200, scoped, tag = 'scoped memory for encoding_block_forward.1']
  %s0 = inlined_call_operand.<no memory space> [shape: f32[1], index: 0, kind: input, shape index: {}]
  %s1 = inlined_call_operand.vmem [shape: f32[2,16,16,4], index: 1, kind: input, shape index: {}]
  %s2 = inlined_call_operand.vmem [shape: f32[3,3,4,64], index: 2, kind: input, shape index: {}]
  %s3 = inlined_call_operand.vmem [shape: f32[1,64], index: 3, kind: input, shape index: {}]
  %s4 = inlined_call_operand.vmem [shape: f32[576,64], index: 4, kind: input, shape index: {}]
  %s5 = inlined_call_operand.vmem [shape: f32[1,64], index: 5, kind: input, shape index: {}]
  %s6 = inlined_call_operand.vmem [shape: f32[576,64], index: 6, kind: input, shape index: {}]
  %s7 = inlined_call_operand.vmem [shape: f32[1,64], index: 7, kind: input, shape index: {}]
  %s8 = inlined_call_operand.vmem [shape: f32[576,128], index: 8, kind: input, shape index: {}]
  %s9 = inlined_call_operand.vmem [shape: f32[1,128], index: 9, kind: input, shape index: {}]
  %s10 = inlined_call_operand.vmem [shape: f32[1152,64], index: 10, kind: input, shape index: {}]
  %s11 = inlined_call_operand.vmem [shape: f32[1,64], index: 11, kind: input, shape index: {}]
  %s12 = inlined_call_operand.hbm [shape: f32[2,16,16,128], index: 12, kind: output, shape index: {0}]
  %s13 = inlined_call_operand.hbm [shape: f32[2,8,8,64], index: 13, kind: output, shape index: {1}]
  %14 = xla_tuple %s12, %s13
  %s15 = sld [smem:[#allocation0]]
  $region89: #{encoding_block_forward.1} parent=0
    _
  %s17 = ssub.s32 1, %s15
  %s18 = scalar_select 0, %s17, %s15
  %19 = sst [smem:[#allocation6]] %s0
  $region1: #{encoding_block_forward.1} parent=0
    #allocation7 [shape = 'u8[262144]{0}', space=vmem, size = 0x40000, scoped, tag = 'output window, operand 0']
    #allocation8 [shape = 's32[2]{0}', space=sflag, size = 0x8, scoped, tag = 'scoped memory for encoding_block_forward.1']
    #allocation9 [shape = 'u8[65536]{0}', space=vmem, size = 0x10000, scoped, tag = 'output window, operand 1']
    #allocation10 [shape = 's32[2]{0}', space=sflag, size = 0x8, scoped, tag = 'scoped memory for encoding_block_forward.1']
    %20 = vsyncpa [#allocation8], 0
    %s21 = scalar_lea.sflag [#allocation8], 1
    %22 = vsyncpa %s21, 0
    %23 = vsyncpa [#allocation10], 0
    %s24 = scalar_lea.sflag [#allocation10], 1
    %25 = vsyncpa %s24, 0
    loop: start=0, step=1, limit=4
    $region2: #{encoding_block_forward.1} parent=1 // loop_pre_header
      _
    $region3: #{encoding_block_forward.1} parent=1 // loop_header
      %s27 = sphi 0, %s31
      %p28 = scmp.ge.s32.totalorder %s27, 4
      %s35 = sphi 0, %s35
      %s37 = sphi 0, %s35
      %s38 = sphi 0, %s37
      %s52 = sphi 0, %s38
      %s58 = sphi 0, %s60
      %s61 = sphi 0, %s58
      %s62 = sphi 0, %s61
      %s78 = sphi 0, %s62
      %s82 = sphi 0, %s82
      %s84 = sphi 0, %s82
      %s85 = sphi 0, %s84
      %s99 = sphi 0, %s85
      %s103 = sphi 0, %s103
      %s105 = sphi 0, %s103
      %s106 = sphi 0, %s105
      %s120 = sphi 0, %s106
      %s124 = sphi 0, %s124
      %s126 = sphi 0, %s124
      %s127 = sphi 0, %s126
      %s141 = sphi 0, %s127
      %s145 = sphi 0, %s145
      %s147 = sphi 0, %s145
      %s148 = sphi 0, %s147
      %s162 = sphi 0, %s148
      %s166 = sphi 0, %s166
      %s168 = sphi 0, %s166
      %s169 = sphi 0, %s168
      %s183 = sphi 0, %s169
      %s187 = sphi 0, %s187
      %s189 = sphi 0, %s187
      %s190 = sphi 0, %s189
      %s204 = sphi 0, %s190
      %s208 = sphi 0, %s208
      %s210 = sphi 0, %s208
      %s211 = sphi 0, %s210
      %s225 = sphi 0, %s211
      %s229 = sphi 0, %s229
      %s231 = sphi 0, %s229
      %s232 = sphi 0, %s231
      %s246 = sphi 0, %s232
      %s250 = sphi 0, %s250
      %s252 = sphi 0, %s250
      %s253 = sphi 0, %s252
      %s267 = sphi 0, %s253
      %s271 = sphi 0, %s271
      %s273 = sphi 0, %s271
      %s274 = sphi 0, %s273
      %s288 = sphi 0, %s274
      %s294 = sphi 0, %s296
      %s297 = sphi 0, %s294
      %s298 = sphi 0, %s297
      %s314 = sphi 0, %s298
      %s320 = sphi 0, %s322
      %s323 = sphi 0, %s320
      %s324 = sphi 0, %s323
      %s340 = sphi 0, %s324
    $region4: #{encoding_block_forward.1} parent=1 // loop_header_branch
      %30 = sbr.rel (%p28) target = $region8
    $region5: #{encoding_block_forward.1} parent=1 // loop_body
      %s32 = ssub.s32 %s27, 1
      %s33 = ssub.s32 %s27, 2
      %s34 = sadd.s32 %s27, 1
      %s36 = sadd.s32 %s35, 1
      %p39 = scmp.eq.s32.totalorder %s27, 1
      %p40 = scmp.ne.s32.totalorder %s35, %s37
      %p41 = scmp.eq.s32.totalorder %s27, 0
      %p42 = por %p40, %p41
      %p43 = scmp.ne.s32.totalorder %s35, %s37
      %p44 = scmp.eq.s32.totalorder %s32, 1
      %p45 = por %p43, %p44
      %p46 = scmp.ne.s32.totalorder %s37, %s38
      %p47 = scmp.eq.s32.totalorder %s32, 0
      %p48 = por %p46, %p47
      %p49 = scmp.ne.s32.totalorder %s37, %s38
      %p50 = scmp.eq.s32.totalorder %s33, 1
      %p51 = por %p49, %p50
      %p53 = scmp.ne.s32.totalorder %s38, %s52
      %p54 = scmp.eq.s32.totalorder %s33, 0
      %p55 = por %p53, %p54
      %s56 = ssub.s32 %s27, %s34
      %p57 = scmp.eq.s32.totalorder %s56, 0
      %s59 = sadd.s32 %s58, 1
      %s60 = scalar_select %p57, %s58, %s59
      %p63 = pneg %p57
      %p64 = scmp.eq.s32.totalorder %s27, 1
      %p65 = por %p63, %p64
      %p66 = scmp.ne.s32.totalorder %s58, %s61
      %p67 = scmp.eq.s32.totalorder %s27, 0
      %p68 = por %p66, %p67
      %p69 = scmp.ne.s32.totalorder %s58, %s61
      %p70 = scmp.eq.s32.totalorder %s32, 1
      %p71 = por %p69, %p70
      %p72 = scmp.ne.s32.totalorder %s61, %s62
      %p73 = scmp.eq.s32.totalorder %s32, 0
      %p74 = por %p72, %p73
      %p75 = scmp.ne.s32.totalorder %s61, %s62
      %p76 = scmp.eq.s32.totalorder %s33, 1
      %p77 = por %p75, %p76
      %p79 = scmp.ne.s32.totalorder %s62, %s78
      %p80 = scmp.eq.s32.totalorder %s33, 0
      %p81 = por %p79, %p80
      %s83 = sadd.s32 %s82, 1
      %p86 = scmp.eq.s32.totalorder %s27, 1
      %p87 = scmp.ne.s32.totalorder %s82, %s84
      %p88 = scmp.eq.s32.totalorder %s27, 0
      %p89 = por %p87, %p88
      %p90 = scmp.ne.s32.totalorder %s82, %s84
      %p91 = scmp.eq.s32.totalorder %s32, 1
      %p92 = por %p90, %p91
      %p93 = scmp.ne.s32.totalorder %s84, %s85
      %p94 = scmp.eq.s32.totalorder %s32, 0
      %p95 = por %p93, %p94
      %p96 = scmp.ne.s32.totalorder %s84, %s85
      %p97 = scmp.eq.s32.totalorder %s33, 1
      %p98 = por %p96, %p97
      %p100 = scmp.ne.s32.totalorder %s85, %s99
      %p101 = scmp.eq.s32.totalorder %s33, 0
      %p102 = por %p100, %p101
      %s104 = sadd.s32 %s103, 1
      %p107 = scmp.eq.s32.totalorder %s27, 1
      %p108 = scmp.ne.s32.totalorder %s103, %s105
      %p109 = scmp.eq.s32.totalorder %s27, 0
      %p110 = por %p108, %p109
      %p111 = scmp.ne.s32.totalorder %s103, %s105
      %p112 = scmp.eq.s32.totalorder %s32, 1
      %p113 = por %p111, %p112
      %p114 = scmp.ne.s32.totalorder %s105, %s106
      %p115 = scmp.eq.s32.totalorder %s32, 0
      %p116 = por %p114, %p115
      %p117 = scmp.ne.s32.totalorder %s105, %s106
      %p118 = scmp.eq.s32.totalorder %s33, 1
      %p119 = por %p117, %p118
      %p121 = scmp.ne.s32.totalorder %s106, %s120
      %p122 = scmp.eq.s32.totalorder %s33, 0
      %p123 = por %p121, %p122
      %s125 = sadd.s32 %s124, 1
      %p128 = scmp.eq.s32.totalorder %s27, 1
      %p129 = scmp.ne.s32.totalorder %s124, %s126
      %p130 = scmp.eq.s32.totalorder %s27, 0
      %p131 = por %p129, %p130
      %p132 = scmp.ne.s32.totalorder %s124, %s126
      %p133 = scmp.eq.s32.totalorder %s32, 1
      %p134 = por %p132, %p133
      %p135 = scmp.ne.s32.totalorder %s126, %s127
      %p136 = scmp.eq.s32.totalorder %s32, 0
      %p137 = por %p135, %p136
      %p138 = scmp.ne.s32.totalorder %s126, %s127
      %p139 = scmp.eq.s32.totalorder %s33, 1
      %p140 = por %p138, %p139
      %p142 = scmp.ne.s32.totalorder %s127, %s141
      %p143 = scmp.eq.s32.totalorder %s33, 0
      %p144 = por %p142, %p143
      %s146 = sadd.s32 %s145, 1
      %p149 = scmp.eq.s32.totalorder %s27, 1
      %p150 = scmp.ne.s32.totalorder %s145, %s147
      %p151 = scmp.eq.s32.totalorder %s27, 0
      %p152 = por %p150, %p151
      %p153 = scmp.ne.s32.totalorder %s145, %s147
      %p154 = scmp.eq.s32.totalorder %s32, 1
      %p155 = por %p153, %p154
      %p156 = scmp.ne.s32.totalorder %s147, %s148
      %p157 = scmp.eq.s32.totalorder %s32, 0
      %p158 = por %p156, %p157
      %p159 = scmp.ne.s32.totalorder %s147, %s148
      %p160 = scmp.eq.s32.totalorder %s33, 1
      %p161 = por %p159, %p160
      %p163 = scmp.ne.s32.totalorder %s148, %s162
      %p164 = scmp.eq.s32.totalorder %s33, 0
      %p165 = por %p163, %p164
      %s167 = sadd.s32 %s166, 1
      %p170 = scmp.eq.s32.totalorder %s27, 1
      %p171 = scmp.ne.s32.totalorder %s166, %s168
      %p172 = scmp.eq.s32.totalorder %s27, 0
      %p173 = por %p171, %p172
      %p174 = scmp.ne.s32.totalorder %s166, %s168
      %p175 = scmp.eq.s32.totalorder %s32, 1
      %p176 = por %p174, %p175
      %p177 = scmp.ne.s32.totalorder %s168, %s169
      %p178 = scmp.eq.s32.totalorder %s32, 0
      %p179 = por %p177, %p178
      %p180 = scmp.ne.s32.totalorder %s168, %s169
      %p181 = scmp.eq.s32.totalorder %s33, 1
      %p182 = por %p180, %p181
      %p184 = scmp.ne.s32.totalorder %s169, %s183
      %p185 = scmp.eq.s32.totalorder %s33, 0
      %p186 = por %p184, %p185
      %s188 = sadd.s32 %s187, 1
      %p191 = scmp.eq.s32.totalorder %s27, 1
      %p192 = scmp.ne.s32.totalorder %s187, %s189
      %p193 = scmp.eq.s32.totalorder %s27, 0
      %p194 = por %p192, %p193
      %p195 = scmp.ne.s32.totalorder %s187, %s189
      %p196 = scmp.eq.s32.totalorder %s32, 1
      %p197 = por %p195, %p196
      %p198 = scmp.ne.s32.totalorder %s189, %s190
      %p199 = scmp.eq.s32.totalorder %s32, 0
      %p200 = por %p198, %p199
      %p201 = scmp.ne.s32.totalorder %s189, %s190
      %p202 = scmp.eq.s32.totalorder %s33, 1
      %p203 = por %p201, %p202
      %p205 = scmp.ne.s32.totalorder %s190, %s204
      %p206 = scmp.eq.s32.totalorder %s33, 0
      %p207 = por %p205, %p206
      %s209 = sadd.s32 %s208, 1
      %p212 = scmp.eq.s32.totalorder %s27, 1
      %p213 = scmp.ne.s32.totalorder %s208, %s210
      %p214 = scmp.eq.s32.totalorder %s27, 0
      %p215 = por %p213, %p214
      %p216 = scmp.ne.s32.totalorder %s208, %s210
      %p217 = scmp.eq.s32.totalorder %s32, 1
      %p218 = por %p216, %p217
      %p219 = scmp.ne.s32.totalorder %s210, %s211
      %p220 = scmp.eq.s32.totalorder %s32, 0
      %p221 = por %p219, %p220
      %p222 = scmp.ne.s32.totalorder %s210, %s211
      %p223 = scmp.eq.s32.totalorder %s33, 1
      %p224 = por %p222, %p223
      %p226 = scmp.ne.s32.totalorder %s211, %s225
      %p227 = scmp.eq.s32.totalorder %s33, 0
      %p228 = por %p226, %p227
      %s230 = sadd.s32 %s229, 1
      %p233 = scmp.eq.s32.totalorder %s27, 1
      %p234 = scmp.ne.s32.totalorder %s229, %s231
      %p235 = scmp.eq.s32.totalorder %s27, 0
      %p236 = por %p234, %p235
      %p237 = scmp.ne.s32.totalorder %s229, %s231
      %p238 = scmp.eq.s32.totalorder %s32, 1
      %p239 = por %p237, %p238
      %p240 = scmp.ne.s32.totalorder %s231, %s232
      %p241 = scmp.eq.s32.totalorder %s32, 0
      %p242 = por %p240, %p241
      %p243 = scmp.ne.s32.totalorder %s231, %s232
      %p244 = scmp.eq.s32.totalorder %s33, 1
      %p245 = por %p243, %p244
      %p247 = scmp.ne.s32.totalorder %s232, %s246
      %p248 = scmp.eq.s32.totalorder %s33, 0
      %p249 = por %p247, %p248
      %s251 = sadd.s32 %s250, 1
      %p254 = scmp.eq.s32.totalorder %s27, 1
      %p255 = scmp.ne.s32.totalorder %s250, %s252
      %p256 = scmp.eq.s32.totalorder %s27, 0
      %p257 = por %p255, %p256
      %p258 = scmp.ne.s32.totalorder %s250, %s252
      %p259 = scmp.eq.s32.totalorder %s32, 1
      %p260 = por %p258, %p259
      %p261 = scmp.ne.s32.totalorder %s252, %s253
      %p262 = scmp.eq.s32.totalorder %s32, 0
      %p263 = por %p261, %p262
      %p264 = scmp.ne.s32.totalorder %s252, %s253
      %p265 = scmp.eq.s32.totalorder %s33, 1
      %p266 = por %p264, %p265
      %p268 = scmp.ne.s32.totalorder %s253, %s267
      %p269 = scmp.eq.s32.totalorder %s33, 0
      %p270 = por %p268, %p269
      %s272 = sadd.s32 %s271, 1
      %p275 = scmp.eq.s32.totalorder %s27, 1
      %p276 = scmp.ne.s32.totalorder %s271, %s273
      %p277 = scmp.eq.s32.totalorder %s27, 0
      %p278 = por %p276, %p277
      %p279 = scmp.ne.s32.totalorder %s271, %s273
      %p280 = scmp.eq.s32.totalorder %s32, 1
      %p281 = por %p279, %p280
      %p282 = scmp.ne.s32.totalorder %s273, %s274
      %p283 = scmp.eq.s32.totalorder %s32, 0
      %p284 = por %p282, %p283
      %p285 = scmp.ne.s32.totalorder %s273, %s274
      %p286 = scmp.eq.s32.totalorder %s33, 1
      %p287 = por %p285, %p286
      %p289 = scmp.ne.s32.totalorder %s274, %s288
      %p290 = scmp.eq.s32.totalorder %s33, 0
      %p291 = por %p289, %p290
      %s292 = ssub.s32 %s27, %s34
      %p293 = scmp.eq.s32.totalorder %s292, 0
      %s295 = sadd.s32 %s294, 1
      %s296 = scalar_select %p293, %s294, %s295
      %p299 = pneg %p293
      %p300 = scmp.eq.s32.totalorder %s27, 1
      %p301 = por %p299, %p300
      %p302 = scmp.ne.s32.totalorder %s294, %s297
      %p303 = scmp.eq.s32.totalorder %s27, 0
      %p304 = por %p302, %p303
      %p305 = scmp.ne.s32.totalorder %s294, %s297
      %p306 = scmp.eq.s32.totalorder %s32, 1
      %p307 = por %p305, %p306
      %p308 = scmp.ne.s32.totalorder %s297, %s298
      %p309 = scmp.eq.s32.totalorder %s32, 0
      %p310 = por %p308, %p309
      %p311 = scmp.ne.s32.totalorder %s297, %s298
      %p312 = scmp.eq.s32.totalorder %s33, 1
      %p313 = por %p311, %p312
      %p315 = scmp.ne.s32.totalorder %s298, %s314
      %p316 = scmp.eq.s32.totalorder %s33, 0
      %p317 = por %p315, %p316
      %s318 = ssub.s32 %s27, %s34
      %p319 = scmp.eq.s32.totalorder %s318, 0
      %s321 = sadd.s32 %s320, 1
      %s322 = scalar_select %p319, %s320, %s321
      %p325 = pneg %p319
      %p326 = scmp.eq.s32.totalorder %s27, 1
      %p327 = por %p325, %p326
      %p328 = scmp.ne.s32.totalorder %s320, %s323
      %p329 = scmp.eq.s32.totalorder %s27, 0
      %p330 = por %p328, %p329
      %p331 = scmp.ne.s32.totalorder %s320, %s323
      %p332 = scmp.eq.s32.totalorder %s32, 1
      %p333 = por %p331, %p332
      %p334 = scmp.ne.s32.totalorder %s323, %s324
      %p335 = scmp.eq.s32.totalorder %s32, 0
      %p336 = por %p334, %p335
      %p337 = scmp.ne.s32.totalorder %s323, %s324
      %p338 = scmp.eq.s32.totalorder %s33, 1
      %p339 = por %p337, %p338
      %p341 = scmp.ne.s32.totalorder %s324, %s340
      %p342 = scmp.eq.s32.totalorder %s33, 0
      %p343 = por %p341, %p342
      %p344 = scmp.le.s32.totalorder 1, %s27
      %p345 = scmp.lt.s32.totalorder %s27, 3
      %p346 = pnand %p344, %p345
      %p347 = pneg %p346
      // Predicated region
      $region9: #{encoding_block_forward.1} parent=5 // pred_check
        _
      $region10: #{encoding_block_forward.1} parent=5 // pred_check_branch
        %349 = sbr.rel (%p346) target = $region12
      $region11: #{encoding_block_forward.1} parent=5 // pred_region
        %s350 = ssub.s32 %s27, 1
        // Predicated region
        $region13: #{encoding_block_forward.1} parent=11 // pred_check
          %p351 = pneg %p48
        $region14: #{encoding_block_forward.1} parent=11 // pred_check_branch
          %353 = sbr.rel (%p351) target = $region16
        $region15: #{encoding_block_forward.1} parent=11 // pred_region
          _
        $region16: #{encoding_block_forward.1} parent=11 // pred_fallthru
          _
        // Predicated region
        $region17: #{encoding_block_forward.1} parent=11 // pred_check
          %p354 = pneg %p95
        $region18: #{encoding_block_forward.1} parent=11 // pred_check_branch
          %356 = sbr.rel (%p354) target = $region20
        $region19: #{encoding_block_forward.1} parent=11 // pred_region
          _
        $region20: #{encoding_block_forward.1} parent=11 // pred_fallthru
          _
        // Predicated region
        $region21: #{encoding_block_forward.1} parent=11 // pred_check
          %p357 = pneg %p116
        $region22: #{encoding_block_forward.1} parent=11 // pred_check_branch
          %359 = sbr.rel (%p357) target = $region24
        $region23: #{encoding_block_forward.1} parent=11 // pred_region
          _
        $region24: #{encoding_block_forward.1} parent=11 // pred_fallthru
          _
        // Predicated region
        $region25: #{encoding_block_forward.1} parent=11 // pred_check
          %p360 = pneg %p137
        $region26: #{encoding_block_forward.1} parent=11 // pred_check_branch
          %362 = sbr.rel (%p360) target = $region28
        $region27: #{encoding_block_forward.1} parent=11 // pred_region
          _
        $region28: #{encoding_block_forward.1} parent=11 // pred_fallthru
          _
        // Predicated region
        $region29: #{encoding_block_forward.1} parent=11 // pred_check
          %p363 = pneg %p158
        $region30: #{encoding_block_forward.1} parent=11 // pred_check_branch
          %365 = sbr.rel (%p363) target = $region32
        $region31: #{encoding_block_forward.1} parent=11 // pred_region
          _
        $region32: #{encoding_block_forward.1} parent=11 // pred_fallthru
          _
        // Predicated region
        $region33: #{encoding_block_forward.1} parent=11 // pred_check
          %p366 = pneg %p179
        $region34: #{encoding_block_forward.1} parent=11 // pred_check_branch
          %368 = sbr.rel (%p366) target = $region36
        $region35: #{encoding_block_forward.1} parent=11 // pred_region
          _
        $region36: #{encoding_block_forward.1} parent=11 // pred_fallthru
          _
        // Predicated region
        $region37: #{encoding_block_forward.1} parent=11 // pred_check
          %p369 = pneg %p200
        $region38: #{encoding_block_forward.1} parent=11 // pred_check_branch
          %371 = sbr.rel (%p369) target = $region40
        $region39: #{encoding_block_forward.1} parent=11 // pred_region
          _
        $region40: #{encoding_block_forward.1} parent=11 // pred_fallthru
          _
        // Predicated region
        $region41: #{encoding_block_forward.1} parent=11 // pred_check
          %p372 = pneg %p221
        $region42: #{encoding_block_forward.1} parent=11 // pred_check_branch
          %374 = sbr.rel (%p372) target = $region44
        $region43: #{encoding_block_forward.1} parent=11 // pred_region
          _
        $region44: #{encoding_block_forward.1} parent=11 // pred_fallthru
          _
        // Predicated region
        $region45: #{encoding_block_forward.1} parent=11 // pred_check
          %p375 = pneg %p242
        $region46: #{encoding_block_forward.1} parent=11 // pred_check_branch
          %377 = sbr.rel (%p375) target = $region48
        $region47: #{encoding_block_forward.1} parent=11 // pred_region
          _
        $region48: #{encoding_block_forward.1} parent=11 // pred_fallthru
          _
        // Predicated region
        $region49: #{encoding_block_forward.1} parent=11 // pred_check
          %p378 = pneg %p263
        $region50: #{encoding_block_forward.1} parent=11 // pred_check_branch
          %380 = sbr.rel (%p378) target = $region52
        $region51: #{encoding_block_forward.1} parent=11 // pred_region
          _
        $region52: #{encoding_block_forward.1} parent=11 // pred_fallthru
          _
        // Predicated region
        $region53: #{encoding_block_forward.1} parent=11 // pred_check
          %p381 = pneg %p284
        $region54: #{encoding_block_forward.1} parent=11 // pred_check_branch
          %383 = sbr.rel (%p381) target = $region56
        $region55: #{encoding_block_forward.1} parent=11 // pred_region
          _
        $region56: #{encoding_block_forward.1} parent=11 // pred_fallthru
          _
      $region12: #{encoding_block_forward.1} parent=5 // pred_fallthru
        _
      %p384 = scmp.lt.s32.totalorder %s27, 2
      // Predicated region
      $region57: #{encoding_block_forward.1} parent=5 // pred_check
        %p385 = pneg %p384
      $region58: #{encoding_block_forward.1} parent=5 // pred_check_branch
        %387 = sbr.rel (%p385) target = $region60
      $region59: #{encoding_block_forward.1} parent=5 // pred_region
        // Predicated region
        $region61: #{encoding_block_forward.1} parent=59 // pred_check
          %p388 = pneg %p68
        $region62: #{encoding_block_forward.1} parent=59 // pred_check_branch
          %390 = sbr.rel (%p388) target = $region64
        $region63: #{encoding_block_forward.1} parent=59 // pred_region
          %p391 = scmp.lt.s32.totalorder %s27, 1
          %s392 = scalar_select %p391, %s27, 1
          %s393 = smul.addr %s392, 32
          %s394 = smul.addr %s393, 8
          %s395 = scalar_lea.vmem %s1, %s394
        $region64: #{encoding_block_forward.1} parent=59 // pred_fallthru
          _
      $region60: #{encoding_block_forward.1} parent=5 // pred_fallthru
        _
      %p396 = scmp.le.s32.totalorder 1, %s27
      %p397 = scmp.lt.s32.totalorder %s27, 3
      %p398 = pnand %p396, %p397
      %p399 = pneg %p398
      // Predicated region
      $region65: #{encoding_block_forward.1} parent=5 // pred_check
        _
      $region66: #{encoding_block_forward.1} parent=5 // pred_check_branch
        %401 = sbr.rel (%p398) target = $region68
      $region67: #{encoding_block_forward.1} parent=5 // pred_region
        %s402 = ssub.s32 %s27, 1
        %p403 = pneg %p48
        %p404 = pneg %p45
        %p405 = scmp.lt.s32.totalorder %s32, 1
        %s406 = scalar_select %p405, %s32, 1
        %s407 = smul.addr %s406, 32
        %s408 = smul.addr %s407, 8
        %s409 = scalar_lea.vmem %s1, %s408
        %p410 = pneg %p74
        %p411 = pneg %p71
        %p412 = pneg %p95
        %p413 = pneg %p92
        %p414 = pneg %p116
        %p415 = pneg %p113
        %p416 = pneg %p137
        %p417 = pneg %p134
        %p418 = pneg %p158
        %p419 = pneg %p155
        %p420 = pneg %p179
        %p421 = pneg %p176
        %p422 = pneg %p200
        %p423 = pneg %p197
        %p424 = pneg %p221
        %p425 = pneg %p218
        %p426 = pneg %p242
        %p427 = pneg %p239
        %p428 = pneg %p263
        %p429 = pneg %p260
        %p430 = pneg %p284
        %p431 = pneg %p281
        %p432 = pneg %p310
        %p433 = pneg %p307
        %s434 = sand.u32 %s297, 1
        %s435 = scalar_lea.sflag [#allocation8], %s434
        %s436 = sand.u32 %s297, 1
        %s437 = smul.addr %s436, 256
        %s438 = scalar_lea.vmem [#allocation7], %s437
        %p439 = pneg %p336
        %p440 = pneg %p333
        %s441 = sand.u32 %s323, 1
        %s442 = scalar_lea.sflag [#allocation10], %s441
        %s443 = sand.u32 %s323, 1
        %s444 = smul.addr %s443, 64
        %s445 = scalar_lea.vmem [#allocation9], %s444
        %p446 = scmp.lt.s32.totalorder %s32, 1
        %s447 = scalar_select %p446, %s32, 1
        %s448 = smul.addr %s447, 32
        %s449 = smul.addr %s448, 8
        %s450 = scalar_lea.vmem %s1, %s449
        %s451 = sld [smem:[#allocation6]]
        %vm452 = vcmask 31744
        %453 = vst.msk [vmem:[#allocation2] sm:$0xff] %vm452, 0.0
        %454 = vst.msk [vmem:[#allocation2 + $0x8] sm:$0xff] %vm452, 0.0
        %vm455 = vcmask 25600
        %456 = vst.msk [vmem:[#allocation2 + $0x10] sm:$0x3] %vm455, 0.0
        %457 = vst.msk [vmem:[#allocation2 + $0x18] sm:$0xff] %vm452, 0.0
        %458 = vst.msk [vmem:[#allocation2 + $0x20] sm:$0xff] %vm452, 0.0
        %459 = vst.msk [vmem:[#allocation2 + $0x28] sm:$0x3] %vm455, 0.0
        %460 = vst.msk [vmem:[#allocation2 + $0x30] sm:$0xff] %vm452, 0.0
        %461 = vst.msk [vmem:[#allocation2 + $0x38] sm:$0xff] %vm452, 0.0
        %462 = vst.msk [vmem:[#allocation2 + $0x40] sm:$0x3] %vm455, 0.0
        %463 = vst.msk [vmem:[#allocation2 + $0x48] sm:$0xff] %vm452, 0.0
        %464 = vst.msk [vmem:[#allocation2 + $0x50] sm:$0xff] %vm452, 0.0
        %465 = vst.msk [vmem:[#allocation2 + $0x58] sm:$0x3] %vm455, 0.0
        %466 = vst.msk [vmem:[#allocation2 + $0x60] sm:$0xff] %vm452, 0.0
        %467 = vst.msk [vmem:[#allocation2 + $0x68] sm:$0xff] %vm452, 0.0
        %468 = vst.msk [vmem:[#allocation2 + $0x70] sm:$0x3] %vm455, 0.0
        %469 = vst.msk [vmem:[#allocation2 + $0x78] sm:$0xff] %vm452, 0.0
        %470 = vst.msk [vmem:[#allocation2 + $0x80] sm:$0xff] %vm452, 0.0
        %471 = vst.msk [vmem:[#allocation2 + $0x88] sm:$0x3] %vm455, 0.0
        %472 = vst.msk [vmem:[#allocation2 + $0x90] sm:$0xff] %vm452, 0.0
        %473 = vst.msk [vmem:[#allocation2 + $0x98] sm:$0xff] %vm452, 0.0
        %474 = vst.msk [vmem:[#allocation2 + $0xa0] sm:$0x3] %vm455, 0.0
        %475 = vst.msk [vmem:[#allocation2 + $0xa8] sm:$0xff] %vm452, 0.0
        %476 = vst.msk [vmem:[#allocation2 + $0xb0] sm:$0xff] %vm452, 0.0
        %477 = vst.msk [vmem:[#allocation2 + $0xb8] sm:$0x3] %vm455, 0.0
        %478 = vst.msk [vmem:[#allocation2 + $0xc0] sm:$0xff] %vm452, 0.0
        %479 = vst.msk [vmem:[#allocation2 + $0xc8] sm:$0xff] %vm452, 0.0
        %480 = vst.msk [vmem:[#allocation2 + $0xd0] sm:$0x3] %vm455, 0.0
        %481 = vst.msk [vmem:[#allocation2 + $0xd8] sm:$0xff] %vm452, 0.0
        %482 = vst.msk [vmem:[#allocation2 + $0xe0] sm:$0xff] %vm452, 0.0
        %483 = vst.msk [vmem:[#allocation2 + $0xe8] sm:$0x3] %vm455, 0.0
        %484 = vst.msk [vmem:[#allocation2 + $0xf0] sm:$0xff] %vm452, 0.0
        %485 = vst.msk [vmem:[#allocation2 + $0xf8] sm:$0xff] %vm452, 0.0
        %486 = vst.msk [vmem:[#allocation2 + $0x100] sm:$0x3] %vm455, 0.0
        %487 = vst.msk [vmem:[#allocation2 + $0x108] sm:$0xff] %vm452, 0.0
        %488 = vst.msk [vmem:[#allocation2 + $0x110] sm:$0xff] %vm452, 0.0
        %489 = vst.msk [vmem:[#allocation2 + $0x118] sm:$0x3] %vm455, 0.0
        %490 = vst.msk [vmem:[#allocation2 + $0x120] sm:$0xff] %vm452, 0.0
        %491 = vst.msk [vmem:[#allocation2 + $0x128] sm:$0xff] %vm452, 0.0
        %492 = vst.msk [vmem:[#allocation2 + $0x130] sm:$0x3] %vm455, 0.0
        %493 = vst.msk [vmem:[#allocation2 + $0x138] sm:$0xff] %vm452, 0.0
        %494 = vst.msk [vmem:[#allocation2 + $0x140] sm:$0xff] %vm452, 0.0
        %495 = vst.msk [vmem:[#allocation2 + $0x148] sm:$0x3] %vm455, 0.0
        %496 = vst.msk [vmem:[#allocation2 + $0x150] sm:$0xff] %vm452, 0.0
        %497 = vst.msk [vmem:[#allocation2 + $0x158] sm:$0xff] %vm452, 0.0
        %498 = vst.msk [vmem:[#allocation2 + $0x160] sm:$0x3] %vm455, 0.0
        %499 = vst.msk [vmem:[#allocation2 + $0x168] sm:$0xff] %vm452, 0.0
        %500 = vst.msk [vmem:[#allocation2 + $0x170] sm:$0xff] %vm452, 0.0
        %501 = vst.msk [vmem:[#allocation2 + $0x178] sm:$0x3] %vm455, 0.0
        %502 = vst.msk [vmem:[#allocation2 + $0x180] sm:$0xff] %vm452, 0.0
        %503 = vst.msk [vmem:[#allocation2 + $0x188] sm:$0xff] %vm452, 0.0
        %504 = vst.msk [vmem:[#allocation2 + $0x190] sm:$0x3] %vm455, 0.0
        %505 = vst.msk [vmem:[#allocation2 + $0x198] sm:$0xff] %vm452, 0.0
        %506 = vst.msk [vmem:[#allocation2 + $0x1a0] sm:$0xff] %vm452, 0.0
        %507 = vst.msk [vmem:[#allocation2 + $0x1a8] sm:$0x3] %vm455, 0.0
        %vm508 = vcmask 523264
        %509 = vst.msk [vmem:[#allocation3] sm:$0xff] %vm508, 0.0
        %510 = vst.msk [vmem:[#allocation3 + $0x8] sm:$0xff] %vm508, 0.0
        %vm511 = vcmask 517120
        %512 = vst.msk [vmem:[#allocation3 + $0x10] sm:$0x3] %vm511, 0.0
        %513 = vst.msk [vmem:[#allocation3 + $0x18] sm:$0xff] %vm508, 0.0
        %514 = vst.msk [vmem:[#allocation3 + $0x20] sm:$0xff] %vm508, 0.0
        %515 = vst.msk [vmem:[#allocation3 + $0x28] sm:$0x3] %vm511, 0.0
        %516 = vst.msk [vmem:[#allocation3 + $0x30] sm:$0xff] %vm508, 0.0
        %517 = vst.msk [vmem:[#allocation3 + $0x38] sm:$0xff] %vm508, 0.0
        %518 = vst.msk [vmem:[#allocation3 + $0x40] sm:$0x3] %vm511, 0.0
        %519 = vst.msk [vmem:[#allocation3 + $0x48] sm:$0xff] %vm508, 0.0
        %520 = vst.msk [vmem:[#allocation3 + $0x50] sm:$0xff] %vm508, 0.0
        %521 = vst.msk [vmem:[#allocation3 + $0x58] sm:$0x3] %vm511, 0.0
        %522 = vst.msk [vmem:[#allocation3 + $0x60] sm:$0xff] %vm508, 0.0
        %523 = vst.msk [vmem:[#allocation3 + $0x68] sm:$0xff] %vm508, 0.0
        %524 = vst.msk [vmem:[#allocation3 + $0x70] sm:$0x3] %vm511, 0.0
        %525 = vst.msk [vmem:[#allocation3 + $0x78] sm:$0xff] %vm508, 0.0
        %526 = vst.msk [vmem:[#allocation3 + $0x80] sm:$0xff] %vm508, 0.0
        %527 = vst.msk [vmem:[#allocation3 + $0x88] sm:$0x3] %vm511, 0.0
        %528 = vst.msk [vmem:[#allocation3 + $0x90] sm:$0xff] %vm508, 0.0
        %529 = vst.msk [vmem:[#allocation3 + $0x98] sm:$0xff] %vm508, 0.0
        %530 = vst.msk [vmem:[#allocation3 + $0xa0] sm:$0x3] %vm511, 0.0
        %531 = vst.msk [vmem:[#allocation3 + $0xa8] sm:$0xff] %vm508, 0.0
        %532 = vst.msk [vmem:[#allocation3 + $0xb0] sm:$0xff] %vm508, 0.0
        %533 = vst.msk [vmem:[#allocation3 + $0xb8] sm:$0x3] %vm511, 0.0
        %534 = vst.msk [vmem:[#allocation3 + $0xc0] sm:$0xff] %vm508, 0.0
        %535 = vst.msk [vmem:[#allocation3 + $0xc8] sm:$0xff] %vm508, 0.0
        %536 = vst.msk [vmem:[#allocation3 + $0xd0] sm:$0x3] %vm511, 0.0
        %537 = vst.msk [vmem:[#allocation3 + $0xd8] sm:$0xff] %vm508, 0.0
        %538 = vst.msk [vmem:[#allocation3 + $0xe0] sm:$0xff] %vm508, 0.0
        %539 = vst.msk [vmem:[#allocation3 + $0xe8] sm:$0x3] %vm511, 0.0
        %540 = vst.msk [vmem:[#allocation3 + $0xf0] sm:$0xff] %vm508, 0.0
        %541 = vst.msk [vmem:[#allocation3 + $0xf8] sm:$0xff] %vm508, 0.0
        %542 = vst.msk [vmem:[#allocation3 + $0x100] sm:$0x3] %vm511, 0.0
        %543 = vst.msk [vmem:[#allocation3 + $0x108] sm:$0xff] %vm508, 0.0
        %544 = vst.msk [vmem:[#allocation3 + $0x110] sm:$0xff] %vm508, 0.0
        %545 = vst.msk [vmem:[#allocation3 + $0x118] sm:$0x3] %vm511, 0.0
        %546 = vst.msk [vmem:[#allocation3 + $0x120] sm:$0xff] %vm508, 0.0
        %547 = vst.msk [vmem:[#allocation3 + $0x128] sm:$0xff] %vm508, 0.0
        %548 = vst.msk [vmem:[#allocation3 + $0x130] sm:$0x3] %vm511, 0.0
        %549 = vst.msk [vmem:[#allocation3 + $0x138] sm:$0xff] %vm508, 0.0
        %550 = vst.msk [vmem:[#allocation3 + $0x140] sm:$0xff] %vm508, 0.0
        %551 = vst.msk [vmem:[#allocation3 + $0x148] sm:$0x3] %vm511, 0.0
        %552 = vst.msk [vmem:[#allocation3 + $0x150] sm:$0xff] %vm508, 0.0
        %553 = vst.msk [vmem:[#allocation3 + $0x158] sm:$0xff] %vm508, 0.0
        %554 = vst.msk [vmem:[#allocation3 + $0x160] sm:$0x3] %vm511, 0.0
        %555 = vst.msk [vmem:[#allocation3 + $0x168] sm:$0xff] %vm508, 0.0
        %556 = vst.msk [vmem:[#allocation3 + $0x170] sm:$0xff] %vm508, 0.0
        %557 = vst.msk [vmem:[#allocation3 + $0x178] sm:$0x3] %vm511, 0.0
        %558 = vst.msk [vmem:[#allocation3 + $0x180] sm:$0xff] %vm508, 0.0
        %559 = vst.msk [vmem:[#allocation3 + $0x188] sm:$0xff] %vm508, 0.0
        %560 = vst.msk [vmem:[#allocation3 + $0x190] sm:$0x3] %vm511, 0.0
        %561 = vst.msk [vmem:[#allocation3 + $0x198] sm:$0xff] %vm508, 0.0
        %562 = vst.msk [vmem:[#allocation3 + $0x1a0] sm:$0xff] %vm508, 0.0
        %563 = vst.msk [vmem:[#allocation3 + $0x1a8] sm:$0x3] %vm511, 0.0
        %564 = vst.msk [vmem:[#allocation4] sm:$0xff] %vm508, 0.0
        %565 = vst.msk [vmem:[#allocation4 + $0x8] sm:$0xff] %vm508, 0.0
        %566 = vst.msk [vmem:[#allocation4 + $0x10] sm:$0x3] %vm511, 0.0
        %567 = vst.msk [vmem:[#allocation4 + $0x18] sm:$0xff] %vm508, 0.0
        %568 = vst.msk [vmem:[#allocation4 + $0x20] sm:$0xff] %vm508, 0.0
        %569 = vst.msk [vmem:[#allocation4 + $0x28] sm:$0x3] %vm511, 0.0
        %570 = vst.msk [vmem:[#allocation4 + $0x30] sm:$0xff] %vm508, 0.0
        %571 = vst.msk [vmem:[#allocation4 + $0x38] sm:$0xff] %vm508, 0.0
        %572 = vst.msk [vmem:[#allocation4 + $0x40] sm:$0x3] %vm511, 0.0
        %573 = vst.msk [vmem:[#allocation4 + $0x48] sm:$0xff] %vm508, 0.0
        %574 = vst.msk [vmem:[#allocation4 + $0x50] sm:$0xff] %vm508, 0.0
        %575 = vst.msk [vmem:[#allocation4 + $0x58] sm:$0x3] %vm511, 0.0
        %576 = vst.msk [vmem:[#allocation4 + $0x60] sm:$0xff] %vm508, 0.0
        %577 = vst.msk [vmem:[#allocation4 + $0x68] sm:$0xff] %vm508, 0.0
        %578 = vst.msk [vmem:[#allocation4 + $0x70] sm:$0x3] %vm511, 0.0
        %579 = vst.msk [vmem:[#allocation4 + $0x78] sm:$0xff] %vm508, 0.0
        %580 = vst.msk [vmem:[#allocation4 + $0x80] sm:$0xff] %vm508, 0.0
        %581 = vst.msk [vmem:[#allocation4 + $0x88] sm:$0x3] %vm511, 0.0
        %582 = vst.msk [vmem:[#allocation4 + $0x90] sm:$0xff] %vm508, 0.0
        %583 = vst.msk [vmem:[#allocation4 + $0x98] sm:$0xff] %vm508, 0.0
        %584 = vst.msk [vmem:[#allocation4 + $0xa0] sm:$0x3] %vm511, 0.0
        %585 = vst.msk [vmem:[#allocation4 + $0xa8] sm:$0xff] %vm508, 0.0
        %586 = vst.msk [vmem:[#allocation4 + $0xb0] sm:$0xff] %vm508, 0.0
        %587 = vst.msk [vmem:[#allocation4 + $0xb8] sm:$0x3] %vm511, 0.0
        %588 = vst.msk [vmem:[#allocation4 + $0xc0] sm:$0xff] %vm508, 0.0
        %589 = vst.msk [vmem:[#allocation4 + $0xc8] sm:$0xff] %vm508, 0.0
        %590 = vst.msk [vmem:[#allocation4 + $0xd0] sm:$0x3] %vm511, 0.0
        %591 = vst.msk [vmem:[#allocation4 + $0xd8] sm:$0xff] %vm508, 0.0
        %592 = vst.msk [vmem:[#allocation4 + $0xe0] sm:$0xff] %vm508, 0.0
        %593 = vst.msk [vmem:[#allocation4 + $0xe8] sm:$0x3] %vm511, 0.0
        %594 = vst.msk [vmem:[#allocation4 + $0xf0] sm:$0xff] %vm508, 0.0
        %595 = vst.msk [vmem:[#allocation4 + $0xf8] sm:$0xff] %vm508, 0.0
        %596 = vst.msk [vmem:[#allocation4 + $0x100] sm:$0x3] %vm511, 0.0
        %597 = vst.msk [vmem:[#allocation4 + $0x108] sm:$0xff] %vm508, 0.0
        %598 = vst.msk [vmem:[#allocation4 + $0x110] sm:$0xff] %vm508, 0.0
        %599 = vst.msk [vmem:[#allocation4 + $0x118] sm:$0x3] %vm511, 0.0
        %600 = vst.msk [vmem:[#allocation4 + $0x120] sm:$0xff] %vm508, 0.0
        %601 = vst.msk [vmem:[#allocation4 + $0x128] sm:$0xff] %vm508, 0.0
        %602 = vst.msk [vmem:[#allocation4 + $0x130] sm:$0x3] %vm511, 0.0
        %603 = vst.msk [vmem:[#allocation4 + $0x138] sm:$0xff] %vm508, 0.0
        %604 = vst.msk [vmem:[#allocation4 + $0x140] sm:$0xff] %vm508, 0.0
        %605 = vst.msk [vmem:[#allocation4 + $0x148] sm:$0x3] %vm511, 0.0
        %606 = vst.msk [vmem:[#allocation4 + $0x150] sm:$0xff] %vm508, 0.0
        %607 = vst.msk [vmem:[#allocation4 + $0x158] sm:$0xff] %vm508, 0.0
        %608 = vst.msk [vmem:[#allocation4 + $0x160] sm:$0x3] %vm511, 0.0
        %609 = vst.msk [vmem:[#allocation4 + $0x168] sm:$0xff] %vm508, 0.0
        %610 = vst.msk [vmem:[#allocation4 + $0x170] sm:$0xff] %vm508, 0.0
        %611 = vst.msk [vmem:[#allocation4 + $0x178] sm:$0x3] %vm511, 0.0
        %612 = vst.msk [vmem:[#allocation4 + $0x180] sm:$0xff] %vm508, 0.0
        %613 = vst.msk [vmem:[#allocation4 + $0x188] sm:$0xff] %vm508, 0.0
        %614 = vst.msk [vmem:[#allocation4 + $0x190] sm:$0x3] %vm511, 0.0
        %615 = vst.msk [vmem:[#allocation4 + $0x198] sm:$0xff] %vm508, 0.0
        %616 = vst.msk [vmem:[#allocation4 + $0x1a0] sm:$0xff] %vm508, 0.0
        %617 = vst.msk [vmem:[#allocation4 + $0x1a8] sm:$0x3] %vm511, 0.0
        %618 = vst [vmem:[#allocation5] sm:$0xff] 0.0
        %619 = vst [vmem:[#allocation5 + $0x8] sm:$0xff] 0.0
        %620 = vst [vmem:[#allocation5 + $0x10] sm:$0x3] 0.0
        %621 = vst [vmem:[#allocation5 + $0x18] sm:$0xff] 0.0
        %622 = vst [vmem:[#allocation5 + $0x20] sm:$0xff] 0.0
        %623 = vst [vmem:[#allocation5 + $0x28] sm:$0x3] 0.0
        %624 = vst [vmem:[#allocation5 + $0x30] sm:$0xff] 0.0
        %625 = vst [vmem:[#allocation5 + $0x38] sm:$0xff] 0.0
        %626 = vst [vmem:[#allocation5 + $0x40] sm:$0x3] 0.0
        %627 = vst [vmem:[#allocation5 + $0x48] sm:$0xff] 0.0
        %628 = vst [vmem:[#allocation5 + $0x50] sm:$0xff] 0.0
        %629 = vst [vmem:[#allocation5 + $0x58] sm:$0x3] 0.0
        %630 = vst [vmem:[#allocation5 + $0x60] sm:$0xff] 0.0
        %631 = vst [vmem:[#allocation5 + $0x68] sm:$0xff] 0.0
        %632 = vst [vmem:[#allocation5 + $0x70] sm:$0x3] 0.0
        %633 = vst [vmem:[#allocation5 + $0x78] sm:$0xff] 0.0
        %634 = vst [vmem:[#allocation5 + $0x80] sm:$0xff] 0.0
        %635 = vst [vmem:[#allocation5 + $0x88] sm:$0x3] 0.0
        %636 = vst [vmem:[#allocation5 + $0x90] sm:$0xff] 0.0
        %637 = vst [vmem:[#allocation5 + $0x98] sm:$0xff] 0.0
        %638 = vst [vmem:[#allocation5 + $0xa0] sm:$0x3] 0.0
        %639 = vst [vmem:[#allocation5 + $0xa8] sm:$0xff] 0.0
        %640 = vst [vmem:[#allocation5 + $0xb0] sm:$0xff] 0.0
        %641 = vst [vmem:[#allocation5 + $0xb8] sm:$0x3] 0.0
        %642 = vst [vmem:[#allocation5 + $0xc0] sm:$0xff] 0.0
        %643 = vst [vmem:[#allocation5 + $0xc8] sm:$0xff] 0.0
        %644 = vst [vmem:[#allocation5 + $0xd0] sm:$0x3] 0.0
        %645 = vst [vmem:[#allocation5 + $0xd8] sm:$0xff] 0.0
        %646 = vst [vmem:[#allocation5 + $0xe0] sm:$0xff] 0.0
        %647 = vst [vmem:[#allocation5 + $0xe8] sm:$0x3] 0.0
        %648 = vst [vmem:[#allocation5 + $0xf0] sm:$0xff] 0.0
        %649 = vst [vmem:[#allocation5 + $0xf8] sm:$0xff] 0.0
        %650 = vst [vmem:[#allocation5 + $0x100] sm:$0x3] 0.0
        %651 = vst [vmem:[#allocation5 + $0x108] sm:$0xff] 0.0
        %652 = vst [vmem:[#allocation5 + $0x110] sm:$0xff] 0.0
        %653 = vst [vmem:[#allocation5 + $0x118] sm:$0x3] 0.0
        %654 = vst [vmem:[#allocation5 + $0x120] sm:$0xff] 0.0
        %655 = vst [vmem:[#allocation5 + $0x128] sm:$0xff] 0.0
        %656 = vst [vmem:[#allocation5 + $0x130] sm:$0x3] 0.0
        %657 = vst [vmem:[#allocation5 + $0x138] sm:$0xff] 0.0
        %658 = vst [vmem:[#allocation5 + $0x140] sm:$0xff] 0.0
        %659 = vst [vmem:[#allocation5 + $0x148] sm:$0x3] 0.0
        %660 = vst [vmem:[#allocation5 + $0x150] sm:$0xff] 0.0
        %661 = vst [vmem:[#allocation5 + $0x158] sm:$0xff] 0.0
        %662 = vst [vmem:[#allocation5 + $0x160] sm:$0x3] 0.0
        %663 = vst [vmem:[#allocation5 + $0x168] sm:$0xff] 0.0
        %664 = vst [vmem:[#allocation5 + $0x170] sm:$0xff] 0.0
        %665 = vst [vmem:[#allocation5 + $0x178] sm:$0x3] 0.0
        %666 = vst [vmem:[#allocation5 + $0x180] sm:$0xff] 0.0
        %667 = vst [vmem:[#allocation5 + $0x188] sm:$0xff] 0.0
        %668 = vst [vmem:[#allocation5 + $0x190] sm:$0x3] 0.0
        %669 = vst [vmem:[#allocation5 + $0x198] sm:$0xff] 0.0
        %670 = vst [vmem:[#allocation5 + $0x1a0] sm:$0xff] 0.0
        %671 = vst [vmem:[#allocation5 + $0x1a8] sm:$0x3] 0.0
        %v672 = vld [vmem:[%s450] sm:$0xff]
        %v673 = vld [vmem:[%s450 + $0x8] sm:$0xff]
        %v674 = vld [vmem:[%s450 + $0x10] sm:$0xff]
        %v675 = vld [vmem:[%s450 + $0x18] sm:$0xff]
        %v676 = vld [vmem:[%s450 + $0x20] sm:$0xff]
        %v677 = vld [vmem:[%s450 + $0x28] sm:$0xff]
        %v678 = vld [vmem:[%s450 + $0x30] sm:$0xff]
        %v679 = vld [vmem:[%s450 + $0x38] sm:$0xff]
        %v680 = vld [vmem:[%s450 + $0x40] sm:$0xff]
        %v681 = vld [vmem:[%s450 + $0x48] sm:$0xff]
        %v682 = vld [vmem:[%s450 + $0x50] sm:$0xff]
        %v683 = vld [vmem:[%s450 + $0x58] sm:$0xff]
        %v684 = vld [vmem:[%s450 + $0x60] sm:$0xff]
        %v685 = vld [vmem:[%s450 + $0x68] sm:$0xff]
        %v686 = vld [vmem:[%s450 + $0x70] sm:$0xff]
        %v687 = vld [vmem:[%s450 + $0x78] sm:$0xff]
        %v688 = vld [vmem:[%s450 + $0x80] sm:$0xff]
        %v689 = vld [vmem:[%s450 + $0x88] sm:$0xff]
        %v690 = vld [vmem:[%s450 + $0x90] sm:$0xff]
        %v691 = vld [vmem:[%s450 + $0x98] sm:$0xff]
        %v692 = vld [vmem:[%s450 + $0xa0] sm:$0xff]
        %v693 = vld [vmem:[%s450 + $0xa8] sm:$0xff]
        %v694 = vld [vmem:[%s450 + $0xb0] sm:$0xff]
        %v695 = vld [vmem:[%s450 + $0xb8] sm:$0xff]
        %v696 = vld [vmem:[%s450 + $0xc0] sm:$0xff]
        %v697 = vld [vmem:[%s450 + $0xc8] sm:$0xff]
        %v698 = vld [vmem:[%s450 + $0xd0] sm:$0xff]
        %v699 = vld [vmem:[%s450 + $0xd8] sm:$0xff]
        %v700 = vld [vmem:[%s450 + $0xe0] sm:$0xff]
        %v701 = vld [vmem:[%s450 + $0xe8] sm:$0xff]
        %v702 = vld [vmem:[%s450 + $0xf0] sm:$0xff]
        %v703 = vld [vmem:[%s450 + $0xf8] sm:$0xff]
        %s704 = scalar_lea.vmem [#allocation2], 24
        %705 = vst.msk [vmem:[%s704 + $0x1] sm:$0xff] %vm452, %v672
        %706 = vst.msk [vmem:[%s704 + $0x9] sm:$0xff] %vm452, %v673
        %707 = vst.msk [vmem:[%s704 + $0x19] sm:$0xff] %vm452, %v674
        %708 = vst.msk [vmem:[%s704 + $0x21] sm:$0xff] %vm452, %v675
        %709 = vst.msk [vmem:[%s704 + $0x31] sm:$0xff] %vm452, %v676
        %710 = vst.msk [vmem:[%s704 + $0x39] sm:$0xff] %vm452, %v677
        %711 = vst.msk [vmem:[%s704 + $0x49] sm:$0xff] %vm452, %v678
        %712 = vst.msk [vmem:[%s704 + $0x51] sm:$0xff] %vm452, %v679
        %713 = vst.msk [vmem:[%s704 + $0x61] sm:$0xff] %vm452, %v680
        %714 = vst.msk [vmem:[%s704 + $0x69] sm:$0xff] %vm452, %v681
        %715 = vst.msk [vmem:[%s704 + $0x79] sm:$0xff] %vm452, %v682
        %716 = vst.msk [vmem:[%s704 + $0x81] sm:$0xff] %vm452, %v683
        %717 = vst.msk [vmem:[%s704 + $0x91] sm:$0xff] %vm452, %v684
        %718 = vst.msk [vmem:[%s704 + $0x99] sm:$0xff] %vm452, %v685
        %719 = vst.msk [vmem:[%s704 + $0xa9] sm:$0xff] %vm452, %v686
        %720 = vst.msk [vmem:[%s704 + $0xb1] sm:$0xff] %vm452, %v687
        %721 = vst.msk [vmem:[%s704 + $0xc1] sm:$0xff] %vm452, %v688
        %722 = vst.msk [vmem:[%s704 + $0xc9] sm:$0xff] %vm452, %v689
        %723 = vst.msk [vmem:[%s704 + $0xd9] sm:$0xff] %vm452, %v690
        %724 = vst.msk [vmem:[%s704 + $0xe1] sm:$0xff] %vm452, %v691
        %725 = vst.msk [vmem:[%s704 + $0xf1] sm:$0xff] %vm452, %v692
        %726 = vst.msk [vmem:[%s704 + $0xf9] sm:$0xff] %vm452, %v693
        %727 = vst.msk [vmem:[%s704 + $0x109] sm:$0xff] %vm452, %v694
        %728 = vst.msk [vmem:[%s704 + $0x111] sm:$0xff] %vm452, %v695
        %729 = vst.msk [vmem:[%s704 + $0x121] sm:$0xff] %vm452, %v696
        %730 = vst.msk [vmem:[%s704 + $0x129] sm:$0xff] %vm452, %v697
        %731 = vst.msk [vmem:[%s704 + $0x139] sm:$0xff] %vm452, %v698
        %732 = vst.msk [vmem:[%s704 + $0x141] sm:$0xff] %vm452, %v699
        %733 = vst.msk [vmem:[%s704 + $0x151] sm:$0xff] %vm452, %v700
        %734 = vst.msk [vmem:[%s704 + $0x159] sm:$0xff] %vm452, %v701
        %735 = vst.msk [vmem:[%s704 + $0x169] sm:$0xff] %vm452, %v702
        %736 = vst.msk [vmem:[%s704 + $0x171] sm:$0xff] %vm452, %v703
        %v737 = vld [vmem:[#allocation2] sm:$0xff]
        %v738 = vld [vmem:[#allocation2 + $0x8] sm:$0xff]
        %v739 = vld [vmem:[#allocation2 + $0x10] sm:$0x3]
        %v740 = vld [vmem:[#allocation2 + $0x18] sm:$0xff]
        %v741 = vld [vmem:[#allocation2 + $0x20] sm:$0xff]
        %v742 = vld [vmem:[#allocation2 + $0x28] sm:$0x3]
        %v743 = vld [vmem:[#allocation2 + $0x30] sm:$0xff]
        %v744 = vld [vmem:[#allocation2 + $0x38] sm:$0xff]
        %v745 = vld [vmem:[#allocation2 + $0x40] sm:$0x3]
        %v746 = vld [vmem:[#allocation2 + $0x48] sm:$0xff]
        %v747 = vld [vmem:[#allocation2 + $0x50] sm:$0xff]
        %v748 = vld [vmem:[#allocation2 + $0x58] sm:$0x3]
        %v749 = vld [vmem:[#allocation2 + $0x60] sm:$0xff]
        %v750 = vld [vmem:[#allocation2 + $0x68] sm:$0xff]
        %v751 = vld [vmem:[#allocation2 + $0x70] sm:$0x3]
        %v752 = vld [vmem:[#allocation2 + $0x78] sm:$0xff]
        %v753 = vld [vmem:[#allocation2 + $0x80] sm:$0xff]
        %v754 = vld [vmem:[#allocation2 + $0x88] sm:$0x3]
        %v755 = vld [vmem:[#allocation2 + $0x90] sm:$0xff]
        %v756 = vld [vmem:[#allocation2 + $0x98] sm:$0xff]
        %v757 = vld [vmem:[#allocation2 + $0xa0] sm:$0x3]
        %v758 = vld [vmem:[#allocation2 + $0xa8] sm:$0xff]
        %v759 = vld [vmem:[#allocation2 + $0xb0] sm:$0xff]
        %v760 = vld [vmem:[#allocation2 + $0xb8] sm:$0x3]
        %v761 = vld [vmem:[#allocation2 + $0xc0] sm:$0xff]
        %v762 = vld [vmem:[#allocation2 + $0xc8] sm:$0xff]
        %v763 = vld [vmem:[#allocation2 + $0xd0] sm:$0x3]
        %v764 = vld [vmem:[#allocation2 + $0xd8] sm:$0xff]
        %v765 = vld [vmem:[#allocation2 + $0xe0] sm:$0xff]
        %v766 = vld [vmem:[#allocation2 + $0xe8] sm:$0x3]
        %v767 = vld [vmem:[#allocation2 + $0xf0] sm:$0xff]
        %v768 = vld [vmem:[#allocation2 + $0xf8] sm:$0xff]
        %v769 = vld [vmem:[#allocation2 + $0x100] sm:$0x3]
        %v770 = vld [vmem:[#allocation2 + $0x108] sm:$0xff]
        %v771 = vld [vmem:[#allocation2 + $0x110] sm:$0xff]
        %v772 = vld [vmem:[#allocation2 + $0x118] sm:$0x3]
        %v773 = vld [vmem:[#allocation2 + $0x120] sm:$0xff]
        %v774 = vld [vmem:[#allocation2 + $0x128] sm:$0xff]
        %v775 = vld [vmem:[#allocation2 + $0x130] sm:$0x3]
        %v776 = vld [vmem:[#allocation2 + $0x138] sm:$0xff]
        %v777 = vld [vmem:[#allocation2 + $0x140] sm:$0xff]
        %v778 = vld [vmem:[#allocation2 + $0x148] sm:$0x3]
        %v779 = vld [vmem:[#allocation2 + $0x150] sm:$0xff]
        %v780 = vld [vmem:[#allocation2 + $0x158] sm:$0xff]
        %v781 = vld [vmem:[#allocation2 + $0x160] sm:$0x3]
        %v782 = vld [vmem:[#allocation2 + $0x168] sm:$0xff]
        %v783 = vld [vmem:[#allocation2 + $0x170] sm:$0xff]
        %v784 = vld [vmem:[#allocation2 + $0x178] sm:$0x3]
        %v785 = vld [vmem:[#allocation2 + $0x180] sm:$0xff]
        %v786 = vld [vmem:[#allocation2 + $0x188] sm:$0xff]
        %v787 = vld [vmem:[#allocation2 + $0x190] sm:$0x3]
        %v788 = vld [vmem:[#allocation2 + $0x198] sm:$0xff]
        %v789 = vld [vmem:[#allocation2 + $0x1a0] sm:$0xff]
        %v790 = vld [vmem:[#allocation2 + $0x1a8] sm:$0x3]
        %v791 = vld [vmem:[%s3] sm:$0x1]
        %v793 = vlaneseq
        %v794 = vshrl.u32 %v793, 7
        %v795 = vsub.s32 0, %v794
        %v796 = vrot.slane %v791, %v795
        %v798 = vld [vmem:[%s2] sm:$0xf]
        %v800 = vsel %vm452, %v737, 0
        %v803 = vsel %vm452, %v738, 0
        %v806 = vsel %vm452, %v740, 0
        %v809 = vsel %vm452, %v741, 0
        %v812 = vsel %vm452, %v743, 0
        %v815 = vsel %vm452, %v744, 0
        %v818 = vsel %vm452, %v746, 0
        %v821 = vsel %vm452, %v747, 0
        %v824 = vsel %vm452, %v749, 0
        %v827 = vsel %vm452, %v750, 0
        %v830 = vsel %vm452, %v752, 0
        %v833 = vsel %vm452, %v753, 0
        %v836 = vsel %vm452, %v755, 0
        %v839 = vsel %vm452, %v756, 0
        %v842 = vsel %vm452, %v758, 0
        %v845 = vsel %vm452, %v759, 0
        %v848 = vsel %vm452, %v761, 0
        %v851 = vsel %vm452, %v762, 0
        %v854 = vsel %vm452, %v764, 0
        %v857 = vsel %vm452, %v765, 0
        %v860 = vsel %vm452, %v767, 0
        %v863 = vsel %vm452, %v768, 0
        %v866 = vsel %vm452, %v770, 0
        %v869 = vsel %vm452, %v771, 0
        %v872 = vsel %vm452, %v773, 0
        %v875 = vsel %vm452, %v774, 0
        %v878 = vsel %vm452, %v776, 0
        %v881 = vsel %vm452, %v777, 0
        %v884 = vsel %vm452, %v779, 0
        %v887 = vsel %vm452, %v780, 0
        %v890 = vsel %vm452, %v782, 0
        %v893 = vsel %vm452, %v783, 0
        %vm895 = vcmask 1043456
        %v897 = vsel %vm895, %v798, 0
        %899 = vmatprep.subr.mxu0 0.0
        %900 = vmatpush1.msra.mxu0 %v897
        %901 = vmatprep.subr.mxu0 0.0
        %902 = vmatpush1.msra.mxu0 0.0
        %903 = vmatprep.subr.mxu0 0.0
        %904 = vmatpush1.msra.mxu0 0.0
        %905 = vmatprep.subr.mxu0 0.0
        %906 = vmatpush1.msra.mxu0 0.0
        %907 = vmatprep.subr.mxu0 0.0
        %908 = vmatpush1.msra.mxu0 0.0
        %909 = vmatprep.subr.mxu0 0.0
        %910 = vmatpush1.msra.mxu0 0.0
        %911 = vmatprep.subr.mxu0 0.0
        %912 = vmatpush1.msra.mxu0 0.0
        %913 = vmatprep.subr.mxu0 0.0
        %914 = vmatpush1.msra.mxu0 0.0
        %915 = vmatprep.subr.mxu0 0.0
        %916 = vmatpush1.msra.mxu0 0.0
        %917 = vmatprep.subr.mxu0 0.0
        %918 = vmatpush1.msra.mxu0 0.0
        %919 = vmatprep.subr.mxu0 0.0
        %920 = vmatpush1.msra.mxu0 0.0
        %921 = vmatprep.subr.mxu0 0.0
        %922 = vmatpush1.msra.mxu0 0.0
        %923 = vmatprep.subr.mxu0 0.0
        %924 = vmatpush1.msra.mxu0 0.0
        %925 = vmatprep.subr.mxu0 0.0
        %926 = vmatpush1.msra.mxu0 0.0
        %927 = vmatprep.subr.mxu0 0.0
        %928 = vmatpush1.msra.mxu0 0.0
        %929 = vmatprep.subr.mxu0 0.0
        %930 = vmatpush1.msra.mxu0 0.0
        %931 = vmatprep.subr.mxu0 0.0
        %932 = vmatpush1.msra.mxu0 0.0
        %933 = vmatprep.subr.mxu0 0.0
        %934 = vmatpush1.msra.mxu0 0.0
        %935 = vmatprep.subr.mxu0 0.0
        %936 = vmatpush1.msra.mxu0 0.0
        %937 = vmatprep.subr.mxu0 0.0
        %938 = vmatpush1.msra.mxu0 0.0
        %939 = vmatprep.subr.mxu0 0.0
        %940 = vmatpush1.msra.mxu0 0.0
        %941 = vmatprep.subr.mxu0 0.0
        %942 = vmatpush1.msra.mxu0 0.0
        %943 = vmatprep.subr.mxu0 0.0
        %944 = vmatpush1.msra.mxu0 0.0
        %945 = vmatprep.subr.mxu0 0.0
        %946 = vmatpush1.msra.mxu0 0.0
        %947 = vmatprep.subr.mxu0 0.0
        %948 = vmatpush1.msra.mxu0 0.0
        %949 = vmatprep.subr.mxu0 0.0
        %950 = vmatpush1.msra.mxu0 0.0
        %951 = vmatprep.subr.mxu0 0.0
        %952 = vmatpush1.msra.mxu0 0.0
        %953 = vmatprep.subr.mxu0 0.0
        %954 = vmatpush1.msra.mxu0 0.0
        %955 = vmatprep.subr.mxu0 0.0
        %956 = vmatpush1.msra.mxu0 0.0
        %957 = vmatprep.subr.mxu0 0.0
        %958 = vmatpush1.msra.mxu0 0.0
        %959 = vmatprep.subr.mxu0 0.0
        %960 = vmatpush1.msra.mxu0 0.0
        %961 = vmatprep.subr.mxu0 0.0
        %962 = vmatpush1.msra.mxu0 0.0
        %963 = vmatprep.mubr.f32.mxu0 0.0
        %964 = vmatmul.mubr.f32.gmra.mrb[0].mxu0 %v800
        %v965 = vpop.f32.mrb[0].mxu0
        %v966 = vadd.f32 0.0, %v965
        %v967 = vpop.f32.mrb[0].mxu0
        %968 = vmatprep.mubr.f32.mxu0 0.0
        %969 = vmatmul.mubr.f32.gmra.mrb[0].mxu0 %v803
        %v970 = vpop.f32.mrb[0].mxu0
        %v971 = vadd.f32 0.0, %v970
        %v972 = vpop.f32.mrb[0].mxu0
        %973 = vmatprep.mubr.f32.mxu0 0.0
        %974 = vmatmul.mubr.f32.gmra.mrb[0].mxu0 %v806
        %v975 = vpop.f32.mrb[0].mxu0
        %v976 = vadd.f32 0.0, %v975
        %v977 = vpop.f32.mrb[0].mxu0
        %978 = vmatprep.mubr.f32.mxu0 0.0
        %979 = vmatmul.mubr.f32.gmra.mrb[0].mxu0 %v809
        %v980 = vpop.f32.mrb[0].mxu0
        %v981 = vadd.f32 0.0, %v980
        %v982 = vpop.f32.mrb[0].mxu0
        %983 = vmatprep.mubr.f32.mxu0 0.0
        %984 = vmatmul.mubr.f32.gmra.mrb[0].mxu0 %v812
        %v985 = vpop.f32.mrb[0].mxu0
        %v986 = vadd.f32 0.0, %v985
        %v987 = vpop.f32.mrb[0].mxu0
        %988 = vmatprep.mubr.f32.mxu0 0.0
        %989 = vmatmul.mubr.f32.gmra.mrb[0].mxu0 %v815
        %v990 = vpop.f32.mrb[0].mxu0
        %v991 = vadd.f32 0.0, %v990
        %v992 = vpop.f32.mrb[0].mxu0
        %993 = vmatprep.mubr.f32.mxu0 0.0
        %994 = vmatmul.mubr.f32.gmra.mrb[0].mxu0 %v818
        %v995 = vpop.f32.mrb[0].mxu0
        %v996 = vadd.f32 0.0, %v995
        %v997 = vpop.f32.mrb[0].mxu0
        %998 = vmatprep.mubr.f32.mxu0 0.0
        %999 = vmatmul.mubr.f32.gmra.mrb[0].mxu0 %v821
        %v1000 = vpop.f32.mrb[0].mxu0
        %v1001 = vadd.f32 0.0, %v1000
        %v1002 = vpop.f32.mrb[0].mxu0
        %1003 = vmatprep.mubr.f32.mxu0 0.0
        %1004 = vmatmul.mubr.f32.gmra.mrb[0].mxu0 %v824
        %v1005 = vpop.f32.mrb[0].mxu0
        %v1006 = vadd.f32 0.0, %v1005
        %v1007 = vpop.f32.mrb[0].mxu0
        %1008 = vmatprep.mubr.f32.mxu0 0.0
        %1009 = vmatmul.mubr.f32.gmra.mrb[0].mxu0 %v827
        %v1010 = vpop.f32.mrb[0].mxu0
        %v1011 = vadd.f32 0.0, %v1010
        %v1012 = vpop.f32.mrb[0].mxu0
        %1013 = vmatprep.mubr.f32.mxu0 0.0
        %1014 = vmatmul.mubr.f32.gmra.mrb[0].mxu0 %v830
        %v1015 = vpop.f32.mrb[0].mxu0
        %v1016 = vadd.f32 0.0, %v1015
        %v1017 = vpop.f32.mrb[0].mxu0
        %1018 = vmatprep.mubr.f32.mxu0 0.0
        %1019 = vmatmul.mubr.f32.gmra.mrb[0].mxu0 %v833
        %v1020 = vpop.f32.mrb[0].mxu0
        %v1021 = vadd.f32 0.0, %v1020
        %v1022 = vpop.f32.mrb[0].mxu0
        %1023 = vmatprep.mubr.f32.mxu0 0.0
        %1024 = vmatmul.mubr.f32.gmra.mrb[0].mxu0 %v836
        %v1025 = vpop.f32.mrb[0].mxu0
        %v1026 = vadd.f32 0.0, %v1025
        %v1027 = vpop.f32.mrb[0].mxu0
        %1028 = vmatprep.mubr.f32.mxu0 0.0
        %1029 = vmatmul.mubr.f32.gmra.mrb[0].mxu0 %v839
        %v1030 = vpop.f32.mrb[0].mxu0
        %v1031 = vadd.f32 0.0, %v1030
        %v1032 = vpop.f32.mrb[0].mxu0
        %1033 = vmatprep.mubr.f32.mxu0 0.0
        %1034 = vmatmul.mubr.f32.gmra.mrb[0].mxu0 %v842
        %v1035 = vpop.f32.mrb[0].mxu0
        %v1036 = vadd.f32 0.0, %v1035
        %v1037 = vpop.f32.mrb[0].mxu0
        %1038 = vmatprep.mubr.f32.mxu0 0.0
        %1039 = vmatmul.mubr.f32.gmra.mrb[0].mxu0 %v845
        %v1040 = vpop.f32.mrb[0].mxu0
        %v1041 = vadd.f32 0.0, %v1040
        %v1042 = vpop.f32.mrb[0].mxu0
        %1043 = vmatprep.mubr.f32.mxu0 0.0
        %1044 = vmatmul.mubr.f32.gmra.mrb[0].mxu0 %v848
        %v1045 = vpop.f32.mrb[0].mxu0
        %v1046 = vadd.f32 0.0, %v1045
        %v1047 = vpop.f32.mrb[0].mxu0
        %1048 = vmatprep.mubr.f32.mxu0 0.0
        %1049 = vmatmul.mubr.f32.gmra.mrb[0].mxu0 %v851
        %v1050 = vpop.f32.mrb[0].mxu0
        %v1051 = vadd.f32 0.0, %v1050
        %v1052 = vpop.f32.mrb[0].mxu0
        %1053 = vmatprep.mubr.f32.mxu0 0.0
        %1054 = vmatmul.mubr.f32.gmra.mrb[0].mxu0 %v854
        %v1055 = vpop.f32.mrb[0].mxu0
        %v1056 = vadd.f32 0.0, %v1055
        %v1057 = vpop.f32.mrb[0].mxu0
        %1058 = vmatprep.mubr.f32.mxu0 0.0
        %1059 = vmatmul.mubr.f32.gmra.mrb[0].mxu0 %v857
        %v1060 = vpop.f32.mrb[0].mxu0
        %v1061 = vadd.f32 0.0, %v1060
        %v1062 = vpop.f32.mrb[0].mxu0
        %1063 = vmatprep.mubr.f32.mxu0 0.0
        %1064 = vmatmul.mubr.f32.gmra.mrb[0].mxu0 %v860
        %v1065 = vpop.f32.mrb[0].mxu0
        %v1066 = vadd.f32 0.0, %v1065
        %v1067 = vpop.f32.mrb[0].mxu0
        %1068 = vmatprep.mubr.f32.mxu0 0.0
        %1069 = vmatmul.mubr.f32.gmra.mrb[0].mxu0 %v863
        %v1070 = vpop.f32.mrb[0].mxu0
        %v1071 = vadd.f32 0.0, %v1070
        %v1072 = vpop.f32.mrb[0].mxu0
        %1073 = vmatprep.mubr.f32.mxu0 0.0
        %1074 = vmatmul.mubr.f32.gmra.mrb[0].mxu0 %v866
        %v1075 = vpop.f32.mrb[0].mxu0
        %v1076 = vadd.f32 0.0, %v1075
        %v1077 = vpop.f32.mrb[0].mxu0
        %1078 = vmatprep.mubr.f32.mxu0 0.0
        %1079 = vmatmul.mubr.f32.gmra.mrb[0].mxu0 %v869
        %v1080 = vpop.f32.mrb[0].mxu0
        %v1081 = vadd.f32 0.0, %v1080
        %v1082 = vpop.f32.mrb[0].mxu0
        %1083 = vmatprep.mubr.f32.mxu0 0.0
        %1084 = vmatmul.mubr.f32.gmra.mrb[0].mxu0 %v872
        %v1085 = vpop.f32.mrb[0].mxu0
        %v1086 = vadd.f32 0.0, %v1085
        %v1087 = vpop.f32.mrb[0].mxu0
        %1088 = vmatprep.mubr.f32.mxu0 0.0
        %1089 = vmatmul.mubr.f32.gmra.mrb[0].mxu0 %v875
        %v1090 = vpop.f32.mrb[0].mxu0
        %v1091 = vadd.f32 0.0, %v1090
        %v1092 = vpop.f32.mrb[0].mxu0
        %1093 = vmatprep.mubr.f32.mxu0 0.0
        %1094 = vmatmul.mubr.f32.gmra.mrb[0].mxu0 %v878
        %v1095 = vpop.f32.mrb[0].mxu0
        %v1096 = vadd.f32 0.0, %v1095
        %v1097 = vpop.f32.mrb[0].mxu0
        %1098 = vmatprep.mubr.f32.mxu0 0.0
        %1099 = vmatmul.mubr.f32.gmra.mrb[0].mxu0 %v881
        %v1100 = vpop.f32.mrb[0].mxu0
        %v1101 = vadd.f32 0.0, %v1100
        %v1102 = vpop.f32.mrb[0].mxu0
        %1103 = vmatprep.mubr.f32.mxu0 0.0
        %1104 = vmatmul.mubr.f32.gmra.mrb[0].mxu0 %v884
        %v1105 = vpop.f32.mrb[0].mxu0
        %v1106 = vadd.f32 0.0, %v1105
        %v1107 = vpop.f32.mrb[0].mxu0
        %1108 = vmatprep.mubr.f32.mxu0 0.0
        %1109 = vmatmul.mubr.f32.gmra.mrb[0].mxu0 %v887
        %v1110 = vpop.f32.mrb[0].mxu0
        %v1111 = vadd.f32 0.0, %v1110
        %v1112 = vpop.f32.mrb[0].mxu0
        %1113 = vmatprep.mubr.f32.mxu0 0.0
        %1114 = vmatmul.mubr.f32.gmra.mrb[0].mxu0 %v890
        %v1115 = vpop.f32.mrb[0].mxu0
        %v1116 = vadd.f32 0.0, %v1115
        %v1117 = vpop.f32.mrb[0].mxu0
        %1118 = vmatprep.mubr.f32.mxu0 0.0
        %1119 = vmatmul.mubr.f32.gmra.mrb[0].mxu0 %v893
        %v1120 = vpop.f32.mrb[0].mxu0
        %v1121 = vadd.f32 0.0, %v1120
        %v1122 = vpop.f32.mrb[0].mxu0
        %1123 = vdwg.mxu0
        %v1124 = vadd.f32 %v796, %v966
        %v1125 = vadd.f32 %v796, %v971
        %v1126 = vadd.f32 %v796, %v976
        %v1127 = vadd.f32 %v796, %v981
        %v1128 = vadd.f32 %v796, %v986
        %v1129 = vadd.f32 %v796, %v991
        %v1130 = vadd.f32 %v796, %v996
        %v1131 = vadd.f32 %v796, %v1001
        %v1132 = vadd.f32 %v796, %v1006
        %v1133 = vadd.f32 %v796, %v1011
        %v1134 = vadd.f32 %v796, %v1016
        %v1135 = vadd.f32 %v796, %v1021
        %v1136 = vadd.f32 %v796, %v1026
        %v1137 = vadd.f32 %v796, %v1031
        %v1138 = vadd.f32 %v796, %v1036
        %v1139 = vadd.f32 %v796, %v1041
        %v1140 = vadd.f32 %v796, %v1046
        %v1141 = vadd.f32 %v796, %v1051
        %v1142 = vadd.f32 %v796, %v1056
        %v1143 = vadd.f32 %v796, %v1061
        %v1144 = vadd.f32 %v796, %v1066
        %v1145 = vadd.f32 %v796, %v1071
        %v1146 = vadd.f32 %v796, %v1076
        %v1147 = vadd.f32 %v796, %v1081
        %v1148 = vadd.f32 %v796, %v1086
        %v1149 = vadd.f32 %v796, %v1091
        %v1150 = vadd.f32 %v796, %v1096
        %v1151 = vadd.f32 %v796, %v1101
        %v1152 = vadd.f32 %v796, %v1106
        %v1153 = vadd.f32 %v796, %v1111
        %v1154 = vadd.f32 %v796, %v1116
        %v1155 = vadd.f32 %v796, %v1121
        %vm1172 = vcmask 1046528
        %v1173 = vrot.slane %v737, 1
        %v1174 = vrot.slane %v738, 1
        %v1175 = vsel %vm1172, %v1173, %v1174
        %v1176 = vrot.slane %v739, 1
        %v1177 = vsel %vm1172, %v1174, %v1176
        %v1178 = vrot.slane %v740, 1
        %v1179 = vrot.slane %v741, 1
        %v1180 = vsel %vm1172, %v1178, %v1179
        %v1181 = vrot.slane %v742, 1
        %v1182 = vsel %vm1172, %v1179, %v1181
        %v1183 = vrot.slane %v743, 1
        %v1184 = vrot.slane %v744, 1
        %v1185 = vsel %vm1172, %v1183, %v1184
        %v1186 = vrot.slane %v745, 1
        %v1187 = vsel %vm1172, %v1184, %v1186
        %v1188 = vrot.slane %v746, 1
        %v1189 = vrot.slane %v747, 1
        %v1190 = vsel %vm1172, %v1188, %v1189
        %v1191 = vrot.slane %v748, 1
        %v1192 = vsel %vm1172, %v1189, %v1191
        %v1193 = vrot.slane %v749, 1
        %v1194 = vrot.slane %v750, 1
        %v1195 = vsel %vm1172, %v1193, %v1194
        %v1196 = vrot.slane %v751, 1
        %v1197 = vsel %vm1172, %v1194, %v1196
        %v1198 = vrot.slane %v752, 1
        %v1199 = vrot.slane %v753, 1
        %v1200 = vsel %vm1172, %v1198, %v1199
        %v1201 = vrot.slane %v754, 1
        %v1202 = vsel %vm1172, %v1199, %v1201
        %v1203 = vrot.slane %v755, 1
        %v1204 = vrot.slane %v756, 1
        %v1205 = vsel %vm1172, %v1203, %v1204
        %v1206 = vrot.slane %v757, 1
        %v1207 = vsel %vm1172, %v1204, %v1206
        %v1208 = vrot.slane %v758, 1
        %v1209 = vrot.slane %v759, 1
        %v1210 = vsel %vm1172, %v1208, %v1209
        %v1211 = vrot.slane %v760, 1
        %v1212 = vsel %vm1172, %v1209, %v1211
        %v1213 = vrot.slane %v761, 1
        %v1214 = vrot.slane %v762, 1
        %v1215 = vsel %vm1172, %v1213, %v1214
        %v1216 = vrot.slane %v763, 1
        %v1217 = vsel %vm1172, %v1214, %v1216
        %v1218 = vrot.slane %v764, 1
        %v1219 = vrot.slane %v765, 1
        %v1220 = vsel %vm1172, %v1218, %v1219
        %v1221 = vrot.slane %v766, 1
        %v1222 = vsel %vm1172, %v1219, %v1221
        %v1223 = vrot.slane %v767, 1
        %v1224 = vrot.slane %v768, 1
        %v1225 = vsel %vm1172, %v1223, %v1224
        %v1226 = vrot.slane %v769, 1
        %v1227 = vsel %vm1172, %v1224, %v1226
        %v1228 = vrot.slane %v770, 1
        %v1229 = vrot.slane %v771, 1
        %v1230 = vsel %vm1172, %v1228, %v1229
        %v1231 = vrot.slane %v772, 1
        %v1232 = vsel %vm1172, %v1229, %v1231
        %v1233 = vrot.slane %v773, 1
        %v1234 = vrot.slane %v774, 1
        %v1235 = vsel %vm1172, %v1233, %v1234
        %v1236 = vrot.slane %v775, 1
        %v1237 = vsel %vm1172, %v1234, %v1236
        %v1238 = vrot.slane %v776, 1
        %v1239 = vrot.slane %v777, 1
        %v1240 = vsel %vm1172, %v1238, %v1239
        %v1241 = vrot.slane %v778, 1
        %v1242 = vsel %vm1172, %v1239, %v1241
        %v1243 = vrot.slane %v779, 1
        %v1244 = vrot.slane %v780, 1
        %v1245 = vsel %vm1172, %v1243, %v1244
        %v1246 = vrot.slane %v781, 1
        %v1247 = vsel %vm1172, %v1244, %v1246
        %v1248 = vrot.slane %v782, 1
        %v1249 = vrot.slane %v783, 1
        %v1250 = vsel %vm1172, %v1248, %v1249
        %v1251 = vrot.slane %v784, 1
        %v1252 = vsel %vm1172, %v1249, %v1251
        %s1253 = scalar_lea.vmem %s2, 4
        %v1254 = vld [vmem:[%s1253] sm:$0xf]
        %v1255 = vsel %vm452, %v1175, 0
        %v1257 = vsel %vm452, %v1177, 0
        %v1259 = vsel %vm452, %v1180, 0
        %v1261 = vsel %vm452, %v1182, 0
        %v1263 = vsel %vm452, %v1185, 0
        %v1265 = vsel %vm452, %v1187, 0
        %v1267 = vsel %vm452, %v1190, 0
        %v1269 = vsel %vm452, %v1192, 0
        %v1271 = vsel %vm452, %v1195, 0
        %v1273 = vsel %vm452, %v1197, 0
        %v1275 = vsel %vm452, %v1200, 0
        %v1277 = vsel %vm452, %v1202, 0
        %v1279 = vsel %vm452, %v1205, 0
        %v1281 = vsel %vm452, %v1207, 0
        %v1283 = vsel %vm452, %v1210, 0
        %v1285 = vsel %vm452, %v1212, 0
        %v1287 = vsel %vm452, %v1215, 0
        %v1289 = vsel %vm452, %v1217, 0
        %v1291 = vsel %vm452, %v1220, 0
        %v1293 = vsel %vm452, %v1222, 0
        %v1295 = vsel %vm452, %v1225, 0
        %v1297 = vsel %vm452, %v1227, 0
        %v1299 = vsel %vm452, %v1230, 0
        %v1301 = vsel %vm452, %v1232, 0
        %v1303 = vsel %vm452, %v1235, 0
        %v1305 = vsel %vm452, %v1237, 0
        %v1307 = vsel %vm452, %v1240, 0
        %v1309 = vsel %vm452, %v1242, 0
        %v1311 = vsel %vm452, %v1245, 0
        %v1313 = vsel %vm452, %v1247, 0
        %v1315 = vsel %vm452, %v1250, 0
        %v1317 = vsel %vm452, %v1252, 0
        %v1320 = vsel %vm895, %v1254, 0
        %1322 = vmatprep.subr.mxu0 0.0
        %1323 = vmatpush1.msra.mxu0 %v1320
        %1324 = vmatprep.subr.mxu0 0.0
        %1325 = vmatpush1.msra.mxu0 0.0
        %1326 = vmatprep.subr.mxu0 0.0
        %1327 = vmatpush1.msra.mxu0 0.0
        %1328 = vmatprep.subr.mxu0 0.0
        %1329 = vmatpush1.msra.mxu0 0.0
        %1330 = vmatprep.subr.mxu0 0.0
        %1331 = vmatpush1.msra.mxu0 0.0
        %1332 = vmatprep.subr.mxu0 0.0
        %1333 = vmatpush1.msra.mxu0 0.0
        %1334 = vmatprep.subr.mxu0 0.0
        %1335 = vmatpush1.msra.mxu0 0.0
        %1336 = vmatprep.subr.mxu0 0.0
        %1337 = vmatpush1.msra.mxu0 0.0
        %1338 = vmatprep.subr.mxu0 0.0
        %1339 = vmatpush1.msra.mxu0 0.0
        %1340 = vmatprep.subr.mxu0 0.0
        %1341 = vmatpush1.msra.mxu0 0.0
        %1342 = vmatprep.subr.mxu0 0.0
        %1343 = vmatpush1.msra.mxu0 0.0
        %1344 = vmatprep.subr.mxu0 0.0
        %1345 = vmatpush1.msra.mxu0 0.0
        %1346 = vmatprep.subr.mxu0 0.0
        %1347 = vmatpush1.msra.mxu0 0.0
        %1348 = vmatprep.subr.mxu0 0.0
        %1349 = vmatpush1.msra.mxu0 0.0
        %1350 = vmatprep.subr.mxu0 0.0
        %1351 = vmatpush1.msra.mxu0 0.0
        %1352 = vmatprep.subr.mxu0 0.0
        %1353 = vmatpush1.msra.mxu0 0.0
        %1354 = vmatprep.subr.mxu0 0.0
        %1355 = vmatpush1.msra.mxu0 0.0
        %1356 = vmatprep.subr.mxu0 0.0
        %1357 = vmatpush1.msra.mxu0 0.0
        %1358 = vmatprep.subr.mxu0 0.0
        %1359 = vmatpush1.msra.mxu0 0.0
        %1360 = vmatprep.subr.mxu0 0.0
        %1361 = vmatpush1.msra.mxu0 0.0
        %1362 = vmatprep.subr.mxu0 0.0
        %1363 = vmatpush1.msra.mxu0 0.0
        %1364 = vmatprep.subr.mxu0 0.0
        %1365 = vmatpush1.msra.mxu0 0.0
        %1366 = vmatprep.subr.mxu0 0.0
        %1367 = vmatpush1.msra.mxu0 0.0
        %1368 = vmatprep.subr.mxu0 0.0
        %1369 = vmatpush1.msra.mxu0 0.0
        %1370 = vmatprep.subr.mxu0 0.0
        %1371 = vmatpush1.msra.mxu0 0.0
        %1372 = vmatprep.subr.mxu0 0.0
        %1373 = vmatpush1.msra.mxu0 0.0
        %1374 = vmatprep.subr.mxu0 0.0
        %1375 = vmatpush1.msra.mxu0 0.0
        %1376 = vmatprep.subr.mxu0 0.0
        %1377 = vmatpush1.msra.mxu0 0.0
        %1378 = vmatprep.subr.mxu0 0.0
        %1379 = vmatpush1.msra.mxu0 0.0
        %1380 = vmatprep.subr.mxu0 0.0
        %1381 = vmatpush1.msra.mxu0 0.0
        %1382 = vmatprep.subr.mxu0 0.0
        %1383 = vmatpush1.msra.mxu0 0.0
        %1384 = vmatprep.subr.mxu0 0.0
        %1385 = vmatpush1.msra.mxu0 0.0
        %1386 = vmatprep.mubr.f32.mxu0 0.0
        %1387 = vmatmul.mubr.f32.gmra.mrb[0].mxu0 %v1255
        %v1388 = vpop.f32.mrb[0].mxu0
        %v1389 = vadd.f32 0.0, %v1388
        %v1390 = vpop.f32.mrb[0].mxu0
        %1391 = vmatprep.mubr.f32.mxu0 0.0
        %1392 = vmatmul.mubr.f32.gmra.mrb[0].mxu0 %v1257
        %v1393 = vpop.f32.mrb[0].mxu0
        %v1394 = vadd.f32 0.0, %v1393
        %v1395 = vpop.f32.mrb[0].mxu0
        %1396 = vmatprep.mubr.f32.mxu0 0.0
        %1397 = vmatmul.mubr.f32.gmra.mrb[0].mxu0 %v1259
        %v1398 = vpop.f32.mrb[0].mxu0
        %v1399 = vadd.f32 0.0, %v1398
        %v1400 = vpop.f32.mrb[0].mxu0
        %1401 = vmatprep.mubr.f32.mxu0 0.0
        %1402 = vmatmul.mubr.f32.gmra.mrb[0].mxu0 %v1261
        %v1403 = vpop.f32.mrb[0].mxu0
        %v1404 = vadd.f32 0.0, %v1403
        %v1405 = vpop.f32.mrb[0].mxu0
        %1406 = vmatprep.mubr.f32.mxu0 0.0
        %1407 = vmatmul.mubr.f32.gmra.mrb[0].mxu0 %v1263
        %v1408 = vpop.f32.mrb[0].mxu0
        %v1409 = vadd.f32 0.0, %v1408
        %v1410 = vpop.f32.mrb[0].mxu0
        %1411 = vmatprep.mubr.f32.mxu0 0.0
        %1412 = vmatmul.mubr.f32.gmra.mrb[0].mxu0 %v1265
        %v1413 = vpop.f32.mrb[0].mxu0
        %v1414 = vadd.f32 0.0, %v1413
        %v1415 = vpop.f32.mrb[0].mxu0
        %1416 = vmatprep.mubr.f32.mxu0 0.0
        %1417 = vmatmul.mubr.f32.gmra.mrb[0].mxu0 %v1267
        %v1418 = vpop.f32.mrb[0].mxu0
        %v1419 = vadd.f32 0.0, %v1418
        %v1420 = vpop.f32.mrb[0].mxu0
        %1421 = vmatprep.mubr.f32.mxu0 0.0
        %1422 = vmatmul.mubr.f32.gmra.mrb[0].mxu0 %v1269
        %v1423 = vpop.f32.mrb[0].mxu0
        %v1424 = vadd.f32 0.0, %v1423
        %v1425 = vpop.f32.mrb[0].mxu0
        %1426 = vmatprep.mubr.f32.mxu0 0.0
        %1427 = vmatmul.mubr.f32.gmra.mrb[0].mxu0 %v1271
        %v1428 = vpop.f32.mrb[0].mxu0
        %v1429 = vadd.f32 0.0, %v1428
        %v1430 = vpop.f32.mrb[0].mxu0
        %1431 = vmatprep.mubr.f32.mxu0 0.0
        %1432 = vmatmul.mubr.f32.gmra.mrb[0].mxu0 %v1273
        %v1433 = vpop.f32.mrb[0].mxu0
        %v1434 = vadd.f32 0.0, %v1433
        %v1435 = vpop.f32.mrb[0].mxu0
        %1436 = vmatprep.mubr.f32.mxu0 0.0
        %1437 = vmatmul.mubr.f32.gmra.mrb[0].mxu0 %v1275
        %v1438 = vpop.f32.mrb[0].mxu0
        %v1439 = vadd.f32 0.0, %v1438
        %v1440 = vpop.f32.mrb[0].mxu0
        %1441 = vmatprep.mubr.f32.mxu0 0.0
        %1442 = vmatmul.mubr.f32.gmra.mrb[0].mxu0 %v1277
        %v1443 = vpop.f32.mrb[0].mxu0
        %v1444 = vadd.f32 0.0, %v1443
        %v1445 = vpop.f32.mrb[0].mxu0
        %1446 = vmatprep.mubr.f32.mxu0 0.0
        %1447 = vmatmul.mubr.f32.gmra.mrb[0].mxu0 %v1279
        %v1448 = vpop.f32.mrb[0].mxu0
        %v1449 = vadd.f32 0.0, %v1448
        %v1450 = vpop.f32.mrb[0].mxu0
        %1451 = vmatprep.mubr.f32.mxu0 0.0
        %1452 = vmatmul.mubr.f32.gmra.mrb[0].mxu0 %v1281
        %v1453 = vpop.f32.mrb[0].mxu0
        %v1454 = vadd.f32 0.0, %v1453
        %v1455 = vpop.f32.mrb[0].mxu0
        %1456 = vmatprep.mubr.f32.mxu0 0.0
        %1457 = vmatmul.mubr.f32.gmra.mrb[0].mxu0 %v1283
        %v1458 = vpop.f32.mrb[0].mxu0
        %v1459 = vadd.f32 0.0, %v1458
        %v1460 = vpop.f32.mrb[0].mxu0
        %1461 = vmatprep.mubr.f32.mxu0 0.0
        %1462 = vmatmul.mubr.f32.gmra.mrb[0].mxu0 %v1285
        %v1463 = vpop.f32.mrb[0].mxu0
        %v1464 = vadd.f32 0.0, %v1463
        %v1465 = vpop.f32.mrb[0].mxu0
        %1466 = vmatprep.mubr.f32.mxu0 0.0
        %1467 = vmatmul.mubr.f32.gmra.mrb[0].mxu0 %v1287
        %v1468 = vpop.f32.mrb[0].mxu0
        %v1469 = vadd.f32 0.0, %v1468
        %v1470 = vpop.f32.mrb[0].mxu0
        %1471 = vmatprep.mubr.f32.mxu0 0.0
        %1472 = vmatmul.mubr.f32.gmra.mrb[0].mxu0 %v1289
        %v1473 = vpop.f32.mrb[0].mxu0
        %v1474 = vadd.f32 0.0, %v1473
        %v1475 = vpop.f32.mrb[0].mxu0
        %1476 = vmatprep.mubr.f32.mxu0 0.0
        %1477 = vmatmul.mubr.f32.gmra.mrb[0].mxu0 %v1291
        %v1478 = vpop.f32.mrb[0].mxu0
        %v1479 = vadd.f32 0.0, %v1478
        %v1480 = vpop.f32.mrb[0].mxu0
        %1481 = vmatprep.mubr.f32.mxu0 0.0
        %1482 = vmatmul.mubr.f32.gmra.mrb[0].mxu0 %v1293
        %v1483 = vpop.f32.mrb[0].mxu0
        %v1484 = vadd.f32 0.0, %v1483
        %v1485 = vpop.f32.mrb[0].mxu0
        %1486 = vmatprep.mubr.f32.mxu0 0.0
        %1487 = vmatmul.mubr.f32.gmra.mrb[0].mxu0 %v1295
        %v1488 = vpop.f32.mrb[0].mxu0
        %v1489 = vadd.f32 0.0, %v1488
        %v1490 = vpop.f32.mrb[0].mxu0
        %1491 = vmatprep.mubr.f32.mxu0 0.0
        %1492 = vmatmul.mubr.f32.gmra.mrb[0].mxu0 %v1297
        %v1493 = vpop.f32.mrb[0].mxu0
        %v1494 = vadd.f32 0.0, %v1493
        %v1495 = vpop.f32.mrb[0].mxu0
        %1496 = vmatprep.mubr.f32.mxu0 0.0
        %1497 = vmatmul.mubr.f32.gmra.mrb[0].mxu0 %v1299
        %v1498 = vpop.f32.mrb[0].mxu0
        %v1499 = vadd.f32 0.0, %v1498
        %v1500 = vpop.f32.mrb[0].mxu0
        %1501 = vmatprep.mubr.f32.mxu0 0.0
        %1502 = vmatmul.mubr.f32.gmra.mrb[0].mxu0 %v1301
        %v1503 = vpop.f32.mrb[0].mxu0
        %v1504 = vadd.f32 0.0, %v1503
        %v1505 = vpop.f32.mrb[0].mxu0
        %1506 = vmatprep.mubr.f32.mxu0 0.0
        %1507 = vmatmul.mubr.f32.gmra.mrb[0].mxu0 %v1303
        %v1508 = vpop.f32.mrb[0].mxu0
        %v1509 = vadd.f32 0.0, %v1508
        %v1510 = vpop.f32.mrb[0].mxu0
        %1511 = vmatprep.mubr.f32.mxu0 0.0
        %1512 = vmatmul.mubr.f32.gmra.mrb[0].mxu0 %v1305
        %v1513 = vpop.f32.mrb[0].mxu0
        %v1514 = vadd.f32 0.0, %v1513
        %v1515 = vpop.f32.mrb[0].mxu0
        %1516 = vmatprep.mubr.f32.mxu0 0.0
        %1517 = vmatmul.mubr.f32.gmra.mrb[0].mxu0 %v1307
        %v1518 = vpop.f32.mrb[0].mxu0
        %v1519 = vadd.f32 0.0, %v1518
        %v1520 = vpop.f32.mrb[0].mxu0
        %1521 = vmatprep.mubr.f32.mxu0 0.0
        %1522 = vmatmul.mubr.f32.gmra.mrb[0].mxu0 %v1309
        %v1523 = vpop.f32.mrb[0].mxu0
        %v1524 = vadd.f32 0.0, %v1523
        %v1525 = vpop.f32.mrb[0].mxu0
        %1526 = vmatprep.mubr.f32.mxu0 0.0
        %1527 = vmatmul.mubr.f32.gmra.mrb[0].mxu0 %v1311
        %v1528 = vpop.f32.mrb[0].mxu0
        %v1529 = vadd.f32 0.0, %v1528
        %v1530 = vpop.f32.mrb[0].mxu0
        %1531 = vmatprep.mubr.f32.mxu0 0.0
        %1532 = vmatmul.mubr.f32.gmra.mrb[0].mxu0 %v1313
        %v1533 = vpop.f32.mrb[0].mxu0
        %v1534 = vadd.f32 0.0, %v1533
        %v1535 = vpop.f32.mrb[0].mxu0
        %1536 = vmatprep.mubr.f32.mxu0 0.0
        %1537 = vmatmul.mubr.f32.gmra.mrb[0].mxu0 %v1315
        %v1538 = vpop.f32.mrb[0].mxu0
        %v1539 = vadd.f32 0.0, %v1538
        %v1540 = vpop.f32.mrb[0].mxu0
        %1541 = vmatprep.mubr.f32.mxu0 0.0
        %1542 = vmatmul.mubr.f32.gmra.mrb[0].mxu0 %v1317
        %v1543 = vpop.f32.mrb[0].mxu0
        %v1544 = vadd.f32 0.0, %v1543
        %v1545 = vpop.f32.mrb[0].mxu0
        %1546 = vdwg.mxu0
        %v1547 = vadd.f32 %v1124, %v1389
        %v1548 = vadd.f32 %v1125, %v1394
        %v1549 = vadd.f32 %v1126, %v1399
        %v1550 = vadd.f32 %v1127, %v1404
        %v1551 = vadd.f32 %v1128, %v1409
        %v1552 = vadd.f32 %v1129, %v1414
        %v1553 = vadd.f32 %v1130, %v1419
        %v1554 = vadd.f32 %v1131, %v1424
        %v1555 = vadd.f32 %v1132, %v1429
        %v1556 = vadd.f32 %v1133, %v1434
        %v1557 = vadd.f32 %v1134, %v1439
        %v1558 = vadd.f32 %v1135, %v1444
        %v1559 = vadd.f32 %v1136, %v1449
        %v1560 = vadd.f32 %v1137, %v1454
        %v1561 = vadd.f32 %v1138, %v1459
        %v1562 = vadd.f32 %v1139, %v1464
        %v1563 = vadd.f32 %v1140, %v1469
        %v1564 = vadd.f32 %v1141, %v1474
        %v1565 = vadd.f32 %v1142, %v1479
        %v1566 = vadd.f32 %v1143, %v1484
        %v1567 = vadd.f32 %v1144, %v1489
        %v1568 = vadd.f32 %v1145, %v1494
        %v1569 = vadd.f32 %v1146, %v1499
        %v1570 = vadd.f32 %v1147, %v1504
        %v1571 = vadd.f32 %v1148, %v1509
        %v1572 = vadd.f32 %v1149, %v1514
        %v1573 = vadd.f32 %v1150, %v1519
        %v1574 = vadd.f32 %v1151, %v1524
        %v1575 = vadd.f32 %v1152, %v1529
        %v1576 = vadd.f32 %v1153, %v1534
        %v1577 = vadd.f32 %v1154, %v1539
        %v1578 = vadd.f32 %v1155, %v1544
        %vm1579 = vcmask 1045504
        %v1580 = vrot.slane %v737, 2
        %v1581 = vrot.slane %v738, 2
        %v1582 = vsel %vm1579, %v1580, %v1581
        %v1583 = vrot.slane %v739, 2
        %v1584 = vsel %vm1579, %v1581, %v1583
        %v1585 = vrot.slane %v740, 2
        %v1586 = vrot.slane %v741, 2
        %v1587 = vsel %vm1579, %v1585, %v1586
        %v1588 = vrot.slane %v742, 2
        %v1589 = vsel %vm1579, %v1586, %v1588
        %v1590 = vrot.slane %v743, 2
        %v1591 = vrot.slane %v744, 2
        %v1592 = vsel %vm1579, %v1590, %v1591
        %v1593 = vrot.slane %v745, 2
        %v1594 = vsel %vm1579, %v1591, %v1593
        %v1595 = vrot.slane %v746, 2
        %v1596 = vrot.slane %v747, 2
        %v1597 = vsel %vm1579, %v1595, %v1596
        %v1598 = vrot.slane %v748, 2
        %v1599 = vsel %vm1579, %v1596, %v1598
        %v1600 = vrot.slane %v749, 2
        %v1601 = vrot.slane %v750, 2
        %v1602 = vsel %vm1579, %v1600, %v1601
        %v1603 = vrot.slane %v751, 2
        %v1604 = vsel %vm1579, %v1601, %v1603
        %v1605 = vrot.slane %v752, 2
        %v1606 = vrot.slane %v753, 2
        %v1607 = vsel %vm1579, %v1605, %v1606
        %v1608 = vrot.slane %v754, 2
        %v1609 = vsel %vm1579, %v1606, %v1608
        %v1610 = vrot.slane %v755, 2
        %v1611 = vrot.slane %v756, 2
        %v1612 = vsel %vm1579, %v1610, %v1611
        %v1613 = vrot.slane %v757, 2
        %v1614 = vsel %vm1579, %v1611, %v1613
        %v1615 = vrot.slane %v758, 2
        %v1616 = vrot.slane %v759, 2
        %v1617 = vsel %vm1579, %v1615, %v1616
        %v1618 = vrot.slane %v760, 2
        %v1619 = vsel %vm1579, %v1616, %v1618
        %v1620 = vrot.slane %v761, 2
        %v1621 = vrot.slane %v762, 2
        %v1622 = vsel %vm1579, %v1620, %v1621
        %v1623 = vrot.slane %v763, 2
        %v1624 = vsel %vm1579, %v1621, %v1623
        %v1625 = vrot.slane %v764, 2
        %v1626 = vrot.slane %v765, 2
        %v1627 = vsel %vm1579, %v1625, %v1626
        %v1628 = vrot.slane %v766, 2
        %v1629 = vsel %vm1579, %v1626, %v1628
        %v1630 = vrot.slane %v767, 2
        %v1631 = vrot.slane %v768, 2
        %v1632 = vsel %vm1579, %v1630, %v1631
        %v1633 = vrot.slane %v769, 2
        %v1634 = vsel %vm1579, %v1631, %v1633
        %v1635 = vrot.slane %v770, 2
        %v1636 = vrot.slane %v771, 2
        %v1637 = vsel %vm1579, %v1635, %v1636
        %v1638 = vrot.slane %v772, 2
        %v1639 = vsel %vm1579, %v1636, %v1638
        %v1640 = vrot.slane %v773, 2
        %v1641 = vrot.slane %v774, 2
        %v1642 = vsel %vm1579, %v1640, %v1641
        %v1643 = vrot.slane %v775, 2
        %v1644 = vsel %vm1579, %v1641, %v1643
        %v1645 = vrot.slane %v776, 2
        %v1646 = vrot.slane %v777, 2
        %v1647 = vsel %vm1579, %v1645, %v1646
        %v1648 = vrot.slane %v778, 2
        %v1649 = vsel %vm1579, %v1646, %v1648
        %v1650 = vrot.slane %v779, 2
        %v1651 = vrot.slane %v780, 2
        %v1652 = vsel %vm1579, %v1650, %v1651
        %v1653 = vrot.slane %v781, 2
        %v1654 = vsel %vm1579, %v1651, %v1653
        %v1655 = vrot.slane %v782, 2
        %v1656 = vrot.slane %v783, 2
        %v1657 = vsel %vm1579, %v1655, %v1656
        %v1658 = vrot.slane %v784, 2
        %v1659 = vsel %vm1579, %v1656, %v1658
        %s1660 = scalar_lea.vmem %s2, 8
        %v1661 = vld [vmem:[%s1660] sm:$0xf]
        %v1662 = vsel %vm452, %v1582, 0
        %v1664 = vsel %vm452, %v1584, 0
        %v1666 = vsel %vm452, %v1587, 0
        %v1668 = vsel %vm452, %v1589, 0
        %v1670 = vsel %vm452, %v1592, 0
        %v1672 = vsel %vm452, %v1594, 0
        %v1674 = vsel %vm452, %v1597, 0
        %v1676 = vsel %vm452, %v1599, 0
        %v1678 = vsel %vm452, %v1602, 0
        %v1680 = vsel %vm452, %v1604, 0
        %v1682 = vsel %vm452, %v1607, 0
        %v1684 = vsel %vm452, %v1609, 0
        %v1686 = vsel %vm452, %v1612, 0
        %v1688 = vsel %vm452, %v1614, 0
        %v1690 = vsel %vm452, %v1617, 0
        %v1692 = vsel %vm452, %v1619, 0
        %v1694 = vsel %vm452, %v1622, 0
        %v1696 = vsel %vm452, %v1624, 0
        %v1698 = vsel %vm452, %v1627, 0
        %v1700 = vsel %vm452, %v1629, 0
        %v1702 = vsel %vm452, %v1632, 0
        %v1704 = vsel %vm452, %v1634, 0
        %v1706 = vsel %vm452, %v1637, 0
        %v1708 = vsel %vm452, %v1639, 0
        %v1710 = vsel %vm452, %v1642, 0
        %v1712 = vsel %vm452, %v1644, 0
        %v1714 = vsel %vm452, %v1647, 0
        %v1716 = vsel %vm452, %v1649, 0
        %v1718 = vsel %vm452, %v1652, 0
        %v1720 = vsel %vm452, %v1654, 0
        %v1722 = vsel %vm452, %v1657, 0
        %v1724 = vsel %vm452, %v1659, 0
        %v1727 = vsel %vm895, %v1661, 0
        %1729 = vmatprep.subr.mxu0 0.0
        %1730 = vmatpush1.msra.mxu0 %v1727
        %1731 = vmatprep.subr.mxu0 0.0
        %1732 = vmatpush1.msra.mxu0 0.0
        %1733 = vmatprep.subr.mxu0 0.0
        %1734 = vmatpush1.msra.mxu0 0.0
        %1735 = vmatprep.subr.mxu0 0.0
        %1736 = vmatpush1.msra.mxu0 0.0
        %1737 = vmatprep.subr.mxu0 0.0
        %1738 = vmatpush1.msra.mxu0 0.0
        %1739 = vmatprep.subr.mxu0 0.0
        %1740 = vmatpush1.msra.mxu0 0.0
        %1741 = vmatprep.subr.mxu0 0.0
        %1742 = vmatpush1.msra.mxu0 0.0
        %1743 = vmatprep.subr.mxu0 0.0
        %1744 = vmatpush1.msra.mxu0 0.0
        %1745 = vmatprep.subr.mxu0 0.0
        %1746 = vmatpush1.msra.mxu0 0.0
        %1747 = vmatprep.subr.mxu0 0.0
        %1748 = vmatpush1.msra.mxu0 0.0
        %1749 = vmatprep.subr.mxu0 0.0
        %1750 = vmatpush1.msra.mxu0 0.0
        %1751 = vmatprep.subr.mxu0 0.0
        %1752 = vmatpush1.msra.mxu0 0.0
        %1753 = vmatprep.subr.mxu0 0.0
        %1754 = vmatpush1.msra.mxu0 0.0
        %1755 = vmatprep.subr.mxu0 0.0
        %1756 = vmatpush1.msra.mxu0 0.0
        %1757 = vmatprep.subr.mxu0 0.0
        %1758 = vmatpush1.msra.mxu0 0.0
        %1759 = vmatprep.subr.mxu0 0.0
        %1760 = vmatpush1.msra.mxu0 0.0
        %1761 = vmatprep.subr.mxu0 0.0
        %1762 = vmatpush1.msra.mxu0 0.0
        %1763 = vmatprep.subr.mxu0 0.0
        %1764 = vmatpush1.msra.mxu0 0.0
        %1765 = vmatprep.subr.mxu0 0.0
        %1766 = vmatpush1.msra.mxu0 0.0
        %1767 = vmatprep.subr.mxu0 0.0
        %1768 = vmatpush1.msra.mxu0 0.0
        %1769 = vmatprep.subr.mxu0 0.0
        %1770 = vmatpush1.msra.mxu0 0.0
        %1771 = vmatprep.subr.mxu0 0.0
        %1772 = vmatpush1.msra.mxu0 0.0
        %1773 = vmatprep.subr.mxu0 0.0
        %1774 = vmatpush1.msra.mxu0 0.0
        %1775 = vmatprep.subr.mxu0 0.0
        %1776 = vmatpush1.msra.mxu0 0.0
        %1777 = vmatprep.subr.mxu0 0.0
        %1778 = vmatpush1.msra.mxu0 0.0
        %1779 = vmatprep.subr.mxu0 0.0
        %1780 = vmatpush1.msra.mxu0 0.0
        %1781 = vmatprep.subr.mxu0 0.0
        %1782 = vmatpush1.msra.mxu0 0.0
        %1783 = vmatprep.subr.mxu0 0.0
        %1784 = vmatpush1.msra.mxu0 0.0
        %1785 = vmatprep.subr.mxu0 0.0
        %1786 = vmatpush1.msra.mxu0 0.0
        %1787 = vmatprep.subr.mxu0 0.0
        %1788 = vmatpush1.msra.mxu0 0.0
        %1789 = vmatprep.subr.mxu0 0.0
        %1790 = vmatpush1.msra.mxu0 0.0
        %1791 = vmatprep.subr.mxu0 0.0
        %1792 = vmatpush1.msra.mxu0 0.0
        %1793 = vmatprep.mubr.f32.mxu0 0.0
        %1794 = vmatmul.mubr.f32.gmra.mrb[0].mxu0 %v1662
        %v1795 = vpop.f32.mrb[0].mxu0
        %v1796 = vadd.f32 0.0, %v1795
        %v1797 = vpop.f32.mrb[0].mxu0
        %1798 = vmatprep.mubr.f32.mxu0 0.0
        %1799 = vmatmul.mubr.f32.gmra.mrb[0].mxu0 %v1664
        %v1800 = vpop.f32.mrb[0].mxu0
        %v1801 = vadd.f32 0.0, %v1800
        %v1802 = vpop.f32.mrb[0].mxu0
        %1803 = vmatprep.mubr.f32.mxu0 0.0
        %1804 = vmatmul.mubr.f32.gmra.mrb[0].mxu0 %v1666
        %v1805 = vpop.f32.mrb[0].mxu0
        %v1806 = vadd.f32 0.0, %v1805
        %v1807 = vpop.f32.mrb[0].mxu0
        %1808 = vmatprep.mubr.f32.mxu0 0.0
        %1809 = vmatmul.mubr.f32.gmra.mrb[0].mxu0 %v1668
        %v1810 = vpop.f32.mrb[0].mxu0
        %v1811 = vadd.f32 0.0, %v1810
        %v1812 = vpop.f32.mrb[0].mxu0
        %1813 = vmatprep.mubr.f32.mxu0 0.0
        %1814 = vmatmul.mubr.f32.gmra.mrb[0].mxu0 %v1670
        %v1815 = vpop.f32.mrb[0].mxu0
        %v1816 = vadd.f32 0.0, %v1815
        %v1817 = vpop.f32.mrb[0].mxu0
        %1818 = vmatprep.mubr.f32.mxu0 0.0
        %1819 = vmatmul.mubr.f32.gmra.mrb[0].mxu0 %v1672
        %v1820 = vpop.f32.mrb[0].mxu0
        %v1821 = vadd.f32 0.0, %v1820
        %v1822 = vpop.f32.mrb[0].mxu0
        %1823 = vmatprep.mubr.f32.mxu0 0.0
        %1824 = vmatmul.mubr.f32.gmra.mrb[0].mxu0 %v1674
        %v1825 = vpop.f32.mrb[0].mxu0
        %v1826 = vadd.f32 0.0, %v1825
        %v1827 = vpop.f32.mrb[0].mxu0
        %1828 = vmatprep.mubr.f32.mxu0 0.0
        %1829 = vmatmul.mubr.f32.gmra.mrb[0].mxu0 %v1676
        %v1830 = vpop.f32.mrb[0].mxu0
        %v1831 = vadd.f32 0.0, %v1830
        %v1832 = vpop.f32.mrb[0].mxu0
        %1833 = vmatprep.mubr.f32.mxu0 0.0
        %1834 = vmatmul.mubr.f32.gmra.mrb[0].mxu0 %v1678
        %v1835 = vpop.f32.mrb[0].mxu0
        %v1836 = vadd.f32 0.0, %v1835
        %v1837 = vpop.f32.mrb[0].mxu0
        %1838 = vmatprep.mubr.f32.mxu0 0.0
        %1839 = vmatmul.mubr.f32.gmra.mrb[0].mxu0 %v1680
        %v1840 = vpop.f32.mrb[0].mxu0
        %v1841 = vadd.f32 0.0, %v1840
        %v1842 = vpop.f32.mrb[0].mxu0
        %1843 = vmatprep.mubr.f32.mxu0 0.0
        %1844 = vmatmul.mubr.f32.gmra.mrb[0].mxu0 %v1682
        %v1845 = vpop.f32.mrb[0].mxu0
        %v1846 = vadd.f32 0.0, %v1845
        %v1847 = vpop.f32.mrb[0].mxu0
        %1848 = vmatprep.mubr.f32.mxu0 0.0
        %1849 = vmatmul.mubr.f32.gmra.mrb[0].mxu0 %v1684
        %v1850 = vpop.f32.mrb[0].mxu0
        %v1851 = vadd.f32 0.0, %v1850
        %v1852 = vpop.f32.mrb[0].mxu0
        %1853 = vmatprep.mubr.f32.mxu0 0.0
        %1854 = vmatmul.mubr.f32.gmra.mrb[0].mxu0 %v1686
        %v1855 = vpop.f32.mrb[0].mxu0
        %v1856 = vadd.f32 0.0, %v1855
        %v1857 = vpop.f32.mrb[0].mxu0
        %1858 = vmatprep.mubr.f32.mxu0 0.0
        %1859 = vmatmul.mubr.f32.gmra.mrb[0].mxu0 %v1688
        %v1860 = vpop.f32.mrb[0].mxu0
        %v1861 = vadd.f32 0.0, %v1860
        %v1862 = vpop.f32.mrb[0].mxu0
        %1863 = vmatprep.mubr.f32.mxu0 0.0
        %1864 = vmatmul.mubr.f32.gmra.mrb[0].mxu0 %v1690
        %v1865 = vpop.f32.mrb[0].mxu0
        %v1866 = vadd.f32 0.0, %v1865
        %v1867 = vpop.f32.mrb[0].mxu0
        %1868 = vmatprep.mubr.f32.mxu0 0.0
        %1869 = vmatmul.mubr.f32.gmra.mrb[0].mxu0 %v1692
        %v1870 = vpop.f32.mrb[0].mxu0
        %v1871 = vadd.f32 0.0, %v1870
        %v1872 = vpop.f32.mrb[0].mxu0
        %1873 = vmatprep.mubr.f32.mxu0 0.0
        %1874 = vmatmul.mubr.f32.gmra.mrb[0].mxu0 %v1694
        %v1875 = vpop.f32.mrb[0].mxu0
        %v1876 = vadd.f32 0.0, %v1875
        %v1877 = vpop.f32.mrb[0].mxu0
        %1878 = vmatprep.mubr.f32.mxu0 0.0
        %1879 = vmatmul.mubr.f32.gmra.mrb[0].mxu0 %v1696
        %v1880 = vpop.f32.mrb[0].mxu0
        %v1881 = vadd.f32 0.0, %v1880
        %v1882 = vpop.f32.mrb[0].mxu0
        %1883 = vmatprep.mubr.f32.mxu0 0.0
        %1884 = vmatmul.mubr.f32.gmra.mrb[0].mxu0 %v1698
        %v1885 = vpop.f32.mrb[0].mxu0
        %v1886 = vadd.f32 0.0, %v1885
        %v1887 = vpop.f32.mrb[0].mxu0
        %1888 = vmatprep.mubr.f32.mxu0 0.0
        %1889 = vmatmul.mubr.f32.gmra.mrb[0].mxu0 %v1700
        %v1890 = vpop.f32.mrb[0].mxu0
        %v1891 = vadd.f32 0.0, %v1890
        %v1892 = vpop.f32.mrb[0].mxu0
        %1893 = vmatprep.mubr.f32.mxu0 0.0
        %1894 = vmatmul.mubr.f32.gmra.mrb[0].mxu0 %v1702
        %v1895 = vpop.f32.mrb[0].mxu0
        %v1896 = vadd.f32 0.0, %v1895
        %v1897 = vpop.f32.mrb[0].mxu0
        %1898 = vmatprep.mubr.f32.mxu0 0.0
        %1899 = vmatmul.mubr.f32.gmra.mrb[0].mxu0 %v1704
        %v1900 = vpop.f32.mrb[0].mxu0
        %v1901 = vadd.f32 0.0, %v1900
        %v1902 = vpop.f32.mrb[0].mxu0
        %1903 = vmatprep.mubr.f32.mxu0 0.0
        %1904 = vmatmul.mubr.f32.gmra.mrb[0].mxu0 %v1706
        %v1905 = vpop.f32.mrb[0].mxu0
        %v1906 = vadd.f32 0.0, %v1905
        %v1907 = vpop.f32.mrb[0].mxu0
        %1908 = vmatprep.mubr.f32.mxu0 0.0
        %1909 = vmatmul.mubr.f32.gmra.mrb[0].mxu0 %v1708
        %v1910 = vpop.f32.mrb[0].mxu0
        %v1911 = vadd.f32 0.0, %v1910
        %v1912 = vpop.f32.mrb[0].mxu0
        %1913 = vmatprep.mubr.f32.mxu0 0.0
        %1914 = vmatmul.mubr.f32.gmra.mrb[0].mxu0 %v1710
        %v1915 = vpop.f32.mrb[0].mxu0
        %v1916 = vadd.f32 0.0, %v1915
        %v1917 = vpop.f32.mrb[0].mxu0
        %1918 = vmatprep.mubr.f32.mxu0 0.0
        %1919 = vmatmul.mubr.f32.gmra.mrb[0].mxu0 %v1712
        %v1920 = vpop.f32.mrb[0].mxu0
        %v1921 = vadd.f32 0.0, %v1920
        %v1922 = vpop.f32.mrb[0].mxu0
        %1923 = vmatprep.mubr.f32.mxu0 0.0
        %1924 = vmatmul.mubr.f32.gmra.mrb[0].mxu0 %v1714
        %v1925 = vpop.f32.mrb[0].mxu0
        %v1926 = vadd.f32 0.0, %v1925
        %v1927 = vpop.f32.mrb[0].mxu0
        %1928 = vmatprep.mubr.f32.mxu0 0.0
        %1929 = vmatmul.mubr.f32.gmra.mrb[0].mxu0 %v1716
        %v1930 = vpop.f32.mrb[0].mxu0
        %v1931 = vadd.f32 0.0, %v1930
        %v1932 = vpop.f32.mrb[0].mxu0
        %1933 = vmatprep.mubr.f32.mxu0 0.0
        %1934 = vmatmul.mubr.f32.gmra.mrb[0].mxu0 %v1718
        %v1935 = vpop.f32.mrb[0].mxu0
        %v1936 = vadd.f32 0.0, %v1935
        %v1937 = vpop.f32.mrb[0].mxu0
        %1938 = vmatprep.mubr.f32.mxu0 0.0
        %1939 = vmatmul.mubr.f32.gmra.mrb[0].mxu0 %v1720
        %v1940 = vpop.f32.mrb[0].mxu0
        %v1941 = vadd.f32 0.0, %v1940
        %v1942 = vpop.f32.mrb[0].mxu0
        %1943 = vmatprep.mubr.f32.mxu0 0.0
        %1944 = vmatmul.mubr.f32.gmra.mrb[0].mxu0 %v1722
        %v1945 = vpop.f32.mrb[0].mxu0
        %v1946 = vadd.f32 0.0, %v1945
        %v1947 = vpop.f32.mrb[0].mxu0
        %1948 = vmatprep.mubr.f32.mxu0 0.0
        %1949 = vmatmul.mubr.f32.gmra.mrb[0].mxu0 %v1724
        %v1950 = vpop.f32.mrb[0].mxu0
        %v1951 = vadd.f32 0.0, %v1950
        %v1952 = vpop.f32.mrb[0].mxu0
        %1953 = vdwg.mxu0
        %v1954 = vadd.f32 %v1547, %v1796
        %v1955 = vadd.f32 %v1548, %v1801
        %v1956 = vadd.f32 %v1549, %v1806
        %v1957 = vadd.f32 %v1550, %v1811
        %v1958 = vadd.f32 %v1551, %v1816
        %v1959 = vadd.f32 %v1552, %v1821
        %v1960 = vadd.f32 %v1553, %v1826
        %v1961 = vadd.f32 %v1554, %v1831
        %v1962 = vadd.f32 %v1555, %v1836
        %v1963 = vadd.f32 %v1556, %v1841
        %v1964 = vadd.f32 %v1557, %v1846
        %v1965 = vadd.f32 %v1558, %v1851
        %v1966 = vadd.f32 %v1559, %v1856
        %v1967 = vadd.f32 %v1560, %v1861
        %v1968 = vadd.f32 %v1561, %v1866
        %v1969 = vadd.f32 %v1562, %v1871
        %v1970 = vadd.f32 %v1563, %v1876
        %v1971 = vadd.f32 %v1564, %v1881
        %v1972 = vadd.f32 %v1565, %v1886
        %v1973 = vadd.f32 %v1566, %v1891
        %v1974 = vadd.f32 %v1567, %v1896
        %v1975 = vadd.f32 %v1568, %v1901
        %v1976 = vadd.f32 %v1569, %v1906
        %v1977 = vadd.f32 %v1570, %v1911
        %v1978 = vadd.f32 %v1571, %v1916
        %v1979 = vadd.f32 %v1572, %v1921
        %v1980 = vadd.f32 %v1573, %v1926
        %v1981 = vadd.f32 %v1574, %v1931
        %v1982 = vadd.f32 %v1575, %v1936
        %v1983 = vadd.f32 %v1576, %v1941
        %v1984 = vadd.f32 %v1577, %v1946
        %v1985 = vadd.f32 %v1578, %v1951
        %s1986 = scalar_lea.vmem %s2, 12
        %v1987 = vld [vmem:[%s1986] sm:$0xf]
        %v1989 = vsel %vm452, %v785, 0
        %v1992 = vsel %vm452, %v786, 0
        %v1995 = vsel %vm895, %v1987, 0
        %1997 = vmatprep.subr.mxu0 0.0
        %1998 = vmatpush1.msra.mxu0 %v1995
        %1999 = vmatprep.subr.mxu0 0.0
        %2000 = vmatpush1.msra.mxu0 0.0
        %2001 = vmatprep.subr.mxu0 0.0
        %2002 = vmatpush1.msra.mxu0 0.0
        %2003 = vmatprep.subr.mxu0 0.0
        %2004 = vmatpush1.msra.mxu0 0.0
        %2005 = vmatprep.subr.mxu0 0.0
        %2006 = vmatpush1.msra.mxu0 0.0
        %2007 = vmatprep.subr.mxu0 0.0
        %2008 = vmatpush1.msra.mxu0 0.0
        %2009 = vmatprep.subr.mxu0 0.0
        %2010 = vmatpush1.msra.mxu0 0.0
        %2011 = vmatprep.subr.mxu0 0.0
        %2012 = vmatpush1.msra.mxu0 0.0
        %2013 = vmatprep.subr.mxu0 0.0
        %2014 = vmatpush1.msra.mxu0 0.0
        %2015 = vmatprep.subr.mxu0 0.0
        %2016 = vmatpush1.msra.mxu0 0.0
        %2017 = vmatprep.subr.mxu0 0.0
        %2018 = vmatpush1.msra.mxu0 0.0
        %2019 = vmatprep.subr.mxu0 0.0
        %2020 = vmatpush1.msra.mxu0 0.0
        %2021 = vmatprep.subr.mxu0 0.0
        %2022 = vmatpush1.msra.mxu0 0.0
        %2023 = vmatprep.subr.mxu0 0.0
        %2024 = vmatpush1.msra.mxu0 0.0
        %2025 = vmatprep.subr.mxu0 0.0
        %2026 = vmatpush1.msra.mxu0 0.0
        %2027 = vmatprep.subr.mxu0 0.0
        %2028 = vmatpush1.msra.mxu0 0.0
        %2029 = vmatprep.subr.mxu0 0.0
        %2030 = vmatpush1.msra.mxu0 0.0
        %2031 = vmatprep.subr.mxu0 0.0
        %2032 = vmatpush1.msra.mxu0 0.0
        %2033 = vmatprep.subr.mxu0 0.0
        %2034 = vmatpush1.msra.mxu0 0.0
        %2035 = vmatprep.subr.mxu0 0.0
        %2036 = vmatpush1.msra.mxu0 0.0
        %2037 = vmatprep.subr.mxu0 0.0
        %2038 = vmatpush1.msra.mxu0 0.0
        %2039 = vmatprep.subr.mxu0 0.0
        %2040 = vmatpush1.msra.mxu0 0.0
        %2041 = vmatprep.subr.mxu0 0.0
        %2042 = vmatpush1.msra.mxu0 0.0
        %2043 = vmatprep.subr.mxu0 0.0
        %2044 = vmatpush1.msra.mxu0 0.0
        %2045 = vmatprep.subr.mxu0 0.0
        %2046 = vmatpush1.msra.mxu0 0.0
        %2047 = vmatprep.subr.mxu0 0.0
        %2048 = vmatpush1.msra.mxu0 0.0
        %2049 = vmatprep.subr.mxu0 0.0
        %2050 = vmatpush1.msra.mxu0 0.0
        %2051 = vmatprep.subr.mxu0 0.0
        %2052 = vmatpush1.msra.mxu0 0.0
        %2053 = vmatprep.subr.mxu0 0.0
        %2054 = vmatpush1.msra.mxu0 0.0
        %2055 = vmatprep.subr.mxu0 0.0
        %2056 = vmatpush1.msra.mxu0 0.0
        %2057 = vmatprep.subr.mxu0 0.0
        %2058 = vmatpush1.msra.mxu0 0.0
        %2059 = vmatprep.subr.mxu0 0.0
        %2060 = vmatpush1.msra.mxu0 0.0
        %2061 = vmatprep.mubr.f32.mxu0 0.0
        %2062 = vmatmul.mubr.f32.gmra.mrb[0].mxu0 %v806
        %v2063 = vpop.f32.mrb[0].mxu0
        %v2064 = vadd.f32 0.0, %v2063
        %v2065 = vpop.f32.mrb[0].mxu0
        %2066 = vmatprep.mubr.f32.mxu0 0.0
        %2067 = vmatmul.mubr.f32.gmra.mrb[0].mxu0 %v809
        %v2068 = vpop.f32.mrb[0].mxu0
        %v2069 = vadd.f32 0.0, %v2068
        %v2070 = vpop.f32.mrb[0].mxu0
        %2071 = vmatprep.mubr.f32.mxu0 0.0
        %2072 = vmatmul.mubr.f32.gmra.mrb[0].mxu0 %v812
        %v2073 = vpop.f32.mrb[0].mxu0
        %v2074 = vadd.f32 0.0, %v2073
        %v2075 = vpop.f32.mrb[0].mxu0
        %2076 = vmatprep.mubr.f32.mxu0 0.0
        %2077 = vmatmul.mubr.f32.gmra.mrb[0].mxu0 %v815
        %v2078 = vpop.f32.mrb[0].mxu0
        %v2079 = vadd.f32 0.0, %v2078
        %v2080 = vpop.f32.mrb[0].mxu0
        %2081 = vmatprep.mubr.f32.mxu0 0.0
        %2082 = vmatmul.mubr.f32.gmra.mrb[0].mxu0 %v818
        %v2083 = vpop.f32.mrb[0].mxu0
        %v2084 = vadd.f32 0.0, %v2083
        %v2085 = vpop.f32.mrb[0].mxu0
        %2086 = vmatprep.mubr.f32.mxu0 0.0
        %2087 = vmatmul.mubr.f32.gmra.mrb[0].mxu0 %v821
        %v2088 = vpop.f32.mrb[0].mxu0
        %v2089 = vadd.f32 0.0, %v2088
        %v2090 = vpop.f32.mrb[0].mxu0
        %2091 = vmatprep.mubr.f32.mxu0 0.0
        %2092 = vmatmul.mubr.f32.gmra.mrb[0].mxu0 %v824
        %v2093 = vpop.f32.mrb[0].mxu0
        %v2094 = vadd.f32 0.0, %v2093
        %v2095 = vpop.f32.mrb[0].mxu0
        %2096 = vmatprep.mubr.f32.mxu0 0.0
        %2097 = vmatmul.mubr.f32.gmra.mrb[0].mxu0 %v827
        %v2098 = vpop.f32.mrb[0].mxu0
        %v2099 = vadd.f32 0.0, %v2098
        %v2100 = vpop.f32.mrb[0].mxu0
        %2101 = vmatprep.mubr.f32.mxu0 0.0
        %2102 = vmatmul.mubr.f32.gmra.mrb[0].mxu0 %v830
        %v2103 = vpop.f32.mrb[0].mxu0
        %v2104 = vadd.f32 0.0, %v2103
        %v2105 = vpop.f32.mrb[0].mxu0
        %2106 = vmatprep.mubr.f32.mxu0 0.0
        %2107 = vmatmul.mubr.f32.gmra.mrb[0].mxu0 %v833
        %v2108 = vpop.f32.mrb[0].mxu0
        %v2109 = vadd.f32 0.0, %v2108
        %v2110 = vpop.f32.mrb[0].mxu0
        %2111 = vmatprep.mubr.f32.mxu0 0.0
        %2112 = vmatmul.mubr.f32.gmra.mrb[0].mxu0 %v836
        %v2113 = vpop.f32.mrb[0].mxu0
        %v2114 = vadd.f32 0.0, %v2113
        %v2115 = vpop.f32.mrb[0].mxu0
        %2116 = vmatprep.mubr.f32.mxu0 0.0
        %2117 = vmatmul.mubr.f32.gmra.mrb[0].mxu0 %v839
        %v2118 = vpop.f32.mrb[0].mxu0
        %v2119 = vadd.f32 0.0, %v2118
        %v2120 = vpop.f32.mrb[0].mxu0
        %2121 = vmatprep.mubr.f32.mxu0 0.0
        %2122 = vmatmul.mubr.f32.gmra.mrb[0].mxu0 %v842
        %v2123 = vpop.f32.mrb[0].mxu0
        %v2124 = vadd.f32 0.0, %v2123
        %v2125 = vpop.f32.mrb[0].mxu0
        %2126 = vmatprep.mubr.f32.mxu0 0.0
        %2127 = vmatmul.mubr.f32.gmra.mrb[0].mxu0 %v845
        %v2128 = vpop.f32.mrb[0].mxu0
        %v2129 = vadd.f32 0.0, %v2128
        %v2130 = vpop.f32.mrb[0].mxu0
        %2131 = vmatprep.mubr.f32.mxu0 0.0
        %2132 = vmatmul.mubr.f32.gmra.mrb[0].mxu0 %v848
        %v2133 = vpop.f32.mrb[0].mxu0
        %v2134 = vadd.f32 0.0, %v2133
        %v2135 = vpop.f32.mrb[0].mxu0
        %2136 = vmatprep.mubr.f32.mxu0 0.0
        %2137 = vmatmul.mubr.f32.gmra.mrb[0].mxu0 %v851
        %v2138 = vpop.f32.mrb[0].mxu0
        %v2139 = vadd.f32 0.0, %v2138
        %v2140 = vpop.f32.mrb[0].mxu0
        %2141 = vmatprep.mubr.f32.mxu0 0.0
        %2142 = vmatmul.mubr.f32.gmra.mrb[0].mxu0 %v854
        %v2143 = vpop.f32.mrb[0].mxu0
        %v2144 = vadd.f32 0.0, %v2143
        %v2145 = vpop.f32.mrb[0].mxu0
        %2146 = vmatprep.mubr.f32.mxu0 0.0
        %2147 = vmatmul.mubr.f32.gmra.mrb[0].mxu0 %v857
        %v2148 = vpop.f32.mrb[0].mxu0
        %v2149 = vadd.f32 0.0, %v2148
        %v2150 = vpop.f32.mrb[0].mxu0
        %2151 = vmatprep.mubr.f32.mxu0 0.0
        %2152 = vmatmul.mubr.f32.gmra.mrb[0].mxu0 %v860
        %v2153 = vpop.f32.mrb[0].mxu0
        %v2154 = vadd.f32 0.0, %v2153
        %v2155 = vpop.f32.mrb[0].mxu0
        %2156 = vmatprep.mubr.f32.mxu0 0.0
        %2157 = vmatmul.mubr.f32.gmra.mrb[0].mxu0 %v863
        %v2158 = vpop.f32.mrb[0].mxu0
        %v2159 = vadd.f32 0.0, %v2158
        %v2160 = vpop.f32.mrb[0].mxu0
        %2161 = vmatprep.mubr.f32.mxu0 0.0
        %2162 = vmatmul.mubr.f32.gmra.mrb[0].mxu0 %v866
        %v2163 = vpop.f32.mrb[0].mxu0
        %v2164 = vadd.f32 0.0, %v2163
        %v2165 = vpop.f32.mrb[0].mxu0
        %2166 = vmatprep.mubr.f32.mxu0 0.0
        %2167 = vmatmul.mubr.f32.gmra.mrb[0].mxu0 %v869
        %v2168 = vpop.f32.mrb[0].mxu0
        %v2169 = vadd.f32 0.0, %v2168
        %v2170 = vpop.f32.mrb[0].mxu0
        %2171 = vmatprep.mubr.f32.mxu0 0.0
        %2172 = vmatmul.mubr.f32.gmra.mrb[0].mxu0 %v872
        %v2173 = vpop.f32.mrb[0].mxu0
        %v2174 = vadd.f32 0.0, %v2173
        %v2175 = vpop.f32.mrb[0].mxu0
        %2176 = vmatprep.mubr.f32.mxu0 0.0
        %2177 = vmatmul.mubr.f32.gmra.mrb[0].mxu0 %v875
        %v2178 = vpop.f32.mrb[0].mxu0
        %v2179 = vadd.f32 0.0, %v2178
        %v2180 = vpop.f32.mrb[0].mxu0
        %2181 = vmatprep.mubr.f32.mxu0 0.0
        %2182 = vmatmul.mubr.f32.gmra.mrb[0].mxu0 %v878
        %v2183 = vpop.f32.mrb[0].mxu0
        %v2184 = vadd.f32 0.0, %v2183
        %v2185 = vpop.f32.mrb[0].mxu0
        %2186 = vmatprep.mubr.f32.mxu0 0.0
        %2187 = vmatmul.mubr.f32.gmra.mrb[0].mxu0 %v881
        %v2188 = vpop.f32.mrb[0].mxu0
        %v2189 = vadd.f32 0.0, %v2188
        %v2190 = vpop.f32.mrb[0].mxu0
        %2191 = vmatprep.mubr.f32.mxu0 0.0
        %2192 = vmatmul.mubr.f32.gmra.mrb[0].mxu0 %v884
        %v2193 = vpop.f32.mrb[0].mxu0
        %v2194 = vadd.f32 0.0, %v2193
        %v2195 = vpop.f32.mrb[0].mxu0
        %2196 = vmatprep.mubr.f32.mxu0 0.0
        %2197 = vmatmul.mubr.f32.gmra.mrb[0].mxu0 %v887
        %v2198 = vpop.f32.mrb[0].mxu0
        %v2199 = vadd.f32 0.0, %v2198
        %v2200 = vpop.f32.mrb[0].mxu0
        %2201 = vmatprep.mubr.f32.mxu0 0.0
        %2202 = vmatmul.mubr.f32.gmra.mrb[0].mxu0 %v890
        %v2203 = vpop.f32.mrb[0].mxu0
        %v2204 = vadd.f32 0.0, %v2203
        %v2205 = vpop.f32.mrb[0].mxu0
        %2206 = vmatprep.mubr.f32.mxu0 0.0
        %2207 = vmatmul.mubr.f32.gmra.mrb[0].mxu0 %v893
        %v2208 = vpop.f32.mrb[0].mxu0
        %v2209 = vadd.f32 0.0, %v2208
        %v2210 = vpop.f32.mrb[0].mxu0
        %2211 = vmatprep.mubr.f32.mxu0 0.0
        %2212 = vmatmul.mubr.f32.gmra.mrb[0].mxu0 %v1989
        %v2213 = vpop.f32.mrb[0].mxu0
        %v2214 = vadd.f32 0.0, %v2213
        %v2215 = vpop.f32.mrb[0].mxu0
        %2216 = vmatprep.mubr.f32.mxu0 0.0
        %2217 = vmatmul.mubr.f32.gmra.mrb[0].mxu0 %v1992
        %v2218 = vpop.f32.mrb[0].mxu0
        %v2219 = vadd.f32 0.0, %v2218
        %v2220 = vpop.f32.mrb[0].mxu0
        %2221 = vdwg.mxu0
        %v2222 = vadd.f32 %v1954, %v2064
        %v2223 = vadd.f32 %v1955, %v2069
        %v2224 = vadd.f32 %v1956, %v2074
        %v2225 = vadd.f32 %v1957, %v2079
        %v2226 = vadd.f32 %v1958, %v2084
        %v2227 = vadd.f32 %v1959, %v2089
        %v2228 = vadd.f32 %v1960, %v2094
        %v2229 = vadd.f32 %v1961, %v2099
        %v2230 = vadd.f32 %v1962, %v2104
        %v2231 = vadd.f32 %v1963, %v2109
        %v2232 = vadd.f32 %v1964, %v2114
        %v2233 = vadd.f32 %v1965, %v2119
        %v2234 = vadd.f32 %v1966, %v2124
        %v2235 = vadd.f32 %v1967, %v2129
        %v2236 = vadd.f32 %v1968, %v2134
        %v2237 = vadd.f32 %v1969, %v2139
        %v2238 = vadd.f32 %v1970, %v2144
        %v2239 = vadd.f32 %v1971, %v2149
        %v2240 = vadd.f32 %v1972, %v2154
        %v2241 = vadd.f32 %v1973, %v2159
        %v2242 = vadd.f32 %v1974, %v2164
        %v2243 = vadd.f32 %v1975, %v2169
        %v2244 = vadd.f32 %v1976, %v2174
        %v2245 = vadd.f32 %v1977, %v2179
        %v2246 = vadd.f32 %v1978, %v2184
        %v2247 = vadd.f32 %v1979, %v2189
        %v2248 = vadd.f32 %v1980, %v2194
        %v2249 = vadd.f32 %v1981, %v2199
        %v2250 = vadd.f32 %v1982, %v2204
        %v2251 = vadd.f32 %v1983, %v2209
        %v2252 = vadd.f32 %v1984, %v2214
        %v2253 = vadd.f32 %v1985, %v2219
        %v2255 = vrot.slane %v785, 1
        %v2256 = vrot.slane %v786, 1
        %v2257 = vsel %vm1172, %v2255, %v2256
        %v2258 = vrot.slane %v787, 1
        %v2259 = vsel %vm1172, %v2256, %v2258
        %s2260 = scalar_lea.vmem %s2, 16
        %v2261 = vld [vmem:[%s2260] sm:$0xf]
        %v2262 = vsel %vm452, %v2257, 0
        %v2264 = vsel %vm452, %v2259, 0
        %v2267 = vsel %vm895, %v2261, 0
        %2269 = vmatprep.subr.mxu0 0.0
        %2270 = vmatpush1.msra.mxu0 %v2267
        %2271 = vmatprep.subr.mxu0 0.0
        %2272 = vmatpush1.msra.mxu0 0.0
        %2273 = vmatprep.subr.mxu0 0.0
        %2274 = vmatpush1.msra.mxu0 0.0
        %2275 = vmatprep.subr.mxu0 0.0
        %2276 = vmatpush1.msra.mxu0 0.0
        %2277 = vmatprep.subr.mxu0 0.0
        %2278 = vmatpush1.msra.mxu0 0.0
        %2279 = vmatprep.subr.mxu0 0.0
        %2280 = vmatpush1.msra.mxu0 0.0
        %2281 = vmatprep.subr.mxu0 0.0
        %2282 = vmatpush1.msra.mxu0 0.0
        %2283 = vmatprep.subr.mxu0 0.0
        %2284 = vmatpush1.msra.mxu0 0.0
        %2285 = vmatprep.subr.mxu0 0.0
        %2286 = vmatpush1.msra.mxu0 0.0
        %2287 = vmatprep.subr.mxu0 0.0
        %2288 = vmatpush1.msra.mxu0 0.0
        %2289 = vmatprep.subr.mxu0 0.0
        %2290 = vmatpush1.msra.mxu0 0.0
        %2291 = vmatprep.subr.mxu0 0.0
        %2292 = vmatpush1.msra.mxu0 0.0
        %2293 = vmatprep.subr.mxu0 0.0
        %2294 = vmatpush1.msra.mxu0 0.0
        %2295 = vmatprep.subr.mxu0 0.0
        %2296 = vmatpush1.msra.mxu0 0.0
        %2297 = vmatprep.subr.mxu0 0.0
        %2298 = vmatpush1.msra.mxu0 0.0
        %2299 = vmatprep.subr.mxu0 0.0
        %2300 = vmatpush1.msra.mxu0 0.0
        %2301 = vmatprep.subr.mxu0 0.0
        %2302 = vmatpush1.msra.mxu0 0.0
        %2303 = vmatprep.subr.mxu0 0.0
        %2304 = vmatpush1.msra.mxu0 0.0
        %2305 = vmatprep.subr.mxu0 0.0
        %2306 = vmatpush1.msra.mxu0 0.0
        %2307 = vmatprep.subr.mxu0 0.0
        %2308 = vmatpush1.msra.mxu0 0.0
        %2309 = vmatprep.subr.mxu0 0.0
        %2310 = vmatpush1.msra.mxu0 0.0
        %2311 = vmatprep.subr.mxu0 0.0
        %2312 = vmatpush1.msra.mxu0 0.0
        %2313 = vmatprep.subr.mxu0 0.0
        %2314 = vmatpush1.msra.mxu0 0.0
        %2315 = vmatprep.subr.mxu0 0.0
        %2316 = vmatpush1.msra.mxu0 0.0
        %2317 = vmatprep.subr.mxu0 0.0
        %2318 = vmatpush1.msra.mxu0 0.0
        %2319 = vmatprep.subr.mxu0 0.0
        %2320 = vmatpush1.msra.mxu0 0.0
        %2321 = vmatprep.subr.mxu0 0.0
        %2322 = vmatpush1.msra.mxu0 0.0
        %2323 = vmatprep.subr.mxu0 0.0
        %2324 = vmatpush1.msra.mxu0 0.0
        %2325 = vmatprep.subr.mxu0 0.0
        %2326 = vmatpush1.msra.mxu0 0.0
        %2327 = vmatprep.subr.mxu0 0.0
        %2328 = vmatpush1.msra.mxu0 0.0
        %2329 = vmatprep.subr.mxu0 0.0
        %2330 = vmatpush1.msra.mxu0 0.0
        %2331 = vmatprep.subr.mxu0 0.0
        %2332 = vmatpush1.msra.mxu0 0.0
        %2333 = vmatprep.mubr.f32.mxu0 0.0
        %2334 = vmatmul.mubr.f32.gmra.mrb[0].mxu0 %v1259
        %v2335 = vpop.f32.mrb[0].mxu0
        %v2336 = vadd.f32 0.0, %v2335
        %v2337 = vpop.f32.mrb[0].mxu0
        %2338 = vmatprep.mubr.f32.mxu0 0.0
        %2339 = vmatmul.mubr.f32.gmra.mrb[0].mxu0 %v1261
        %v2340 = vpop.f32.mrb[0].mxu0
        %v2341 = vadd.f32 0.0, %v2340
        %v2342 = vpop.f32.mrb[0].mxu0
        %2343 = vmatprep.mubr.f32.mxu0 0.0
        %2344 = vmatmul.mubr.f32.gmra.mrb[0].mxu0 %v1263
        %v2345 = vpop.f32.mrb[0].mxu0
        %v2346 = vadd.f32 0.0, %v2345
        %v2347 = vpop.f32.mrb[0].mxu0
        %2348 = vmatprep.mubr.f32.mxu0 0.0
        %2349 = vmatmul.mubr.f32.gmra.mrb[0].mxu0 %v1265
        %v2350 = vpop.f32.mrb[0].mxu0
        %v2351 = vadd.f32 0.0, %v2350
        %v2352 = vpop.f32.mrb[0].mxu0
        %2353 = vmatprep.mubr.f32.mxu0 0.0
        %2354 = vmatmul.mubr.f32.gmra.mrb[0].mxu0 %v1267
        %v2355 = vpop.f32.mrb[0].mxu0
        %v2356 = vadd.f32 0.0, %v2355
        %v2357 = vpop.f32.mrb[0].mxu0
        %2358 = vmatprep.mubr.f32.mxu0 0.0
        %2359 = vmatmul.mubr.f32.gmra.mrb[0].mxu0 %v1269
        %v2360 = vpop.f32.mrb[0].mxu0
        %v2361 = vadd.f32 0.0, %v2360
        %v2362 = vpop.f32.mrb[0].mxu0
        %2363 = vmatprep.mubr.f32.mxu0 0.0
        %2364 = vmatmul.mubr.f32.gmra.mrb[0].mxu0 %v1271
        %v2365 = vpop.f32.mrb[0].mxu0
        %v2366 = vadd.f32 0.0, %v2365
        %v2367 = vpop.f32.mrb[0].mxu0
        %2368 = vmatprep.mubr.f32.mxu0 0.0
        %2369 = vmatmul.mubr.f32.gmra.mrb[0].mxu0 %v1273
        %v2370 = vpop.f32.mrb[0].mxu0
        %v2371 = vadd.f32 0.0, %v2370
        %v2372 = vpop.f32.mrb[0].mxu0
        %2373 = vmatprep.mubr.f32.mxu0 0.0
        %2374 = vmatmul.mubr.f32.gmra.mrb[0].mxu0 %v1275
        %v2375 = vpop.f32.mrb[0].mxu0
        %v2376 = vadd.f32 0.0, %v2375
        %v2377 = vpop.f32.mrb[0].mxu0
        %2378 = vmatprep.mubr.f32.mxu0 0.0
        %2379 = vmatmul.mubr.f32.gmra.mrb[0].mxu0 %v1277
        %v2380 = vpop.f32.mrb[0].mxu0
        %v2381 = vadd.f32 0.0, %v2380
        %v2382 = vpop.f32.mrb[0].mxu0
        %2383 = vmatprep.mubr.f32.mxu0 0.0
        %2384 = vmatmul.mubr.f32.gmra.mrb[0].mxu0 %v1279
        %v2385 = vpop.f32.mrb[0].mxu0
        %v2386 = vadd.f32 0.0, %v2385
        %v2387 = vpop.f32.mrb[0].mxu0
        %2388 = vmatprep.mubr.f32.mxu0 0.0
        %2389 = vmatmul.mubr.f32.gmra.mrb[0].mxu0 %v1281
        %v2390 = vpop.f32.mrb[0].mxu0
        %v2391 = vadd.f32 0.0, %v2390
        %v2392 = vpop.f32.mrb[0].mxu0
        %2393 = vmatprep.mubr.f32.mxu0 0.0
        %2394 = vmatmul.mubr.f32.gmra.mrb[0].mxu0 %v1283
        %v2395 = vpop.f32.mrb[0].mxu0
        %v2396 = vadd.f32 0.0, %v2395
        %v2397 = vpop.f32.mrb[0].mxu0
        %2398 = vmatprep.mubr.f32.mxu0 0.0
        %2399 = vmatmul.mubr.f32.gmra.mrb[0].mxu0 %v1285
        %v2400 = vpop.f32.mrb[0].mxu0
        %v2401 = vadd.f32 0.0, %v2400
        %v2402 = vpop.f32.mrb[0].mxu0
        %2403 = vmatprep.mubr.f32.mxu0 0.0
        %2404 = vmatmul.mubr.f32.gmra.mrb[0].mxu0 %v1287
        %v2405 = vpop.f32.mrb[0].mxu0
        %v2406 = vadd.f32 0.0, %v2405
        %v2407 = vpop.f32.mrb[0].mxu0
        %2408 = vmatprep.mubr.f32.mxu0 0.0
        %2409 = vmatmul.mubr.f32.gmra.mrb[0].mxu0 %v1289
        %v2410 = vpop.f32.mrb[0].mxu0
        %v2411 = vadd.f32 0.0, %v2410
        %v2412 = vpop.f32.mrb[0].mxu0
        %2413 = vmatprep.mubr.f32.mxu0 0.0
        %2414 = vmatmul.mubr.f32.gmra.mrb[0].mxu0 %v1291
        %v2415 = vpop.f32.mrb[0].mxu0
        %v2416 = vadd.f32 0.0, %v2415
        %v2417 = vpop.f32.mrb[0].mxu0
        %2418 = vmatprep.mubr.f32.mxu0 0.0
        %2419 = vmatmul.mubr.f32.gmra.mrb[0].mxu0 %v1293
        %v2420 = vpop.f32.mrb[0].mxu0
        %v2421 = vadd.f32 0.0, %v2420
        %v2422 = vpop.f32.mrb[0].mxu0
        %2423 = vmatprep.mubr.f32.mxu0 0.0
        %2424 = vmatmul.mubr.f32.gmra.mrb[0].mxu0 %v1295
        %v2425 = vpop.f32.mrb[0].mxu0
        %v2426 = vadd.f32 0.0, %v2425
        %v2427 = vpop.f32.mrb[0].mxu0
        %2428 = vmatprep.mubr.f32.mxu0 0.0
        %2429 = vmatmul.mubr.f32.gmra.mrb[0].mxu0 %v1297
        %v2430 = vpop.f32.mrb[0].mxu0
        %v2431 = vadd.f32 0.0, %v2430
        %v2432 = vpop.f32.mrb[0].mxu0
        %2433 = vmatprep.mubr.f32.mxu0 0.0
        %2434 = vmatmul.mubr.f32.gmra.mrb[0].mxu0 %v1299
        %v2435 = vpop.f32.mrb[0].mxu0
        %v2436 = vadd.f32 0.0, %v2435
        %v2437 = vpop.f32.mrb[0].mxu0
        %2438 = vmatprep.mubr.f32.mxu0 0.0
        %2439 = vmatmul.mubr.f32.gmra.mrb[0].mxu0 %v1301
        %v2440 = vpop.f32.mrb[0].mxu0
        %v2441 = vadd.f32 0.0, %v2440
        %v2442 = vpop.f32.mrb[0].mxu0
        %2443 = vmatprep.mubr.f32.mxu0 0.0
        %2444 = vmatmul.mubr.f32.gmra.mrb[0].mxu0 %v1303
        %v2445 = vpop.f32.mrb[0].mxu0
        %v2446 = vadd.f32 0.0, %v2445
        %v2447 = vpop.f32.mrb[0].mxu0
        %2448 = vmatprep.mubr.f32.mxu0 0.0
        %2449 = vmatmul.mubr.f32.gmra.mrb[0].mxu0 %v1305
        %v2450 = vpop.f32.mrb[0].mxu0
        %v2451 = vadd.f32 0.0, %v2450
        %v2452 = vpop.f32.mrb[0].mxu0
        %2453 = vmatprep.mubr.f32.mxu0 0.0
        %2454 = vmatmul.mubr.f32.gmra.mrb[0].mxu0 %v1307
        %v2455 = vpop.f32.mrb[0].mxu0
        %v2456 = vadd.f32 0.0, %v2455
        %v2457 = vpop.f32.mrb[0].mxu0
        %2458 = vmatprep.mubr.f32.mxu0 0.0
        %2459 = vmatmul.mubr.f32.gmra.mrb[0].mxu0 %v1309
        %v2460 = vpop.f32.mrb[0].mxu0
        %v2461 = vadd.f32 0.0, %v2460
        %v2462 = vpop.f32.mrb[0].mxu0
        %2463 = vmatprep.mubr.f32.mxu0 0.0
        %2464 = vmatmul.mubr.f32.gmra.mrb[0].mxu0 %v1311
        %v2465 = vpop.f32.mrb[0].mxu0
        %v2466 = vadd.f32 0.0, %v2465
        %v2467 = vpop.f32.mrb[0].mxu0
        %2468 = vmatprep.mubr.f32.mxu0 0.0
        %2469 = vmatmul.mubr.f32.gmra.mrb[0].mxu0 %v1313
        %v2470 = vpop.f32.mrb[0].mxu0
        %v2471 = vadd.f32 0.0, %v2470
        %v2472 = vpop.f32.mrb[0].mxu0
        %2473 = vmatprep.mubr.f32.mxu0 0.0
        %2474 = vmatmul.mubr.f32.gmra.mrb[0].mxu0 %v1315
        %v2475 = vpop.f32.mrb[0].mxu0
        %v2476 = vadd.f32 0.0, %v2475
        %v2477 = vpop.f32.mrb[0].mxu0
        %2478 = vmatprep.mubr.f32.mxu0 0.0
        %2479 = vmatmul.mubr.f32.gmra.mrb[0].mxu0 %v1317
        %v2480 = vpop.f32.mrb[0].mxu0
        %v2481 = vadd.f32 0.0, %v2480
        %v2482 = vpop.f32.mrb[0].mxu0
        %2483 = vmatprep.mubr.f32.mxu0 0.0
        %2484 = vmatmul.mubr.f32.gmra.mrb[0].mxu0 %v2262
        %v2485 = vpop.f32.mrb[0].mxu0
        %v2486 = vadd.f32 0.0, %v2485
        %v2487 = vpop.f32.mrb[0].mxu0
        %2488 = vmatprep.mubr.f32.mxu0 0.0
        %2489 = vmatmul.mubr.f32.gmra.mrb[0].mxu0 %v2264
        %v2490 = vpop.f32.mrb[0].mxu0
        %v2491 = vadd.f32 0.0, %v2490
        %v2492 = vpop.f32.mrb[0].mxu0
        %2493 = vdwg.mxu0
        %v2494 = vadd.f32 %v2222, %v2336
        %v2495 = vadd.f32 %v2223, %v2341
        %v2496 = vadd.f32 %v2224, %v2346
        %v2497 = vadd.f32 %v2225, %v2351
        %v2498 = vadd.f32 %v2226, %v2356
        %v2499 = vadd.f32 %v2227, %v2361
        %v2500 = vadd.f32 %v2228, %v2366
        %v2501 = vadd.f32 %v2229, %v2371
        %v2502 = vadd.f32 %v2230, %v2376
        %v2503 = vadd.f32 %v2231, %v2381
        %v2504 = vadd.f32 %v2232, %v2386
        %v2505 = vadd.f32 %v2233, %v2391
        %v2506 = vadd.f32 %v2234, %v2396
        %v2507 = vadd.f32 %v2235, %v2401
        %v2508 = vadd.f32 %v2236, %v2406
        %v2509 = vadd.f32 %v2237, %v2411
        %v2510 = vadd.f32 %v2238, %v2416
        %v2511 = vadd.f32 %v2239, %v2421
        %v2512 = vadd.f32 %v2240, %v2426
        %v2513 = vadd.f32 %v2241, %v2431
        %v2514 = vadd.f32 %v2242, %v2436
        %v2515 = vadd.f32 %v2243, %v2441
        %v2516 = vadd.f32 %v2244, %v2446
        %v2517 = vadd.f32 %v2245, %v2451
        %v2518 = vadd.f32 %v2246, %v2456
        %v2519 = vadd.f32 %v2247, %v2461
        %v2520 = vadd.f32 %v2248, %v2466
        %v2521 = vadd.f32 %v2249, %v2471
        %v2522 = vadd.f32 %v2250, %v2476
        %v2523 = vadd.f32 %v2251, %v2481
        %v2524 = vadd.f32 %v2252, %v2486
        %v2525 = vadd.f32 %v2253, %v2491
        %v2526 = vrot.slane %v785, 2
        %v2527 = vrot.slane %v786, 2
        %v2528 = vsel %vm1579, %v2526, %v2527
        %v2529 = vrot.slane %v787, 2
        %v2530 = vsel %vm1579, %v2527, %v2529
        %s2531 = scalar_lea.vmem %s2, 20
        %v2532 = vld [vmem:[%s2531] sm:$0xf]
        %v2533 = vsel %vm452, %v2528, 0
        %v2535 = vsel %vm452, %v2530, 0
        %v2538 = vsel %vm895, %v2532, 0
        %2540 = vmatprep.subr.mxu0 0.0
        %2541 = vmatpush1.msra.mxu0 %v2538
        %2542 = vmatprep.subr.mxu0 0.0
        %2543 = vmatpush1.msra.mxu0 0.0
        %2544 = vmatprep.subr.mxu0 0.0
        %2545 = vmatpush1.msra.mxu0 0.0
        %2546 = vmatprep.subr.mxu0 0.0
        %2547 = vmatpush1.msra.mxu0 0.0
        %2548 = vmatprep.subr.mxu0 0.0
        %2549 = vmatpush1.msra.mxu0 0.0
        %2550 = vmatprep.subr.mxu0 0.0
        %2551 = vmatpush1.msra.mxu0 0.0
        %2552 = vmatprep.subr.mxu0 0.0
        %2553 = vmatpush1.msra.mxu0 0.0
        %2554 = vmatprep.subr.mxu0 0.0
        %2555 = vmatpush1.msra.mxu0 0.0
        %2556 = vmatprep.subr.mxu0 0.0
        %2557 = vmatpush1.msra.mxu0 0.0
        %2558 = vmatprep.subr.mxu0 0.0
        %2559 = vmatpush1.msra.mxu0 0.0
        %2560 = vmatprep.subr.mxu0 0.0
        %2561 = vmatpush1.msra.mxu0 0.0
        %2562 = vmatprep.subr.mxu0 0.0
        %2563 = vmatpush1.msra.mxu0 0.0
        %2564 = vmatprep.subr.mxu0 0.0
        %2565 = vmatpush1.msra.mxu0 0.0
        %2566 = vmatprep.subr.mxu0 0.0
        %2567 = vmatpush1.msra.mxu0 0.0
        %2568 = vmatprep.subr.mxu0 0.0
        %2569 = vmatpush1.msra.mxu0 0.0
        %2570 = vmatprep.subr.mxu0 0.0
        %2571 = vmatpush1.msra.mxu0 0.0
        %2572 = vmatprep.subr.mxu0 0.0
        %2573 = vmatpush1.msra.mxu0 0.0
        %2574 = vmatprep.subr.mxu0 0.0
        %2575 = vmatpush1.msra.mxu0 0.0
        %2576 = vmatprep.subr.mxu0 0.0
        %2577 = vmatpush1.msra.mxu0 0.0
        %2578 = vmatprep.subr.mxu0 0.0
        %2579 = vmatpush1.msra.mxu0 0.0
        %2580 = vmatprep.subr.mxu0 0.0
        %2581 = vmatpush1.msra.mxu0 0.0
        %2582 = vmatprep.subr.mxu0 0.0
        %2583 = vmatpush1.msra.mxu0 0.0
        %2584 = vmatprep.subr.mxu0 0.0
        %2585 = vmatpush1.msra.mxu0 0.0
        %2586 = vmatprep.subr.mxu0 0.0
        %2587 = vmatpush1.msra.mxu0 0.0
        %2588 = vmatprep.subr.mxu0 0.0
        %2589 = vmatpush1.msra.mxu0 0.0
        %2590 = vmatprep.subr.mxu0 0.0
        %2591 = vmatpush1.msra.mxu0 0.0
        %2592 = vmatprep.subr.mxu0 0.0
        %2593 = vmatpush1.msra.mxu0 0.0
        %2594 = vmatprep.subr.mxu0 0.0
        %2595 = vmatpush1.msra.mxu0 0.0
        %2596 = vmatprep.subr.mxu0 0.0
        %2597 = vmatpush1.msra.mxu0 0.0
        %2598 = vmatprep.subr.mxu0 0.0
        %2599 = vmatpush1.msra.mxu0 0.0
        %2600 = vmatprep.subr.mxu0 0.0
        %2601 = vmatpush1.msra.mxu0 0.0
        %2602 = vmatprep.subr.mxu0 0.0
        %2603 = vmatpush1.msra.mxu0 0.0
        %2604 = vmatprep.mubr.f32.mxu0 0.0
        %2605 = vmatmul.mubr.f32.gmra.mrb[0].mxu0 %v1666
        %v2606 = vpop.f32.mrb[0].mxu0
        %v2607 = vadd.f32 0.0, %v2606
        %v2608 = vpop.f32.mrb[0].mxu0
        %2609 = vmatprep.mubr.f32.mxu0 0.0
        %2610 = vmatmul.mubr.f32.gmra.mrb[0].mxu0 %v1668
        %v2611 = vpop.f32.mrb[0].mxu0
        %v2612 = vadd.f32 0.0, %v2611
        %v2613 = vpop.f32.mrb[0].mxu0
        %2614 = vmatprep.mubr.f32.mxu0 0.0
        %2615 = vmatmul.mubr.f32.gmra.mrb[0].mxu0 %v1670
        %v2616 = vpop.f32.mrb[0].mxu0
        %v2617 = vadd.f32 0.0, %v2616
        %v2618 = vpop.f32.mrb[0].mxu0
        %2619 = vmatprep.mubr.f32.mxu0 0.0
        %2620 = vmatmul.mubr.f32.gmra.mrb[0].mxu0 %v1672
        %v2621 = vpop.f32.mrb[0].mxu0
        %v2622 = vadd.f32 0.0, %v2621
        %v2623 = vpop.f32.mrb[0].mxu0
        %2624 = vmatprep.mubr.f32.mxu0 0.0
        %2625 = vmatmul.mubr.f32.gmra.mrb[0].mxu0 %v1674
        %v2626 = vpop.f32.mrb[0].mxu0
        %v2627 = vadd.f32 0.0, %v2626
        %v2628 = vpop.f32.mrb[0].mxu0
        %2629 = vmatprep.mubr.f32.mxu0 0.0
        %2630 = vmatmul.mubr.f32.gmra.mrb[0].mxu0 %v1676
        %v2631 = vpop.f32.mrb[0].mxu0
        %v2632 = vadd.f32 0.0, %v2631
        %v2633 = vpop.f32.mrb[0].mxu0
        %2634 = vmatprep.mubr.f32.mxu0 0.0
        %2635 = vmatmul.mubr.f32.gmra.mrb[0].mxu0 %v1678
        %v2636 = vpop.f32.mrb[0].mxu0
        %v2637 = vadd.f32 0.0, %v2636
        %v2638 = vpop.f32.mrb[0].mxu0
        %2639 = vmatprep.mubr.f32.mxu0 0.0
        %2640 = vmatmul.mubr.f32.gmra.mrb[0].mxu0 %v1680
        %v2641 = vpop.f32.mrb[0].mxu0
        %v2642 = vadd.f32 0.0, %v2641
        %v2643 = vpop.f32.mrb[0].mxu0
        %2644 = vmatprep.mubr.f32.mxu0 0.0
        %2645 = vmatmul.mubr.f32.gmra.mrb[0].mxu0 %v1682
        %v2646 = vpop.f32.mrb[0].mxu0
        %v2647 = vadd.f32 0.0, %v2646
        %v2648 = vpop.f32.mrb[0].mxu0
        %2649 = vmatprep.mubr.f32.mxu0 0.0
        %2650 = vmatmul.mubr.f32.gmra.mrb[0].mxu0 %v1684
        %v2651 = vpop.f32.mrb[0].mxu0
        %v2652 = vadd.f32 0.0, %v2651
        %v2653 = vpop.f32.mrb[0].mxu0
        %2654 = vmatprep.mubr.f32.mxu0 0.0
        %2655 = vmatmul.mubr.f32.gmra.mrb[0].mxu0 %v1686
        %v2656 = vpop.f32.mrb[0].mxu0
        %v2657 = vadd.f32 0.0, %v2656
        %v2658 = vpop.f32.mrb[0].mxu0
        %2659 = vmatprep.mubr.f32.mxu0 0.0
        %2660 = vmatmul.mubr.f32.gmra.mrb[0].mxu0 %v1688
        %v2661 = vpop.f32.mrb[0].mxu0
        %v2662 = vadd.f32 0.0, %v2661
        %v2663 = vpop.f32.mrb[0].mxu0
        %2664 = vmatprep.mubr.f32.mxu0 0.0
        %2665 = vmatmul.mubr.f32.gmra.mrb[0].mxu0 %v1690
        %v2666 = vpop.f32.mrb[0].mxu0
        %v2667 = vadd.f32 0.0, %v2666
        %v2668 = vpop.f32.mrb[0].mxu0
        %2669 = vmatprep.mubr.f32.mxu0 0.0
        %2670 = vmatmul.mubr.f32.gmra.mrb[0].mxu0 %v1692
        %v2671 = vpop.f32.mrb[0].mxu0
        %v2672 = vadd.f32 0.0, %v2671
        %v2673 = vpop.f32.mrb[0].mxu0
        %2674 = vmatprep.mubr.f32.mxu0 0.0
        %2675 = vmatmul.mubr.f32.gmra.mrb[0].mxu0 %v1694
        %v2676 = vpop.f32.mrb[0].mxu0
        %v2677 = vadd.f32 0.0, %v2676
        %v2678 = vpop.f32.mrb[0].mxu0
        %2679 = vmatprep.mubr.f32.mxu0 0.0
        %2680 = vmatmul.mubr.f32.gmra.mrb[0].mxu0 %v1696
        %v2681 = vpop.f32.mrb[0].mxu0
        %v2682 = vadd.f32 0.0, %v2681
        %v2683 = vpop.f32.mrb[0].mxu0
        %2684 = vmatprep.mubr.f32.mxu0 0.0
        %2685 = vmatmul.mubr.f32.gmra.mrb[0].mxu0 %v1698
        %v2686 = vpop.f32.mrb[0].mxu0
        %v2687 = vadd.f32 0.0, %v2686
        %v2688 = vpop.f32.mrb[0].mxu0
        %2689 = vmatprep.mubr.f32.mxu0 0.0
        %2690 = vmatmul.mubr.f32.gmra.mrb[0].mxu0 %v1700
        %v2691 = vpop.f32.mrb[0].mxu0
        %v2692 = vadd.f32 0.0, %v2691
        %v2693 = vpop.f32.mrb[0].mxu0
        %2694 = vmatprep.mubr.f32.mxu0 0.0
        %2695 = vmatmul.mubr.f32.gmra.mrb[0].mxu0 %v1702
        %v2696 = vpop.f32.mrb[0].mxu0
        %v2697 = vadd.f32 0.0, %v2696
        %v2698 = vpop.f32.mrb[0].mxu0
        %2699 = vmatprep.mubr.f32.mxu0 0.0
        %2700 = vmatmul.mubr.f32.gmra.mrb[0].mxu0 %v1704
        %v2701 = vpop.f32.mrb[0].mxu0
        %v2702 = vadd.f32 0.0, %v2701
        %v2703 = vpop.f32.mrb[0].mxu0
        %2704 = vmatprep.mubr.f32.mxu0 0.0
        %2705 = vmatmul.mubr.f32.gmra.mrb[0].mxu0 %v1706
        %v2706 = vpop.f32.mrb[0].mxu0
        %v2707 = vadd.f32 0.0, %v2706
        %v2708 = vpop.f32.mrb[0].mxu0
        %2709 = vmatprep.mubr.f32.mxu0 0.0
        %2710 = vmatmul.mubr.f32.gmra.mrb[0].mxu0 %v1708
        %v2711 = vpop.f32.mrb[0].mxu0
        %v2712 = vadd.f32 0.0, %v2711
        %v2713 = vpop.f32.mrb[0].mxu0
        %2714 = vmatprep.mubr.f32.mxu0 0.0
        %2715 = vmatmul.mubr.f32.gmra.mrb[0].mxu0 %v1710
        %v2716 = vpop.f32.mrb[0].mxu0
        %v2717 = vadd.f32 0.0, %v2716
        %v2718 = vpop.f32.mrb[0].mxu0
        %2719 = vmatprep.mubr.f32.mxu0 0.0
        %2720 = vmatmul.mubr.f32.gmra.mrb[0].mxu0 %v1712
        %v2721 = vpop.f32.mrb[0].mxu0
        %v2722 = vadd.f32 0.0, %v2721
        %v2723 = vpop.f32.mrb[0].mxu0
        %2724 = vmatprep.mubr.f32.mxu0 0.0
        %2725 = vmatmul.mubr.f32.gmra.mrb[0].mxu0 %v1714
        %v2726 = vpop.f32.mrb[0].mxu0
        %v2727 = vadd.f32 0.0, %v2726
        %v2728 = vpop.f32.mrb[0].mxu0
        %2729 = vmatprep.mubr.f32.mxu0 0.0
        %2730 = vmatmul.mubr.f32.gmra.mrb[0].mxu0 %v1716
        %v2731 = vpop.f32.mrb[0].mxu0
        %v2732 = vadd.f32 0.0, %v2731
        %v2733 = vpop.f32.mrb[0].mxu0
        %2734 = vmatprep.mubr.f32.mxu0 0.0
        %2735 = vmatmul.mubr.f32.gmra.mrb[0].mxu0 %v1718
        %v2736 = vpop.f32.mrb[0].mxu0
        %v2737 = vadd.f32 0.0, %v2736
        %v2738 = vpop.f32.mrb[0].mxu0
        %2739 = vmatprep.mubr.f32.mxu0 0.0
        %2740 = vmatmul.mubr.f32.gmra.mrb[0].mxu0 %v1720
        %v2741 = vpop.f32.mrb[0].mxu0
        %v2742 = vadd.f32 0.0, %v2741
        %v2743 = vpop.f32.mrb[0].mxu0
        %2744 = vmatprep.mubr.f32.mxu0 0.0
        %2745 = vmatmul.mubr.f32.gmra.mrb[0].mxu0 %v1722
        %v2746 = vpop.f32.mrb[0].mxu0
        %v2747 = vadd.f32 0.0, %v2746
        %v2748 = vpop.f32.mrb[0].mxu0
        %2749 = vmatprep.mubr.f32.mxu0 0.0
        %2750 = vmatmul.mubr.f32.gmra.mrb[0].mxu0 %v1724
        %v2751 = vpop.f32.mrb[0].mxu0
        %v2752 = vadd.f32 0.0, %v2751
        %v2753 = vpop.f32.mrb[0].mxu0
        %2754 = vmatprep.mubr.f32.mxu0 0.0
        %2755 = vmatmul.mubr.f32.gmra.mrb[0].mxu0 %v2533
        %v2756 = vpop.f32.mrb[0].mxu0
        %v2757 = vadd.f32 0.0, %v2756
        %v2758 = vpop.f32.mrb[0].mxu0
        %2759 = vmatprep.mubr.f32.mxu0 0.0
        %2760 = vmatmul.mubr.f32.gmra.mrb[0].mxu0 %v2535
        %v2761 = vpop.f32.mrb[0].mxu0
        %v2762 = vadd.f32 0.0, %v2761
        %v2763 = vpop.f32.mrb[0].mxu0
        %2764 = vdwg.mxu0
        %v2765 = vadd.f32 %v2494, %v2607
        %v2766 = vadd.f32 %v2495, %v2612
        %v2767 = vadd.f32 %v2496, %v2617
        %v2768 = vadd.f32 %v2497, %v2622
        %v2769 = vadd.f32 %v2498, %v2627
        %v2770 = vadd.f32 %v2499, %v2632
        %v2771 = vadd.f32 %v2500, %v2637
        %v2772 = vadd.f32 %v2501, %v2642
        %v2773 = vadd.f32 %v2502, %v2647
        %v2774 = vadd.f32 %v2503, %v2652
        %v2775 = vadd.f32 %v2504, %v2657
        %v2776 = vadd.f32 %v2505, %v2662
        %v2777 = vadd.f32 %v2506, %v2667
        %v2778 = vadd.f32 %v2507, %v2672
        %v2779 = vadd.f32 %v2508, %v2677
        %v2780 = vadd.f32 %v2509, %v2682
        %v2781 = vadd.f32 %v2510, %v2687
        %v2782 = vadd.f32 %v2511, %v2692
        %v2783 = vadd.f32 %v2512, %v2697
        %v2784 = vadd.f32 %v2513, %v2702
        %v2785 = vadd.f32 %v2514, %v2707
        %v2786 = vadd.f32 %v2515, %v2712
        %v2787 = vadd.f32 %v2516, %v2717
        %v2788 = vadd.f32 %v2517, %v2722
        %v2789 = vadd.f32 %v2518, %v2727
        %v2790 = vadd.f32 %v2519, %v2732
        %v2791 = vadd.f32 %v2520, %v2737
        %v2792 = vadd.f32 %v2521, %v2742
        %v2793 = vadd.f32 %v2522, %v2747
        %v2794 = vadd.f32 %v2523, %v2752
        %v2795 = vadd.f32 %v2524, %v2757
        %v2796 = vadd.f32 %v2525, %v2762
        %s2797 = scalar_lea.vmem %s2, 24
        %v2798 = vld [vmem:[%s2797] sm:$0xf]
        %v2800 = vsel %vm452, %v788, 0
        %v2803 = vsel %vm452, %v789, 0
        %v2806 = vsel %vm895, %v2798, 0
        %2808 = vmatprep.subr.mxu0 0.0
        %2809 = vmatpush1.msra.mxu0 %v2806
        %2810 = vmatprep.subr.mxu0 0.0
        %2811 = vmatpush1.msra.mxu0 0.0
        %2812 = vmatprep.subr.mxu0 0.0
        %2813 = vmatpush1.msra.mxu0 0.0
        %2814 = vmatprep.subr.mxu0 0.0
        %2815 = vmatpush1.msra.mxu0 0.0
        %2816 = vmatprep.subr.mxu0 0.0
        %2817 = vmatpush1.msra.mxu0 0.0
        %2818 = vmatprep.subr.mxu0 0.0
        %2819 = vmatpush1.msra.mxu0 0.0
        %2820 = vmatprep.subr.mxu0 0.0
        %2821 = vmatpush1.msra.mxu0 0.0
        %2822 = vmatprep.subr.mxu0 0.0
        %2823 = vmatpush1.msra.mxu0 0.0
        %2824 = vmatprep.subr.mxu0 0.0
        %2825 = vmatpush1.msra.mxu0 0.0
        %2826 = vmatprep.subr.mxu0 0.0
        %2827 = vmatpush1.msra.mxu0 0.0
        %2828 = vmatprep.subr.mxu0 0.0
        %2829 = vmatpush1.msra.mxu0 0.0
        %2830 = vmatprep.subr.mxu0 0.0
        %2831 = vmatpush1.msra.mxu0 0.0
        %2832 = vmatprep.subr.mxu0 0.0
        %2833 = vmatpush1.msra.mxu0 0.0
        %2834 = vmatprep.subr.mxu0 0.0
        %2835 = vmatpush1.msra.mxu0 0.0
        %2836 = vmatprep.subr.mxu0 0.0
        %2837 = vmatpush1.msra.mxu0 0.0
        %2838 = vmatprep.subr.mxu0 0.0
        %2839 = vmatpush1.msra.mxu0 0.0
        %2840 = vmatprep.subr.mxu0 0.0
        %2841 = vmatpush1.msra.mxu0 0.0
        %2842 = vmatprep.subr.mxu0 0.0
        %2843 = vmatpush1.msra.mxu0 0.0
        %2844 = vmatprep.subr.mxu0 0.0
        %2845 = vmatpush1.msra.mxu0 0.0
        %2846 = vmatprep.subr.mxu0 0.0
        %2847 = vmatpush1.msra.mxu0 0.0
        %2848 = vmatprep.subr.mxu0 0.0
        %2849 = vmatpush1.msra.mxu0 0.0
        %2850 = vmatprep.subr.mxu0 0.0
        %2851 = vmatpush1.msra.mxu0 0.0
        %2852 = vmatprep.subr.mxu0 0.0
        %2853 = vmatpush1.msra.mxu0 0.0
        %2854 = vmatprep.subr.mxu0 0.0
        %2855 = vmatpush1.msra.mxu0 0.0
        %2856 = vmatprep.subr.mxu0 0.0
        %2857 = vmatpush1.msra.mxu0 0.0
        %2858 = vmatprep.subr.mxu0 0.0
        %2859 = vmatpush1.msra.mxu0 0.0
        %2860 = vmatprep.subr.mxu0 0.0
        %2861 = vmatpush1.msra.mxu0 0.0
        %2862 = vmatprep.subr.mxu0 0.0
        %2863 = vmatpush1.msra.mxu0 0.0
        %2864 = vmatprep.subr.mxu0 0.0
        %2865 = vmatpush1.msra.mxu0 0.0
        %2866 = vmatprep.subr.mxu0 0.0
        %2867 = vmatpush1.msra.mxu0 0.0
        %2868 = vmatprep.subr.mxu0 0.0
        %2869 = vmatpush1.msra.mxu0 0.0
        %2870 = vmatprep.subr.mxu0 0.0
        %2871 = vmatpush1.msra.mxu0 0.0
        %2872 = vmatprep.mubr.f32.mxu0 0.0
        %2873 = vmatmul.mubr.f32.gmra.mrb[0].mxu0 %v812
        %v2874 = vpop.f32.mrb[0].mxu0
        %v2875 = vadd.f32 0.0, %v2874
        %v2876 = vpop.f32.mrb[0].mxu0
        %2877 = vmatprep.mubr.f32.mxu0 0.0
        %2878 = vmatmul.mubr.f32.gmra.mrb[0].mxu0 %v815
        %v2879 = vpop.f32.mrb[0].mxu0
        %v2880 = vadd.f32 0.0, %v2879
        %v2881 = vpop.f32.mrb[0].mxu0
        %2882 = vmatprep.mubr.f32.mxu0 0.0
        %2883 = vmatmul.mubr.f32.gmra.mrb[0].mxu0 %v818
        %v2884 = vpop.f32.mrb[0].mxu0
        %v2885 = vadd.f32 0.0, %v2884
        %v2886 = vpop.f32.mrb[0].mxu0
        %2887 = vmatprep.mubr.f32.mxu0 0.0
        %2888 = vmatmul.mubr.f32.gmra.mrb[0].mxu0 %v821
        %v2889 = vpop.f32.mrb[0].mxu0
        %v2890 = vadd.f32 0.0, %v2889
        %v2891 = vpop.f32.mrb[0].mxu0
        %2892 = vmatprep.mubr.f32.mxu0 0.0
        %2893 = vmatmul.mubr.f32.gmra.mrb[0].mxu0 %v824
        %v2894 = vpop.f32.mrb[0].mxu0
        %v2895 = vadd.f32 0.0, %v2894
        %v2896 = vpop.f32.mrb[0].mxu0
        %2897 = vmatprep.mubr.f32.mxu0 0.0
        %2898 = vmatmul.mubr.f32.gmra.mrb[0].mxu0 %v827
        %v2899 = vpop.f32.mrb[0].mxu0
        %v2900 = vadd.f32 0.0, %v2899
        %v2901 = vpop.f32.mrb[0].mxu0
        %2902 = vmatprep.mubr.f32.mxu0 0.0
        %2903 = vmatmul.mubr.f32.gmra.mrb[0].mxu0 %v830
        %v2904 = vpop.f32.mrb[0].mxu0
        %v2905 = vadd.f32 0.0, %v2904
        %v2906 = vpop.f32.mrb[0].mxu0
        %2907 = vmatprep.mubr.f32.mxu0 0.0
        %2908 = vmatmul.mubr.f32.gmra.mrb[0].mxu0 %v833
        %v2909 = vpop.f32.mrb[0].mxu0
        %v2910 = vadd.f32 0.0, %v2909
        %v2911 = vpop.f32.mrb[0].mxu0
        %2912 = vmatprep.mubr.f32.mxu0 0.0
        %2913 = vmatmul.mubr.f32.gmra.mrb[0].mxu0 %v836
        %v2914 = vpop.f32.mrb[0].mxu0
        %v2915 = vadd.f32 0.0, %v2914
        %v2916 = vpop.f32.mrb[0].mxu0
        %2917 = vmatprep.mubr.f32.mxu0 0.0
        %2918 = vmatmul.mubr.f32.gmra.mrb[0].mxu0 %v839
        %v2919 = vpop.f32.mrb[0].mxu0
        %v2920 = vadd.f32 0.0, %v2919
        %v2921 = vpop.f32.mrb[0].mxu0
        %2922 = vmatprep.mubr.f32.mxu0 0.0
        %2923 = vmatmul.mubr.f32.gmra.mrb[0].mxu0 %v842
        %v2924 = vpop.f32.mrb[0].mxu0
        %v2925 = vadd.f32 0.0, %v2924
        %v2926 = vpop.f32.mrb[0].mxu0
        %2927 = vmatprep.mubr.f32.mxu0 0.0
        %2928 = vmatmul.mubr.f32.gmra.mrb[0].mxu0 %v845
        %v2929 = vpop.f32.mrb[0].mxu0
        %v2930 = vadd.f32 0.0, %v2929
        %v2931 = vpop.f32.mrb[0].mxu0
        %2932 = vmatprep.mubr.f32.mxu0 0.0
        %2933 = vmatmul.mubr.f32.gmra.mrb[0].mxu0 %v848
        %v2934 = vpop.f32.mrb[0].mxu0
        %v2935 = vadd.f32 0.0, %v2934
        %v2936 = vpop.f32.mrb[0].mxu0
        %2937 = vmatprep.mubr.f32.mxu0 0.0
        %2938 = vmatmul.mubr.f32.gmra.mrb[0].mxu0 %v851
        %v2939 = vpop.f32.mrb[0].mxu0
        %v2940 = vadd.f32 0.0, %v2939
        %v2941 = vpop.f32.mrb[0].mxu0
        %2942 = vmatprep.mubr.f32.mxu0 0.0
        %2943 = vmatmul.mubr.f32.gmra.mrb[0].mxu0 %v854
        %v2944 = vpop.f32.mrb[0].mxu0
        %v2945 = vadd.f32 0.0, %v2944
        %v2946 = vpop.f32.mrb[0].mxu0
        %2947 = vmatprep.mubr.f32.mxu0 0.0
        %2948 = vmatmul.mubr.f32.gmra.mrb[0].mxu0 %v857
        %v2949 = vpop.f32.mrb[0].mxu0
        %v2950 = vadd.f32 0.0, %v2949
        %v2951 = vpop.f32.mrb[0].mxu0
        %2952 = vmatprep.mubr.f32.mxu0 0.0
        %2953 = vmatmul.mubr.f32.gmra.mrb[0].mxu0 %v860
        %v2954 = vpop.f32.mrb[0].mxu0
        %v2955 = vadd.f32 0.0, %v2954
        %v2956 = vpop.f32.mrb[0].mxu0
        %2957 = vmatprep.mubr.f32.mxu0 0.0
        %2958 = vmatmul.mubr.f32.gmra.mrb[0].mxu0 %v863
        %v2959 = vpop.f32.mrb[0].mxu0
        %v2960 = vadd.f32 0.0, %v2959
        %v2961 = vpop.f32.mrb[0].mxu0
        %2962 = vmatprep.mubr.f32.mxu0 0.0
        %2963 = vmatmul.mubr.f32.gmra.mrb[0].mxu0 %v866
        %v2964 = vpop.f32.mrb[0].mxu0
        %v2965 = vadd.f32 0.0, %v2964
        %v2966 = vpop.f32.mrb[0].mxu0
        %2967 = vmatprep.mubr.f32.mxu0 0.0
        %2968 = vmatmul.mubr.f32.gmra.mrb[0].mxu0 %v869
        %v2969 = vpop.f32.mrb[0].mxu0
        %v2970 = vadd.f32 0.0, %v2969
        %v2971 = vpop.f32.mrb[0].mxu0
        %2972 = vmatprep.mubr.f32.mxu0 0.0
        %2973 = vmatmul.mubr.f32.gmra.mrb[0].mxu0 %v872
        %v2974 = vpop.f32.mrb[0].mxu0
        %v2975 = vadd.f32 0.0, %v2974
        %v2976 = vpop.f32.mrb[0].mxu0
        %2977 = vmatprep.mubr.f32.mxu0 0.0
        %2978 = vmatmul.mubr.f32.gmra.mrb[0].mxu0 %v875
        %v2979 = vpop.f32.mrb[0].mxu0
        %v2980 = vadd.f32 0.0, %v2979
        %v2981 = vpop.f32.mrb[0].mxu0
        %2982 = vmatprep.mubr.f32.mxu0 0.0
        %2983 = vmatmul.mubr.f32.gmra.mrb[0].mxu0 %v878
        %v2984 = vpop.f32.mrb[0].mxu0
        %v2985 = vadd.f32 0.0, %v2984
        %v2986 = vpop.f32.mrb[0].mxu0
        %2987 = vmatprep.mubr.f32.mxu0 0.0
        %2988 = vmatmul.mubr.f32.gmra.mrb[0].mxu0 %v881
        %v2989 = vpop.f32.mrb[0].mxu0
        %v2990 = vadd.f32 0.0, %v2989
        %v2991 = vpop.f32.mrb[0].mxu0
        %2992 = vmatprep.mubr.f32.mxu0 0.0
        %2993 = vmatmul.mubr.f32.gmra.mrb[0].mxu0 %v884
        %v2994 = vpop.f32.mrb[0].mxu0
        %v2995 = vadd.f32 0.0, %v2994
        %v2996 = vpop.f32.mrb[0].mxu0
        %2997 = vmatprep.mubr.f32.mxu0 0.0
        %2998 = vmatmul.mubr.f32.gmra.mrb[0].mxu0 %v887
        %v2999 = vpop.f32.mrb[0].mxu0
        %v3000 = vadd.f32 0.0, %v2999
        %v3001 = vpop.f32.mrb[0].mxu0
        %3002 = vmatprep.mubr.f32.mxu0 0.0
        %3003 = vmatmul.mubr.f32.gmra.mrb[0].mxu0 %v890
        %v3004 = vpop.f32.mrb[0].mxu0
        %v3005 = vadd.f32 0.0, %v3004
        %v3006 = vpop.f32.mrb[0].mxu0
        %3007 = vmatprep.mubr.f32.mxu0 0.0
        %3008 = vmatmul.mubr.f32.gmra.mrb[0].mxu0 %v893
        %v3009 = vpop.f32.mrb[0].mxu0
        %v3010 = vadd.f32 0.0, %v3009
        %v3011 = vpop.f32.mrb[0].mxu0
        %3012 = vmatprep.mubr.f32.mxu0 0.0
        %3013 = vmatmul.mubr.f32.gmra.mrb[0].mxu0 %v1989
        %v3014 = vpop.f32.mrb[0].mxu0
        %v3015 = vadd.f32 0.0, %v3014
        %v3016 = vpop.f32.mrb[0].mxu0
        %3017 = vmatprep.mubr.f32.mxu0 0.0
        %3018 = vmatmul.mubr.f32.gmra.mrb[0].mxu0 %v1992
        %v3019 = vpop.f32.mrb[0].mxu0
        %v3020 = vadd.f32 0.0, %v3019
        %v3021 = vpop.f32.mrb[0].mxu0
        %3022 = vmatprep.mubr.f32.mxu0 0.0
        %3023 = vmatmul.mubr.f32.gmra.mrb[0].mxu0 %v2800
        %v3024 = vpop.f32.mrb[0].mxu0
        %v3025 = vadd.f32 0.0, %v3024
        %v3026 = vpop.f32.mrb[0].mxu0
        %3027 = vmatprep.mubr.f32.mxu0 0.0
        %3028 = vmatmul.mubr.f32.gmra.mrb[0].mxu0 %v2803
        %v3029 = vpop.f32.mrb[0].mxu0
        %v3030 = vadd.f32 0.0, %v3029
        %v3031 = vpop.f32.mrb[0].mxu0
        %3032 = vdwg.mxu0
        %v3033 = vadd.f32 %v2765, %v2875
        %v3034 = vadd.f32 %v2766, %v2880
        %v3035 = vadd.f32 %v2767, %v2885
        %v3036 = vadd.f32 %v2768, %v2890
        %v3037 = vadd.f32 %v2769, %v2895
        %v3038 = vadd.f32 %v2770, %v2900
        %v3039 = vadd.f32 %v2771, %v2905
        %v3040 = vadd.f32 %v2772, %v2910
        %v3041 = vadd.f32 %v2773, %v2915
        %v3042 = vadd.f32 %v2774, %v2920
        %v3043 = vadd.f32 %v2775, %v2925
        %v3044 = vadd.f32 %v2776, %v2930
        %v3045 = vadd.f32 %v2777, %v2935
        %v3046 = vadd.f32 %v2778, %v2940
        %v3047 = vadd.f32 %v2779, %v2945
        %v3048 = vadd.f32 %v2780, %v2950
        %v3049 = vadd.f32 %v2781, %v2955
        %v3050 = vadd.f32 %v2782, %v2960
        %v3051 = vadd.f32 %v2783, %v2965
        %v3052 = vadd.f32 %v2784, %v2970
        %v3053 = vadd.f32 %v2785, %v2975
        %v3054 = vadd.f32 %v2786, %v2980
        %v3055 = vadd.f32 %v2787, %v2985
        %v3056 = vadd.f32 %v2788, %v2990
        %v3057 = vadd.f32 %v2789, %v2995
        %v3058 = vadd.f32 %v2790, %v3000
        %v3059 = vadd.f32 %v2791, %v3005
        %v3060 = vadd.f32 %v2792, %v3010
        %v3061 = vadd.f32 %v2793, %v3015
        %v3062 = vadd.f32 %v2794, %v3020
        %v3063 = vadd.f32 %v2795, %v3025
        %v3064 = vadd.f32 %v2796, %v3030
        %v3066 = vrot.slane %v788, 1
        %v3067 = vrot.slane %v789, 1
        %v3068 = vsel %vm1172, %v3066, %v3067
        %v3069 = vrot.slane %v790, 1
        %v3070 = vsel %vm1172, %v3067, %v3069
        %s3071 = scalar_lea.vmem %s2, 28
        %v3072 = vld [vmem:[%s3071] sm:$0xf]
        %v3073 = vsel %vm452, %v3068, 0
        %v3075 = vsel %vm452, %v3070, 0
        %v3078 = vsel %vm895, %v3072, 0
        %3080 = vmatprep.subr.mxu0 0.0
        %3081 = vmatpush1.msra.mxu0 %v3078
        %3082 = vmatprep.subr.mxu0 0.0
        %3083 = vmatpush1.msra.mxu0 0.0
        %3084 = vmatprep.subr.mxu0 0.0
        %3085 = vmatpush1.msra.mxu0 0.0
        %3086 = vmatprep.subr.mxu0 0.0
        %3087 = vmatpush1.msra.mxu0 0.0
        %3088 = vmatprep.subr.mxu0 0.0
        %3089 = vmatpush1.msra.mxu0 0.0
        %3090 = vmatprep.subr.mxu0 0.0
        %3091 = vmatpush1.msra.mxu0 0.0
        %3092 = vmatprep.subr.mxu0 0.0
        %3093 = vmatpush1.msra.mxu0 0.0
        %3094 = vmatprep.subr.mxu0 0.0
        %3095 = vmatpush1.msra.mxu0 0.0
        %3096 = vmatprep.subr.mxu0 0.0
        %3097 = vmatpush1.msra.mxu0 0.0
        %3098 = vmatprep.subr.mxu0 0.0
        %3099 = vmatpush1.msra.mxu0 0.0
        %3100 = vmatprep.subr.mxu0 0.0
        %3101 = vmatpush1.msra.mxu0 0.0
        %3102 = vmatprep.subr.mxu0 0.0
        %3103 = vmatpush1.msra.mxu0 0.0
        %3104 = vmatprep.subr.mxu0 0.0
        %3105 = vmatpush1.msra.mxu0 0.0
        %3106 = vmatprep.subr.mxu0 0.0
        %3107 = vmatpush1.msra.mxu0 0.0
        %3108 = vmatprep.subr.mxu0 0.0
        %3109 = vmatpush1.msra.mxu0 0.0
        %3110 = vmatprep.subr.mxu0 0.0
        %3111 = vmatpush1.msra.mxu0 0.0
        %3112 = vmatprep.subr.mxu0 0.0
        %3113 = vmatpush1.msra.mxu0 0.0
        %3114 = vmatprep.subr.mxu0 0.0
        %3115 = vmatpush1.msra.mxu0 0.0
        %3116 = vmatprep.subr.mxu0 0.0
        %3117 = vmatpush1.msra.mxu0 0.0
        %3118 = vmatprep.subr.mxu0 0.0
        %3119 = vmatpush1.msra.mxu0 0.0
        %3120 = vmatprep.subr.mxu0 0.0
        %3121 = vmatpush1.msra.mxu0 0.0
        %3122 = vmatprep.subr.mxu0 0.0
        %3123 = vmatpush1.msra.mxu0 0.0
        %3124 = vmatprep.subr.mxu0 0.0
        %3125 = vmatpush1.msra.mxu0 0.0
        %3126 = vmatprep.subr.mxu0 0.0
        %3127 = vmatpush1.msra.mxu0 0.0
        %3128 = vmatprep.subr.mxu0 0.0
        %3129 = vmatpush1.msra.mxu0 0.0
        %3130 = vmatprep.subr.mxu0 0.0
        %3131 = vmatpush1.msra.mxu0 0.0
        %3132 = vmatprep.subr.mxu0 0.0
        %3133 = vmatpush1.msra.mxu0 0.0
        %3134 = vmatprep.subr.mxu0 0.0
        %3135 = vmatpush1.msra.mxu0 0.0
        %3136 = vmatprep.subr.mxu0 0.0
        %3137 = vmatpush1.msra.mxu0 0.0
        %3138 = vmatprep.subr.mxu0 0.0
        %3139 = vmatpush1.msra.mxu0 0.0
        %3140 = vmatprep.subr.mxu0 0.0
        %3141 = vmatpush1.msra.mxu0 0.0
        %3142 = vmatprep.subr.mxu0 0.0
        %3143 = vmatpush1.msra.mxu0 0.0
        %3144 = vmatprep.mubr.f32.mxu0 0.0
        %3145 = vmatmul.mubr.f32.gmra.mrb[0].mxu0 %v1263
        %v3146 = vpop.f32.mrb[0].mxu0
        %v3147 = vadd.f32 0.0, %v3146
        %v3148 = vpop.f32.mrb[0].mxu0
        %3149 = vmatprep.mubr.f32.mxu0 0.0
        %3150 = vmatmul.mubr.f32.gmra.mrb[0].mxu0 %v1265
        %v3151 = vpop.f32.mrb[0].mxu0
        %v3152 = vadd.f32 0.0, %v3151
        %v3153 = vpop.f32.mrb[0].mxu0
        %3154 = vmatprep.mubr.f32.mxu0 0.0
        %3155 = vmatmul.mubr.f32.gmra.mrb[0].mxu0 %v1267
        %v3156 = vpop.f32.mrb[0].mxu0
        %v3157 = vadd.f32 0.0, %v3156
        %v3158 = vpop.f32.mrb[0].mxu0
        %3159 = vmatprep.mubr.f32.mxu0 0.0
        %3160 = vmatmul.mubr.f32.gmra.mrb[0].mxu0 %v1269
        %v3161 = vpop.f32.mrb[0].mxu0
        %v3162 = vadd.f32 0.0, %v3161
        %v3163 = vpop.f32.mrb[0].mxu0
        %3164 = vmatprep.mubr.f32.mxu0 0.0
        %3165 = vmatmul.mubr.f32.gmra.mrb[0].mxu0 %v1271
        %v3166 = vpop.f32.mrb[0].mxu0
        %v3167 = vadd.f32 0.0, %v3166
        %v3168 = vpop.f32.mrb[0].mxu0
        %3169 = vmatprep.mubr.f32.mxu0 0.0
        %3170 = vmatmul.mubr.f32.gmra.mrb[0].mxu0 %v1273
        %v3171 = vpop.f32.mrb[0].mxu0
        %v3172 = vadd.f32 0.0, %v3171
        %v3173 = vpop.f32.mrb[0].mxu0
        %3174 = vmatprep.mubr.f32.mxu0 0.0
        %3175 = vmatmul.mubr.f32.gmra.mrb[0].mxu0 %v1275
        %v3176 = vpop.f32.mrb[0].mxu0
        %v3177 = vadd.f32 0.0, %v3176
        %v3178 = vpop.f32.mrb[0].mxu0
        %3179 = vmatprep.mubr.f32.mxu0 0.0
        %3180 = vmatmul.mubr.f32.gmra.mrb[0].mxu0 %v1277
        %v3181 = vpop.f32.mrb[0].mxu0
        %v3182 = vadd.f32 0.0, %v3181
        %v3183 = vpop.f32.mrb[0].mxu0
        %3184 = vmatprep.mubr.f32.mxu0 0.0
        %3185 = vmatmul.mubr.f32.gmra.mrb[0].mxu0 %v1279
        %v3186 = vpop.f32.mrb[0].mxu0
        %v3187 = vadd.f32 0.0, %v3186
        %v3188 = vpop.f32.mrb[0].mxu0
        %3189 = vmatprep.mubr.f32.mxu0 0.0
        %3190 = vmatmul.mubr.f32.gmra.mrb[0].mxu0 %v1281
        %v3191 = vpop.f32.mrb[0].mxu0
        %v3192 = vadd.f32 0.0, %v3191
        %v3193 = vpop.f32.mrb[0].mxu0
        %3194 = vmatprep.mubr.f32.mxu0 0.0
        %3195 = vmatmul.mubr.f32.gmra.mrb[0].mxu0 %v1283
        %v3196 = vpop.f32.mrb[0].mxu0
        %v3197 = vadd.f32 0.0, %v3196
        %v3198 = vpop.f32.mrb[0].mxu0
        %3199 = vmatprep.mubr.f32.mxu0 0.0
        %3200 = vmatmul.mubr.f32.gmra.mrb[0].mxu0 %v1285
        %v3201 = vpop.f32.mrb[0].mxu0
        %v3202 = vadd.f32 0.0, %v3201
        %v3203 = vpop.f32.mrb[0].mxu0
        %3204 = vmatprep.mubr.f32.mxu0 0.0
        %3205 = vmatmul.mubr.f32.gmra.mrb[0].mxu0 %v1287
        %v3206 = vpop.f32.mrb[0].mxu0
        %v3207 = vadd.f32 0.0, %v3206
        %v3208 = vpop.f32.mrb[0].mxu0
        %3209 = vmatprep.mubr.f32.mxu0 0.0
        %3210 = vmatmul.mubr.f32.gmra.mrb[0].mxu0 %v1289
        %v3211 = vpop.f32.mrb[0].mxu0
        %v3212 = vadd.f32 0.0, %v3211
        %v3213 = vpop.f32.mrb[0].mxu0
        %3214 = vmatprep.mubr.f32.mxu0 0.0
        %3215 = vmatmul.mubr.f32.gmra.mrb[0].mxu0 %v1291
        %v3216 = vpop.f32.mrb[0].mxu0
        %v3217 = vadd.f32 0.0, %v3216
        %v3218 = vpop.f32.mrb[0].mxu0
        %3219 = vmatprep.mubr.f32.mxu0 0.0
        %3220 = vmatmul.mubr.f32.gmra.mrb[0].mxu0 %v1293
        %v3221 = vpop.f32.mrb[0].mxu0
        %v3222 = vadd.f32 0.0, %v3221
        %v3223 = vpop.f32.mrb[0].mxu0
        %3224 = vmatprep.mubr.f32.mxu0 0.0
        %3225 = vmatmul.mubr.f32.gmra.mrb[0].mxu0 %v1295
        %v3226 = vpop.f32.mrb[0].mxu0
        %v3227 = vadd.f32 0.0, %v3226
        %v3228 = vpop.f32.mrb[0].mxu0
        %3229 = vmatprep.mubr.f32.mxu0 0.0
        %3230 = vmatmul.mubr.f32.gmra.mrb[0].mxu0 %v1297
        %v3231 = vpop.f32.mrb[0].mxu0
        %v3232 = vadd.f32 0.0, %v3231
        %v3233 = vpop.f32.mrb[0].mxu0
        %3234 = vmatprep.mubr.f32.mxu0 0.0
        %3235 = vmatmul.mubr.f32.gmra.mrb[0].mxu0 %v1299
        %v3236 = vpop.f32.mrb[0].mxu0
        %v3237 = vadd.f32 0.0, %v3236
        %v3238 = vpop.f32.mrb[0].mxu0
        %3239 = vmatprep.mubr.f32.mxu0 0.0
        %3240 = vmatmul.mubr.f32.gmra.mrb[0].mxu0 %v1301
        %v3241 = vpop.f32.mrb[0].mxu0
        %v3242 = vadd.f32 0.0, %v3241
        %v3243 = vpop.f32.mrb[0].mxu0
        %3244 = vmatprep.mubr.f32.mxu0 0.0
        %3245 = vmatmul.mubr.f32.gmra.mrb[0].mxu0 %v1303
        %v3246 = vpop.f32.mrb[0].mxu0
        %v3247 = vadd.f32 0.0, %v3246
        %v3248 = vpop.f32.mrb[0].mxu0
        %3249 = vmatprep.mubr.f32.mxu0 0.0
        %3250 = vmatmul.mubr.f32.gmra.mrb[0].mxu0 %v1305
        %v3251 = vpop.f32.mrb[0].mxu0
        %v3252 = vadd.f32 0.0, %v3251
        %v3253 = vpop.f32.mrb[0].mxu0
        %3254 = vmatprep.mubr.f32.mxu0 0.0
        %3255 = vmatmul.mubr.f32.gmra.mrb[0].mxu0 %v1307
        %v3256 = vpop.f32.mrb[0].mxu0
        %v3257 = vadd.f32 0.0, %v3256
        %v3258 = vpop.f32.mrb[0].mxu0
        %3259 = vmatprep.mubr.f32.mxu0 0.0
        %3260 = vmatmul.mubr.f32.gmra.mrb[0].mxu0 %v1309
        %v3261 = vpop.f32.mrb[0].mxu0
        %v3262 = vadd.f32 0.0, %v3261
        %v3263 = vpop.f32.mrb[0].mxu0
        %3264 = vmatprep.mubr.f32.mxu0 0.0
        %3265 = vmatmul.mubr.f32.gmra.mrb[0].mxu0 %v1311
        %v3266 = vpop.f32.mrb[0].mxu0
        %v3267 = vadd.f32 0.0, %v3266
        %v3268 = vpop.f32.mrb[0].mxu0
        %3269 = vmatprep.mubr.f32.mxu0 0.0
        %3270 = vmatmul.mubr.f32.gmra.mrb[0].mxu0 %v1313
        %v3271 = vpop.f32.mrb[0].mxu0
        %v3272 = vadd.f32 0.0, %v3271
        %v3273 = vpop.f32.mrb[0].mxu0
        %3274 = vmatprep.mubr.f32.mxu0 0.0
        %3275 = vmatmul.mubr.f32.gmra.mrb[0].mxu0 %v1315
        %v3276 = vpop.f32.mrb[0].mxu0
        %v3277 = vadd.f32 0.0, %v3276
        %v3278 = vpop.f32.mrb[0].mxu0
        %3279 = vmatprep.mubr.f32.mxu0 0.0
        %3280 = vmatmul.mubr.f32.gmra.mrb[0].mxu0 %v1317
        %v3281 = vpop.f32.mrb[0].mxu0
        %v3282 = vadd.f32 0.0, %v3281
        %v3283 = vpop.f32.mrb[0].mxu0
        %3284 = vmatprep.mubr.f32.mxu0 0.0
        %3285 = vmatmul.mubr.f32.gmra.mrb[0].mxu0 %v2262
        %v3286 = vpop.f32.mrb[0].mxu0
        %v3287 = vadd.f32 0.0, %v3286
        %v3288 = vpop.f32.mrb[0].mxu0
        %3289 = vmatprep.mubr.f32.mxu0 0.0
        %3290 = vmatmul.mubr.f32.gmra.mrb[0].mxu0 %v2264
        %v3291 = vpop.f32.mrb[0].mxu0
        %v3292 = vadd.f32 0.0, %v3291
        %v3293 = vpop.f32.mrb[0].mxu0
        %3294 = vmatprep.mubr.f32.mxu0 0.0
        %3295 = vmatmul.mubr.f32.gmra.mrb[0].mxu0 %v3073
        %v3296 = vpop.f32.mrb[0].mxu0
        %v3297 = vadd.f32 0.0, %v3296
        %v3298 = vpop.f32.mrb[0].mxu0
        %3299 = vmatprep.mubr.f32.mxu0 0.0
        %3300 = vmatmul.mubr.f32.gmra.mrb[0].mxu0 %v3075
        %v3301 = vpop.f32.mrb[0].mxu0
        %v3302 = vadd.f32 0.0, %v3301
        %v3303 = vpop.f32.mrb[0].mxu0
        %3304 = vdwg.mxu0
        %v3305 = vadd.f32 %v3033, %v3147
        %v3306 = vadd.f32 %v3034, %v3152
        %v3307 = vadd.f32 %v3035, %v3157
        %v3308 = vadd.f32 %v3036, %v3162
        %v3309 = vadd.f32 %v3037, %v3167
        %v3310 = vadd.f32 %v3038, %v3172
        %v3311 = vadd.f32 %v3039, %v3177
        %v3312 = vadd.f32 %v3040, %v3182
        %v3313 = vadd.f32 %v3041, %v3187
        %v3314 = vadd.f32 %v3042, %v3192
        %v3315 = vadd.f32 %v3043, %v3197
        %v3316 = vadd.f32 %v3044, %v3202
        %v3317 = vadd.f32 %v3045, %v3207
        %v3318 = vadd.f32 %v3046, %v3212
        %v3319 = vadd.f32 %v3047, %v3217
        %v3320 = vadd.f32 %v3048, %v3222
        %v3321 = vadd.f32 %v3049, %v3227
        %v3322 = vadd.f32 %v3050, %v3232
        %v3323 = vadd.f32 %v3051, %v3237
        %v3324 = vadd.f32 %v3052, %v3242
        %v3325 = vadd.f32 %v3053, %v3247
        %v3326 = vadd.f32 %v3054, %v3252
        %v3327 = vadd.f32 %v3055, %v3257
        %v3328 = vadd.f32 %v3056, %v3262
        %v3329 = vadd.f32 %v3057, %v3267
        %v3330 = vadd.f32 %v3058, %v3272
        %v3331 = vadd.f32 %v3059, %v3277
        %v3332 = vadd.f32 %v3060, %v3282
        %v3333 = vadd.f32 %v3061, %v3287
        %v3334 = vadd.f32 %v3062, %v3292
        %v3335 = vadd.f32 %v3063, %v3297
        %v3336 = vadd.f32 %v3064, %v3302
        %v3337 = vrot.slane %v788, 2
        %v3338 = vrot.slane %v789, 2
        %v3339 = vsel %vm1579, %v3337, %v3338
        %v3340 = vrot.slane %v790, 2
        %v3341 = vsel %vm1579, %v3338, %v3340
        %s3342 = scalar_lea.vmem %s2, 32
        %v3343 = vld [vmem:[%s3342] sm:$0xf]
        %v3344 = vsel %vm452, %v3339, 0
        %v3346 = vsel %vm452, %v3341, 0
        %v3349 = vsel %vm895, %v3343, 0
        %3351 = vmatprep.subr.mxu0 0.0
        %3352 = vmatpush1.msra.mxu0 %v3349
        %3353 = vmatprep.subr.mxu0 0.0
        %3354 = vmatpush1.msra.mxu0 0.0
        %3355 = vmatprep.subr.mxu0 0.0
        %3356 = vmatpush1.msra.mxu0 0.0
        %3357 = vmatprep.subr.mxu0 0.0
        %3358 = vmatpush1.msra.mxu0 0.0
        %3359 = vmatprep.subr.mxu0 0.0
        %3360 = vmatpush1.msra.mxu0 0.0
        %3361 = vmatprep.subr.mxu0 0.0
        %3362 = vmatpush1.msra.mxu0 0.0
        %3363 = vmatprep.subr.mxu0 0.0
        %3364 = vmatpush1.msra.mxu0 0.0
        %3365 = vmatprep.subr.mxu0 0.0
        %3366 = vmatpush1.msra.mxu0 0.0
        %3367 = vmatprep.subr.mxu0 0.0
        %3368 = vmatpush1.msra.mxu0 0.0
        %3369 = vmatprep.subr.mxu0 0.0
        %3370 = vmatpush1.msra.mxu0 0.0
        %3371 = vmatprep.subr.mxu0 0.0
        %3372 = vmatpush1.msra.mxu0 0.0
        %3373 = vmatprep.subr.mxu0 0.0
        %3374 = vmatpush1.msra.mxu0 0.0
        %3375 = vmatprep.subr.mxu0 0.0
        %3376 = vmatpush1.msra.mxu0 0.0
        %3377 = vmatprep.subr.mxu0 0.0
        %3378 = vmatpush1.msra.mxu0 0.0
        %3379 = vmatprep.subr.mxu0 0.0
        %3380 = vmatpush1.msra.mxu0 0.0
        %3381 = vmatprep.subr.mxu0 0.0
        %3382 = vmatpush1.msra.mxu0 0.0
        %3383 = vmatprep.subr.mxu0 0.0
        %3384 = vmatpush1.msra.mxu0 0.0
        %3385 = vmatprep.subr.mxu0 0.0
        %3386 = vmatpush1.msra.mxu0 0.0
        %3387 = vmatprep.subr.mxu0 0.0
        %3388 = vmatpush1.msra.mxu0 0.0
        %3389 = vmatprep.subr.mxu0 0.0
        %3390 = vmatpush1.msra.mxu0 0.0
        %3391 = vmatprep.subr.mxu0 0.0
        %3392 = vmatpush1.msra.mxu0 0.0
        %3393 = vmatprep.subr.mxu0 0.0
        %3394 = vmatpush1.msra.mxu0 0.0
        %3395 = vmatprep.subr.mxu0 0.0
        %3396 = vmatpush1.msra.mxu0 0.0
        %3397 = vmatprep.subr.mxu0 0.0
        %3398 = vmatpush1.msra.mxu0 0.0
        %3399 = vmatprep.subr.mxu0 0.0
        %3400 = vmatpush1.msra.mxu0 0.0
        %3401 = vmatprep.subr.mxu0 0.0
        %3402 = vmatpush1.msra.mxu0 0.0
        %3403 = vmatprep.subr.mxu0 0.0
        %3404 = vmatpush1.msra.mxu0 0.0
        %3405 = vmatprep.subr.mxu0 0.0
        %3406 = vmatpush1.msra.mxu0 0.0
        %3407 = vmatprep.subr.mxu0 0.0
        %3408 = vmatpush1.msra.mxu0 0.0
        %3409 = vmatprep.subr.mxu0 0.0
        %3410 = vmatpush1.msra.mxu0 0.0
        %3411 = vmatprep.subr.mxu0 0.0
        %3412 = vmatpush1.msra.mxu0 0.0
        %3413 = vmatprep.subr.mxu0 0.0
        %3414 = vmatpush1.msra.mxu0 0.0
        %3415 = vmatprep.mubr.f32.mxu0 0.0
        %3416 = vmatmul.mubr.f32.gmra.mrb[0].mxu0 %v1670
        %v3417 = vpop.f32.mrb[0].mxu0
        %v3418 = vadd.f32 0.0, %v3417
        %v3419 = vpop.f32.mrb[0].mxu0
        %3420 = vmatprep.mubr.f32.mxu0 0.0
        %3421 = vmatmul.mubr.f32.gmra.mrb[0].mxu0 %v1672
        %v3422 = vpop.f32.mrb[0].mxu0
        %v3423 = vadd.f32 0.0, %v3422
        %v3424 = vpop.f32.mrb[0].mxu0
        %3425 = vmatprep.mubr.f32.mxu0 0.0
        %3426 = vmatmul.mubr.f32.gmra.mrb[0].mxu0 %v1674
        %v3427 = vpop.f32.mrb[0].mxu0
        %v3428 = vadd.f32 0.0, %v3427
        %v3429 = vpop.f32.mrb[0].mxu0
        %3430 = vmatprep.mubr.f32.mxu0 0.0
        %3431 = vmatmul.mubr.f32.gmra.mrb[0].mxu0 %v1676
        %v3432 = vpop.f32.mrb[0].mxu0
        %v3433 = vadd.f32 0.0, %v3432
        %v3434 = vpop.f32.mrb[0].mxu0
        %3435 = vmatprep.mubr.f32.mxu0 0.0
        %3436 = vmatmul.mubr.f32.gmra.mrb[0].mxu0 %v1678
        %v3437 = vpop.f32.mrb[0].mxu0
        %v3438 = vadd.f32 0.0, %v3437
        %v3439 = vpop.f32.mrb[0].mxu0
        %3440 = vmatprep.mubr.f32.mxu0 0.0
        %3441 = vmatmul.mubr.f32.gmra.mrb[0].mxu0 %v1680
        %v3442 = vpop.f32.mrb[0].mxu0
        %v3443 = vadd.f32 0.0, %v3442
        %v3444 = vpop.f32.mrb[0].mxu0
        %3445 = vmatprep.mubr.f32.mxu0 0.0
        %3446 = vmatmul.mubr.f32.gmra.mrb[0].mxu0 %v1682
        %v3447 = vpop.f32.mrb[0].mxu0
        %v3448 = vadd.f32 0.0, %v3447
        %v3449 = vpop.f32.mrb[0].mxu0
        %3450 = vmatprep.mubr.f32.mxu0 0.0
        %3451 = vmatmul.mubr.f32.gmra.mrb[0].mxu0 %v1684
        %v3452 = vpop.f32.mrb[0].mxu0
        %v3453 = vadd.f32 0.0, %v3452
        %v3454 = vpop.f32.mrb[0].mxu0
        %3455 = vmatprep.mubr.f32.mxu0 0.0
        %3456 = vmatmul.mubr.f32.gmra.mrb[0].mxu0 %v1686
        %v3457 = vpop.f32.mrb[0].mxu0
        %v3458 = vadd.f32 0.0, %v3457
        %v3459 = vpop.f32.mrb[0].mxu0
        %3460 = vmatprep.mubr.f32.mxu0 0.0
        %3461 = vmatmul.mubr.f32.gmra.mrb[0].mxu0 %v1688
        %v3462 = vpop.f32.mrb[0].mxu0
        %v3463 = vadd.f32 0.0, %v3462
        %v3464 = vpop.f32.mrb[0].mxu0
        %3465 = vmatprep.mubr.f32.mxu0 0.0
        %3466 = vmatmul.mubr.f32.gmra.mrb[0].mxu0 %v1690
        %v3467 = vpop.f32.mrb[0].mxu0
        %v3468 = vadd.f32 0.0, %v3467
        %v3469 = vpop.f32.mrb[0].mxu0
        %3470 = vmatprep.mubr.f32.mxu0 0.0
        %3471 = vmatmul.mubr.f32.gmra.mrb[0].mxu0 %v1692
        %v3472 = vpop.f32.mrb[0].mxu0
        %v3473 = vadd.f32 0.0, %v3472
        %v3474 = vpop.f32.mrb[0].mxu0
        %3475 = vmatprep.mubr.f32.mxu0 0.0
        %3476 = vmatmul.mubr.f32.gmra.mrb[0].mxu0 %v1694
        %v3477 = vpop.f32.mrb[0].mxu0
        %v3478 = vadd.f32 0.0, %v3477
        %v3479 = vpop.f32.mrb[0].mxu0
        %3480 = vmatprep.mubr.f32.mxu0 0.0
        %3481 = vmatmul.mubr.f32.gmra.mrb[0].mxu0 %v1696
        %v3482 = vpop.f32.mrb[0].mxu0
        %v3483 = vadd.f32 0.0, %v3482
        %v3484 = vpop.f32.mrb[0].mxu0
        %3485 = vmatprep.mubr.f32.mxu0 0.0
        %3486 = vmatmul.mubr.f32.gmra.mrb[0].mxu0 %v1698
        %v3487 = vpop.f32.mrb[0].mxu0
        %v3488 = vadd.f32 0.0, %v3487
        %v3489 = vpop.f32.mrb[0].mxu0
        %3490 = vmatprep.mubr.f32.mxu0 0.0
        %3491 = vmatmul.mubr.f32.gmra.mrb[0].mxu0 %v1700
        %v3492 = vpop.f32.mrb[0].mxu0
        %v3493 = vadd.f32 0.0, %v3492
        %v3494 = vpop.f32.mrb[0].mxu0
        %3495 = vmatprep.mubr.f32.mxu0 0.0
        %3496 = vmatmul.mubr.f32.gmra.mrb[0].mxu0 %v1702
        %v3497 = vpop.f32.mrb[0].mxu0
        %v3498 = vadd.f32 0.0, %v3497
        %v3499 = vpop.f32.mrb[0].mxu0
        %3500 = vmatprep.mubr.f32.mxu0 0.0
        %3501 = vmatmul.mubr.f32.gmra.mrb[0].mxu0 %v1704
        %v3502 = vpop.f32.mrb[0].mxu0
        %v3503 = vadd.f32 0.0, %v3502
        %v3504 = vpop.f32.mrb[0].mxu0
        %3505 = vmatprep.mubr.f32.mxu0 0.0
        %3506 = vmatmul.mubr.f32.gmra.mrb[0].mxu0 %v1706
        %v3507 = vpop.f32.mrb[0].mxu0
        %v3508 = vadd.f32 0.0, %v3507
        %v3509 = vpop.f32.mrb[0].mxu0
        %3510 = vmatprep.mubr.f32.mxu0 0.0
        %3511 = vmatmul.mubr.f32.gmra.mrb[0].mxu0 %v1708
        %v3512 = vpop.f32.mrb[0].mxu0
        %v3513 = vadd.f32 0.0, %v3512
        %v3514 = vpop.f32.mrb[0].mxu0
        %3515 = vmatprep.mubr.f32.mxu0 0.0
        %3516 = vmatmul.mubr.f32.gmra.mrb[0].mxu0 %v1710
        %v3517 = vpop.f32.mrb[0].mxu0
        %v3518 = vadd.f32 0.0, %v3517
        %v3519 = vpop.f32.mrb[0].mxu0
        %3520 = vmatprep.mubr.f32.mxu0 0.0
        %3521 = vmatmul.mubr.f32.gmra.mrb[0].mxu0 %v1712
        %v3522 = vpop.f32.mrb[0].mxu0
        %v3523 = vadd.f32 0.0, %v3522
        %v3524 = vpop.f32.mrb[0].mxu0
        %3525 = vmatprep.mubr.f32.mxu0 0.0
        %3526 = vmatmul.mubr.f32.gmra.mrb[0].mxu0 %v1714
        %v3527 = vpop.f32.mrb[0].mxu0
        %v3528 = vadd.f32 0.0, %v3527
        %v3529 = vpop.f32.mrb[0].mxu0
        %3530 = vmatprep.mubr.f32.mxu0 0.0
        %3531 = vmatmul.mubr.f32.gmra.mrb[0].mxu0 %v1716
        %v3532 = vpop.f32.mrb[0].mxu0
        %v3533 = vadd.f32 0.0, %v3532
        %v3534 = vpop.f32.mrb[0].mxu0
        %3535 = vmatprep.mubr.f32.mxu0 0.0
        %3536 = vmatmul.mubr.f32.gmra.mrb[0].mxu0 %v1718
        %v3537 = vpop.f32.mrb[0].mxu0
        %v3538 = vadd.f32 0.0, %v3537
        %v3539 = vpop.f32.mrb[0].mxu0
        %3540 = vmatprep.mubr.f32.mxu0 0.0
        %3541 = vmatmul.mubr.f32.gmra.mrb[0].mxu0 %v1720
        %v3542 = vpop.f32.mrb[0].mxu0
        %v3543 = vadd.f32 0.0, %v3542
        %v3544 = vpop.f32.mrb[0].mxu0
        %3545 = vmatprep.mubr.f32.mxu0 0.0
        %3546 = vmatmul.mubr.f32.gmra.mrb[0].mxu0 %v1722
        %v3547 = vpop.f32.mrb[0].mxu0
        %v3548 = vadd.f32 0.0, %v3547
        %v3549 = vpop.f32.mrb[0].mxu0
        %3550 = vmatprep.mubr.f32.mxu0 0.0
        %3551 = vmatmul.mubr.f32.gmra.mrb[0].mxu0 %v1724
        %v3552 = vpop.f32.mrb[0].mxu0
        %v3553 = vadd.f32 0.0, %v3552
        %v3554 = vpop.f32.mrb[0].mxu0
        %3555 = vmatprep.mubr.f32.mxu0 0.0
        %3556 = vmatmul.mubr.f32.gmra.mrb[0].mxu0 %v2533
        %v3557 = vpop.f32.mrb[0].mxu0
        %v3558 = vadd.f32 0.0, %v3557
        %v3559 = vpop.f32.mrb[0].mxu0
        %3560 = vmatprep.mubr.f32.mxu0 0.0
        %3561 = vmatmul.mubr.f32.gmra.mrb[0].mxu0 %v2535
        %v3562 = vpop.f32.mrb[0].mxu0
        %v3563 = vadd.f32 0.0, %v3562
        %v3564 = vpop.f32.mrb[0].mxu0
        %3565 = vmatprep.mubr.f32.mxu0 0.0
        %3566 = vmatmul.mubr.f32.gmra.mrb[0].mxu0 %v3344
        %v3567 = vpop.f32.mrb[0].mxu0
        %v3568 = vadd.f32 0.0, %v3567
        %v3569 = vpop.f32.mrb[0].mxu0
        %3570 = vmatprep.mubr.f32.mxu0 0.0
        %3571 = vmatmul.mubr.f32.gmra.mrb[0].mxu0 %v3346
        %v3572 = vpop.f32.mrb[0].mxu0
        %v3573 = vadd.f32 0.0, %v3572
        %v3574 = vpop.f32.mrb[0].mxu0
        %3575 = vdwg.mxu0
        %v3576 = vadd.f32 %v3305, %v3418
        %v3577 = vadd.f32 %v3306, %v3423
        %v3578 = vadd.f32 %v3307, %v3428
        %v3579 = vadd.f32 %v3308, %v3433
        %v3580 = vadd.f32 %v3309, %v3438
        %v3581 = vadd.f32 %v3310, %v3443
        %v3582 = vadd.f32 %v3311, %v3448
        %v3583 = vadd.f32 %v3312, %v3453
        %v3584 = vadd.f32 %v3313, %v3458
        %v3585 = vadd.f32 %v3314, %v3463
        %v3586 = vadd.f32 %v3315, %v3468
        %v3587 = vadd.f32 %v3316, %v3473
        %v3588 = vadd.f32 %v3317, %v3478
        %v3589 = vadd.f32 %v3318, %v3483
        %v3590 = vadd.f32 %v3319, %v3488
        %v3591 = vadd.f32 %v3320, %v3493
        %v3592 = vadd.f32 %v3321, %v3498
        %v3593 = vadd.f32 %v3322, %v3503
        %v3594 = vadd.f32 %v3323, %v3508
        %v3595 = vadd.f32 %v3324, %v3513
        %v3596 = vadd.f32 %v3325, %v3518
        %v3597 = vadd.f32 %v3326, %v3523
        %v3598 = vadd.f32 %v3327, %v3528
        %v3599 = vadd.f32 %v3328, %v3533
        %v3600 = vadd.f32 %v3329, %v3538
        %v3601 = vadd.f32 %v3330, %v3543
        %v3602 = vadd.f32 %v3331, %v3548
        %v3603 = vadd.f32 %v3332, %v3553
        %v3604 = vadd.f32 %v3333, %v3558
        %v3605 = vadd.f32 %v3334, %v3563
        %v3606 = vadd.f32 %v3335, %v3568
        %v3607 = vadd.f32 %v3336, %v3573
        %vm3608 = vcmp.ge.f32.partialorder %v3576, 0.0
        %vm3609 = vcmp.ge.f32.partialorder %v3577, 0.0
        %vm3610 = vcmp.ge.f32.partialorder %v3578, 0.0
        %vm3611 = vcmp.ge.f32.partialorder %v3579, 0.0
        %vm3612 = vcmp.ge.f32.partialorder %v3580, 0.0
        %vm3613 = vcmp.ge.f32.partialorder %v3581, 0.0
        %vm3614 = vcmp.ge.f32.partialorder %v3582, 0.0
        %vm3615 = vcmp.ge.f32.partialorder %v3583, 0.0
        %vm3616 = vcmp.ge.f32.partialorder %v3584, 0.0
        %vm3617 = vcmp.ge.f32.partialorder %v3585, 0.0
        %vm3618 = vcmp.ge.f32.partialorder %v3586, 0.0
        %vm3619 = vcmp.ge.f32.partialorder %v3587, 0.0
        %vm3620 = vcmp.ge.f32.partialorder %v3588, 0.0
        %vm3621 = vcmp.ge.f32.partialorder %v3589, 0.0
        %vm3622 = vcmp.ge.f32.partialorder %v3590, 0.0
        %vm3623 = vcmp.ge.f32.partialorder %v3591, 0.0
        %vm3624 = vcmp.ge.f32.partialorder %v3592, 0.0
        %vm3625 = vcmp.ge.f32.partialorder %v3593, 0.0
        %vm3626 = vcmp.ge.f32.partialorder %v3594, 0.0
        %vm3627 = vcmp.ge.f32.partialorder %v3595, 0.0
        %vm3628 = vcmp.ge.f32.partialorder %v3596, 0.0
        %vm3629 = vcmp.ge.f32.partialorder %v3597, 0.0
        %vm3630 = vcmp.ge.f32.partialorder %v3598, 0.0
        %vm3631 = vcmp.ge.f32.partialorder %v3599, 0.0
        %vm3632 = vcmp.ge.f32.partialorder %v3600, 0.0
        %vm3633 = vcmp.ge.f32.partialorder %v3601, 0.0
        %vm3634 = vcmp.ge.f32.partialorder %v3602, 0.0
        %vm3635 = vcmp.ge.f32.partialorder %v3603, 0.0
        %vm3636 = vcmp.ge.f32.partialorder %v3604, 0.0
        %vm3637 = vcmp.ge.f32.partialorder %v3605, 0.0
        %vm3638 = vcmp.ge.f32.partialorder %v3606, 0.0
        %vm3639 = vcmp.ge.f32.partialorder %v3607, 0.0
        %v3640 = vstv %s451
        %v3641 = vmul.f32 %v3640, %v3576
        %v3642 = vmul.f32 %v3640, %v3577
        %v3643 = vmul.f32 %v3640, %v3578
        %v3644 = vmul.f32 %v3640, %v3579
        %v3645 = vmul.f32 %v3640, %v3580
        %v3646 = vmul.f32 %v3640, %v3581
        %v3647 = vmul.f32 %v3640, %v3582
        %v3648 = vmul.f32 %v3640, %v3583
        %v3649 = vmul.f32 %v3640, %v3584
        %v3650 = vmul.f32 %v3640, %v3585
        %v3651 = vmul.f32 %v3640, %v3586
        %v3652 = vmul.f32 %v3640, %v3587
        %v3653 = vmul.f32 %v3640, %v3588
        %v3654 = vmul.f32 %v3640, %v3589
        %v3655 = vmul.f32 %v3640, %v3590
        %v3656 = vmul.f32 %v3640, %v3591
        %v3657 = vmul.f32 %v3640, %v3592
        %v3658 = vmul.f32 %v3640, %v3593
        %v3659 = vmul.f32 %v3640, %v3594
        %v3660 = vmul.f32 %v3640, %v3595
        %v3661 = vmul.f32 %v3640, %v3596
        %v3662 = vmul.f32 %v3640, %v3597
        %v3663 = vmul.f32 %v3640, %v3598
        %v3664 = vmul.f32 %v3640, %v3599
        %v3665 = vmul.f32 %v3640, %v3600
        %v3666 = vmul.f32 %v3640, %v3601
        %v3667 = vmul.f32 %v3640, %v3602
        %v3668 = vmul.f32 %v3640, %v3603
        %v3669 = vmul.f32 %v3640, %v3604
        %v3670 = vmul.f32 %v3640, %v3605
        %v3671 = vmul.f32 %v3640, %v3606
        %v3672 = vmul.f32 %v3640, %v3607
        %v3673 = vsel %vm3608, %v3576, %v3641
        %v3674 = vsel %vm3609, %v3577, %v3642
        %v3675 = vsel %vm3610, %v3578, %v3643
        %v3676 = vsel %vm3611, %v3579, %v3644
        %v3677 = vsel %vm3612, %v3580, %v3645
        %v3678 = vsel %vm3613, %v3581, %v3646
        %v3679 = vsel %vm3614, %v3582, %v3647
        %v3680 = vsel %vm3615, %v3583, %v3648
        %v3681 = vsel %vm3616, %v3584, %v3649
        %v3682 = vsel %vm3617, %v3585, %v3650
        %v3683 = vsel %vm3618, %v3586, %v3651
        %v3684 = vsel %vm3619, %v3587, %v3652
        %v3685 = vsel %vm3620, %v3588, %v3653
        %v3686 = vsel %vm3621, %v3589, %v3654
        %v3687 = vsel %vm3622, %v3590, %v3655
        %v3688 = vsel %vm3623, %v3591, %v3656
        %v3689 = vsel %vm3624, %v3592, %v3657
        %v3690 = vsel %vm3625, %v3593, %v3658
        %v3691 = vsel %vm3626, %v3594, %v3659
        %v3692 = vsel %vm3627, %v3595, %v3660
        %v3693 = vsel %vm3628, %v3596, %v3661
        %v3694 = vsel %vm3629, %v3597, %v3662
        %v3695 = vsel %vm3630, %v3598, %v3663
        %v3696 = vsel %vm3631, %v3599, %v3664
        %v3697 = vsel %vm3632, %v3600, %v3665
        %v3698 = vsel %vm3633, %v3601, %v3666
        %v3699 = vsel %vm3634, %v3602, %v3667
        %v3700 = vsel %vm3635, %v3603, %v3668
        %v3701 = vsel %vm3636, %v3604, %v3669
        %v3702 = vsel %vm3637, %v3605, %v3670
        %v3703 = vsel %vm3638, %v3606, %v3671
        %v3704 = vsel %vm3639, %v3607, %v3672
        %s3705 = scalar_lea.vmem [#allocation3], 24
        %3706 = vst.msk [vmem:[%s3705 + $0x1] sm:$0xff] %vm508, %v3673
        %3707 = vst.msk [vmem:[%s3705 + $0x9] sm:$0xff] %vm508, %v3674
        %3708 = vst.msk [vmem:[%s3705 + $0x19] sm:$0xff] %vm508, %v3675
        %3709 = vst.msk [vmem:[%s3705 + $0x21] sm:$0xff] %vm508, %v3676
        %3710 = vst.msk [vmem:[%s3705 + $0x31] sm:$0xff] %vm508, %v3677
        %3711 = vst.msk [vmem:[%s3705 + $0x39] sm:$0xff] %vm508, %v3678
        %3712 = vst.msk [vmem:[%s3705 + $0x49] sm:$0xff] %vm508, %v3679
        %3713 = vst.msk [vmem:[%s3705 + $0x51] sm:$0xff] %vm508, %v3680
        %3714 = vst.msk [vmem:[%s3705 + $0x61] sm:$0xff] %vm508, %v3681
        %3715 = vst.msk [vmem:[%s3705 + $0x69] sm:$0xff] %vm508, %v3682
        %3716 = vst.msk [vmem:[%s3705 + $0x79] sm:$0xff] %vm508, %v3683
        %3717 = vst.msk [vmem:[%s3705 + $0x81] sm:$0xff] %vm508, %v3684
        %3718 = vst.msk [vmem:[%s3705 + $0x91] sm:$0xff] %vm508, %v3685
        %3719 = vst.msk [vmem:[%s3705 + $0x99] sm:$0xff] %vm508, %v3686
        %3720 = vst.msk [vmem:[%s3705 + $0xa9] sm:$0xff] %vm508, %v3687
        %3721 = vst.msk [vmem:[%s3705 + $0xb1] sm:$0xff] %vm508, %v3688
        %3722 = vst.msk [vmem:[%s3705 + $0xc1] sm:$0xff] %vm508, %v3689
        %3723 = vst.msk [vmem:[%s3705 + $0xc9] sm:$0xff] %vm508, %v3690
        %3724 = vst.msk [vmem:[%s3705 + $0xd9] sm:$0xff] %vm508, %v3691
        %3725 = vst.msk [vmem:[%s3705 + $0xe1] sm:$0xff] %vm508, %v3692
        %3726 = vst.msk [vmem:[%s3705 + $0xf1] sm:$0xff] %vm508, %v3693
        %3727 = vst.msk [vmem:[%s3705 + $0xf9] sm:$0xff] %vm508, %v3694
        %3728 = vst.msk [vmem:[%s3705 + $0x109] sm:$0xff] %vm508, %v3695
        %3729 = vst.msk [vmem:[%s3705 + $0x111] sm:$0xff] %vm508, %v3696
        %3730 = vst.msk [vmem:[%s3705 + $0x121] sm:$0xff] %vm508, %v3697
        %3731 = vst.msk [vmem:[%s3705 + $0x129] sm:$0xff] %vm508, %v3698
        %3732 = vst.msk [vmem:[%s3705 + $0x139] sm:$0xff] %vm508, %v3699
        %3733 = vst.msk [vmem:[%s3705 + $0x141] sm:$0xff] %vm508, %v3700
        %3734 = vst.msk [vmem:[%s3705 + $0x151] sm:$0xff] %vm508, %v3701
        %3735 = vst.msk [vmem:[%s3705 + $0x159] sm:$0xff] %vm508, %v3702
        %3736 = vst.msk [vmem:[%s3705 + $0x169] sm:$0xff] %vm508, %v3703
        %3737 = vst.msk [vmem:[%s3705 + $0x171] sm:$0xff] %vm508, %v3704
        %v3738 = vld [vmem:[#allocation3] sm:$0xff]
        %v3739 = vld [vmem:[#allocation3 + $0x8] sm:$0xff]
        %v3740 = vld [vmem:[#allocation3 + $0x10] sm:$0x3]
        %v3741 = vld [vmem:[#allocation3 + $0x18] sm:$0xff]
        %v3742 = vld [vmem:[#allocation3 + $0x20] sm:$0xff]
        %v3743 = vld [vmem:[#allocation3 + $0x28] sm:$0x3]
        %v3744 = vld [vmem:[#allocation3 + $0x30] sm:$0xff]
        %v3745 = vld [vmem:[#allocation3 + $0x38] sm:$0xff]
        %v3746 = vld [vmem:[#allocation3 + $0x40] sm:$0x3]
        %v3747 = vld [vmem:[#allocation3 + $0x48] sm:$0xff]
        %v3748 = vld [vmem:[#allocation3 + $0x50] sm:$0xff]
        %v3749 = vld [vmem:[#allocation3 + $0x58] sm:$0x3]
        %v3750 = vld [vmem:[#allocation3 + $0x60] sm:$0xff]
        %v3751 = vld [vmem:[#allocation3 + $0x68] sm:$0xff]
        %v3752 = vld [vmem:[#allocation3 + $0x70] sm:$0x3]
        %v3753 = vld [vmem:[#allocation3 + $0x78] sm:$0xff]
        %v3754 = vld [vmem:[#allocation3 + $0x80] sm:$0xff]
        %v3755 = vld [vmem:[#allocation3 + $0x88] sm:$0x3]
        %v3756 = vld [vmem:[#allocation3 + $0x90] sm:$0xff]
        %v3757 = vld [vmem:[#allocation3 + $0x98] sm:$0xff]
        %v3758 = vld [vmem:[#allocation3 + $0xa0] sm:$0x3]
        %v3759 = vld [vmem:[#allocation3 + $0xa8] sm:$0xff]
        %v3760 = vld [vmem:[#allocation3 + $0xb0] sm:$0xff]
        %v3761 = vld [vmem:[#allocation3 + $0xb8] sm:$0x3]
        %v3762 = vld [vmem:[#allocation3 + $0xc0] sm:$0xff]
        %v3763 = vld [vmem:[#allocation3 + $0xc8] sm:$0xff]
        %v3764 = vld [vmem:[#allocation3 + $0xd0] sm:$0x3]
        %v3765 = vld [vmem:[#allocation3 + $0xd8] sm:$0xff]
        %v3766 = vld [vmem:[#allocation3 + $0xe0] sm:$0xff]
        %v3767 = vld [vmem:[#allocation3 + $0xe8] sm:$0x3]
        %v3768 = vld [vmem:[#allocation3 + $0xf0] sm:$0xff]
        %v3769 = vld [vmem:[#allocation3 + $0xf8] sm:$0xff]
        %v3770 = vld [vmem:[#allocation3 + $0x100] sm:$0x3]
        %v3771 = vld [vmem:[#allocation3 + $0x108] sm:$0xff]
        %v3772 = vld [vmem:[#allocation3 + $0x110] sm:$0xff]
        %v3773 = vld [vmem:[#allocation3 + $0x118] sm:$0x3]
        %v3774 = vld [vmem:[#allocation3 + $0x120] sm:$0xff]
        %v3775 = vld [vmem:[#allocation3 + $0x128] sm:$0xff]
        %v3776 = vld [vmem:[#allocation3 + $0x130] sm:$0x3]
        %v3777 = vld [vmem:[#allocation3 + $0x138] sm:$0xff]
        %v3778 = vld [vmem:[#allocation3 + $0x140] sm:$0xff]
        %v3779 = vld [vmem:[#allocation3 + $0x148] sm:$0x3]
        %v3780 = vld [vmem:[#allocation3 + $0x150] sm:$0xff]
        %v3781 = vld [vmem:[#allocation3 + $0x158] sm:$0xff]
        %v3782 = vld [vmem:[#allocation3 + $0x160] sm:$0x3]
        %v3783 = vld [vmem:[#allocation3 + $0x168] sm:$0xff]
        %v3784 = vld [vmem:[#allocation3 + $0x170] sm:$0xff]
        %v3785 = vld [vmem:[#allocation3 + $0x178] sm:$0x3]
        %v3786 = vld [vmem:[#allocation3 + $0x180] sm:$0xff]
        %v3787 = vld [vmem:[#allocation3 + $0x188] sm:$0xff]
        %v3788 = vld [vmem:[#allocation3 + $0x190] sm:$0x3]
        %v3789 = vld [vmem:[#allocation3 + $0x198] sm:$0xff]
        %v3790 = vld [vmem:[#allocation3 + $0x1a0] sm:$0xff]
        %v3791 = vld [vmem:[#allocation3 + $0x1a8] sm:$0x3]
        %v3840 = vrot.slane %v3738, 1
        %v3841 = vrot.slane %v3739, 1
        %v3842 = vsel %vm1172, %v3840, %v3841
        %v3843 = vrot.slane %v3740, 1
        %v3844 = vsel %vm1172, %v3841, %v3843
        %v3845 = vrot.slane %v3741, 1
        %v3846 = vrot.slane %v3742, 1
        %v3847 = vsel %vm1172, %v3845, %v3846
        %v3848 = vrot.slane %v3743, 1
        %v3849 = vsel %vm1172, %v3846, %v3848
        %v3850 = vrot.slane %v3744, 1
        %v3851 = vrot.slane %v3745, 1
        %v3852 = vsel %vm1172, %v3850, %v3851
        %v3853 = vrot.slane %v3746, 1
        %v3854 = vsel %vm1172, %v3851, %v3853
        %v3855 = vrot.slane %v3747, 1
        %v3856 = vrot.slane %v3748, 1
        %v3857 = vsel %vm1172, %v3855, %v3856
        %v3858 = vrot.slane %v3749, 1
        %v3859 = vsel %vm1172, %v3856, %v3858
        %v3860 = vrot.slane %v3750, 1
        %v3861 = vrot.slane %v3751, 1
        %v3862 = vsel %vm1172, %v3860, %v3861
        %v3863 = vrot.slane %v3752, 1
        %v3864 = vsel %vm1172, %v3861, %v3863
        %v3865 = vrot.slane %v3753, 1
        %v3866 = vrot.slane %v3754, 1
        %v3867 = vsel %vm1172, %v3865, %v3866
        %v3868 = vrot.slane %v3755, 1
        %v3869 = vsel %vm1172, %v3866, %v3868
        %v3870 = vrot.slane %v3756, 1
        %v3871 = vrot.slane %v3757, 1
        %v3872 = vsel %vm1172, %v3870, %v3871
        %v3873 = vrot.slane %v3758, 1
        %v3874 = vsel %vm1172, %v3871, %v3873
        %v3875 = vrot.slane %v3759, 1
        %v3876 = vrot.slane %v3760, 1
        %v3877 = vsel %vm1172, %v3875, %v3876
        %v3878 = vrot.slane %v3761, 1
        %v3879 = vsel %vm1172, %v3876, %v3878
        %v3880 = vrot.slane %v3762, 1
        %v3881 = vrot.slane %v3763, 1
        %v3882 = vsel %vm1172, %v3880, %v3881
        %v3883 = vrot.slane %v3764, 1
        %v3884 = vsel %vm1172, %v3881, %v3883
        %v3885 = vrot.slane %v3765, 1
        %v3886 = vrot.slane %v3766, 1
        %v3887 = vsel %vm1172, %v3885, %v3886
        %v3888 = vrot.slane %v3767, 1
        %v3889 = vsel %vm1172, %v3886, %v3888
        %v3890 = vrot.slane %v3768, 1
        %v3891 = vrot.slane %v3769, 1
        %v3892 = vsel %vm1172, %v3890, %v3891
        %v3893 = vrot.slane %v3770, 1
        %v3894 = vsel %vm1172, %v3891, %v3893
        %v3895 = vrot.slane %v3771, 1
        %v3896 = vrot.slane %v3772, 1
        %v3897 = vsel %vm1172, %v3895, %v3896
        %v3898 = vrot.slane %v3773, 1
        %v3899 = vsel %vm1172, %v3896, %v3898
        %v3900 = vrot.slane %v3774, 1
        %v3901 = vrot.slane %v3775, 1
        %v3902 = vsel %vm1172, %v3900, %v3901
        %v3903 = vrot.slane %v3776, 1
        %v3904 = vsel %vm1172, %v3901, %v3903
        %v3905 = vrot.slane %v3777, 1
        %v3906 = vrot.slane %v3778, 1
        %v3907 = vsel %vm1172, %v3905, %v3906
        %v3908 = vrot.slane %v3779, 1
        %v3909 = vsel %vm1172, %v3906, %v3908
        %v3910 = vrot.slane %v3780, 1
        %v3911 = vrot.slane %v3781, 1
        %v3912 = vsel %vm1172, %v3910, %v3911
        %v3913 = vrot.slane %v3782, 1
        %v3914 = vsel %vm1172, %v3911, %v3913
        %v3915 = vrot.slane %v3783, 1
        %v3916 = vrot.slane %v3784, 1
        %v3917 = vsel %vm1172, %v3915, %v3916
        %v3918 = vrot.slane %v3785, 1
        %v3919 = vsel %vm1172, %v3916, %v3918
        %v3920 = vrot.slane %v3738, 2
        %v3921 = vrot.slane %v3739, 2
        %v3922 = vsel %vm1579, %v3920, %v3921
        %v3923 = vrot.slane %v3740, 2
        %v3924 = vsel %vm1579, %v3921, %v3923
        %v3925 = vrot.slane %v3741, 2
        %v3926 = vrot.slane %v3742, 2
        %v3927 = vsel %vm1579, %v3925, %v3926
        %v3928 = vrot.slane %v3743, 2
        %v3929 = vsel %vm1579, %v3926, %v3928
        %v3930 = vrot.slane %v3744, 2
        %v3931 = vrot.slane %v3745, 2
        %v3932 = vsel %vm1579, %v3930, %v3931
        %v3933 = vrot.slane %v3746, 2
        %v3934 = vsel %vm1579, %v3931, %v3933
        %v3935 = vrot.slane %v3747, 2
        %v3936 = vrot.slane %v3748, 2
        %v3937 = vsel %vm1579, %v3935, %v3936
        %v3938 = vrot.slane %v3749, 2
        %v3939 = vsel %vm1579, %v3936, %v3938
        %v3940 = vrot.slane %v3750, 2
        %v3941 = vrot.slane %v3751, 2
        %v3942 = vsel %vm1579, %v3940, %v3941
        %v3943 = vrot.slane %v3752, 2
        %v3944 = vsel %vm1579, %v3941, %v3943
        %v3945 = vrot.slane %v3753, 2
        %v3946 = vrot.slane %v3754, 2
        %v3947 = vsel %vm1579, %v3945, %v3946
        %v3948 = vrot.slane %v3755, 2
        %v3949 = vsel %vm1579, %v3946, %v3948
        %v3950 = vrot.slane %v3756, 2
        %v3951 = vrot.slane %v3757, 2
        %v3952 = vsel %vm1579, %v3950, %v3951
        %v3953 = vrot.slane %v3758, 2
        %v3954 = vsel %vm1579, %v3951, %v3953
        %v3955 = vrot.slane %v3759, 2
        %v3956 = vrot.slane %v3760, 2
        %v3957 = vsel %vm1579, %v3955, %v3956
        %v3958 = vrot.slane %v3761, 2
        %v3959 = vsel %vm1579, %v3956, %v3958
        %v3960 = vrot.slane %v3762, 2
        %v3961 = vrot.slane %v3763, 2
        %v3962 = vsel %vm1579, %v3960, %v3961
        %v3963 = vrot.slane %v3764, 2
        %v3964 = vsel %vm1579, %v3961, %v3963
        %v3965 = vrot.slane %v3765, 2
        %v3966 = vrot.slane %v3766, 2
        %v3967 = vsel %vm1579, %v3965, %v3966
        %v3968 = vrot.slane %v3767, 2
        %v3969 = vsel %vm1579, %v3966, %v3968
        %v3970 = vrot.slane %v3768, 2
        %v3971 = vrot.slane %v3769, 2
        %v3972 = vsel %vm1579, %v3970, %v3971
        %v3973 = vrot.slane %v3770, 2
        %v3974 = vsel %vm1579, %v3971, %v3973
        %v3975 = vrot.slane %v3771, 2
        %v3976 = vrot.slane %v3772, 2
        %v3977 = vsel %vm1579, %v3975, %v3976
        %v3978 = vrot.slane %v3773, 2
        %v3979 = vsel %vm1579, %v3976, %v3978
        %v3980 = vrot.slane %v3774, 2
        %v3981 = vrot.slane %v3775, 2
        %v3982 = vsel %vm1579, %v3980, %v3981
        %v3983 = vrot.slane %v3776, 2
        %v3984 = vsel %vm1579, %v3981, %v3983
        %v3985 = vrot.slane %v3777, 2
        %v3986 = vrot.slane %v3778, 2
        %v3987 = vsel %vm1579, %v3985, %v3986
        %v3988 = vrot.slane %v3779, 2
        %v3989 = vsel %vm1579, %v3986, %v3988
        %v3990 = vrot.slane %v3780, 2
        %v3991 = vrot.slane %v3781, 2
        %v3992 = vsel %vm1579, %v3990, %v3991
        %v3993 = vrot.slane %v3782, 2
        %v3994 = vsel %vm1579, %v3991, %v3993
        %v3995 = vrot.slane %v3783, 2
        %v3996 = vrot.slane %v3784, 2
        %v3997 = vsel %vm1579, %v3995, %v3996
        %v3998 = vrot.slane %v3785, 2
        %v3999 = vsel %vm1579, %v3996, %v3998
        %v4035 = vrot.slane %v3786, 1
        %v4036 = vrot.slane %v3787, 1
        %v4037 = vsel %vm1172, %v4035, %v4036
        %v4038 = vrot.slane %v3788, 1
        %v4039 = vsel %vm1172, %v4036, %v4038
        %v4072 = vrot.slane %v3786, 2
        %v4073 = vrot.slane %v3787, 2
        %v4074 = vsel %vm1579, %v4072, %v4073
        %v4075 = vrot.slane %v3788, 2
        %v4076 = vsel %vm1579, %v4073, %v4075
        %v4080 = vrot.slane %v3789, 1
        %v4081 = vrot.slane %v3790, 1
        %v4082 = vsel %vm1172, %v4080, %v4081
        %v4083 = vrot.slane %v3791, 1
        %v4084 = vsel %vm1172, %v4081, %v4083
        %v4085 = vrot.slane %v3789, 2
        %v4086 = vrot.slane %v3790, 2
        %v4087 = vsel %vm1579, %v4085, %v4086
        %v4088 = vrot.slane %v3791, 2
        %v4089 = vsel %vm1579, %v4086, %v4088
        %4090 = vrot.lane.b32.xlu0 %v3842, 64
        %v4091 = vpop.permute.xlu0 %4090
        %4092 = vrot.lane.b32.xlu0 %v3844, 64
        %v4093 = vpop.permute.xlu0 %4092
        %4094 = vrot.lane.b32.xlu0 %v3847, 64
        %v4095 = vpop.permute.xlu0 %4094
        %4096 = vrot.lane.b32.xlu0 %v3849, 64
        %v4097 = vpop.permute.xlu0 %4096
        %4098 = vrot.lane.b32.xlu0 %v3852, 64
        %v4099 = vpop.permute.xlu0 %4098
        %4100 = vrot.lane.b32.xlu0 %v3854, 64
        %v4101 = vpop.permute.xlu0 %4100
        %4102 = vrot.lane.b32.xlu0 %v3857, 64
        %v4103 = vpop.permute.xlu0 %4102
        %4104 = vrot.lane.b32.xlu0 %v3859, 64
        %v4105 = vpop.permute.xlu0 %4104
        %4106 = vrot.lane.b32.xlu0 %v3862, 64
        %v4107 = vpop.permute.xlu0 %4106
        %4108 = vrot.lane.b32.xlu0 %v3864, 64
        %v4109 = vpop.permute.xlu0 %4108
        %4110 = vrot.lane.b32.xlu0 %v3867, 64
        %v4111 = vpop.permute.xlu0 %4110
        %4112 = vrot.lane.b32.xlu0 %v3869, 64
        %v4113 = vpop.permute.xlu0 %4112
        %4114 = vrot.lane.b32.xlu0 %v3872, 64
        %v4115 = vpop.permute.xlu0 %4114
        %4116 = vrot.lane.b32.xlu0 %v3874, 64
        %v4117 = vpop.permute.xlu0 %4116
        %4118 = vrot.lane.b32.xlu0 %v3877, 64
        %v4119 = vpop.permute.xlu0 %4118
        %4120 = vrot.lane.b32.xlu0 %v3879, 64
        %v4121 = vpop.permute.xlu0 %4120
        %4122 = vrot.lane.b32.xlu0 %v3882, 64
        %v4123 = vpop.permute.xlu0 %4122
        %4124 = vrot.lane.b32.xlu0 %v3884, 64
        %v4125 = vpop.permute.xlu0 %4124
        %4126 = vrot.lane.b32.xlu0 %v3887, 64
        %v4127 = vpop.permute.xlu0 %4126
        %4128 = vrot.lane.b32.xlu0 %v3889, 64
        %v4129 = vpop.permute.xlu0 %4128
        %4130 = vrot.lane.b32.xlu0 %v3892, 64
        %v4131 = vpop.permute.xlu0 %4130
        %4132 = vrot.lane.b32.xlu0 %v3894, 64
        %v4133 = vpop.permute.xlu0 %4132
        %4134 = vrot.lane.b32.xlu0 %v3897, 64
        %v4135 = vpop.permute.xlu0 %4134
        %4136 = vrot.lane.b32.xlu0 %v3899, 64
        %v4137 = vpop.permute.xlu0 %4136
        %4138 = vrot.lane.b32.xlu0 %v3902, 64
        %v4139 = vpop.permute.xlu0 %4138
        %4140 = vrot.lane.b32.xlu0 %v3904, 64
        %v4141 = vpop.permute.xlu0 %4140
        %4142 = vrot.lane.b32.xlu0 %v3907, 64
        %v4143 = vpop.permute.xlu0 %4142
        %4144 = vrot.lane.b32.xlu0 %v3909, 64
        %v4145 = vpop.permute.xlu0 %4144
        %4146 = vrot.lane.b32.xlu0 %v3912, 64
        %v4147 = vpop.permute.xlu0 %4146
        %4148 = vrot.lane.b32.xlu0 %v3914, 64
        %v4149 = vpop.permute.xlu0 %4148
        %4150 = vrot.lane.b32.xlu0 %v3917, 64
        %v4151 = vpop.permute.xlu0 %4150
        %4152 = vrot.lane.b32.xlu0 %v3919, 64
        %v4153 = vpop.permute.xlu0 %4152
        %4186 = vrot.lane.b32.xlu0 %v3741, 64
        %v4187 = vpop.permute.xlu0 %4186
        %4188 = vrot.lane.b32.xlu0 %v3742, 64
        %v4189 = vpop.permute.xlu0 %4188
        %4190 = vrot.lane.b32.xlu0 %v3744, 64
        %v4191 = vpop.permute.xlu0 %4190
        %4192 = vrot.lane.b32.xlu0 %v3745, 64
        %v4193 = vpop.permute.xlu0 %4192
        %4194 = vrot.lane.b32.xlu0 %v3747, 64
        %v4195 = vpop.permute.xlu0 %4194
        %4196 = vrot.lane.b32.xlu0 %v3748, 64
        %v4197 = vpop.permute.xlu0 %4196
        %4198 = vrot.lane.b32.xlu0 %v3750, 64
        %v4199 = vpop.permute.xlu0 %4198
        %4200 = vrot.lane.b32.xlu0 %v3751, 64
        %v4201 = vpop.permute.xlu0 %4200
        %4202 = vrot.lane.b32.xlu0 %v3753, 64
        %v4203 = vpop.permute.xlu0 %4202
        %4204 = vrot.lane.b32.xlu0 %v3754, 64
        %v4205 = vpop.permute.xlu0 %4204
        %4206 = vrot.lane.b32.xlu0 %v3756, 64
        %v4207 = vpop.permute.xlu0 %4206
        %4208 = vrot.lane.b32.xlu0 %v3757, 64
        %v4209 = vpop.permute.xlu0 %4208
        %4210 = vrot.lane.b32.xlu0 %v3759, 64
        %v4211 = vpop.permute.xlu0 %4210
        %4212 = vrot.lane.b32.xlu0 %v3760, 64
        %v4213 = vpop.permute.xlu0 %4212
        %4214 = vrot.lane.b32.xlu0 %v3762, 64
        %v4215 = vpop.permute.xlu0 %4214
        %4216 = vrot.lane.b32.xlu0 %v3763, 64
        %v4217 = vpop.permute.xlu0 %4216
        %4218 = vrot.lane.b32.xlu0 %v3765, 64
        %v4219 = vpop.permute.xlu0 %4218
        %4220 = vrot.lane.b32.xlu0 %v3766, 64
        %v4221 = vpop.permute.xlu0 %4220
        %4222 = vrot.lane.b32.xlu0 %v3768, 64
        %v4223 = vpop.permute.xlu0 %4222
        %4224 = vrot.lane.b32.xlu0 %v3769, 64
        %v4225 = vpop.permute.xlu0 %4224
        %4226 = vrot.lane.b32.xlu0 %v3771, 64
        %v4227 = vpop.permute.xlu0 %4226
        %4228 = vrot.lane.b32.xlu0 %v3772, 64
        %v4229 = vpop.permute.xlu0 %4228
        %4230 = vrot.lane.b32.xlu0 %v3774, 64
        %v4231 = vpop.permute.xlu0 %4230
        %4232 = vrot.lane.b32.xlu0 %v3775, 64
        %v4233 = vpop.permute.xlu0 %4232
        %4234 = vrot.lane.b32.xlu0 %v3777, 64
        %v4235 = vpop.permute.xlu0 %4234
        %4236 = vrot.lane.b32.xlu0 %v3778, 64
        %v4237 = vpop.permute.xlu0 %4236
        %4238 = vrot.lane.b32.xlu0 %v3780, 64
        %v4239 = vpop.permute.xlu0 %4238
        %4240 = vrot.lane.b32.xlu0 %v3781, 64
        %v4241 = vpop.permute.xlu0 %4240
        %4242 = vrot.lane.b32.xlu0 %v3783, 64
        %v4243 = vpop.permute.xlu0 %4242
        %4244 = vrot.lane.b32.xlu0 %v3784, 64
        %v4245 = vpop.permute.xlu0 %4244
        %4246 = vrot.lane.b32.xlu0 %v3786, 64
        %v4247 = vpop.permute.xlu0 %4246
        %4248 = vrot.lane.b32.xlu0 %v3787, 64
        %v4249 = vpop.permute.xlu0 %4248
        %4282 = vrot.lane.b32.xlu0 %v3927, 64
        %v4283 = vpop.permute.xlu0 %4282
        %4284 = vrot.lane.b32.xlu0 %v3929, 64
        %v4285 = vpop.permute.xlu0 %4284
        %4286 = vrot.lane.b32.xlu0 %v3932, 64
        %v4287 = vpop.permute.xlu0 %4286
        %4288 = vrot.lane.b32.xlu0 %v3934, 64
        %v4289 = vpop.permute.xlu0 %4288
        %4290 = vrot.lane.b32.xlu0 %v3937, 64
        %v4291 = vpop.permute.xlu0 %4290
        %4292 = vrot.lane.b32.xlu0 %v3939, 64
        %v4293 = vpop.permute.xlu0 %4292
        %4294 = vrot.lane.b32.xlu0 %v3942, 64
        %v4295 = vpop.permute.xlu0 %4294
        %4296 = vrot.lane.b32.xlu0 %v3944, 64
        %v4297 = vpop.permute.xlu0 %4296
        %4298 = vrot.lane.b32.xlu0 %v3947, 64
        %v4299 = vpop.permute.xlu0 %4298
        %4300 = vrot.lane.b32.xlu0 %v3949, 64
        %v4301 = vpop.permute.xlu0 %4300
        %4302 = vrot.lane.b32.xlu0 %v3952, 64
        %v4303 = vpop.permute.xlu0 %4302
        %4304 = vrot.lane.b32.xlu0 %v3954, 64
        %v4305 = vpop.permute.xlu0 %4304
        %4306 = vrot.lane.b32.xlu0 %v3957, 64
        %v4307 = vpop.permute.xlu0 %4306
        %4308 = vrot.lane.b32.xlu0 %v3959, 64
        %v4309 = vpop.permute.xlu0 %4308
        %4310 = vrot.lane.b32.xlu0 %v3962, 64
        %v4311 = vpop.permute.xlu0 %4310
        %4312 = vrot.lane.b32.xlu0 %v3964, 64
        %v4313 = vpop.permute.xlu0 %4312
        %4314 = vrot.lane.b32.xlu0 %v3967, 64
        %v4315 = vpop.permute.xlu0 %4314
        %4316 = vrot.lane.b32.xlu0 %v3969, 64
        %v4317 = vpop.permute.xlu0 %4316
        %4318 = vrot.lane.b32.xlu0 %v3972, 64
        %v4319 = vpop.permute.xlu0 %4318
        %4320 = vrot.lane.b32.xlu0 %v3974, 64
        %v4321 = vpop.permute.xlu0 %4320
        %4322 = vrot.lane.b32.xlu0 %v3977, 64
        %v4323 = vpop.permute.xlu0 %4322
        %4324 = vrot.lane.b32.xlu0 %v3979, 64
        %v4325 = vpop.permute.xlu0 %4324
        %4326 = vrot.lane.b32.xlu0 %v3982, 64
        %v4327 = vpop.permute.xlu0 %4326
        %4328 = vrot.lane.b32.xlu0 %v3984, 64
        %v4329 = vpop.permute.xlu0 %4328
        %4330 = vrot.lane.b32.xlu0 %v3987, 64
        %v4331 = vpop.permute.xlu0 %4330
        %4332 = vrot.lane.b32.xlu0 %v3989, 64
        %v4333 = vpop.permute.xlu0 %4332
        %4334 = vrot.lane.b32.xlu0 %v3992, 64
        %v4335 = vpop.permute.xlu0 %4334
        %4336 = vrot.lane.b32.xlu0 %v3994, 64
        %v4337 = vpop.permute.xlu0 %4336
        %4338 = vrot.lane.b32.xlu0 %v3997, 64
        %v4339 = vpop.permute.xlu0 %4338
        %4340 = vrot.lane.b32.xlu0 %v3999, 64
        %v4341 = vpop.permute.xlu0 %4340
        %4342 = vrot.lane.b32.xlu0 %v4074, 64
        %v4343 = vpop.permute.xlu0 %4342
        %4344 = vrot.lane.b32.xlu0 %v4076, 64
        %v4345 = vpop.permute.xlu0 %4344
        %4378 = vrot.lane.b32.xlu0 %v4037, 64
        %v4379 = vpop.permute.xlu0 %4378
        %4380 = vrot.lane.b32.xlu0 %v4039, 64
        %v4381 = vpop.permute.xlu0 %4380
        %4382 = vrot.lane.b32.xlu0 %v4082, 64
        %v4383 = vpop.permute.xlu0 %4382
        %4384 = vrot.lane.b32.xlu0 %v4084, 64
        %v4385 = vpop.permute.xlu0 %4384
        %v4390 = vsel %vm508, %v3738, %v4091
        %v4391 = vsel %vm508, %v3739, %v4093
        %v4392 = vsel %vm508, %v3741, %v4095
        %v4393 = vsel %vm508, %v3742, %v4097
        %v4394 = vsel %vm508, %v3744, %v4099
        %v4395 = vsel %vm508, %v3745, %v4101
        %v4396 = vsel %vm508, %v3747, %v4103
        %v4397 = vsel %vm508, %v3748, %v4105
        %v4398 = vsel %vm508, %v3750, %v4107
        %v4399 = vsel %vm508, %v3751, %v4109
        %v4400 = vsel %vm508, %v3753, %v4111
        %v4401 = vsel %vm508, %v3754, %v4113
        %v4402 = vsel %vm508, %v3756, %v4115
        %v4403 = vsel %vm508, %v3757, %v4117
        %v4404 = vsel %vm508, %v3759, %v4119
        %v4405 = vsel %vm508, %v3760, %v4121
        %v4406 = vsel %vm508, %v3762, %v4123
        %v4407 = vsel %vm508, %v3763, %v4125
        %v4408 = vsel %vm508, %v3765, %v4127
        %v4409 = vsel %vm508, %v3766, %v4129
        %v4410 = vsel %vm508, %v3768, %v4131
        %v4411 = vsel %vm508, %v3769, %v4133
        %v4412 = vsel %vm508, %v3771, %v4135
        %v4413 = vsel %vm508, %v3772, %v4137
        %v4414 = vsel %vm508, %v3774, %v4139
        %v4415 = vsel %vm508, %v3775, %v4141
        %v4416 = vsel %vm508, %v3777, %v4143
        %v4417 = vsel %vm508, %v3778, %v4145
        %v4418 = vsel %vm508, %v3780, %v4147
        %v4419 = vsel %vm508, %v3781, %v4149
        %v4420 = vsel %vm508, %v3783, %v4151
        %v4421 = vsel %vm508, %v3784, %v4153
        %v4422 = vsel %vm508, %v3922, %v4187
        %v4423 = vsel %vm508, %v3924, %v4189
        %v4424 = vsel %vm508, %v3927, %v4191
        %v4425 = vsel %vm508, %v3929, %v4193
        %v4426 = vsel %vm508, %v3932, %v4195
        %v4427 = vsel %vm508, %v3934, %v4197
        %v4428 = vsel %vm508, %v3937, %v4199
        %v4429 = vsel %vm508, %v3939, %v4201
        %v4430 = vsel %vm508, %v3942, %v4203
        %v4431 = vsel %vm508, %v3944, %v4205
        %v4432 = vsel %vm508, %v3947, %v4207
        %v4433 = vsel %vm508, %v3949, %v4209
        %v4434 = vsel %vm508, %v3952, %v4211
        %v4435 = vsel %vm508, %v3954, %v4213
        %v4436 = vsel %vm508, %v3957, %v4215
        %v4437 = vsel %vm508, %v3959, %v4217
        %v4438 = vsel %vm508, %v3962, %v4219
        %v4439 = vsel %vm508, %v3964, %v4221
        %v4440 = vsel %vm508, %v3967, %v4223
        %v4441 = vsel %vm508, %v3969, %v4225
        %v4442 = vsel %vm508, %v3972, %v4227
        %v4443 = vsel %vm508, %v3974, %v4229
        %v4444 = vsel %vm508, %v3977, %v4231
        %v4445 = vsel %vm508, %v3979, %v4233
        %v4446 = vsel %vm508, %v3982, %v4235
        %v4447 = vsel %vm508, %v3984, %v4237
        %v4448 = vsel %vm508, %v3987, %v4239
        %v4449 = vsel %vm508, %v3989, %v4241
        %v4450 = vsel %vm508, %v3992, %v4243
        %v4451 = vsel %vm508, %v3994, %v4245
        %v4452 = vsel %vm508, %v3997, %v4247
        %v4453 = vsel %vm508, %v3999, %v4249
        %v4454 = vsel %vm508, %v3847, %v4283
        %v4455 = vsel %vm508, %v3849, %v4285
        %v4456 = vsel %vm508, %v3852, %v4287
        %v4457 = vsel %vm508, %v3854, %v4289
        %v4458 = vsel %vm508, %v3857, %v4291
        %v4459 = vsel %vm508, %v3859, %v4293
        %v4460 = vsel %vm508, %v3862, %v4295
        %v4461 = vsel %vm508, %v3864, %v4297
        %v4462 = vsel %vm508, %v3867, %v4299
        %v4463 = vsel %vm508, %v3869, %v4301
        %v4464 = vsel %vm508, %v3872, %v4303
        %v4465 = vsel %vm508, %v3874, %v4305
        %v4466 = vsel %vm508, %v3877, %v4307
        %v4467 = vsel %vm508, %v3879, %v4309
        %v4468 = vsel %vm508, %v3882, %v4311
        %v4469 = vsel %vm508, %v3884, %v4313
        %v4470 = vsel %vm508, %v3887, %v4315
        %v4471 = vsel %vm508, %v3889, %v4317
        %v4472 = vsel %vm508, %v3892, %v4319
        %v4473 = vsel %vm508, %v3894, %v4321
        %v4474 = vsel %vm508, %v3897, %v4323
        %v4475 = vsel %vm508, %v3899, %v4325
        %v4476 = vsel %vm508, %v3902, %v4327
        %v4477 = vsel %vm508, %v3904, %v4329
        %v4478 = vsel %vm508, %v3907, %v4331
        %v4479 = vsel %vm508, %v3909, %v4333
        %v4480 = vsel %vm508, %v3912, %v4335
        %v4481 = vsel %vm508, %v3914, %v4337
        %v4482 = vsel %vm508, %v3917, %v4339
        %v4483 = vsel %vm508, %v3919, %v4341
        %v4484 = vsel %vm508, %v4037, %v4343
        %v4485 = vsel %vm508, %v4039, %v4345
        %v4486 = vsel %vm508, %v3786, %v4379
        %v4487 = vsel %vm508, %v3787, %v4381
        %v4488 = vsel %vm508, %v3789, %v4383
        %v4489 = vsel %vm508, %v3790, %v4385
        %v4490 = vld [vmem:[%s4] sm:$0xff]
        %v4491 = vld [vmem:[%s4 + $0x8] sm:$0xff]
        %v4492 = vld [vmem:[%s4 + $0x10] sm:$0xff]
        %v4493 = vld [vmem:[%s4 + $0x18] sm:$0xff]
        %v4494 = vld [vmem:[%s4 + $0x20] sm:$0xff]
        %v4495 = vld [vmem:[%s4 + $0x28] sm:$0xff]
        %v4496 = vld [vmem:[%s4 + $0x30] sm:$0xff]
        %v4497 = vld [vmem:[%s4 + $0x38] sm:$0xff]
        %v4498 = vld [vmem:[%s4 + $0x40] sm:$0xff]
        %v4499 = vld [vmem:[%s4 + $0x48] sm:$0xff]
        %v4500 = vld [vmem:[%s4 + $0x50] sm:$0xff]
        %v4501 = vld [vmem:[%s4 + $0x58] sm:$0xff]
        %v4502 = vld [vmem:[%s4 + $0x60] sm:$0xff]
        %v4503 = vld [vmem:[%s4 + $0x68] sm:$0xff]
        %v4504 = vld [vmem:[%s4 + $0x70] sm:$0xff]
        %v4505 = vld [vmem:[%s4 + $0x78] sm:$0xff]
        %v4506 = vld [vmem:[%s4 + $0x80] sm:$0xff]
        %v4507 = vld [vmem:[%s4 + $0x88] sm:$0xff]
        %v4508 = vld [vmem:[%s4 + $0x90] sm:$0xff]
        %v4509 = vld [vmem:[%s4 + $0x98] sm:$0xff]
        %v4510 = vld [vmem:[%s4 + $0xa0] sm:$0xff]
        %v4511 = vld [vmem:[%s4 + $0xa8] sm:$0xff]
        %v4512 = vld [vmem:[%s4 + $0xb0] sm:$0xff]
        %v4513 = vld [vmem:[%s4 + $0xb8] sm:$0xff]
        %v4514 = vld [vmem:[%s4 + $0xc0] sm:$0xff]
        %v4515 = vld [vmem:[%s4 + $0xc8] sm:$0xff]
        %v4516 = vld [vmem:[%s4 + $0xd0] sm:$0xff]
        %v4517 = vld [vmem:[%s4 + $0xd8] sm:$0xff]
        %v4518 = vld [vmem:[%s4 + $0xe0] sm:$0xff]
        %v4519 = vld [vmem:[%s4 + $0xe8] sm:$0xff]
        %v4520 = vld [vmem:[%s4 + $0xf0] sm:$0xff]
        %v4521 = vld [vmem:[%s4 + $0xf8] sm:$0xff]
        %v4522 = vld [vmem:[%s4 + $0x100] sm:$0xff]
        %v4523 = vld [vmem:[%s4 + $0x108] sm:$0xff]
        %v4524 = vld [vmem:[%s4 + $0x110] sm:$0xff]
        %v4525 = vld [vmem:[%s4 + $0x118] sm:$0xff]
        %v4526 = vld [vmem:[%s4 + $0x120] sm:$0xff]
        %v4527 = vld [vmem:[%s4 + $0x128] sm:$0xff]
        %v4528 = vld [vmem:[%s4 + $0x130] sm:$0xff]
        %v4529 = vld [vmem:[%s4 + $0x138] sm:$0xff]
        %v4530 = vld [vmem:[%s4 + $0x140] sm:$0xff]
        %v4531 = vld [vmem:[%s4 + $0x148] sm:$0xff]
        %v4532 = vld [vmem:[%s4 + $0x150] sm:$0xff]
        %v4533 = vld [vmem:[%s4 + $0x158] sm:$0xff]
        %v4534 = vld [vmem:[%s4 + $0x160] sm:$0xff]
        %v4535 = vld [vmem:[%s4 + $0x168] sm:$0xff]
        %v4536 = vld [vmem:[%s4 + $0x170] sm:$0xff]
        %v4537 = vld [vmem:[%s4 + $0x178] sm:$0xff]
        %v4538 = vld [vmem:[%s4 + $0x180] sm:$0xff]
        %v4539 = vld [vmem:[%s4 + $0x188] sm:$0xff]
        %v4540 = vld [vmem:[%s4 + $0x190] sm:$0xff]
        %v4541 = vld [vmem:[%s4 + $0x198] sm:$0xff]
        %v4542 = vld [vmem:[%s4 + $0x1a0] sm:$0xff]
        %v4543 = vld [vmem:[%s4 + $0x1a8] sm:$0xff]
        %v4544 = vld [vmem:[%s4 + $0x1b0] sm:$0xff]
        %v4545 = vld [vmem:[%s4 + $0x1b8] sm:$0xff]
        %v4546 = vld [vmem:[%s4 + $0x1c0] sm:$0xff]
        %v4547 = vld [vmem:[%s4 + $0x1c8] sm:$0xff]
        %v4548 = vld [vmem:[%s4 + $0x1d0] sm:$0xff]
        %v4549 = vld [vmem:[%s4 + $0x1d8] sm:$0xff]
        %v4550 = vld [vmem:[%s4 + $0x1e0] sm:$0xff]
        %v4551 = vld [vmem:[%s4 + $0x1e8] sm:$0xff]
        %v4552 = vld [vmem:[%s4 + $0x1f0] sm:$0xff]
        %v4553 = vld [vmem:[%s4 + $0x1f8] sm:$0xff]
        %v4554 = vld [vmem:[%s4 + $0x200] sm:$0xff]
        %v4555 = vld [vmem:[%s4 + $0x208] sm:$0xff]
        %v4556 = vld [vmem:[%s4 + $0x210] sm:$0xff]
        %v4557 = vld [vmem:[%s4 + $0x218] sm:$0xff]
        %v4558 = vld [vmem:[%s4 + $0x220] sm:$0xff]
        %v4559 = vld [vmem:[%s4 + $0x228] sm:$0xff]
        %v4560 = vld [vmem:[%s4 + $0x230] sm:$0xff]
        %v4561 = vld [vmem:[%s4 + $0x238] sm:$0xff]
        %v4562 = vld [vmem:[%s5] sm:$0x1]
        %v4564 = vlaneseq
        %v4565 = vshrl.u32 %v4564, 7
        %v4566 = vsub.s32 0, %v4565
        %v4567 = vrot.slane %v4562, %v4566
        %v4569 = vsel %vm508, %v3932, 0
        %v4571 = vsel %vm508, %v3934, 0
        %v4573 = vsel %vm508, %v3937, 0
        %v4575 = vsel %vm508, %v3939, 0
        %v4577 = vsel %vm508, %v3942, 0
        %v4579 = vsel %vm508, %v3944, 0
        %v4581 = vsel %vm508, %v3947, 0
        %v4583 = vsel %vm508, %v3949, 0
        %v4585 = vsel %vm508, %v3952, 0
        %v4587 = vsel %vm508, %v3954, 0
        %v4589 = vsel %vm508, %v3957, 0
        %v4591 = vsel %vm508, %v3959, 0
        %v4593 = vsel %vm508, %v3962, 0
        %v4595 = vsel %vm508, %v3964, 0
        %v4597 = vsel %vm508, %v3967, 0
        %v4599 = vsel %vm508, %v3969, 0
        %v4601 = vsel %vm508, %v3972, 0
        %v4603 = vsel %vm508, %v3974, 0
        %v4605 = vsel %vm508, %v3977, 0
        %v4607 = vsel %vm508, %v3979, 0
        %v4609 = vsel %vm508, %v3982, 0
        %v4611 = vsel %vm508, %v3984, 0
        %v4613 = vsel %vm508, %v3987, 0
        %v4615 = vsel %vm508, %v3989, 0
        %v4617 = vsel %vm508, %v3992, 0
        %v4619 = vsel %vm508, %v3994, 0
        %v4621 = vsel %vm508, %v3997, 0
        %v4623 = vsel %vm508, %v3999, 0
        %v4625 = vsel %vm508, %v4074, 0
        %v4627 = vsel %vm508, %v4076, 0
        %v4629 = vsel %vm508, %v4087, 0
        %v4631 = vsel %vm508, %v4089, 0
        %4633 = vmatprep.subr.mxu0 0.0
        %4634 = vmatpush1.msra.mxu0 %v4490
        %4635 = vmatprep.subr.mxu0 0.0
        %4636 = vmatpush1.msra.mxu0 %v4491
        %4637 = vmatprep.subr.mxu0 0.0
        %4638 = vmatpush1.msra.mxu0 %v4492
        %4639 = vmatprep.subr.mxu0 0.0
        %4640 = vmatpush1.msra.mxu0 %v4493
        %4641 = vmatprep.subr.mxu0 0.0
        %4642 = vmatpush1.msra.mxu0 %v4494
        %4643 = vmatprep.subr.mxu0 0.0
        %4644 = vmatpush1.msra.mxu0 %v4495
        %4645 = vmatprep.subr.mxu0 0.0
        %4646 = vmatpush1.msra.mxu0 %v4496
        %4647 = vmatprep.subr.mxu0 0.0
        %4648 = vmatpush1.msra.mxu0 %v4497
        %4649 = vmatprep.subr.mxu0 0.0
        %4650 = vmatpush1.msra.mxu0 %v4498
        %4651 = vmatprep.subr.mxu0 0.0
        %4652 = vmatpush1.msra.mxu0 %v4499
        %4653 = vmatprep.subr.mxu0 0.0
        %4654 = vmatpush1.msra.mxu0 %v4500
        %4655 = vmatprep.subr.mxu0 0.0
        %4656 = vmatpush1.msra.mxu0 %v4501
        %4657 = vmatprep.subr.mxu0 0.0
        %4658 = vmatpush1.msra.mxu0 %v4502
        %4659 = vmatprep.subr.mxu0 0.0
        %4660 = vmatpush1.msra.mxu0 %v4503
        %4661 = vmatprep.subr.mxu0 0.0
        %4662 = vmatpush1.msra.mxu0 %v4504
        %4663 = vmatprep.subr.mxu0 0.0
        %4664 = vmatpush1.msra.mxu0 %v4505
        %4665 = vmatprep.subr.mxu0 0.0
        %4666 = vmatpush1.msra.mxu0 %v4506
        %4667 = vmatprep.subr.mxu0 0.0
        %4668 = vmatpush1.msra.mxu0 %v4507
        %4669 = vmatprep.subr.mxu0 0.0
        %4670 = vmatpush1.msra.mxu0 %v4508
        %4671 = vmatprep.subr.mxu0 0.0
        %4672 = vmatpush1.msra.mxu0 %v4509
        %4673 = vmatprep.subr.mxu0 0.0
        %4674 = vmatpush1.msra.mxu0 %v4510
        %4675 = vmatprep.subr.mxu0 0.0
        %4676 = vmatpush1.msra.mxu0 %v4511
        %4677 = vmatprep.subr.mxu0 0.0
        %4678 = vmatpush1.msra.mxu0 %v4512
        %4679 = vmatprep.subr.mxu0 0.0
        %4680 = vmatpush1.msra.mxu0 %v4513
        %4681 = vmatprep.subr.mxu0 0.0
        %4682 = vmatpush1.msra.mxu0 %v4514
        %4683 = vmatprep.subr.mxu0 0.0
        %4684 = vmatpush1.msra.mxu0 %v4515
        %4685 = vmatprep.subr.mxu0 0.0
        %4686 = vmatpush1.msra.mxu0 %v4516
        %4687 = vmatprep.subr.mxu0 0.0
        %4688 = vmatpush1.msra.mxu0 %v4517
        %4689 = vmatprep.subr.mxu0 0.0
        %4690 = vmatpush1.msra.mxu0 %v4518
        %4691 = vmatprep.subr.mxu0 0.0
        %4692 = vmatpush1.msra.mxu0 %v4519
        %4693 = vmatprep.subr.mxu0 0.0
        %4694 = vmatpush1.msra.mxu0 %v4520
        %4695 = vmatprep.subr.mxu0 0.0
        %4696 = vmatpush1.msra.mxu0 %v4521
        %4697 = vmatprep.mubr.f32.mxu0 %v4422
        %4698 = vmatmul.mubr.f32.gmra.mrb[0].mxu0 %v4390
        %v4699 = vpop.f32.mrb[0].mxu0
        %v4700 = vadd.f32 %v4567, %v4699
        %v4701 = vpop.f32.mrb[0].mxu0
        %4702 = vmatprep.mubr.f32.mxu0 %v4423
        %4703 = vmatmul.mubr.f32.gmra.mrb[0].mxu0 %v4391
        %v4704 = vpop.f32.mrb[0].mxu0
        %v4705 = vadd.f32 %v4567, %v4704
        %v4706 = vpop.f32.mrb[0].mxu0
        %4707 = vmatprep.mubr.f32.mxu0 %v4424
        %4708 = vmatmul.mubr.f32.gmra.mrb[0].mxu0 %v4392
        %v4709 = vpop.f32.mrb[0].mxu0
        %v4710 = vadd.f32 %v4567, %v4709
        %v4711 = vpop.f32.mrb[0].mxu0
        %4712 = vmatprep.mubr.f32.mxu0 %v4425
        %4713 = vmatmul.mubr.f32.gmra.mrb[0].mxu0 %v4393
        %v4714 = vpop.f32.mrb[0].mxu0
        %v4715 = vadd.f32 %v4567, %v4714
        %v4716 = vpop.f32.mrb[0].mxu0
        %4717 = vmatprep.mubr.f32.mxu0 %v4426
        %4718 = vmatmul.mubr.f32.gmra.mrb[0].mxu0 %v4394
        %v4719 = vpop.f32.mrb[0].mxu0
        %v4720 = vadd.f32 %v4567, %v4719
        %v4721 = vpop.f32.mrb[0].mxu0
        %4722 = vmatprep.mubr.f32.mxu0 %v4427
        %4723 = vmatmul.mubr.f32.gmra.mrb[0].mxu0 %v4395
        %v4724 = vpop.f32.mrb[0].mxu0
        %v4725 = vadd.f32 %v4567, %v4724
        %v4726 = vpop.f32.mrb[0].mxu0
        %4727 = vmatprep.mubr.f32.mxu0 %v4428
        %4728 = vmatmul.mubr.f32.gmra.mrb[0].mxu0 %v4396
        %v4729 = vpop.f32.mrb[0].mxu0
        %v4730 = vadd.f32 %v4567, %v4729
        %v4731 = vpop.f32.mrb[0].mxu0
        %4732 = vmatprep.mubr.f32.mxu0 %v4429
        %4733 = vmatmul.mubr.f32.gmra.mrb[0].mxu0 %v4397
        %v4734 = vpop.f32.mrb[0].mxu0
        %v4735 = vadd.f32 %v4567, %v4734
        %v4736 = vpop.f32.mrb[0].mxu0
        %4737 = vmatprep.mubr.f32.mxu0 %v4430
        %4738 = vmatmul.mubr.f32.gmra.mrb[0].mxu0 %v4398
        %v4739 = vpop.f32.mrb[0].mxu0
        %v4740 = vadd.f32 %v4567, %v4739
        %v4741 = vpop.f32.mrb[0].mxu0
        %4742 = vmatprep.mubr.f32.mxu0 %v4431
        %4743 = vmatmul.mubr.f32.gmra.mrb[0].mxu0 %v4399
        %v4744 = vpop.f32.mrb[0].mxu0
        %v4745 = vadd.f32 %v4567, %v4744
        %v4746 = vpop.f32.mrb[0].mxu0
        %4747 = vmatprep.mubr.f32.mxu0 %v4432
        %4748 = vmatmul.mubr.f32.gmra.mrb[0].mxu0 %v4400
        %v4749 = vpop.f32.mrb[0].mxu0
        %v4750 = vadd.f32 %v4567, %v4749
        %v4751 = vpop.f32.mrb[0].mxu0
        %4752 = vmatprep.mubr.f32.mxu0 %v4433
        %4753 = vmatmul.mubr.f32.gmra.mrb[0].mxu0 %v4401
        %v4754 = vpop.f32.mrb[0].mxu0
        %v4755 = vadd.f32 %v4567, %v4754
        %v4756 = vpop.f32.mrb[0].mxu0
        %4757 = vmatprep.mubr.f32.mxu0 %v4434
        %4758 = vmatmul.mubr.f32.gmra.mrb[0].mxu0 %v4402
        %v4759 = vpop.f32.mrb[0].mxu0
        %v4760 = vadd.f32 %v4567, %v4759
        %v4761 = vpop.f32.mrb[0].mxu0
        %4762 = vmatprep.mubr.f32.mxu0 %v4435
        %4763 = vmatmul.mubr.f32.gmra.mrb[0].mxu0 %v4403
        %v4764 = vpop.f32.mrb[0].mxu0
        %v4765 = vadd.f32 %v4567, %v4764
        %v4766 = vpop.f32.mrb[0].mxu0
        %4767 = vmatprep.mubr.f32.mxu0 %v4436
        %4768 = vmatmul.mubr.f32.gmra.mrb[0].mxu0 %v4404
        %v4769 = vpop.f32.mrb[0].mxu0
        %v4770 = vadd.f32 %v4567, %v4769
        %v4771 = vpop.f32.mrb[0].mxu0
        %4772 = vmatprep.mubr.f32.mxu0 %v4437
        %4773 = vmatmul.mubr.f32.gmra.mrb[0].mxu0 %v4405
        %v4774 = vpop.f32.mrb[0].mxu0
        %v4775 = vadd.f32 %v4567, %v4774
        %v4776 = vpop.f32.mrb[0].mxu0
        %4777 = vmatprep.mubr.f32.mxu0 %v4438
        %4778 = vmatmul.mubr.f32.gmra.mrb[0].mxu0 %v4406
        %v4779 = vpop.f32.mrb[0].mxu0
        %v4780 = vadd.f32 %v4567, %v4779
        %v4781 = vpop.f32.mrb[0].mxu0
        %4782 = vmatprep.mubr.f32.mxu0 %v4439
        %4783 = vmatmul.mubr.f32.gmra.mrb[0].mxu0 %v4407
        %v4784 = vpop.f32.mrb[0].mxu0
        %v4785 = vadd.f32 %v4567, %v4784
        %v4786 = vpop.f32.mrb[0].mxu0
        %4787 = vmatprep.mubr.f32.mxu0 %v4440
        %4788 = vmatmul.mubr.f32.gmra.mrb[0].mxu0 %v4408
        %v4789 = vpop.f32.mrb[0].mxu0
        %v4790 = vadd.f32 %v4567, %v4789
        %v4791 = vpop.f32.mrb[0].mxu0
        %4792 = vmatprep.mubr.f32.mxu0 %v4441
        %4793 = vmatmul.mubr.f32.gmra.mrb[0].mxu0 %v4409
        %v4794 = vpop.f32.mrb[0].mxu0
        %v4795 = vadd.f32 %v4567, %v4794
        %v4796 = vpop.f32.mrb[0].mxu0
        %4797 = vmatprep.mubr.f32.mxu0 %v4442
        %4798 = vmatmul.mubr.f32.gmra.mrb[0].mxu0 %v4410
        %v4799 = vpop.f32.mrb[0].mxu0
        %v4800 = vadd.f32 %v4567, %v4799
        %v4801 = vpop.f32.mrb[0].mxu0
        %4802 = vmatprep.mubr.f32.mxu0 %v4443
        %4803 = vmatmul.mubr.f32.gmra.mrb[0].mxu0 %v4411
        %v4804 = vpop.f32.mrb[0].mxu0
        %v4805 = vadd.f32 %v4567, %v4804
        %v4806 = vpop.f32.mrb[0].mxu0
        %4807 = vmatprep.mubr.f32.mxu0 %v4444
        %4808 = vmatmul.mubr.f32.gmra.mrb[0].mxu0 %v4412
        %v4809 = vpop.f32.mrb[0].mxu0
        %v4810 = vadd.f32 %v4567, %v4809
        %v4811 = vpop.f32.mrb[0].mxu0
        %4812 = vmatprep.mubr.f32.mxu0 %v4445
        %4813 = vmatmul.mubr.f32.gmra.mrb[0].mxu0 %v4413
        %v4814 = vpop.f32.mrb[0].mxu0
        %v4815 = vadd.f32 %v4567, %v4814
        %v4816 = vpop.f32.mrb[0].mxu0
        %4817 = vmatprep.mubr.f32.mxu0 %v4446
        %4818 = vmatmul.mubr.f32.gmra.mrb[0].mxu0 %v4414
        %v4819 = vpop.f32.mrb[0].mxu0
        %v4820 = vadd.f32 %v4567, %v4819
        %v4821 = vpop.f32.mrb[0].mxu0
        %4822 = vmatprep.mubr.f32.mxu0 %v4447
        %4823 = vmatmul.mubr.f32.gmra.mrb[0].mxu0 %v4415
        %v4824 = vpop.f32.mrb[0].mxu0
        %v4825 = vadd.f32 %v4567, %v4824
        %v4826 = vpop.f32.mrb[0].mxu0
        %4827 = vmatprep.mubr.f32.mxu0 %v4448
        %4828 = vmatmul.mubr.f32.gmra.mrb[0].mxu0 %v4416
        %v4829 = vpop.f32.mrb[0].mxu0
        %v4830 = vadd.f32 %v4567, %v4829
        %v4831 = vpop.f32.mrb[0].mxu0
        %4832 = vmatprep.mubr.f32.mxu0 %v4449
        %4833 = vmatmul.mubr.f32.gmra.mrb[0].mxu0 %v4417
        %v4834 = vpop.f32.mrb[0].mxu0
        %v4835 = vadd.f32 %v4567, %v4834
        %v4836 = vpop.f32.mrb[0].mxu0
        %4837 = vmatprep.mubr.f32.mxu0 %v4450
        %4838 = vmatmul.mubr.f32.gmra.mrb[0].mxu0 %v4418
        %v4839 = vpop.f32.mrb[0].mxu0
        %v4840 = vadd.f32 %v4567, %v4839
        %v4841 = vpop.f32.mrb[0].mxu0
        %4842 = vmatprep.mubr.f32.mxu0 %v4451
        %4843 = vmatmul.mubr.f32.gmra.mrb[0].mxu0 %v4419
        %v4844 = vpop.f32.mrb[0].mxu0
        %v4845 = vadd.f32 %v4567, %v4844
        %v4846 = vpop.f32.mrb[0].mxu0
        %4847 = vmatprep.mubr.f32.mxu0 %v4452
        %4848 = vmatmul.mubr.f32.gmra.mrb[0].mxu0 %v4420
        %v4849 = vpop.f32.mrb[0].mxu0
        %v4850 = vadd.f32 %v4567, %v4849
        %v4851 = vpop.f32.mrb[0].mxu0
        %4852 = vmatprep.mubr.f32.mxu0 %v4453
        %4853 = vmatmul.mubr.f32.gmra.mrb[0].mxu0 %v4421
        %v4854 = vpop.f32.mrb[0].mxu0
        %v4855 = vadd.f32 %v4567, %v4854
        %v4856 = vpop.f32.mrb[0].mxu0
        %4857 = vdwg.mxu0
        %4858 = vmatprep.subr.mxu0 0.0
        %4859 = vmatpush1.msra.mxu0 %v4522
        %4860 = vmatprep.subr.mxu0 0.0
        %4861 = vmatpush1.msra.mxu0 %v4523
        %4862 = vmatprep.subr.mxu0 0.0
        %4863 = vmatpush1.msra.mxu0 %v4524
        %4864 = vmatprep.subr.mxu0 0.0
        %4865 = vmatpush1.msra.mxu0 %v4525
        %4866 = vmatprep.subr.mxu0 0.0
        %4867 = vmatpush1.msra.mxu0 %v4526
        %4868 = vmatprep.subr.mxu0 0.0
        %4869 = vmatpush1.msra.mxu0 %v4527
        %4870 = vmatprep.subr.mxu0 0.0
        %4871 = vmatpush1.msra.mxu0 %v4528
        %4872 = vmatprep.subr.mxu0 0.0
        %4873 = vmatpush1.msra.mxu0 %v4529
        %4874 = vmatprep.subr.mxu0 0.0
        %4875 = vmatpush1.msra.mxu0 %v4530
        %4876 = vmatprep.subr.mxu0 0.0
        %4877 = vmatpush1.msra.mxu0 %v4531
        %4878 = vmatprep.subr.mxu0 0.0
        %4879 = vmatpush1.msra.mxu0 %v4532
        %4880 = vmatprep.subr.mxu0 0.0
        %4881 = vmatpush1.msra.mxu0 %v4533
        %4882 = vmatprep.subr.mxu0 0.0
        %4883 = vmatpush1.msra.mxu0 %v4534
        %4884 = vmatprep.subr.mxu0 0.0
        %4885 = vmatpush1.msra.mxu0 %v4535
        %4886 = vmatprep.subr.mxu0 0.0
        %4887 = vmatpush1.msra.mxu0 %v4536
        %4888 = vmatprep.subr.mxu0 0.0
        %4889 = vmatpush1.msra.mxu0 %v4537
        %4890 = vmatprep.subr.mxu0 0.0
        %4891 = vmatpush1.msra.mxu0 %v4538
        %4892 = vmatprep.subr.mxu0 0.0
        %4893 = vmatpush1.msra.mxu0 %v4539
        %4894 = vmatprep.subr.mxu0 0.0
        %4895 = vmatpush1.msra.mxu0 %v4540
        %4896 = vmatprep.subr.mxu0 0.0
        %4897 = vmatpush1.msra.mxu0 %v4541
        %4898 = vmatprep.subr.mxu0 0.0
        %4899 = vmatpush1.msra.mxu0 %v4542
        %4900 = vmatprep.subr.mxu0 0.0
        %4901 = vmatpush1.msra.mxu0 %v4543
        %4902 = vmatprep.subr.mxu0 0.0
        %4903 = vmatpush1.msra.mxu0 %v4544
        %4904 = vmatprep.subr.mxu0 0.0
        %4905 = vmatpush1.msra.mxu0 %v4545
        %4906 = vmatprep.subr.mxu0 0.0
        %4907 = vmatpush1.msra.mxu0 %v4546
        %4908 = vmatprep.subr.mxu0 0.0
        %4909 = vmatpush1.msra.mxu0 %v4547
        %4910 = vmatprep.subr.mxu0 0.0
        %4911 = vmatpush1.msra.mxu0 %v4548
        %4912 = vmatprep.subr.mxu0 0.0
        %4913 = vmatpush1.msra.mxu0 %v4549
        %4914 = vmatprep.subr.mxu0 0.0
        %4915 = vmatpush1.msra.mxu0 %v4550
        %4916 = vmatprep.subr.mxu0 0.0
        %4917 = vmatpush1.msra.mxu0 %v4551
        %4918 = vmatprep.subr.mxu0 0.0
        %4919 = vmatpush1.msra.mxu0 %v4552
        %4920 = vmatprep.subr.mxu0 0.0
        %4921 = vmatpush1.msra.mxu0 %v4553
        %4922 = vmatprep.mubr.f32.mxu0 %v4394
        %4923 = vmatmul.mubr.f32.gmra.mrb[0].mxu0 %v4454
        %v4924 = vpop.f32.mrb[0].mxu0
        %v4925 = vadd.f32 %v4700, %v4924
        %v4926 = vpop.f32.mrb[0].mxu0
        %4927 = vmatprep.mubr.f32.mxu0 %v4395
        %4928 = vmatmul.mubr.f32.gmra.mrb[0].mxu0 %v4455
        %v4929 = vpop.f32.mrb[0].mxu0
        %v4930 = vadd.f32 %v4705, %v4929
        %v4931 = vpop.f32.mrb[0].mxu0
        %4932 = vmatprep.mubr.f32.mxu0 %v4396
        %4933 = vmatmul.mubr.f32.gmra.mrb[0].mxu0 %v4456
        %v4934 = vpop.f32.mrb[0].mxu0
        %v4935 = vadd.f32 %v4710, %v4934
        %v4936 = vpop.f32.mrb[0].mxu0
        %4937 = vmatprep.mubr.f32.mxu0 %v4397
        %4938 = vmatmul.mubr.f32.gmra.mrb[0].mxu0 %v4457
        %v4939 = vpop.f32.mrb[0].mxu0
        %v4940 = vadd.f32 %v4715, %v4939
        %v4941 = vpop.f32.mrb[0].mxu0
        %4942 = vmatprep.mubr.f32.mxu0 %v4398
        %4943 = vmatmul.mubr.f32.gmra.mrb[0].mxu0 %v4458
        %v4944 = vpop.f32.mrb[0].mxu0
        %v4945 = vadd.f32 %v4720, %v4944
        %v4946 = vpop.f32.mrb[0].mxu0
        %4947 = vmatprep.mubr.f32.mxu0 %v4399
        %4948 = vmatmul.mubr.f32.gmra.mrb[0].mxu0 %v4459
        %v4949 = vpop.f32.mrb[0].mxu0
        %v4950 = vadd.f32 %v4725, %v4949
        %v4951 = vpop.f32.mrb[0].mxu0
        %4952 = vmatprep.mubr.f32.mxu0 %v4400
        %4953 = vmatmul.mubr.f32.gmra.mrb[0].mxu0 %v4460
        %v4954 = vpop.f32.mrb[0].mxu0
        %v4955 = vadd.f32 %v4730, %v4954
        %v4956 = vpop.f32.mrb[0].mxu0
        %4957 = vmatprep.mubr.f32.mxu0 %v4401
        %4958 = vmatmul.mubr.f32.gmra.mrb[0].mxu0 %v4461
        %v4959 = vpop.f32.mrb[0].mxu0
        %v4960 = vadd.f32 %v4735, %v4959
        %v4961 = vpop.f32.mrb[0].mxu0
        %4962 = vmatprep.mubr.f32.mxu0 %v4402
        %4963 = vmatmul.mubr.f32.gmra.mrb[0].mxu0 %v4462
        %v4964 = vpop.f32.mrb[0].mxu0
        %v4965 = vadd.f32 %v4740, %v4964
        %v4966 = vpop.f32.mrb[0].mxu0
        %4967 = vmatprep.mubr.f32.mxu0 %v4403
        %4968 = vmatmul.mubr.f32.gmra.mrb[0].mxu0 %v4463
        %v4969 = vpop.f32.mrb[0].mxu0
        %v4970 = vadd.f32 %v4745, %v4969
        %v4971 = vpop.f32.mrb[0].mxu0
        %4972 = vmatprep.mubr.f32.mxu0 %v4404
        %4973 = vmatmul.mubr.f32.gmra.mrb[0].mxu0 %v4464
        %v4974 = vpop.f32.mrb[0].mxu0
        %v4975 = vadd.f32 %v4750, %v4974
        %v4976 = vpop.f32.mrb[0].mxu0
        %4977 = vmatprep.mubr.f32.mxu0 %v4405
        %4978 = vmatmul.mubr.f32.gmra.mrb[0].mxu0 %v4465
        %v4979 = vpop.f32.mrb[0].mxu0
        %v4980 = vadd.f32 %v4755, %v4979
        %v4981 = vpop.f32.mrb[0].mxu0
        %4982 = vmatprep.mubr.f32.mxu0 %v4406
        %4983 = vmatmul.mubr.f32.gmra.mrb[0].mxu0 %v4466
        %v4984 = vpop.f32.mrb[0].mxu0
        %v4985 = vadd.f32 %v4760, %v4984
        %v4986 = vpop.f32.mrb[0].mxu0
        %4987 = vmatprep.mubr.f32.mxu0 %v4407
        %4988 = vmatmul.mubr.f32.gmra.mrb[0].mxu0 %v4467
        %v4989 = vpop.f32.mrb[0].mxu0
        %v4990 = vadd.f32 %v4765, %v4989
        %v4991 = vpop.f32.mrb[0].mxu0
        %4992 = vmatprep.mubr.f32.mxu0 %v4408
        %4993 = vmatmul.mubr.f32.gmra.mrb[0].mxu0 %v4468
        %v4994 = vpop.f32.mrb[0].mxu0
        %v4995 = vadd.f32 %v4770, %v4994
        %v4996 = vpop.f32.mrb[0].mxu0
        %4997 = vmatprep.mubr.f32.mxu0 %v4409
        %4998 = vmatmul.mubr.f32.gmra.mrb[0].mxu0 %v4469
        %v4999 = vpop.f32.mrb[0].mxu0
        %v5000 = vadd.f32 %v4775, %v4999
        %v5001 = vpop.f32.mrb[0].mxu0
        %5002 = vmatprep.mubr.f32.mxu0 %v4410
        %5003 = vmatmul.mubr.f32.gmra.mrb[0].mxu0 %v4470
        %v5004 = vpop.f32.mrb[0].mxu0
        %v5005 = vadd.f32 %v4780, %v5004
        %v5006 = vpop.f32.mrb[0].mxu0
        %5007 = vmatprep.mubr.f32.mxu0 %v4411
        %5008 = vmatmul.mubr.f32.gmra.mrb[0].mxu0 %v4471
        %v5009 = vpop.f32.mrb[0].mxu0
        %v5010 = vadd.f32 %v4785, %v5009
        %v5011 = vpop.f32.mrb[0].mxu0
        %5012 = vmatprep.mubr.f32.mxu0 %v4412
        %5013 = vmatmul.mubr.f32.gmra.mrb[0].mxu0 %v4472
        %v5014 = vpop.f32.mrb[0].mxu0
        %v5015 = vadd.f32 %v4790, %v5014
        %v5016 = vpop.f32.mrb[0].mxu0
        %5017 = vmatprep.mubr.f32.mxu0 %v4413
        %5018 = vmatmul.mubr.f32.gmra.mrb[0].mxu0 %v4473
        %v5019 = vpop.f32.mrb[0].mxu0
        %v5020 = vadd.f32 %v4795, %v5019
        %v5021 = vpop.f32.mrb[0].mxu0
        %5022 = vmatprep.mubr.f32.mxu0 %v4414
        %5023 = vmatmul.mubr.f32.gmra.mrb[0].mxu0 %v4474
        %v5024 = vpop.f32.mrb[0].mxu0
        %v5025 = vadd.f32 %v4800, %v5024
        %v5026 = vpop.f32.mrb[0].mxu0
        %5027 = vmatprep.mubr.f32.mxu0 %v4415
        %5028 = vmatmul.mubr.f32.gmra.mrb[0].mxu0 %v4475
        %v5029 = vpop.f32.mrb[0].mxu0
        %v5030 = vadd.f32 %v4805, %v5029
        %v5031 = vpop.f32.mrb[0].mxu0
        %5032 = vmatprep.mubr.f32.mxu0 %v4416
        %5033 = vmatmul.mubr.f32.gmra.mrb[0].mxu0 %v4476
        %v5034 = vpop.f32.mrb[0].mxu0
        %v5035 = vadd.f32 %v4810, %v5034
        %v5036 = vpop.f32.mrb[0].mxu0
        %5037 = vmatprep.mubr.f32.mxu0 %v4417
        %5038 = vmatmul.mubr.f32.gmra.mrb[0].mxu0 %v4477
        %v5039 = vpop.f32.mrb[0].mxu0
        %v5040 = vadd.f32 %v4815, %v5039
        %v5041 = vpop.f32.mrb[0].mxu0
        %5042 = vmatprep.mubr.f32.mxu0 %v4418
        %5043 = vmatmul.mubr.f32.gmra.mrb[0].mxu0 %v4478
        %v5044 = vpop.f32.mrb[0].mxu0
        %v5045 = vadd.f32 %v4820, %v5044
        %v5046 = vpop.f32.mrb[0].mxu0
        %5047 = vmatprep.mubr.f32.mxu0 %v4419
        %5048 = vmatmul.mubr.f32.gmra.mrb[0].mxu0 %v4479
        %v5049 = vpop.f32.mrb[0].mxu0
        %v5050 = vadd.f32 %v4825, %v5049
        %v5051 = vpop.f32.mrb[0].mxu0
        %5052 = vmatprep.mubr.f32.mxu0 %v4420
        %5053 = vmatmul.mubr.f32.gmra.mrb[0].mxu0 %v4480
        %v5054 = vpop.f32.mrb[0].mxu0
        %v5055 = vadd.f32 %v4830, %v5054
        %v5056 = vpop.f32.mrb[0].mxu0
        %5057 = vmatprep.mubr.f32.mxu0 %v4421
        %5058 = vmatmul.mubr.f32.gmra.mrb[0].mxu0 %v4481
        %v5059 = vpop.f32.mrb[0].mxu0
        %v5060 = vadd.f32 %v4835, %v5059
        %v5061 = vpop.f32.mrb[0].mxu0
        %5062 = vmatprep.mubr.f32.mxu0 %v4486
        %5063 = vmatmul.mubr.f32.gmra.mrb[0].mxu0 %v4482
        %v5064 = vpop.f32.mrb[0].mxu0
        %v5065 = vadd.f32 %v4840, %v5064
        %v5066 = vpop.f32.mrb[0].mxu0
        %5067 = vmatprep.mubr.f32.mxu0 %v4487
        %5068 = vmatmul.mubr.f32.gmra.mrb[0].mxu0 %v4483
        %v5069 = vpop.f32.mrb[0].mxu0
        %v5070 = vadd.f32 %v4845, %v5069
        %v5071 = vpop.f32.mrb[0].mxu0
        %5072 = vmatprep.mubr.f32.mxu0 %v4488
        %5073 = vmatmul.mubr.f32.gmra.mrb[0].mxu0 %v4484
        %v5074 = vpop.f32.mrb[0].mxu0
        %v5075 = vadd.f32 %v4850, %v5074
        %v5076 = vpop.f32.mrb[0].mxu0
        %5077 = vmatprep.mubr.f32.mxu0 %v4489
        %5078 = vmatmul.mubr.f32.gmra.mrb[0].mxu0 %v4485
        %v5079 = vpop.f32.mrb[0].mxu0
        %v5080 = vadd.f32 %v4855, %v5079
        %v5081 = vpop.f32.mrb[0].mxu0
        %5082 = vdwg.mxu0
        %5083 = vmatprep.subr.mxu0 0.0
        %5084 = vmatpush1.msra.mxu0 %v4554
        %5085 = vmatprep.subr.mxu0 0.0
        %5086 = vmatpush1.msra.mxu0 %v4555
        %5087 = vmatprep.subr.mxu0 0.0
        %5088 = vmatpush1.msra.mxu0 %v4556
        %5089 = vmatprep.subr.mxu0 0.0
        %5090 = vmatpush1.msra.mxu0 %v4557
        %5091 = vmatprep.subr.mxu0 0.0
        %5092 = vmatpush1.msra.mxu0 %v4558
        %5093 = vmatprep.subr.mxu0 0.0
        %5094 = vmatpush1.msra.mxu0 %v4559
        %5095 = vmatprep.subr.mxu0 0.0
        %5096 = vmatpush1.msra.mxu0 %v4560
        %5097 = vmatprep.subr.mxu0 0.0
        %5098 = vmatpush1.msra.mxu0 %v4561
        %5099 = vmatprep.subr.mxu0 0.0
        %5100 = vmatpush1.msra.mxu0 0.0
        %5101 = vmatprep.subr.mxu0 0.0
        %5102 = vmatpush1.msra.mxu0 0.0
        %5103 = vmatprep.subr.mxu0 0.0
        %5104 = vmatpush1.msra.mxu0 0.0
        %5105 = vmatprep.subr.mxu0 0.0
        %5106 = vmatpush1.msra.mxu0 0.0
        %5107 = vmatprep.subr.mxu0 0.0
        %5108 = vmatpush1.msra.mxu0 0.0
        %5109 = vmatprep.subr.mxu0 0.0
        %5110 = vmatpush1.msra.mxu0 0.0
        %5111 = vmatprep.subr.mxu0 0.0
        %5112 = vmatpush1.msra.mxu0 0.0
        %5113 = vmatprep.subr.mxu0 0.0
        %5114 = vmatpush1.msra.mxu0 0.0
        %5115 = vmatprep.subr.mxu0 0.0
        %5116 = vmatpush1.msra.mxu0 0.0
        %5117 = vmatprep.subr.mxu0 0.0
        %5118 = vmatpush1.msra.mxu0 0.0
        %5119 = vmatprep.subr.mxu0 0.0
        %5120 = vmatpush1.msra.mxu0 0.0
        %5121 = vmatprep.subr.mxu0 0.0
        %5122 = vmatpush1.msra.mxu0 0.0
        %5123 = vmatprep.subr.mxu0 0.0
        %5124 = vmatpush1.msra.mxu0 0.0
        %5125 = vmatprep.subr.mxu0 0.0
        %5126 = vmatpush1.msra.mxu0 0.0
        %5127 = vmatprep.subr.mxu0 0.0
        %5128 = vmatpush1.msra.mxu0 0.0
        %5129 = vmatprep.subr.mxu0 0.0
        %5130 = vmatpush1.msra.mxu0 0.0
        %5131 = vmatprep.subr.mxu0 0.0
        %5132 = vmatpush1.msra.mxu0 0.0
        %5133 = vmatprep.subr.mxu0 0.0
        %5134 = vmatpush1.msra.mxu0 0.0
        %5135 = vmatprep.subr.mxu0 0.0
        %5136 = vmatpush1.msra.mxu0 0.0
        %5137 = vmatprep.subr.mxu0 0.0
        %5138 = vmatpush1.msra.mxu0 0.0
        %5139 = vmatprep.subr.mxu0 0.0
        %5140 = vmatpush1.msra.mxu0 0.0
        %5141 = vmatprep.subr.mxu0 0.0
        %5142 = vmatpush1.msra.mxu0 0.0
        %5143 = vmatprep.subr.mxu0 0.0
        %5144 = vmatpush1.msra.mxu0 0.0
        %5145 = vmatprep.subr.mxu0 0.0
        %5146 = vmatpush1.msra.mxu0 0.0
        %5147 = vmatprep.mubr.f32.mxu0 0.0
        %5148 = vmatmul.mubr.f32.gmra.mrb[0].mxu0 %v4569
        %v5149 = vpop.f32.mrb[0].mxu0
        %v5150 = vadd.f32 %v4925, %v5149
        %v5151 = vpop.f32.mrb[0].mxu0
        %5152 = vmatprep.mubr.f32.mxu0 0.0
        %5153 = vmatmul.mubr.f32.gmra.mrb[0].mxu0 %v4571
        %v5154 = vpop.f32.mrb[0].mxu0
        %v5155 = vadd.f32 %v4930, %v5154
        %v5156 = vpop.f32.mrb[0].mxu0
        %5157 = vmatprep.mubr.f32.mxu0 0.0
        %5158 = vmatmul.mubr.f32.gmra.mrb[0].mxu0 %v4573
        %v5159 = vpop.f32.mrb[0].mxu0
        %v5160 = vadd.f32 %v4935, %v5159
        %v5161 = vpop.f32.mrb[0].mxu0
        %5162 = vmatprep.mubr.f32.mxu0 0.0
        %5163 = vmatmul.mubr.f32.gmra.mrb[0].mxu0 %v4575
        %v5164 = vpop.f32.mrb[0].mxu0
        %v5165 = vadd.f32 %v4940, %v5164
        %v5166 = vpop.f32.mrb[0].mxu0
        %5167 = vmatprep.mubr.f32.mxu0 0.0
        %5168 = vmatmul.mubr.f32.gmra.mrb[0].mxu0 %v4577
        %v5169 = vpop.f32.mrb[0].mxu0
        %v5170 = vadd.f32 %v4945, %v5169
        %v5171 = vpop.f32.mrb[0].mxu0
        %5172 = vmatprep.mubr.f32.mxu0 0.0
        %5173 = vmatmul.mubr.f32.gmra.mrb[0].mxu0 %v4579
        %v5174 = vpop.f32.mrb[0].mxu0
        %v5175 = vadd.f32 %v4950, %v5174
        %v5176 = vpop.f32.mrb[0].mxu0
        %5177 = vmatprep.mubr.f32.mxu0 0.0
        %5178 = vmatmul.mubr.f32.gmra.mrb[0].mxu0 %v4581
        %v5179 = vpop.f32.mrb[0].mxu0
        %v5180 = vadd.f32 %v4955, %v5179
        %v5181 = vpop.f32.mrb[0].mxu0
        %5182 = vmatprep.mubr.f32.mxu0 0.0
        %5183 = vmatmul.mubr.f32.gmra.mrb[0].mxu0 %v4583
        %v5184 = vpop.f32.mrb[0].mxu0
        %v5185 = vadd.f32 %v4960, %v5184
        %v5186 = vpop.f32.mrb[0].mxu0
        %5187 = vmatprep.mubr.f32.mxu0 0.0
        %5188 = vmatmul.mubr.f32.gmra.mrb[0].mxu0 %v4585
        %v5189 = vpop.f32.mrb[0].mxu0
        %v5190 = vadd.f32 %v4965, %v5189
        %v5191 = vpop.f32.mrb[0].mxu0
        %5192 = vmatprep.mubr.f32.mxu0 0.0
        %5193 = vmatmul.mubr.f32.gmra.mrb[0].mxu0 %v4587
        %v5194 = vpop.f32.mrb[0].mxu0
        %v5195 = vadd.f32 %v4970, %v5194
        %v5196 = vpop.f32.mrb[0].mxu0
        %5197 = vmatprep.mubr.f32.mxu0 0.0
        %5198 = vmatmul.mubr.f32.gmra.mrb[0].mxu0 %v4589
        %v5199 = vpop.f32.mrb[0].mxu0
        %v5200 = vadd.f32 %v4975, %v5199
        %v5201 = vpop.f32.mrb[0].mxu0
        %5202 = vmatprep.mubr.f32.mxu0 0.0
        %5203 = vmatmul.mubr.f32.gmra.mrb[0].mxu0 %v4591
        %v5204 = vpop.f32.mrb[0].mxu0
        %v5205 = vadd.f32 %v4980, %v5204
        %v5206 = vpop.f32.mrb[0].mxu0
        %5207 = vmatprep.mubr.f32.mxu0 0.0
        %5208 = vmatmul.mubr.f32.gmra.mrb[0].mxu0 %v4593
        %v5209 = vpop.f32.mrb[0].mxu0
        %v5210 = vadd.f32 %v4985, %v5209
        %v5211 = vpop.f32.mrb[0].mxu0
        %5212 = vmatprep.mubr.f32.mxu0 0.0
        %5213 = vmatmul.mubr.f32.gmra.mrb[0].mxu0 %v4595
        %v5214 = vpop.f32.mrb[0].mxu0
        %v5215 = vadd.f32 %v4990, %v5214
        %v5216 = vpop.f32.mrb[0].mxu0
        %5217 = vmatprep.mubr.f32.mxu0 0.0
        %5218 = vmatmul.mubr.f32.gmra.mrb[0].mxu0 %v4597
        %v5219 = vpop.f32.mrb[0].mxu0
        %v5220 = vadd.f32 %v4995, %v5219
        %v5221 = vpop.f32.mrb[0].mxu0
        %5222 = vmatprep.mubr.f32.mxu0 0.0
        %5223 = vmatmul.mubr.f32.gmra.mrb[0].mxu0 %v4599
        %v5224 = vpop.f32.mrb[0].mxu0
        %v5225 = vadd.f32 %v5000, %v5224
        %v5226 = vpop.f32.mrb[0].mxu0
        %5227 = vmatprep.mubr.f32.mxu0 0.0
        %5228 = vmatmul.mubr.f32.gmra.mrb[0].mxu0 %v4601
        %v5229 = vpop.f32.mrb[0].mxu0
        %v5230 = vadd.f32 %v5005, %v5229
        %v5231 = vpop.f32.mrb[0].mxu0
        %5232 = vmatprep.mubr.f32.mxu0 0.0
        %5233 = vmatmul.mubr.f32.gmra.mrb[0].mxu0 %v4603
        %v5234 = vpop.f32.mrb[0].mxu0
        %v5235 = vadd.f32 %v5010, %v5234
        %v5236 = vpop.f32.mrb[0].mxu0
        %5237 = vmatprep.mubr.f32.mxu0 0.0
        %5238 = vmatmul.mubr.f32.gmra.mrb[0].mxu0 %v4605
        %v5239 = vpop.f32.mrb[0].mxu0
        %v5240 = vadd.f32 %v5015, %v5239
        %v5241 = vpop.f32.mrb[0].mxu0
        %5242 = vmatprep.mubr.f32.mxu0 0.0
        %5243 = vmatmul.mubr.f32.gmra.mrb[0].mxu0 %v4607
        %v5244 = vpop.f32.mrb[0].mxu0
        %v5245 = vadd.f32 %v5020, %v5244
        %v5246 = vpop.f32.mrb[0].mxu0
        %5247 = vmatprep.mubr.f32.mxu0 0.0
        %5248 = vmatmul.mubr.f32.gmra.mrb[0].mxu0 %v4609
        %v5249 = vpop.f32.mrb[0].mxu0
        %v5250 = vadd.f32 %v5025, %v5249
        %v5251 = vpop.f32.mrb[0].mxu0
        %5252 = vmatprep.mubr.f32.mxu0 0.0
        %5253 = vmatmul.mubr.f32.gmra.mrb[0].mxu0 %v4611
        %v5254 = vpop.f32.mrb[0].mxu0
        %v5255 = vadd.f32 %v5030, %v5254
        %v5256 = vpop.f32.mrb[0].mxu0
        %5257 = vmatprep.mubr.f32.mxu0 0.0
        %5258 = vmatmul.mubr.f32.gmra.mrb[0].mxu0 %v4613
        %v5259 = vpop.f32.mrb[0].mxu0
        %v5260 = vadd.f32 %v5035, %v5259
        %v5261 = vpop.f32.mrb[0].mxu0
        %5262 = vmatprep.mubr.f32.mxu0 0.0
        %5263 = vmatmul.mubr.f32.gmra.mrb[0].mxu0 %v4615
        %v5264 = vpop.f32.mrb[0].mxu0
        %v5265 = vadd.f32 %v5040, %v5264
        %v5266 = vpop.f32.mrb[0].mxu0
        %5267 = vmatprep.mubr.f32.mxu0 0.0
        %5268 = vmatmul.mubr.f32.gmra.mrb[0].mxu0 %v4617
        %v5269 = vpop.f32.mrb[0].mxu0
        %v5270 = vadd.f32 %v5045, %v5269
        %v5271 = vpop.f32.mrb[0].mxu0
        %5272 = vmatprep.mubr.f32.mxu0 0.0
        %5273 = vmatmul.mubr.f32.gmra.mrb[0].mxu0 %v4619
        %v5274 = vpop.f32.mrb[0].mxu0
        %v5275 = vadd.f32 %v5050, %v5274
        %v5276 = vpop.f32.mrb[0].mxu0
        %5277 = vmatprep.mubr.f32.mxu0 0.0
        %5278 = vmatmul.mubr.f32.gmra.mrb[0].mxu0 %v4621
        %v5279 = vpop.f32.mrb[0].mxu0
        %v5280 = vadd.f32 %v5055, %v5279
        %v5281 = vpop.f32.mrb[0].mxu0
        %5282 = vmatprep.mubr.f32.mxu0 0.0
        %5283 = vmatmul.mubr.f32.gmra.mrb[0].mxu0 %v4623
        %v5284 = vpop.f32.mrb[0].mxu0
        %v5285 = vadd.f32 %v5060, %v5284
        %v5286 = vpop.f32.mrb[0].mxu0
        %5287 = vmatprep.mubr.f32.mxu0 0.0
        %5288 = vmatmul.mubr.f32.gmra.mrb[0].mxu0 %v4625
        %v5289 = vpop.f32.mrb[0].mxu0
        %v5290 = vadd.f32 %v5065, %v5289
        %v5291 = vpop.f32.mrb[0].mxu0
        %5292 = vmatprep.mubr.f32.mxu0 0.0
        %5293 = vmatmul.mubr.f32.gmra.mrb[0].mxu0 %v4627
        %v5294 = vpop.f32.mrb[0].mxu0
        %v5295 = vadd.f32 %v5070, %v5294
        %v5296 = vpop.f32.mrb[0].mxu0
        %5297 = vmatprep.mubr.f32.mxu0 0.0
        %5298 = vmatmul.mubr.f32.gmra.mrb[0].mxu0 %v4629
        %v5299 = vpop.f32.mrb[0].mxu0
        %v5300 = vadd.f32 %v5075, %v5299
        %v5301 = vpop.f32.mrb[0].mxu0
        %5302 = vmatprep.mubr.f32.mxu0 0.0
        %5303 = vmatmul.mubr.f32.gmra.mrb[0].mxu0 %v4631
        %v5304 = vpop.f32.mrb[0].mxu0
        %v5305 = vadd.f32 %v5080, %v5304
        %v5306 = vpop.f32.mrb[0].mxu0
        %5307 = vdwg.mxu0
        %vm5308 = vcmp.ge.f32.partialorder %v5150, 0.0
        %vm5309 = vcmp.ge.f32.partialorder %v5155, 0.0
        %vm5310 = vcmp.ge.f32.partialorder %v5160, 0.0
        %vm5311 = vcmp.ge.f32.partialorder %v5165, 0.0
        %vm5312 = vcmp.ge.f32.partialorder %v5170, 0.0
        %vm5313 = vcmp.ge.f32.partialorder %v5175, 0.0
        %vm5314 = vcmp.ge.f32.partialorder %v5180, 0.0
        %vm5315 = vcmp.ge.f32.partialorder %v5185, 0.0
        %vm5316 = vcmp.ge.f32.partialorder %v5190, 0.0
        %vm5317 = vcmp.ge.f32.partialorder %v5195, 0.0
        %vm5318 = vcmp.ge.f32.partialorder %v5200, 0.0
        %vm5319 = vcmp.ge.f32.partialorder %v5205, 0.0
        %vm5320 = vcmp.ge.f32.partialorder %v5210, 0.0
        %vm5321 = vcmp.ge.f32.partialorder %v5215, 0.0
        %vm5322 = vcmp.ge.f32.partialorder %v5220, 0.0
        %vm5323 = vcmp.ge.f32.partialorder %v5225, 0.0
        %vm5324 = vcmp.ge.f32.partialorder %v5230, 0.0
        %vm5325 = vcmp.ge.f32.partialorder %v5235, 0.0
        %vm5326 = vcmp.ge.f32.partialorder %v5240, 0.0
        %vm5327 = vcmp.ge.f32.partialorder %v5245, 0.0
        %vm5328 = vcmp.ge.f32.partialorder %v5250, 0.0
        %vm5329 = vcmp.ge.f32.partialorder %v5255, 0.0
        %vm5330 = vcmp.ge.f32.partialorder %v5260, 0.0
        %vm5331 = vcmp.ge.f32.partialorder %v5265, 0.0
        %vm5332 = vcmp.ge.f32.partialorder %v5270, 0.0
        %vm5333 = vcmp.ge.f32.partialorder %v5275, 0.0
        %vm5334 = vcmp.ge.f32.partialorder %v5280, 0.0
        %vm5335 = vcmp.ge.f32.partialorder %v5285, 0.0
        %vm5336 = vcmp.ge.f32.partialorder %v5290, 0.0
        %vm5337 = vcmp.ge.f32.partialorder %v5295, 0.0
        %vm5338 = vcmp.ge.f32.partialorder %v5300, 0.0
        %vm5339 = vcmp.ge.f32.partialorder %v5305, 0.0
        %v5340 = vmul.f32 %v3640, %v5150
        %v5341 = vmul.f32 %v3640, %v5155
        %v5342 = vmul.f32 %v3640, %v5160
        %v5343 = vmul.f32 %v3640, %v5165
        %v5344 = vmul.f32 %v3640, %v5170
        %v5345 = vmul.f32 %v3640, %v5175
        %v5346 = vmul.f32 %v3640, %v5180
        %v5347 = vmul.f32 %v3640, %v5185
        %v5348 = vmul.f32 %v3640, %v5190
        %v5349 = vmul.f32 %v3640, %v5195
        %v5350 = vmul.f32 %v3640, %v5200
        %v5351 = vmul.f32 %v3640, %v5205
        %v5352 = vmul.f32 %v3640, %v5210
        %v5353 = vmul.f32 %v3640, %v5215
        %v5354 = vmul.f32 %v3640, %v5220
        %v5355 = vmul.f32 %v3640, %v5225
        %v5356 = vmul.f32 %v3640, %v5230
        %v5357 = vmul.f32 %v3640, %v5235
        %v5358 = vmul.f32 %v3640, %v5240
        %v5359 = vmul.f32 %v3640, %v5245
        %v5360 = vmul.f32 %v3640, %v5250
        %v5361 = vmul.f32 %v3640, %v5255
        %v5362 = vmul.f32 %v3640, %v5260
        %v5363 = vmul.f32 %v3640, %v5265
        %v5364 = vmul.f32 %v3640, %v5270
        %v5365 = vmul.f32 %v3640, %v5275
        %v5366 = vmul.f32 %v3640, %v5280
        %v5367 = vmul.f32 %v3640, %v5285
        %v5368 = vmul.f32 %v3640, %v5290
        %v5369 = vmul.f32 %v3640, %v5295
        %v5370 = vmul.f32 %v3640, %v5300
        %v5371 = vmul.f32 %v3640, %v5305
        %v5372 = vsel %vm5308, %v5150, %v5340
        %v5373 = vsel %vm5309, %v5155, %v5341
        %v5374 = vsel %vm5310, %v5160, %v5342
        %v5375 = vsel %vm5311, %v5165, %v5343
        %v5376 = vsel %vm5312, %v5170, %v5344
        %v5377 = vsel %vm5313, %v5175, %v5345
        %v5378 = vsel %vm5314, %v5180, %v5346
        %v5379 = vsel %vm5315, %v5185, %v5347
        %v5380 = vsel %vm5316, %v5190, %v5348
        %v5381 = vsel %vm5317, %v5195, %v5349
        %v5382 = vsel %vm5318, %v5200, %v5350
        %v5383 = vsel %vm5319, %v5205, %v5351
        %v5384 = vsel %vm5320, %v5210, %v5352
        %v5385 = vsel %vm5321, %v5215, %v5353
        %v5386 = vsel %vm5322, %v5220, %v5354
        %v5387 = vsel %vm5323, %v5225, %v5355
        %v5388 = vsel %vm5324, %v5230, %v5356
        %v5389 = vsel %vm5325, %v5235, %v5357
        %v5390 = vsel %vm5326, %v5240, %v5358
        %v5391 = vsel %vm5327, %v5245, %v5359
        %v5392 = vsel %vm5328, %v5250, %v5360
        %v5393 = vsel %vm5329, %v5255, %v5361
        %v5394 = vsel %vm5330, %v5260, %v5362
        %v5395 = vsel %vm5331, %v5265, %v5363
        %v5396 = vsel %vm5332, %v5270, %v5364
        %v5397 = vsel %vm5333, %v5275, %v5365
        %v5398 = vsel %vm5334, %v5280, %v5366
        %v5399 = vsel %vm5335, %v5285, %v5367
        %v5400 = vsel %vm5336, %v5290, %v5368
        %v5401 = vsel %vm5337, %v5295, %v5369
        %v5402 = vsel %vm5338, %v5300, %v5370
        %v5403 = vsel %vm5339, %v5305, %v5371
        %s5404 = scalar_lea.vmem [#allocation4], 24
        %5405 = vst.msk [vmem:[%s5404 + $0x1] sm:$0xff] %vm508, %v5372
        %5406 = vst.msk [vmem:[%s5404 + $0x9] sm:$0xff] %vm508, %v5373
        %5407 = vst.msk [vmem:[%s5404 + $0x19] sm:$0xff] %vm508, %v5374
        %5408 = vst.msk [vmem:[%s5404 + $0x21] sm:$0xff] %vm508, %v5375
        %5409 = vst.msk [vmem:[%s5404 + $0x31] sm:$0xff] %vm508, %v5376
        %5410 = vst.msk [vmem:[%s5404 + $0x39] sm:$0xff] %vm508, %v5377
        %5411 = vst.msk [vmem:[%s5404 + $0x49] sm:$0xff] %vm508, %v5378
        %5412 = vst.msk [vmem:[%s5404 + $0x51] sm:$0xff] %vm508, %v5379
        %5413 = vst.msk [vmem:[%s5404 + $0x61] sm:$0xff] %vm508, %v5380
        %5414 = vst.msk [vmem:[%s5404 + $0x69] sm:$0xff] %vm508, %v5381
        %5415 = vst.msk [vmem:[%s5404 + $0x79] sm:$0xff] %vm508, %v5382
        %5416 = vst.msk [vmem:[%s5404 + $0x81] sm:$0xff] %vm508, %v5383
        %5417 = vst.msk [vmem:[%s5404 + $0x91] sm:$0xff] %vm508, %v5384
        %5418 = vst.msk [vmem:[%s5404 + $0x99] sm:$0xff] %vm508, %v5385
        %5419 = vst.msk [vmem:[%s5404 + $0xa9] sm:$0xff] %vm508, %v5386
        %5420 = vst.msk [vmem:[%s5404 + $0xb1] sm:$0xff] %vm508, %v5387
        %5421 = vst.msk [vmem:[%s5404 + $0xc1] sm:$0xff] %vm508, %v5388
        %5422 = vst.msk [vmem:[%s5404 + $0xc9] sm:$0xff] %vm508, %v5389
        %5423 = vst.msk [vmem:[%s5404 + $0xd9] sm:$0xff] %vm508, %v5390
        %5424 = vst.msk [vmem:[%s5404 + $0xe1] sm:$0xff] %vm508, %v5391
        %5425 = vst.msk [vmem:[%s5404 + $0xf1] sm:$0xff] %vm508, %v5392
        %5426 = vst.msk [vmem:[%s5404 + $0xf9] sm:$0xff] %vm508, %v5393
        %5427 = vst.msk [vmem:[%s5404 + $0x109] sm:$0xff] %vm508, %v5394
        %5428 = vst.msk [vmem:[%s5404 + $0x111] sm:$0xff] %vm508, %v5395
        %5429 = vst.msk [vmem:[%s5404 + $0x121] sm:$0xff] %vm508, %v5396
        %5430 = vst.msk [vmem:[%s5404 + $0x129] sm:$0xff] %vm508, %v5397
        %5431 = vst.msk [vmem:[%s5404 + $0x139] sm:$0xff] %vm508, %v5398
        %5432 = vst.msk [vmem:[%s5404 + $0x141] sm:$0xff] %vm508, %v5399
        %5433 = vst.msk [vmem:[%s5404 + $0x151] sm:$0xff] %vm508, %v5400
        %5434 = vst.msk [vmem:[%s5404 + $0x159] sm:$0xff] %vm508, %v5401
        %5435 = vst.msk [vmem:[%s5404 + $0x169] sm:$0xff] %vm508, %v5402
        %5436 = vst.msk [vmem:[%s5404 + $0x171] sm:$0xff] %vm508, %v5403
        %v5437 = vld [vmem:[#allocation4] sm:$0xff]
        %v5438 = vld [vmem:[#allocation4 + $0x8] sm:$0xff]
        %v5439 = vld [vmem:[#allocation4 + $0x10] sm:$0x3]
        %v5440 = vld [vmem:[#allocation4 + $0x18] sm:$0xff]
        %v5441 = vld [vmem:[#allocation4 + $0x20] sm:$0xff]
        %v5442 = vld [vmem:[#allocation4 + $0x28] sm:$0x3]
        %v5443 = vld [vmem:[#allocation4 + $0x30] sm:$0xff]
        %v5444 = vld [vmem:[#allocation4 + $0x38] sm:$0xff]
        %v5445 = vld [vmem:[#allocation4 + $0x40] sm:$0x3]
        %v5446 = vld [vmem:[#allocation4 + $0x48] sm:$0xff]
        %v5447 = vld [vmem:[#allocation4 + $0x50] sm:$0xff]
        %v5448 = vld [vmem:[#allocation4 + $0x58] sm:$0x3]
        %v5449 = vld [vmem:[#allocation4 + $0x60] sm:$0xff]
        %v5450 = vld [vmem:[#allocation4 + $0x68] sm:$0xff]
        %v5451 = vld [vmem:[#allocation4 + $0x70] sm:$0x3]
        %v5452 = vld [vmem:[#allocation4 + $0x78] sm:$0xff]
        %v5453 = vld [vmem:[#allocation4 + $0x80] sm:$0xff]
        %v5454 = vld [vmem:[#allocation4 + $0x88] sm:$0x3]
        %v5455 = vld [vmem:[#allocation4 + $0x90] sm:$0xff]
        %v5456 = vld [vmem:[#allocation4 + $0x98] sm:$0xff]
        %v5457 = vld [vmem:[#allocation4 + $0xa0] sm:$0x3]
        %v5458 = vld [vmem:[#allocation4 + $0xa8] sm:$0xff]
        %v5459 = vld [vmem:[#allocation4 + $0xb0] sm:$0xff]
        %v5460 = vld [vmem:[#allocation4 + $0xb8] sm:$0x3]
        %v5461 = vld [vmem:[#allocation4 + $0xc0] sm:$0xff]
        %v5462 = vld [vmem:[#allocation4 + $0xc8] sm:$0xff]
        %v5463 = vld [vmem:[#allocation4 + $0xd0] sm:$0x3]
        %v5464 = vld [vmem:[#allocation4 + $0xd8] sm:$0xff]
        %v5465 = vld [vmem:[#allocation4 + $0xe0] sm:$0xff]
        %v5466 = vld [vmem:[#allocation4 + $0xe8] sm:$0x3]
        %v5467 = vld [vmem:[#allocation4 + $0xf0] sm:$0xff]
        %v5468 = vld [vmem:[#allocation4 + $0xf8] sm:$0xff]
        %v5469 = vld [vmem:[#allocation4 + $0x100] sm:$0x3]
        %v5470 = vld [vmem:[#allocation4 + $0x108] sm:$0xff]
        %v5471 = vld [vmem:[#allocation4 + $0x110] sm:$0xff]
        %v5472 = vld [vmem:[#allocation4 + $0x118] sm:$0x3]
        %v5473 = vld [vmem:[#allocation4 + $0x120] sm:$0xff]
        %v5474 = vld [vmem:[#allocation4 + $0x128] sm:$0xff]
        %v5475 = vld [vmem:[#allocation4 + $0x130] sm:$0x3]
        %v5476 = vld [vmem:[#allocation4 + $0x138] sm:$0xff]
        %v5477 = vld [vmem:[#allocation4 + $0x140] sm:$0xff]
        %v5478 = vld [vmem:[#allocation4 + $0x148] sm:$0x3]
        %v5479 = vld [vmem:[#allocation4 + $0x150] sm:$0xff]
        %v5480 = vld [vmem:[#allocation4 + $0x158] sm:$0xff]
        %v5481 = vld [vmem:[#allocation4 + $0x160] sm:$0x3]
        %v5482 = vld [vmem:[#allocation4 + $0x168] sm:$0xff]
        %v5483 = vld [vmem:[#allocation4 + $0x170] sm:$0xff]
        %v5484 = vld [vmem:[#allocation4 + $0x178] sm:$0x3]
        %v5485 = vld [vmem:[#allocation4 + $0x180] sm:$0xff]
        %v5486 = vld [vmem:[#allocation4 + $0x188] sm:$0xff]
        %v5487 = vld [vmem:[#allocation4 + $0x190] sm:$0x3]
        %v5488 = vld [vmem:[#allocation4 + $0x198] sm:$0xff]
        %v5489 = vld [vmem:[#allocation4 + $0x1a0] sm:$0xff]
        %v5490 = vld [vmem:[#allocation4 + $0x1a8] sm:$0x3]
        %v5539 = vrot.slane %v5437, 1
        %v5540 = vrot.slane %v5438, 1
        %v5541 = vsel %vm1172, %v5539, %v5540
        %v5542 = vrot.slane %v5439, 1
        %v5543 = vsel %vm1172, %v5540, %v5542
        %v5544 = vrot.slane %v5440, 1
        %v5545 = vrot.slane %v5441, 1
        %v5546 = vsel %vm1172, %v5544, %v5545
        %v5547 = vrot.slane %v5442, 1
        %v5548 = vsel %vm1172, %v5545, %v5547
        %v5549 = vrot.slane %v5443, 1
        %v5550 = vrot.slane %v5444, 1
        %v5551 = vsel %vm1172, %v5549, %v5550
        %v5552 = vrot.slane %v5445, 1
        %v5553 = vsel %vm1172, %v5550, %v5552
        %v5554 = vrot.slane %v5446, 1
        %v5555 = vrot.slane %v5447, 1
        %v5556 = vsel %vm1172, %v5554, %v5555
        %v5557 = vrot.slane %v5448, 1
        %v5558 = vsel %vm1172, %v5555, %v5557
        %v5559 = vrot.slane %v5449, 1
        %v5560 = vrot.slane %v5450, 1
        %v5561 = vsel %vm1172, %v5559, %v5560
        %v5562 = vrot.slane %v5451, 1
        %v5563 = vsel %vm1172, %v5560, %v5562
        %v5564 = vrot.slane %v5452, 1
        %v5565 = vrot.slane %v5453, 1
        %v5566 = vsel %vm1172, %v5564, %v5565
        %v5567 = vrot.slane %v5454, 1
        %v5568 = vsel %vm1172, %v5565, %v5567
        %v5569 = vrot.slane %v5455, 1
        %v5570 = vrot.slane %v5456, 1
        %v5571 = vsel %vm1172, %v5569, %v5570
        %v5572 = vrot.slane %v5457, 1
        %v5573 = vsel %vm1172, %v5570, %v5572
        %v5574 = vrot.slane %v5458, 1
        %v5575 = vrot.slane %v5459, 1
        %v5576 = vsel %vm1172, %v5574, %v5575
        %v5577 = vrot.slane %v5460, 1
        %v5578 = vsel %vm1172, %v5575, %v5577
        %v5579 = vrot.slane %v5461, 1
        %v5580 = vrot.slane %v5462, 1
        %v5581 = vsel %vm1172, %v5579, %v5580
        %v5582 = vrot.slane %v5463, 1
        %v5583 = vsel %vm1172, %v5580, %v5582
        %v5584 = vrot.slane %v5464, 1
        %v5585 = vrot.slane %v5465, 1
        %v5586 = vsel %vm1172, %v5584, %v5585
        %v5587 = vrot.slane %v5466, 1
        %v5588 = vsel %vm1172, %v5585, %v5587
        %v5589 = vrot.slane %v5467, 1
        %v5590 = vrot.slane %v5468, 1
        %v5591 = vsel %vm1172, %v5589, %v5590
        %v5592 = vrot.slane %v5469, 1
        %v5593 = vsel %vm1172, %v5590, %v5592
        %v5594 = vrot.slane %v5470, 1
        %v5595 = vrot.slane %v5471, 1
        %v5596 = vsel %vm1172, %v5594, %v5595
        %v5597 = vrot.slane %v5472, 1
        %v5598 = vsel %vm1172, %v5595, %v5597
        %v5599 = vrot.slane %v5473, 1
        %v5600 = vrot.slane %v5474, 1
        %v5601 = vsel %vm1172, %v5599, %v5600
        %v5602 = vrot.slane %v5475, 1
        %v5603 = vsel %vm1172, %v5600, %v5602
        %v5604 = vrot.slane %v5476, 1
        %v5605 = vrot.slane %v5477, 1
        %v5606 = vsel %vm1172, %v5604, %v5605
        %v5607 = vrot.slane %v5478, 1
        %v5608 = vsel %vm1172, %v5605, %v5607
        %v5609 = vrot.slane %v5479, 1
        %v5610 = vrot.slane %v5480, 1
        %v5611 = vsel %vm1172, %v5609, %v5610
        %v5612 = vrot.slane %v5481, 1
        %v5613 = vsel %vm1172, %v5610, %v5612
        %v5614 = vrot.slane %v5482, 1
        %v5615 = vrot.slane %v5483, 1
        %v5616 = vsel %vm1172, %v5614, %v5615
        %v5617 = vrot.slane %v5484, 1
        %v5618 = vsel %vm1172, %v5615, %v5617
        %v5619 = vrot.slane %v5437, 2
        %v5620 = vrot.slane %v5438, 2
        %v5621 = vsel %vm1579, %v5619, %v5620
        %v5622 = vrot.slane %v5439, 2
        %v5623 = vsel %vm1579, %v5620, %v5622
        %v5624 = vrot.slane %v5440, 2
        %v5625 = vrot.slane %v5441, 2
        %v5626 = vsel %vm1579, %v5624, %v5625
        %v5627 = vrot.slane %v5442, 2
        %v5628 = vsel %vm1579, %v5625, %v5627
        %v5629 = vrot.slane %v5443, 2
        %v5630 = vrot.slane %v5444, 2
        %v5631 = vsel %vm1579, %v5629, %v5630
        %v5632 = vrot.slane %v5445, 2
        %v5633 = vsel %vm1579, %v5630, %v5632
        %v5634 = vrot.slane %v5446, 2
        %v5635 = vrot.slane %v5447, 2
        %v5636 = vsel %vm1579, %v5634, %v5635
        %v5637 = vrot.slane %v5448, 2
        %v5638 = vsel %vm1579, %v5635, %v5637
        %v5639 = vrot.slane %v5449, 2
        %v5640 = vrot.slane %v5450, 2
        %v5641 = vsel %vm1579, %v5639, %v5640
        %v5642 = vrot.slane %v5451, 2
        %v5643 = vsel %vm1579, %v5640, %v5642
        %v5644 = vrot.slane %v5452, 2
        %v5645 = vrot.slane %v5453, 2
        %v5646 = vsel %vm1579, %v5644, %v5645
        %v5647 = vrot.slane %v5454, 2
        %v5648 = vsel %vm1579, %v5645, %v5647
        %v5649 = vrot.slane %v5455, 2
        %v5650 = vrot.slane %v5456, 2
        %v5651 = vsel %vm1579, %v5649, %v5650
        %v5652 = vrot.slane %v5457, 2
        %v5653 = vsel %vm1579, %v5650, %v5652
        %v5654 = vrot.slane %v5458, 2
        %v5655 = vrot.slane %v5459, 2
        %v5656 = vsel %vm1579, %v5654, %v5655
        %v5657 = vrot.slane %v5460, 2
        %v5658 = vsel %vm1579, %v5655, %v5657
        %v5659 = vrot.slane %v5461, 2
        %v5660 = vrot.slane %v5462, 2
        %v5661 = vsel %vm1579, %v5659, %v5660
        %v5662 = vrot.slane %v5463, 2
        %v5663 = vsel %vm1579, %v5660, %v5662
        %v5664 = vrot.slane %v5464, 2
        %v5665 = vrot.slane %v5465, 2
        %v5666 = vsel %vm1579, %v5664, %v5665
        %v5667 = vrot.slane %v5466, 2
        %v5668 = vsel %vm1579, %v5665, %v5667
        %v5669 = vrot.slane %v5467, 2
        %v5670 = vrot.slane %v5468, 2
        %v5671 = vsel %vm1579, %v5669, %v5670
        %v5672 = vrot.slane %v5469, 2
        %v5673 = vsel %vm1579, %v5670, %v5672
        %v5674 = vrot.slane %v5470, 2
        %v5675 = vrot.slane %v5471, 2
        %v5676 = vsel %vm1579, %v5674, %v5675
        %v5677 = vrot.slane %v5472, 2
        %v5678 = vsel %vm1579, %v5675, %v5677
        %v5679 = vrot.slane %v5473, 2
        %v5680 = vrot.slane %v5474, 2
        %v5681 = vsel %vm1579, %v5679, %v5680
        %v5682 = vrot.slane %v5475, 2
        %v5683 = vsel %vm1579, %v5680, %v5682
        %v5684 = vrot.slane %v5476, 2
        %v5685 = vrot.slane %v5477, 2
        %v5686 = vsel %vm1579, %v5684, %v5685
        %v5687 = vrot.slane %v5478, 2
        %v5688 = vsel %vm1579, %v5685, %v5687
        %v5689 = vrot.slane %v5479, 2
        %v5690 = vrot.slane %v5480, 2
        %v5691 = vsel %vm1579, %v5689, %v5690
        %v5692 = vrot.slane %v5481, 2
        %v5693 = vsel %vm1579, %v5690, %v5692
        %v5694 = vrot.slane %v5482, 2
        %v5695 = vrot.slane %v5483, 2
        %v5696 = vsel %vm1579, %v5694, %v5695
        %v5697 = vrot.slane %v5484, 2
        %v5698 = vsel %vm1579, %v5695, %v5697
        %v5734 = vrot.slane %v5485, 1
        %v5735 = vrot.slane %v5486, 1
        %v5736 = vsel %vm1172, %v5734, %v5735
        %v5737 = vrot.slane %v5487, 1
        %v5738 = vsel %vm1172, %v5735, %v5737
        %v5771 = vrot.slane %v5485, 2
        %v5772 = vrot.slane %v5486, 2
        %v5773 = vsel %vm1579, %v5771, %v5772
        %v5774 = vrot.slane %v5487, 2
        %v5775 = vsel %vm1579, %v5772, %v5774
        %v5779 = vrot.slane %v5488, 1
        %v5780 = vrot.slane %v5489, 1
        %v5781 = vsel %vm1172, %v5779, %v5780
        %v5782 = vrot.slane %v5490, 1
        %v5783 = vsel %vm1172, %v5780, %v5782
        %v5784 = vrot.slane %v5488, 2
        %v5785 = vrot.slane %v5489, 2
        %v5786 = vsel %vm1579, %v5784, %v5785
        %v5787 = vrot.slane %v5490, 2
        %v5788 = vsel %vm1579, %v5785, %v5787
        %5789 = vrot.lane.b32.xlu0 %v5541, 64
        %v5790 = vpop.permute.xlu0 %5789
        %5791 = vrot.lane.b32.xlu0 %v5543, 64
        %v5792 = vpop.permute.xlu0 %5791
        %5793 = vrot.lane.b32.xlu0 %v5546, 64
        %v5794 = vpop.permute.xlu0 %5793
        %5795 = vrot.lane.b32.xlu0 %v5548, 64
        %v5796 = vpop.permute.xlu0 %5795
        %5797 = vrot.lane.b32.xlu0 %v5551, 64
        %v5798 = vpop.permute.xlu0 %5797
        %5799 = vrot.lane.b32.xlu0 %v5553, 64
        %v5800 = vpop.permute.xlu0 %5799
        %5801 = vrot.lane.b32.xlu0 %v5556, 64
        %v5802 = vpop.permute.xlu0 %5801
        %5803 = vrot.lane.b32.xlu0 %v5558, 64
        %v5804 = vpop.permute.xlu0 %5803
        %5805 = vrot.lane.b32.xlu0 %v5561, 64
        %v5806 = vpop.permute.xlu0 %5805
        %5807 = vrot.lane.b32.xlu0 %v5563, 64
        %v5808 = vpop.permute.xlu0 %5807
        %5809 = vrot.lane.b32.xlu0 %v5566, 64
        %v5810 = vpop.permute.xlu0 %5809
        %5811 = vrot.lane.b32.xlu0 %v5568, 64
        %v5812 = vpop.permute.xlu0 %5811
        %5813 = vrot.lane.b32.xlu0 %v5571, 64
        %v5814 = vpop.permute.xlu0 %5813
        %5815 = vrot.lane.b32.xlu0 %v5573, 64
        %v5816 = vpop.permute.xlu0 %5815
        %5817 = vrot.lane.b32.xlu0 %v5576, 64
        %v5818 = vpop.permute.xlu0 %5817
        %5819 = vrot.lane.b32.xlu0 %v5578, 64
        %v5820 = vpop.permute.xlu0 %5819
        %5821 = vrot.lane.b32.xlu0 %v5581, 64
        %v5822 = vpop.permute.xlu0 %5821
        %5823 = vrot.lane.b32.xlu0 %v5583, 64
        %v5824 = vpop.permute.xlu0 %5823
        %5825 = vrot.lane.b32.xlu0 %v5586, 64
        %v5826 = vpop.permute.xlu0 %5825
        %5827 = vrot.lane.b32.xlu0 %v5588, 64
        %v5828 = vpop.permute.xlu0 %5827
        %5829 = vrot.lane.b32.xlu0 %v5591, 64
        %v5830 = vpop.permute.xlu0 %5829
        %5831 = vrot.lane.b32.xlu0 %v5593, 64
        %v5832 = vpop.permute.xlu0 %5831
        %5833 = vrot.lane.b32.xlu0 %v5596, 64
        %v5834 = vpop.permute.xlu0 %5833
        %5835 = vrot.lane.b32.xlu0 %v5598, 64
        %v5836 = vpop.permute.xlu0 %5835
        %5837 = vrot.lane.b32.xlu0 %v5601, 64
        %v5838 = vpop.permute.xlu0 %5837
        %5839 = vrot.lane.b32.xlu0 %v5603, 64
        %v5840 = vpop.permute.xlu0 %5839
        %5841 = vrot.lane.b32.xlu0 %v5606, 64
        %v5842 = vpop.permute.xlu0 %5841
        %5843 = vrot.lane.b32.xlu0 %v5608, 64
        %v5844 = vpop.permute.xlu0 %5843
        %5845 = vrot.lane.b32.xlu0 %v5611, 64
        %v5846 = vpop.permute.xlu0 %5845
        %5847 = vrot.lane.b32.xlu0 %v5613, 64
        %v5848 = vpop.permute.xlu0 %5847
        %5849 = vrot.lane.b32.xlu0 %v5616, 64
        %v5850 = vpop.permute.xlu0 %5849
        %5851 = vrot.lane.b32.xlu0 %v5618, 64
        %v5852 = vpop.permute.xlu0 %5851
        %5885 = vrot.lane.b32.xlu0 %v5440, 64
        %v5886 = vpop.permute.xlu0 %5885
        %5887 = vrot.lane.b32.xlu0 %v5441, 64
        %v5888 = vpop.permute.xlu0 %5887
        %5889 = vrot.lane.b32.xlu0 %v5443, 64
        %v5890 = vpop.permute.xlu0 %5889
        %5891 = vrot.lane.b32.xlu0 %v5444, 64
        %v5892 = vpop.permute.xlu0 %5891
        %5893 = vrot.lane.b32.xlu0 %v5446, 64
        %v5894 = vpop.permute.xlu0 %5893
        %5895 = vrot.lane.b32.xlu0 %v5447, 64
        %v5896 = vpop.permute.xlu0 %5895
        %5897 = vrot.lane.b32.xlu0 %v5449, 64
        %v5898 = vpop.permute.xlu0 %5897
        %5899 = vrot.lane.b32.xlu0 %v5450, 64
        %v5900 = vpop.permute.xlu0 %5899
        %5901 = vrot.lane.b32.xlu0 %v5452, 64
        %v5902 = vpop.permute.xlu0 %5901
        %5903 = vrot.lane.b32.xlu0 %v5453, 64
        %v5904 = vpop.permute.xlu0 %5903
        %5905 = vrot.lane.b32.xlu0 %v5455, 64
        %v5906 = vpop.permute.xlu0 %5905
        %5907 = vrot.lane.b32.xlu0 %v5456, 64
        %v5908 = vpop.permute.xlu0 %5907
        %5909 = vrot.lane.b32.xlu0 %v5458, 64
        %v5910 = vpop.permute.xlu0 %5909
        %5911 = vrot.lane.b32.xlu0 %v5459, 64
        %v5912 = vpop.permute.xlu0 %5911
        %5913 = vrot.lane.b32.xlu0 %v5461, 64
        %v5914 = vpop.permute.xlu0 %5913
        %5915 = vrot.lane.b32.xlu0 %v5462, 64
        %v5916 = vpop.permute.xlu0 %5915
        %5917 = vrot.lane.b32.xlu0 %v5464, 64
        %v5918 = vpop.permute.xlu0 %5917
        %5919 = vrot.lane.b32.xlu0 %v5465, 64
        %v5920 = vpop.permute.xlu0 %5919
        %5921 = vrot.lane.b32.xlu0 %v5467, 64
        %v5922 = vpop.permute.xlu0 %5921
        %5923 = vrot.lane.b32.xlu0 %v5468, 64
        %v5924 = vpop.permute.xlu0 %5923
        %5925 = vrot.lane.b32.xlu0 %v5470, 64
        %v5926 = vpop.permute.xlu0 %5925
        %5927 = vrot.lane.b32.xlu0 %v5471, 64
        %v5928 = vpop.permute.xlu0 %5927
        %5929 = vrot.lane.b32.xlu0 %v5473, 64
        %v5930 = vpop.permute.xlu0 %5929
        %5931 = vrot.lane.b32.xlu0 %v5474, 64
        %v5932 = vpop.permute.xlu0 %5931
        %5933 = vrot.lane.b32.xlu0 %v5476, 64
        %v5934 = vpop.permute.xlu0 %5933
        %5935 = vrot.lane.b32.xlu0 %v5477, 64
        %v5936 = vpop.permute.xlu0 %5935
        %5937 = vrot.lane.b32.xlu0 %v5479, 64
        %v5938 = vpop.permute.xlu0 %5937
        %5939 = vrot.lane.b32.xlu0 %v5480, 64
        %v5940 = vpop.permute.xlu0 %5939
        %5941 = vrot.lane.b32.xlu0 %v5482, 64
        %v5942 = vpop.permute.xlu0 %5941
        %5943 = vrot.lane.b32.xlu0 %v5483, 64
        %v5944 = vpop.permute.xlu0 %5943
        %5945 = vrot.lane.b32.xlu0 %v5485, 64
        %v5946 = vpop.permute.xlu0 %5945
        %5947 = vrot.lane.b32.xlu0 %v5486, 64
        %v5948 = vpop.permute.xlu0 %5947
        %5981 = vrot.lane.b32.xlu0 %v5626, 64
        %v5982 = vpop.permute.xlu0 %5981
        %5983 = vrot.lane.b32.xlu0 %v5628, 64
        %v5984 = vpop.permute.xlu0 %5983
        %5985 = vrot.lane.b32.xlu0 %v5631, 64
        %v5986 = vpop.permute.xlu0 %5985
        %5987 = vrot.lane.b32.xlu0 %v5633, 64
        %v5988 = vpop.permute.xlu0 %5987
        %5989 = vrot.lane.b32.xlu0 %v5636, 64
        %v5990 = vpop.permute.xlu0 %5989
        %5991 = vrot.lane.b32.xlu0 %v5638, 64
        %v5992 = vpop.permute.xlu0 %5991
        %5993 = vrot.lane.b32.xlu0 %v5641, 64
        %v5994 = vpop.permute.xlu0 %5993
        %5995 = vrot.lane.b32.xlu0 %v5643, 64
        %v5996 = vpop.permute.xlu0 %5995
        %5997 = vrot.lane.b32.xlu0 %v5646, 64
        %v5998 = vpop.permute.xlu0 %5997
        %5999 = vrot.lane.b32.xlu0 %v5648, 64
        %v6000 = vpop.permute.xlu0 %5999
        %6001 = vrot.lane.b32.xlu0 %v5651, 64
        %v6002 = vpop.permute.xlu0 %6001
        %6003 = vrot.lane.b32.xlu0 %v5653, 64
        %v6004 = vpop.permute.xlu0 %6003
        %6005 = vrot.lane.b32.xlu0 %v5656, 64
        %v6006 = vpop.permute.xlu0 %6005
        %6007 = vrot.lane.b32.xlu0 %v5658, 64
        %v6008 = vpop.permute.xlu0 %6007
        %6009 = vrot.lane.b32.xlu0 %v5661, 64
        %v6010 = vpop.permute.xlu0 %6009
        %6011 = vrot.lane.b32.xlu0 %v5663, 64
        %v6012 = vpop.permute.xlu0 %6011
        %6013 = vrot.lane.b32.xlu0 %v5666, 64
        %v6014 = vpop.permute.xlu0 %6013
        %6015 = vrot.lane.b32.xlu0 %v5668, 64
        %v6016 = vpop.permute.xlu0 %6015
        %6017 = vrot.lane.b32.xlu0 %v5671, 64
        %v6018 = vpop.permute.xlu0 %6017
        %6019 = vrot.lane.b32.xlu0 %v5673, 64
        %v6020 = vpop.permute.xlu0 %6019
        %6021 = vrot.lane.b32.xlu0 %v5676, 64
        %v6022 = vpop.permute.xlu0 %6021
        %6023 = vrot.lane.b32.xlu0 %v5678, 64
        %v6024 = vpop.permute.xlu0 %6023
        %6025 = vrot.lane.b32.xlu0 %v5681, 64
        %v6026 = vpop.permute.xlu0 %6025
        %6027 = vrot.lane.b32.xlu0 %v5683, 64
        %v6028 = vpop.permute.xlu0 %6027
        %6029 = vrot.lane.b32.xlu0 %v5686, 64
        %v6030 = vpop.permute.xlu0 %6029
        %6031 = vrot.lane.b32.xlu0 %v5688, 64
        %v6032 = vpop.permute.xlu0 %6031
        %6033 = vrot.lane.b32.xlu0 %v5691, 64
        %v6034 = vpop.permute.xlu0 %6033
        %6035 = vrot.lane.b32.xlu0 %v5693, 64
        %v6036 = vpop.permute.xlu0 %6035
        %6037 = vrot.lane.b32.xlu0 %v5696, 64
        %v6038 = vpop.permute.xlu0 %6037
        %6039 = vrot.lane.b32.xlu0 %v5698, 64
        %v6040 = vpop.permute.xlu0 %6039
        %6041 = vrot.lane.b32.xlu0 %v5773, 64
        %v6042 = vpop.permute.xlu0 %6041
        %6043 = vrot.lane.b32.xlu0 %v5775, 64
        %v6044 = vpop.permute.xlu0 %6043
        %6077 = vrot.lane.b32.xlu0 %v5736, 64
        %v6078 = vpop.permute.xlu0 %6077
        %6079 = vrot.lane.b32.xlu0 %v5738, 64
        %v6080 = vpop.permute.xlu0 %6079
        %6081 = vrot.lane.b32.xlu0 %v5781, 64
        %v6082 = vpop.permute.xlu0 %6081
        %6083 = vrot.lane.b32.xlu0 %v5783, 64
        %v6084 = vpop.permute.xlu0 %6083
        %v6089 = vsel %vm508, %v5437, %v5790
        %v6090 = vsel %vm508, %v5438, %v5792
        %v6091 = vsel %vm508, %v5440, %v5794
        %v6092 = vsel %vm508, %v5441, %v5796
        %v6093 = vsel %vm508, %v5443, %v5798
        %v6094 = vsel %vm508, %v5444, %v5800
        %v6095 = vsel %vm508, %v5446, %v5802
        %v6096 = vsel %vm508, %v5447, %v5804
        %v6097 = vsel %vm508, %v5449, %v5806
        %v6098 = vsel %vm508, %v5450, %v5808
        %v6099 = vsel %vm508, %v5452, %v5810
        %v6100 = vsel %vm508, %v5453, %v5812
        %v6101 = vsel %vm508, %v5455, %v5814
        %v6102 = vsel %vm508, %v5456, %v5816
        %v6103 = vsel %vm508, %v5458, %v5818
        %v6104 = vsel %vm508, %v5459, %v5820
        %v6105 = vsel %vm508, %v5461, %v5822
        %v6106 = vsel %vm508, %v5462, %v5824
        %v6107 = vsel %vm508, %v5464, %v5826
        %v6108 = vsel %vm508, %v5465, %v5828
        %v6109 = vsel %vm508, %v5467, %v5830
        %v6110 = vsel %vm508, %v5468, %v5832
        %v6111 = vsel %vm508, %v5470, %v5834
        %v6112 = vsel %vm508, %v5471, %v5836
        %v6113 = vsel %vm508, %v5473, %v5838
        %v6114 = vsel %vm508, %v5474, %v5840
        %v6115 = vsel %vm508, %v5476, %v5842
        %v6116 = vsel %vm508, %v5477, %v5844
        %v6117 = vsel %vm508, %v5479, %v5846
        %v6118 = vsel %vm508, %v5480, %v5848
        %v6119 = vsel %vm508, %v5482, %v5850
        %v6120 = vsel %vm508, %v5483, %v5852
        %v6121 = vsel %vm508, %v5621, %v5886
        %v6122 = vsel %vm508, %v5623, %v5888
        %v6123 = vsel %vm508, %v5626, %v5890
        %v6124 = vsel %vm508, %v5628, %v5892
        %v6125 = vsel %vm508, %v5631, %v5894
        %v6126 = vsel %vm508, %v5633, %v5896
        %v6127 = vsel %vm508, %v5636, %v5898
        %v6128 = vsel %vm508, %v5638, %v5900
        %v6129 = vsel %vm508, %v5641, %v5902
        %v6130 = vsel %vm508, %v5643, %v5904
        %v6131 = vsel %vm508, %v5646, %v5906
        %v6132 = vsel %vm508, %v5648, %v5908
        %v6133 = vsel %vm508, %v5651, %v5910
        %v6134 = vsel %vm508, %v5653, %v5912
        %v6135 = vsel %vm508, %v5656, %v5914
        %v6136 = vsel %vm508, %v5658, %v5916
        %v6137 = vsel %vm508, %v5661, %v5918
        %v6138 = vsel %vm508, %v5663, %v5920
        %v6139 = vsel %vm508, %v5666, %v5922
        %v6140 = vsel %vm508, %v5668, %v5924
        %v6141 = vsel %vm508, %v5671, %v5926
        %v6142 = vsel %vm508, %v5673, %v5928
        %v6143 = vsel %vm508, %v5676, %v5930
        %v6144 = vsel %vm508, %v5678, %v5932
        %v6145 = vsel %vm508, %v5681, %v5934
        %v6146 = vsel %vm508, %v5683, %v5936
        %v6147 = vsel %vm508, %v5686, %v5938
        %v6148 = vsel %vm508, %v5688, %v5940
        %v6149 = vsel %vm508, %v5691, %v5942
        %v6150 = vsel %vm508, %v5693, %v5944
        %v6151 = vsel %vm508, %v5696, %v5946
        %v6152 = vsel %vm508, %v5698, %v5948
        %v6153 = vsel %vm508, %v5546, %v5982
        %v6154 = vsel %vm508, %v5548, %v5984
        %v6155 = vsel %vm508, %v5551, %v5986
        %v6156 = vsel %vm508, %v5553, %v5988
        %v6157 = vsel %vm508, %v5556, %v5990
        %v6158 = vsel %vm508, %v5558, %v5992
        %v6159 = vsel %vm508, %v5561, %v5994
        %v6160 = vsel %vm508, %v5563, %v5996
        %v6161 = vsel %vm508, %v5566, %v5998
        %v6162 = vsel %vm508, %v5568, %v6000
        %v6163 = vsel %vm508, %v5571, %v6002
        %v6164 = vsel %vm508, %v5573, %v6004
        %v6165 = vsel %vm508, %v5576, %v6006
        %v6166 = vsel %vm508, %v5578, %v6008
        %v6167 = vsel %vm508, %v5581, %v6010
        %v6168 = vsel %vm508, %v5583, %v6012
        %v6169 = vsel %vm508, %v5586, %v6014
        %v6170 = vsel %vm508, %v5588, %v6016
        %v6171 = vsel %vm508, %v5591, %v6018
        %v6172 = vsel %vm508, %v5593, %v6020
        %v6173 = vsel %vm508, %v5596, %v6022
        %v6174 = vsel %vm508, %v5598, %v6024
        %v6175 = vsel %vm508, %v5601, %v6026
        %v6176 = vsel %vm508, %v5603, %v6028
        %v6177 = vsel %vm508, %v5606, %v6030
        %v6178 = vsel %vm508, %v5608, %v6032
        %v6179 = vsel %vm508, %v5611, %v6034
        %v6180 = vsel %vm508, %v5613, %v6036
        %v6181 = vsel %vm508, %v5616, %v6038
        %v6182 = vsel %vm508, %v5618, %v6040
        %v6183 = vsel %vm508, %v5736, %v6042
        %v6184 = vsel %vm508, %v5738, %v6044
        %v6185 = vsel %vm508, %v5485, %v6078
        %v6186 = vsel %vm508, %v5486, %v6080
        %v6187 = vsel %vm508, %v5488, %v6082
        %v6188 = vsel %vm508, %v5489, %v6084
        %v6189 = vld [vmem:[%s6] sm:$0xff]
        %v6190 = vld [vmem:[%s6 + $0x8] sm:$0xff]
        %v6191 = vld [vmem:[%s6 + $0x10] sm:$0xff]
        %v6192 = vld [vmem:[%s6 + $0x18] sm:$0xff]
        %v6193 = vld [vmem:[%s6 + $0x20] sm:$0xff]
        %v6194 = vld [vmem:[%s6 + $0x28] sm:$0xff]
        %v6195 = vld [vmem:[%s6 + $0x30] sm:$0xff]
        %v6196 = vld [vmem:[%s6 + $0x38] sm:$0xff]
        %v6197 = vld [vmem:[%s6 + $0x40] sm:$0xff]
        %v6198 = vld [vmem:[%s6 + $0x48] sm:$0xff]
        %v6199 = vld [vmem:[%s6 + $0x50] sm:$0xff]
        %v6200 = vld [vmem:[%s6 + $0x58] sm:$0xff]
        %v6201 = vld [vmem:[%s6 + $0x60] sm:$0xff]
        %v6202 = vld [vmem:[%s6 + $0x68] sm:$0xff]
        %v6203 = vld [vmem:[%s6 + $0x70] sm:$0xff]
        %v6204 = vld [vmem:[%s6 + $0x78] sm:$0xff]
        %v6205 = vld [vmem:[%s6 + $0x80] sm:$0xff]
        %v6206 = vld [vmem:[%s6 + $0x88] sm:$0xff]
        %v6207 = vld [vmem:[%s6 + $0x90] sm:$0xff]
        %v6208 = vld [vmem:[%s6 + $0x98] sm:$0xff]
        %v6209 = vld [vmem:[%s6 + $0xa0] sm:$0xff]
        %v6210 = vld [vmem:[%s6 + $0xa8] sm:$0xff]
        %v6211 = vld [vmem:[%s6 + $0xb0] sm:$0xff]
        %v6212 = vld [vmem:[%s6 + $0xb8] sm:$0xff]
        %v6213 = vld [vmem:[%s6 + $0xc0] sm:$0xff]
        %v6214 = vld [vmem:[%s6 + $0xc8] sm:$0xff]
        %v6215 = vld [vmem:[%s6 + $0xd0] sm:$0xff]
        %v6216 = vld [vmem:[%s6 + $0xd8] sm:$0xff]
        %v6217 = vld [vmem:[%s6 + $0xe0] sm:$0xff]
        %v6218 = vld [vmem:[%s6 + $0xe8] sm:$0xff]
        %v6219 = vld [vmem:[%s6 + $0xf0] sm:$0xff]
        %v6220 = vld [vmem:[%s6 + $0xf8] sm:$0xff]
        %v6221 = vld [vmem:[%s6 + $0x100] sm:$0xff]
        %v6222 = vld [vmem:[%s6 + $0x108] sm:$0xff]
        %v6223 = vld [vmem:[%s6 + $0x110] sm:$0xff]
        %v6224 = vld [vmem:[%s6 + $0x118] sm:$0xff]
        %v6225 = vld [vmem:[%s6 + $0x120] sm:$0xff]
        %v6226 = vld [vmem:[%s6 + $0x128] sm:$0xff]
        %v6227 = vld [vmem:[%s6 + $0x130] sm:$0xff]
        %v6228 = vld [vmem:[%s6 + $0x138] sm:$0xff]
        %v6229 = vld [vmem:[%s6 + $0x140] sm:$0xff]
        %v6230 = vld [vmem:[%s6 + $0x148] sm:$0xff]
        %v6231 = vld [vmem:[%s6 + $0x150] sm:$0xff]
        %v6232 = vld [vmem:[%s6 + $0x158] sm:$0xff]
        %v6233 = vld [vmem:[%s6 + $0x160] sm:$0xff]
        %v6234 = vld [vmem:[%s6 + $0x168] sm:$0xff]
        %v6235 = vld [vmem:[%s6 + $0x170] sm:$0xff]
        %v6236 = vld [vmem:[%s6 + $0x178] sm:$0xff]
        %v6237 = vld [vmem:[%s6 + $0x180] sm:$0xff]
        %v6238 = vld [vmem:[%s6 + $0x188] sm:$0xff]
        %v6239 = vld [vmem:[%s6 + $0x190] sm:$0xff]
        %v6240 = vld [vmem:[%s6 + $0x198] sm:$0xff]
        %v6241 = vld [vmem:[%s6 + $0x1a0] sm:$0xff]
        %v6242 = vld [vmem:[%s6 + $0x1a8] sm:$0xff]
        %v6243 = vld [vmem:[%s6 + $0x1b0] sm:$0xff]
        %v6244 = vld [vmem:[%s6 + $0x1b8] sm:$0xff]
        %v6245 = vld [vmem:[%s6 + $0x1c0] sm:$0xff]
        %v6246 = vld [vmem:[%s6 + $0x1c8] sm:$0xff]
        %v6247 = vld [vmem:[%s6 + $0x1d0] sm:$0xff]
        %v6248 = vld [vmem:[%s6 + $0x1d8] sm:$0xff]
        %v6249 = vld [vmem:[%s6 + $0x1e0] sm:$0xff]
        %v6250 = vld [vmem:[%s6 + $0x1e8] sm:$0xff]
        %v6251 = vld [vmem:[%s6 + $0x1f0] sm:$0xff]
        %v6252 = vld [vmem:[%s6 + $0x1f8] sm:$0xff]
        %v6253 = vld [vmem:[%s6 + $0x200] sm:$0xff]
        %v6254 = vld [vmem:[%s6 + $0x208] sm:$0xff]
        %v6255 = vld [vmem:[%s6 + $0x210] sm:$0xff]
        %v6256 = vld [vmem:[%s6 + $0x218] sm:$0xff]
        %v6257 = vld [vmem:[%s6 + $0x220] sm:$0xff]
        %v6258 = vld [vmem:[%s6 + $0x228] sm:$0xff]
        %v6259 = vld [vmem:[%s6 + $0x230] sm:$0xff]
        %v6260 = vld [vmem:[%s6 + $0x238] sm:$0xff]
        %v6261 = vld [vmem:[%s7] sm:$0x1]
        %v6263 = vlaneseq
        %v6264 = vshrl.u32 %v6263, 7
        %v6265 = vsub.s32 0, %v6264
        %v6266 = vrot.slane %v6261, %v6265
        %v6268 = vsel %vm508, %v5631, 0
        %v6270 = vsel %vm508, %v5633, 0
        %v6272 = vsel %vm508, %v5636, 0
        %v6274 = vsel %vm508, %v5638, 0
        %v6276 = vsel %vm508, %v5641, 0
        %v6278 = vsel %vm508, %v5643, 0
        %v6280 = vsel %vm508, %v5646, 0
        %v6282 = vsel %vm508, %v5648, 0
        %v6284 = vsel %vm508, %v5651, 0
        %v6286 = vsel %vm508, %v5653, 0
        %v6288 = vsel %vm508, %v5656, 0
        %v6290 = vsel %vm508, %v5658, 0
        %v6292 = vsel %vm508, %v5661, 0
        %v6294 = vsel %vm508, %v5663, 0
        %v6296 = vsel %vm508, %v5666, 0
        %v6298 = vsel %vm508, %v5668, 0
        %v6300 = vsel %vm508, %v5671, 0
        %v6302 = vsel %vm508, %v5673, 0
        %v6304 = vsel %vm508, %v5676, 0
        %v6306 = vsel %vm508, %v5678, 0
        %v6308 = vsel %vm508, %v5681, 0
        %v6310 = vsel %vm508, %v5683, 0
        %v6312 = vsel %vm508, %v5686, 0
        %v6314 = vsel %vm508, %v5688, 0
        %v6316 = vsel %vm508, %v5691, 0
        %v6318 = vsel %vm508, %v5693, 0
        %v6320 = vsel %vm508, %v5696, 0
        %v6322 = vsel %vm508, %v5698, 0
        %v6324 = vsel %vm508, %v5773, 0
        %v6326 = vsel %vm508, %v5775, 0
        %v6328 = vsel %vm508, %v5786, 0
        %v6330 = vsel %vm508, %v5788, 0
        %6332 = vmatprep.subr.mxu0 0.0
        %6333 = vmatpush1.msra.mxu0 %v6189
        %6334 = vmatprep.subr.mxu0 0.0
        %6335 = vmatpush1.msra.mxu0 %v6190
        %6336 = vmatprep.subr.mxu0 0.0
        %6337 = vmatpush1.msra.mxu0 %v6191
        %6338 = vmatprep.subr.mxu0 0.0
        %6339 = vmatpush1.msra.mxu0 %v6192
        %6340 = vmatprep.subr.mxu0 0.0
        %6341 = vmatpush1.msra.mxu0 %v6193
        %6342 = vmatprep.subr.mxu0 0.0
        %6343 = vmatpush1.msra.mxu0 %v6194
        %6344 = vmatprep.subr.mxu0 0.0
        %6345 = vmatpush1.msra.mxu0 %v6195
        %6346 = vmatprep.subr.mxu0 0.0
        %6347 = vmatpush1.msra.mxu0 %v6196
        %6348 = vmatprep.subr.mxu0 0.0
        %6349 = vmatpush1.msra.mxu0 %v6197
        %6350 = vmatprep.subr.mxu0 0.0
        %6351 = vmatpush1.msra.mxu0 %v6198
        %6352 = vmatprep.subr.mxu0 0.0
        %6353 = vmatpush1.msra.mxu0 %v6199
        %6354 = vmatprep.subr.mxu0 0.0
        %6355 = vmatpush1.msra.mxu0 %v6200
        %6356 = vmatprep.subr.mxu0 0.0
        %6357 = vmatpush1.msra.mxu0 %v6201
        %6358 = vmatprep.subr.mxu0 0.0
        %6359 = vmatpush1.msra.mxu0 %v6202
        %6360 = vmatprep.subr.mxu0 0.0
        %6361 = vmatpush1.msra.mxu0 %v6203
        %6362 = vmatprep.subr.mxu0 0.0
        %6363 = vmatpush1.msra.mxu0 %v6204
        %6364 = vmatprep.subr.mxu0 0.0
        %6365 = vmatpush1.msra.mxu0 %v6205
        %6366 = vmatprep.subr.mxu0 0.0
        %6367 = vmatpush1.msra.mxu0 %v6206
        %6368 = vmatprep.subr.mxu0 0.0
        %6369 = vmatpush1.msra.mxu0 %v6207
        %6370 = vmatprep.subr.mxu0 0.0
        %6371 = vmatpush1.msra.mxu0 %v6208
        %6372 = vmatprep.subr.mxu0 0.0
        %6373 = vmatpush1.msra.mxu0 %v6209
        %6374 = vmatprep.subr.mxu0 0.0
        %6375 = vmatpush1.msra.mxu0 %v6210
        %6376 = vmatprep.subr.mxu0 0.0
        %6377 = vmatpush1.msra.mxu0 %v6211
        %6378 = vmatprep.subr.mxu0 0.0
        %6379 = vmatpush1.msra.mxu0 %v6212
        %6380 = vmatprep.subr.mxu0 0.0
        %6381 = vmatpush1.msra.mxu0 %v6213
        %6382 = vmatprep.subr.mxu0 0.0
        %6383 = vmatpush1.msra.mxu0 %v6214
        %6384 = vmatprep.subr.mxu0 0.0
        %6385 = vmatpush1.msra.mxu0 %v6215
        %6386 = vmatprep.subr.mxu0 0.0
        %6387 = vmatpush1.msra.mxu0 %v6216
        %6388 = vmatprep.subr.mxu0 0.0
        %6389 = vmatpush1.msra.mxu0 %v6217
        %6390 = vmatprep.subr.mxu0 0.0
        %6391 = vmatpush1.msra.mxu0 %v6218
        %6392 = vmatprep.subr.mxu0 0.0
        %6393 = vmatpush1.msra.mxu0 %v6219
        %6394 = vmatprep.subr.mxu0 0.0
        %6395 = vmatpush1.msra.mxu0 %v6220
        %6396 = vmatprep.mubr.f32.mxu0 %v6121
        %6397 = vmatmul.mubr.f32.gmra.mrb[0].mxu0 %v6089
        %v6398 = vpop.f32.mrb[0].mxu0
        %v6399 = vadd.f32 %v6266, %v6398
        %v6400 = vpop.f32.mrb[0].mxu0
        %6401 = vmatprep.mubr.f32.mxu0 %v6122
        %6402 = vmatmul.mubr.f32.gmra.mrb[0].mxu0 %v6090
        %v6403 = vpop.f32.mrb[0].mxu0
        %v6404 = vadd.f32 %v6266, %v6403
        %v6405 = vpop.f32.mrb[0].mxu0
        %6406 = vmatprep.mubr.f32.mxu0 %v6123
        %6407 = vmatmul.mubr.f32.gmra.mrb[0].mxu0 %v6091
        %v6408 = vpop.f32.mrb[0].mxu0
        %v6409 = vadd.f32 %v6266, %v6408
        %v6410 = vpop.f32.mrb[0].mxu0
        %6411 = vmatprep.mubr.f32.mxu0 %v6124
        %6412 = vmatmul.mubr.f32.gmra.mrb[0].mxu0 %v6092
        %v6413 = vpop.f32.mrb[0].mxu0
        %v6414 = vadd.f32 %v6266, %v6413
        %v6415 = vpop.f32.mrb[0].mxu0
        %6416 = vmatprep.mubr.f32.mxu0 %v6125
        %6417 = vmatmul.mubr.f32.gmra.mrb[0].mxu0 %v6093
        %v6418 = vpop.f32.mrb[0].mxu0
        %v6419 = vadd.f32 %v6266, %v6418
        %v6420 = vpop.f32.mrb[0].mxu0
        %6421 = vmatprep.mubr.f32.mxu0 %v6126
        %6422 = vmatmul.mubr.f32.gmra.mrb[0].mxu0 %v6094
        %v6423 = vpop.f32.mrb[0].mxu0
        %v6424 = vadd.f32 %v6266, %v6423
        %v6425 = vpop.f32.mrb[0].mxu0
        %6426 = vmatprep.mubr.f32.mxu0 %v6127
        %6427 = vmatmul.mubr.f32.gmra.mrb[0].mxu0 %v6095
        %v6428 = vpop.f32.mrb[0].mxu0
        %v6429 = vadd.f32 %v6266, %v6428
        %v6430 = vpop.f32.mrb[0].mxu0
        %6431 = vmatprep.mubr.f32.mxu0 %v6128
        %6432 = vmatmul.mubr.f32.gmra.mrb[0].mxu0 %v6096
        %v6433 = vpop.f32.mrb[0].mxu0
        %v6434 = vadd.f32 %v6266, %v6433
        %v6435 = vpop.f32.mrb[0].mxu0
        %6436 = vmatprep.mubr.f32.mxu0 %v6129
        %6437 = vmatmul.mubr.f32.gmra.mrb[0].mxu0 %v6097
        %v6438 = vpop.f32.mrb[0].mxu0
        %v6439 = vadd.f32 %v6266, %v6438
        %v6440 = vpop.f32.mrb[0].mxu0
        %6441 = vmatprep.mubr.f32.mxu0 %v6130
        %6442 = vmatmul.mubr.f32.gmra.mrb[0].mxu0 %v6098
        %v6443 = vpop.f32.mrb[0].mxu0
        %v6444 = vadd.f32 %v6266, %v6443
        %v6445 = vpop.f32.mrb[0].mxu0
        %6446 = vmatprep.mubr.f32.mxu0 %v6131
        %6447 = vmatmul.mubr.f32.gmra.mrb[0].mxu0 %v6099
        %v6448 = vpop.f32.mrb[0].mxu0
        %v6449 = vadd.f32 %v6266, %v6448
        %v6450 = vpop.f32.mrb[0].mxu0
        %6451 = vmatprep.mubr.f32.mxu0 %v6132
        %6452 = vmatmul.mubr.f32.gmra.mrb[0].mxu0 %v6100
        %v6453 = vpop.f32.mrb[0].mxu0
        %v6454 = vadd.f32 %v6266, %v6453
        %v6455 = vpop.f32.mrb[0].mxu0
        %6456 = vmatprep.mubr.f32.mxu0 %v6133
        %6457 = vmatmul.mubr.f32.gmra.mrb[0].mxu0 %v6101
        %v6458 = vpop.f32.mrb[0].mxu0
        %v6459 = vadd.f32 %v6266, %v6458
        %v6460 = vpop.f32.mrb[0].mxu0
        %6461 = vmatprep.mubr.f32.mxu0 %v6134
        %6462 = vmatmul.mubr.f32.gmra.mrb[0].mxu0 %v6102
        %v6463 = vpop.f32.mrb[0].mxu0
        %v6464 = vadd.f32 %v6266, %v6463
        %v6465 = vpop.f32.mrb[0].mxu0
        %6466 = vmatprep.mubr.f32.mxu0 %v6135
        %6467 = vmatmul.mubr.f32.gmra.mrb[0].mxu0 %v6103
        %v6468 = vpop.f32.mrb[0].mxu0
        %v6469 = vadd.f32 %v6266, %v6468
        %v6470 = vpop.f32.mrb[0].mxu0
        %6471 = vmatprep.mubr.f32.mxu0 %v6136
        %6472 = vmatmul.mubr.f32.gmra.mrb[0].mxu0 %v6104
        %v6473 = vpop.f32.mrb[0].mxu0
        %v6474 = vadd.f32 %v6266, %v6473
        %v6475 = vpop.f32.mrb[0].mxu0
        %6476 = vmatprep.mubr.f32.mxu0 %v6137
        %6477 = vmatmul.mubr.f32.gmra.mrb[0].mxu0 %v6105
        %v6478 = vpop.f32.mrb[0].mxu0
        %v6479 = vadd.f32 %v6266, %v6478
        %v6480 = vpop.f32.mrb[0].mxu0
        %6481 = vmatprep.mubr.f32.mxu0 %v6138
        %6482 = vmatmul.mubr.f32.gmra.mrb[0].mxu0 %v6106
        %v6483 = vpop.f32.mrb[0].mxu0
        %v6484 = vadd.f32 %v6266, %v6483
        %v6485 = vpop.f32.mrb[0].mxu0
        %6486 = vmatprep.mubr.f32.mxu0 %v6139
        %6487 = vmatmul.mubr.f32.gmra.mrb[0].mxu0 %v6107
        %v6488 = vpop.f32.mrb[0].mxu0
        %v6489 = vadd.f32 %v6266, %v6488
        %v6490 = vpop.f32.mrb[0].mxu0
        %6491 = vmatprep.mubr.f32.mxu0 %v6140
        %6492 = vmatmul.mubr.f32.gmra.mrb[0].mxu0 %v6108
        %v6493 = vpop.f32.mrb[0].mxu0
        %v6494 = vadd.f32 %v6266, %v6493
        %v6495 = vpop.f32.mrb[0].mxu0
        %6496 = vmatprep.mubr.f32.mxu0 %v6141
        %6497 = vmatmul.mubr.f32.gmra.mrb[0].mxu0 %v6109
        %v6498 = vpop.f32.mrb[0].mxu0
        %v6499 = vadd.f32 %v6266, %v6498
        %v6500 = vpop.f32.mrb[0].mxu0
        %6501 = vmatprep.mubr.f32.mxu0 %v6142
        %6502 = vmatmul.mubr.f32.gmra.mrb[0].mxu0 %v6110
        %v6503 = vpop.f32.mrb[0].mxu0
        %v6504 = vadd.f32 %v6266, %v6503
        %v6505 = vpop.f32.mrb[0].mxu0
        %6506 = vmatprep.mubr.f32.mxu0 %v6143
        %6507 = vmatmul.mubr.f32.gmra.mrb[0].mxu0 %v6111
        %v6508 = vpop.f32.mrb[0].mxu0
        %v6509 = vadd.f32 %v6266, %v6508
        %v6510 = vpop.f32.mrb[0].mxu0
        %6511 = vmatprep.mubr.f32.mxu0 %v6144
        %6512 = vmatmul.mubr.f32.gmra.mrb[0].mxu0 %v6112
        %v6513 = vpop.f32.mrb[0].mxu0
        %v6514 = vadd.f32 %v6266, %v6513
        %v6515 = vpop.f32.mrb[0].mxu0
        %6516 = vmatprep.mubr.f32.mxu0 %v6145
        %6517 = vmatmul.mubr.f32.gmra.mrb[0].mxu0 %v6113
        %v6518 = vpop.f32.mrb[0].mxu0
        %v6519 = vadd.f32 %v6266, %v6518
        %v6520 = vpop.f32.mrb[0].mxu0
        %6521 = vmatprep.mubr.f32.mxu0 %v6146
        %6522 = vmatmul.mubr.f32.gmra.mrb[0].mxu0 %v6114
        %v6523 = vpop.f32.mrb[0].mxu0
        %v6524 = vadd.f32 %v6266, %v6523
        %v6525 = vpop.f32.mrb[0].mxu0
        %6526 = vmatprep.mubr.f32.mxu0 %v6147
        %6527 = vmatmul.mubr.f32.gmra.mrb[0].mxu0 %v6115
        %v6528 = vpop.f32.mrb[0].mxu0
        %v6529 = vadd.f32 %v6266, %v6528
        %v6530 = vpop.f32.mrb[0].mxu0
        %6531 = vmatprep.mubr.f32.mxu0 %v6148
        %6532 = vmatmul.mubr.f32.gmra.mrb[0].mxu0 %v6116
        %v6533 = vpop.f32.mrb[0].mxu0
        %v6534 = vadd.f32 %v6266, %v6533
        %v6535 = vpop.f32.mrb[0].mxu0
        %6536 = vmatprep.mubr.f32.mxu0 %v6149
        %6537 = vmatmul.mubr.f32.gmra.mrb[0].mxu0 %v6117
        %v6538 = vpop.f32.mrb[0].mxu0
        %v6539 = vadd.f32 %v6266, %v6538
        %v6540 = vpop.f32.mrb[0].mxu0
        %6541 = vmatprep.mubr.f32.mxu0 %v6150
        %6542 = vmatmul.mubr.f32.gmra.mrb[0].mxu0 %v6118
        %v6543 = vpop.f32.mrb[0].mxu0
        %v6544 = vadd.f32 %v6266, %v6543
        %v6545 = vpop.f32.mrb[0].mxu0
        %6546 = vmatprep.mubr.f32.mxu0 %v6151
        %6547 = vmatmul.mubr.f32.gmra.mrb[0].mxu0 %v6119
        %v6548 = vpop.f32.mrb[0].mxu0
        %v6549 = vadd.f32 %v6266, %v6548
        %v6550 = vpop.f32.mrb[0].mxu0
        %6551 = vmatprep.mubr.f32.mxu0 %v6152
        %6552 = vmatmul.mubr.f32.gmra.mrb[0].mxu0 %v6120
        %v6553 = vpop.f32.mrb[0].mxu0
        %v6554 = vadd.f32 %v6266, %v6553
        %v6555 = vpop.f32.mrb[0].mxu0
        %6556 = vdwg.mxu0
        %6557 = vmatprep.subr.mxu0 0.0
        %6558 = vmatpush1.msra.mxu0 %v6221
        %6559 = vmatprep.subr.mxu0 0.0
        %6560 = vmatpush1.msra.mxu0 %v6222
        %6561 = vmatprep.subr.mxu0 0.0
        %6562 = vmatpush1.msra.mxu0 %v6223
        %6563 = vmatprep.subr.mxu0 0.0
        %6564 = vmatpush1.msra.mxu0 %v6224
        %6565 = vmatprep.subr.mxu0 0.0
        %6566 = vmatpush1.msra.mxu0 %v6225
        %6567 = vmatprep.subr.mxu0 0.0
        %6568 = vmatpush1.msra.mxu0 %v6226
        %6569 = vmatprep.subr.mxu0 0.0
        %6570 = vmatpush1.msra.mxu0 %v6227
        %6571 = vmatprep.subr.mxu0 0.0
        %6572 = vmatpush1.msra.mxu0 %v6228
        %6573 = vmatprep.subr.mxu0 0.0
        %6574 = vmatpush1.msra.mxu0 %v6229
        %6575 = vmatprep.subr.mxu0 0.0
        %6576 = vmatpush1.msra.mxu0 %v6230
        %6577 = vmatprep.subr.mxu0 0.0
        %6578 = vmatpush1.msra.mxu0 %v6231
        %6579 = vmatprep.subr.mxu0 0.0
        %6580 = vmatpush1.msra.mxu0 %v6232
        %6581 = vmatprep.subr.mxu0 0.0
        %6582 = vmatpush1.msra.mxu0 %v6233
        %6583 = vmatprep.subr.mxu0 0.0
        %6584 = vmatpush1.msra.mxu0 %v6234
        %6585 = vmatprep.subr.mxu0 0.0
        %6586 = vmatpush1.msra.mxu0 %v6235
        %6587 = vmatprep.subr.mxu0 0.0
        %6588 = vmatpush1.msra.mxu0 %v6236
        %6589 = vmatprep.subr.mxu0 0.0
        %6590 = vmatpush1.msra.mxu0 %v6237
        %6591 = vmatprep.subr.mxu0 0.0
        %6592 = vmatpush1.msra.mxu0 %v6238
        %6593 = vmatprep.subr.mxu0 0.0
        %6594 = vmatpush1.msra.mxu0 %v6239
        %6595 = vmatprep.subr.mxu0 0.0
        %6596 = vmatpush1.msra.mxu0 %v6240
        %6597 = vmatprep.subr.mxu0 0.0
        %6598 = vmatpush1.msra.mxu0 %v6241
        %6599 = vmatprep.subr.mxu0 0.0
        %6600 = vmatpush1.msra.mxu0 %v6242
        %6601 = vmatprep.subr.mxu0 0.0
        %6602 = vmatpush1.msra.mxu0 %v6243
        %6603 = vmatprep.subr.mxu0 0.0
        %6604 = vmatpush1.msra.mxu0 %v6244
        %6605 = vmatprep.subr.mxu0 0.0
        %6606 = vmatpush1.msra.mxu0 %v6245
        %6607 = vmatprep.subr.mxu0 0.0
        %6608 = vmatpush1.msra.mxu0 %v6246
        %6609 = vmatprep.subr.mxu0 0.0
        %6610 = vmatpush1.msra.mxu0 %v6247
        %6611 = vmatprep.subr.mxu0 0.0
        %6612 = vmatpush1.msra.mxu0 %v6248
        %6613 = vmatprep.subr.mxu0 0.0
        %6614 = vmatpush1.msra.mxu0 %v6249
        %6615 = vmatprep.subr.mxu0 0.0
        %6616 = vmatpush1.msra.mxu0 %v6250
        %6617 = vmatprep.subr.mxu0 0.0
        %6618 = vmatpush1.msra.mxu0 %v6251
        %6619 = vmatprep.subr.mxu0 0.0
        %6620 = vmatpush1.msra.mxu0 %v6252
        %6621 = vmatprep.mubr.f32.mxu0 %v6093
        %6622 = vmatmul.mubr.f32.gmra.mrb[0].mxu0 %v6153
        %v6623 = vpop.f32.mrb[0].mxu0
        %v6624 = vadd.f32 %v6399, %v6623
        %v6625 = vpop.f32.mrb[0].mxu0
        %6626 = vmatprep.mubr.f32.mxu0 %v6094
        %6627 = vmatmul.mubr.f32.gmra.mrb[0].mxu0 %v6154
        %v6628 = vpop.f32.mrb[0].mxu0
        %v6629 = vadd.f32 %v6404, %v6628
        %v6630 = vpop.f32.mrb[0].mxu0
        %6631 = vmatprep.mubr.f32.mxu0 %v6095
        %6632 = vmatmul.mubr.f32.gmra.mrb[0].mxu0 %v6155
        %v6633 = vpop.f32.mrb[0].mxu0
        %v6634 = vadd.f32 %v6409, %v6633
        %v6635 = vpop.f32.mrb[0].mxu0
        %6636 = vmatprep.mubr.f32.mxu0 %v6096
        %6637 = vmatmul.mubr.f32.gmra.mrb[0].mxu0 %v6156
        %v6638 = vpop.f32.mrb[0].mxu0
        %v6639 = vadd.f32 %v6414, %v6638
        %v6640 = vpop.f32.mrb[0].mxu0
        %6641 = vmatprep.mubr.f32.mxu0 %v6097
        %6642 = vmatmul.mubr.f32.gmra.mrb[0].mxu0 %v6157
        %v6643 = vpop.f32.mrb[0].mxu0
        %v6644 = vadd.f32 %v6419, %v6643
        %v6645 = vpop.f32.mrb[0].mxu0
        %6646 = vmatprep.mubr.f32.mxu0 %v6098
        %6647 = vmatmul.mubr.f32.gmra.mrb[0].mxu0 %v6158
        %v6648 = vpop.f32.mrb[0].mxu0
        %v6649 = vadd.f32 %v6424, %v6648
        %v6650 = vpop.f32.mrb[0].mxu0
        %6651 = vmatprep.mubr.f32.mxu0 %v6099
        %6652 = vmatmul.mubr.f32.gmra.mrb[0].mxu0 %v6159
        %v6653 = vpop.f32.mrb[0].mxu0
        %v6654 = vadd.f32 %v6429, %v6653
        %v6655 = vpop.f32.mrb[0].mxu0
        %6656 = vmatprep.mubr.f32.mxu0 %v6100
        %6657 = vmatmul.mubr.f32.gmra.mrb[0].mxu0 %v6160
        %v6658 = vpop.f32.mrb[0].mxu0
        %v6659 = vadd.f32 %v6434, %v6658
        %v6660 = vpop.f32.mrb[0].mxu0
        %6661 = vmatprep.mubr.f32.mxu0 %v6101
        %6662 = vmatmul.mubr.f32.gmra.mrb[0].mxu0 %v6161
        %v6663 = vpop.f32.mrb[0].mxu0
        %v6664 = vadd.f32 %v6439, %v6663
        %v6665 = vpop.f32.mrb[0].mxu0
        %6666 = vmatprep.mubr.f32.mxu0 %v6102
        %6667 = vmatmul.mubr.f32.gmra.mrb[0].mxu0 %v6162
        %v6668 = vpop.f32.mrb[0].mxu0
        %v6669 = vadd.f32 %v6444, %v6668
        %v6670 = vpop.f32.mrb[0].mxu0
        %6671 = vmatprep.mubr.f32.mxu0 %v6103
        %6672 = vmatmul.mubr.f32.gmra.mrb[0].mxu0 %v6163
        %v6673 = vpop.f32.mrb[0].mxu0
        %v6674 = vadd.f32 %v6449, %v6673
        %v6675 = vpop.f32.mrb[0].mxu0
        %6676 = vmatprep.mubr.f32.mxu0 %v6104
        %6677 = vmatmul.mubr.f32.gmra.mrb[0].mxu0 %v6164
        %v6678 = vpop.f32.mrb[0].mxu0
        %v6679 = vadd.f32 %v6454, %v6678
        %v6680 = vpop.f32.mrb[0].mxu0
        %6681 = vmatprep.mubr.f32.mxu0 %v6105
        %6682 = vmatmul.mubr.f32.gmra.mrb[0].mxu0 %v6165
        %v6683 = vpop.f32.mrb[0].mxu0
        %v6684 = vadd.f32 %v6459, %v6683
        %v6685 = vpop.f32.mrb[0].mxu0
        %6686 = vmatprep.mubr.f32.mxu0 %v6106
        %6687 = vmatmul.mubr.f32.gmra.mrb[0].mxu0 %v6166
        %v6688 = vpop.f32.mrb[0].mxu0
        %v6689 = vadd.f32 %v6464, %v6688
        %v6690 = vpop.f32.mrb[0].mxu0
        %6691 = vmatprep.mubr.f32.mxu0 %v6107
        %6692 = vmatmul.mubr.f32.gmra.mrb[0].mxu0 %v6167
        %v6693 = vpop.f32.mrb[0].mxu0
        %v6694 = vadd.f32 %v6469, %v6693
        %v6695 = vpop.f32.mrb[0].mxu0
        %6696 = vmatprep.mubr.f32.mxu0 %v6108
        %6697 = vmatmul.mubr.f32.gmra.mrb[0].mxu0 %v6168
        %v6698 = vpop.f32.mrb[0].mxu0
        %v6699 = vadd.f32 %v6474, %v6698
        %v6700 = vpop.f32.mrb[0].mxu0
        %6701 = vmatprep.mubr.f32.mxu0 %v6109
        %6702 = vmatmul.mubr.f32.gmra.mrb[0].mxu0 %v6169
        %v6703 = vpop.f32.mrb[0].mxu0
        %v6704 = vadd.f32 %v6479, %v6703
        %v6705 = vpop.f32.mrb[0].mxu0
        %6706 = vmatprep.mubr.f32.mxu0 %v6110
        %6707 = vmatmul.mubr.f32.gmra.mrb[0].mxu0 %v6170
        %v6708 = vpop.f32.mrb[0].mxu0
        %v6709 = vadd.f32 %v6484, %v6708
        %v6710 = vpop.f32.mrb[0].mxu0
        %6711 = vmatprep.mubr.f32.mxu0 %v6111
        %6712 = vmatmul.mubr.f32.gmra.mrb[0].mxu0 %v6171
        %v6713 = vpop.f32.mrb[0].mxu0
        %v6714 = vadd.f32 %v6489, %v6713
        %v6715 = vpop.f32.mrb[0].mxu0
        %6716 = vmatprep.mubr.f32.mxu0 %v6112
        %6717 = vmatmul.mubr.f32.gmra.mrb[0].mxu0 %v6172
        %v6718 = vpop.f32.mrb[0].mxu0
        %v6719 = vadd.f32 %v6494, %v6718
        %v6720 = vpop.f32.mrb[0].mxu0
        %6721 = vmatprep.mubr.f32.mxu0 %v6113
        %6722 = vmatmul.mubr.f32.gmra.mrb[0].mxu0 %v6173
        %v6723 = vpop.f32.mrb[0].mxu0
        %v6724 = vadd.f32 %v6499, %v6723
        %v6725 = vpop.f32.mrb[0].mxu0
        %6726 = vmatprep.mubr.f32.mxu0 %v6114
        %6727 = vmatmul.mubr.f32.gmra.mrb[0].mxu0 %v6174
        %v6728 = vpop.f32.mrb[0].mxu0
        %v6729 = vadd.f32 %v6504, %v6728
        %v6730 = vpop.f32.mrb[0].mxu0
        %6731 = vmatprep.mubr.f32.mxu0 %v6115
        %6732 = vmatmul.mubr.f32.gmra.mrb[0].mxu0 %v6175
        %v6733 = vpop.f32.mrb[0].mxu0
        %v6734 = vadd.f32 %v6509, %v6733
        %v6735 = vpop.f32.mrb[0].mxu0
        %6736 = vmatprep.mubr.f32.mxu0 %v6116
        %6737 = vmatmul.mubr.f32.gmra.mrb[0].mxu0 %v6176
        %v6738 = vpop.f32.mrb[0].mxu0
        %v6739 = vadd.f32 %v6514, %v6738
        %v6740 = vpop.f32.mrb[0].mxu0
        %6741 = vmatprep.mubr.f32.mxu0 %v6117
        %6742 = vmatmul.mubr.f32.gmra.mrb[0].mxu0 %v6177
        %v6743 = vpop.f32.mrb[0].mxu0
        %v6744 = vadd.f32 %v6519, %v6743
        %v6745 = vpop.f32.mrb[0].mxu0
        %6746 = vmatprep.mubr.f32.mxu0 %v6118
        %6747 = vmatmul.mubr.f32.gmra.mrb[0].mxu0 %v6178
        %v6748 = vpop.f32.mrb[0].mxu0
        %v6749 = vadd.f32 %v6524, %v6748
        %v6750 = vpop.f32.mrb[0].mxu0
        %6751 = vmatprep.mubr.f32.mxu0 %v6119
        %6752 = vmatmul.mubr.f32.gmra.mrb[0].mxu0 %v6179
        %v6753 = vpop.f32.mrb[0].mxu0
        %v6754 = vadd.f32 %v6529, %v6753
        %v6755 = vpop.f32.mrb[0].mxu0
        %6756 = vmatprep.mubr.f32.mxu0 %v6120
        %6757 = vmatmul.mubr.f32.gmra.mrb[0].mxu0 %v6180
        %v6758 = vpop.f32.mrb[0].mxu0
        %v6759 = vadd.f32 %v6534, %v6758
        %v6760 = vpop.f32.mrb[0].mxu0
        %6761 = vmatprep.mubr.f32.mxu0 %v6185
        %6762 = vmatmul.mubr.f32.gmra.mrb[0].mxu0 %v6181
        %v6763 = vpop.f32.mrb[0].mxu0
        %v6764 = vadd.f32 %v6539, %v6763
        %v6765 = vpop.f32.mrb[0].mxu0
        %6766 = vmatprep.mubr.f32.mxu0 %v6186
        %6767 = vmatmul.mubr.f32.gmra.mrb[0].mxu0 %v6182
        %v6768 = vpop.f32.mrb[0].mxu0
        %v6769 = vadd.f32 %v6544, %v6768
        %v6770 = vpop.f32.mrb[0].mxu0
        %6771 = vmatprep.mubr.f32.mxu0 %v6187
        %6772 = vmatmul.mubr.f32.gmra.mrb[0].mxu0 %v6183
        %v6773 = vpop.f32.mrb[0].mxu0
        %v6774 = vadd.f32 %v6549, %v6773
        %v6775 = vpop.f32.mrb[0].mxu0
        %6776 = vmatprep.mubr.f32.mxu0 %v6188
        %6777 = vmatmul.mubr.f32.gmra.mrb[0].mxu0 %v6184
        %v6778 = vpop.f32.mrb[0].mxu0
        %v6779 = vadd.f32 %v6554, %v6778
        %v6780 = vpop.f32.mrb[0].mxu0
        %6781 = vdwg.mxu0
        %6782 = vmatprep.subr.mxu0 0.0
        %6783 = vmatpush1.msra.mxu0 %v6253
        %6784 = vmatprep.subr.mxu0 0.0
        %6785 = vmatpush1.msra.mxu0 %v6254
        %6786 = vmatprep.subr.mxu0 0.0
        %6787 = vmatpush1.msra.mxu0 %v6255
        %6788 = vmatprep.subr.mxu0 0.0
        %6789 = vmatpush1.msra.mxu0 %v6256
        %6790 = vmatprep.subr.mxu0 0.0
        %6791 = vmatpush1.msra.mxu0 %v6257
        %6792 = vmatprep.subr.mxu0 0.0
        %6793 = vmatpush1.msra.mxu0 %v6258
        %6794 = vmatprep.subr.mxu0 0.0
        %6795 = vmatpush1.msra.mxu0 %v6259
        %6796 = vmatprep.subr.mxu0 0.0
        %6797 = vmatpush1.msra.mxu0 %v6260
        %6798 = vmatprep.subr.mxu0 0.0
        %6799 = vmatpush1.msra.mxu0 0.0
        %6800 = vmatprep.subr.mxu0 0.0
        %6801 = vmatpush1.msra.mxu0 0.0
        %6802 = vmatprep.subr.mxu0 0.0
        %6803 = vmatpush1.msra.mxu0 0.0
        %6804 = vmatprep.subr.mxu0 0.0
        %6805 = vmatpush1.msra.mxu0 0.0
        %6806 = vmatprep.subr.mxu0 0.0
        %6807 = vmatpush1.msra.mxu0 0.0
        %6808 = vmatprep.subr.mxu0 0.0
        %6809 = vmatpush1.msra.mxu0 0.0
        %6810 = vmatprep.subr.mxu0 0.0
        %6811 = vmatpush1.msra.mxu0 0.0
        %6812 = vmatprep.subr.mxu0 0.0
        %6813 = vmatpush1.msra.mxu0 0.0
        %6814 = vmatprep.subr.mxu0 0.0
        %6815 = vmatpush1.msra.mxu0 0.0
        %6816 = vmatprep.subr.mxu0 0.0
        %6817 = vmatpush1.msra.mxu0 0.0
        %6818 = vmatprep.subr.mxu0 0.0
        %6819 = vmatpush1.msra.mxu0 0.0
        %6820 = vmatprep.subr.mxu0 0.0
        %6821 = vmatpush1.msra.mxu0 0.0
        %6822 = vmatprep.subr.mxu0 0.0
        %6823 = vmatpush1.msra.mxu0 0.0
        %6824 = vmatprep.subr.mxu0 0.0
        %6825 = vmatpush1.msra.mxu0 0.0
        %6826 = vmatprep.subr.mxu0 0.0
        %6827 = vmatpush1.msra.mxu0 0.0
        %6828 = vmatprep.subr.mxu0 0.0
        %6829 = vmatpush1.msra.mxu0 0.0
        %6830 = vmatprep.subr.mxu0 0.0
        %6831 = vmatpush1.msra.mxu0 0.0
        %6832 = vmatprep.subr.mxu0 0.0
        %6833 = vmatpush1.msra.mxu0 0.0
        %6834 = vmatprep.subr.mxu0 0.0
        %6835 = vmatpush1.msra.mxu0 0.0
        %6836 = vmatprep.subr.mxu0 0.0
        %6837 = vmatpush1.msra.mxu0 0.0
        %6838 = vmatprep.subr.mxu0 0.0
        %6839 = vmatpush1.msra.mxu0 0.0
        %6840 = vmatprep.subr.mxu0 0.0
        %6841 = vmatpush1.msra.mxu0 0.0
        %6842 = vmatprep.subr.mxu0 0.0
        %6843 = vmatpush1.msra.mxu0 0.0
        %6844 = vmatprep.subr.mxu0 0.0
        %6845 = vmatpush1.msra.mxu0 0.0
        %6846 = vmatprep.mubr.f32.mxu0 0.0
        %6847 = vmatmul.mubr.f32.gmra.mrb[0].mxu0 %v6268
        %v6848 = vpop.f32.mrb[0].mxu0
        %v6849 = vadd.f32 %v6624, %v6848
        %v6850 = vpop.f32.mrb[0].mxu0
        %6851 = vmatprep.mubr.f32.mxu0 0.0
        %6852 = vmatmul.mubr.f32.gmra.mrb[0].mxu0 %v6270
        %v6853 = vpop.f32.mrb[0].mxu0
        %v6854 = vadd.f32 %v6629, %v6853
        %v6855 = vpop.f32.mrb[0].mxu0
        %6856 = vmatprep.mubr.f32.mxu0 0.0
        %6857 = vmatmul.mubr.f32.gmra.mrb[0].mxu0 %v6272
        %v6858 = vpop.f32.mrb[0].mxu0
        %v6859 = vadd.f32 %v6634, %v6858
        %v6860 = vpop.f32.mrb[0].mxu0
        %6861 = vmatprep.mubr.f32.mxu0 0.0
        %6862 = vmatmul.mubr.f32.gmra.mrb[0].mxu0 %v6274
        %v6863 = vpop.f32.mrb[0].mxu0
        %v6864 = vadd.f32 %v6639, %v6863
        %v6865 = vpop.f32.mrb[0].mxu0
        %6866 = vmatprep.mubr.f32.mxu0 0.0
        %6867 = vmatmul.mubr.f32.gmra.mrb[0].mxu0 %v6276
        %v6868 = vpop.f32.mrb[0].mxu0
        %v6869 = vadd.f32 %v6644, %v6868
        %v6870 = vpop.f32.mrb[0].mxu0
        %6871 = vmatprep.mubr.f32.mxu0 0.0
        %6872 = vmatmul.mubr.f32.gmra.mrb[0].mxu0 %v6278
        %v6873 = vpop.f32.mrb[0].mxu0
        %v6874 = vadd.f32 %v6649, %v6873
        %v6875 = vpop.f32.mrb[0].mxu0
        %6876 = vmatprep.mubr.f32.mxu0 0.0
        %6877 = vmatmul.mubr.f32.gmra.mrb[0].mxu0 %v6280
        %v6878 = vpop.f32.mrb[0].mxu0
        %v6879 = vadd.f32 %v6654, %v6878
        %v6880 = vpop.f32.mrb[0].mxu0
        %6881 = vmatprep.mubr.f32.mxu0 0.0
        %6882 = vmatmul.mubr.f32.gmra.mrb[0].mxu0 %v6282
        %v6883 = vpop.f32.mrb[0].mxu0
        %v6884 = vadd.f32 %v6659, %v6883
        %v6885 = vpop.f32.mrb[0].mxu0
        %6886 = vmatprep.mubr.f32.mxu0 0.0
        %6887 = vmatmul.mubr.f32.gmra.mrb[0].mxu0 %v6284
        %v6888 = vpop.f32.mrb[0].mxu0
        %v6889 = vadd.f32 %v6664, %v6888
        %v6890 = vpop.f32.mrb[0].mxu0
        %6891 = vmatprep.mubr.f32.mxu0 0.0
        %6892 = vmatmul.mubr.f32.gmra.mrb[0].mxu0 %v6286
        %v6893 = vpop.f32.mrb[0].mxu0
        %v6894 = vadd.f32 %v6669, %v6893
        %v6895 = vpop.f32.mrb[0].mxu0
        %6896 = vmatprep.mubr.f32.mxu0 0.0
        %6897 = vmatmul.mubr.f32.gmra.mrb[0].mxu0 %v6288
        %v6898 = vpop.f32.mrb[0].mxu0
        %v6899 = vadd.f32 %v6674, %v6898
        %v6900 = vpop.f32.mrb[0].mxu0
        %6901 = vmatprep.mubr.f32.mxu0 0.0
        %6902 = vmatmul.mubr.f32.gmra.mrb[0].mxu0 %v6290
        %v6903 = vpop.f32.mrb[0].mxu0
        %v6904 = vadd.f32 %v6679, %v6903
        %v6905 = vpop.f32.mrb[0].mxu0
        %6906 = vmatprep.mubr.f32.mxu0 0.0
        %6907 = vmatmul.mubr.f32.gmra.mrb[0].mxu0 %v6292
        %v6908 = vpop.f32.mrb[0].mxu0
        %v6909 = vadd.f32 %v6684, %v6908
        %v6910 = vpop.f32.mrb[0].mxu0
        %6911 = vmatprep.mubr.f32.mxu0 0.0
        %6912 = vmatmul.mubr.f32.gmra.mrb[0].mxu0 %v6294
        %v6913 = vpop.f32.mrb[0].mxu0
        %v6914 = vadd.f32 %v6689, %v6913
        %v6915 = vpop.f32.mrb[0].mxu0
        %6916 = vmatprep.mubr.f32.mxu0 0.0
        %6917 = vmatmul.mubr.f32.gmra.mrb[0].mxu0 %v6296
        %v6918 = vpop.f32.mrb[0].mxu0
        %v6919 = vadd.f32 %v6694, %v6918
        %v6920 = vpop.f32.mrb[0].mxu0
        %6921 = vmatprep.mubr.f32.mxu0 0.0
        %6922 = vmatmul.mubr.f32.gmra.mrb[0].mxu0 %v6298
        %v6923 = vpop.f32.mrb[0].mxu0
        %v6924 = vadd.f32 %v6699, %v6923
        %v6925 = vpop.f32.mrb[0].mxu0
        %6926 = vmatprep.mubr.f32.mxu0 0.0
        %6927 = vmatmul.mubr.f32.gmra.mrb[0].mxu0 %v6300
        %v6928 = vpop.f32.mrb[0].mxu0
        %v6929 = vadd.f32 %v6704, %v6928
        %v6930 = vpop.f32.mrb[0].mxu0
        %6931 = vmatprep.mubr.f32.mxu0 0.0
        %6932 = vmatmul.mubr.f32.gmra.mrb[0].mxu0 %v6302
        %v6933 = vpop.f32.mrb[0].mxu0
        %v6934 = vadd.f32 %v6709, %v6933
        %v6935 = vpop.f32.mrb[0].mxu0
        %6936 = vmatprep.mubr.f32.mxu0 0.0
        %6937 = vmatmul.mubr.f32.gmra.mrb[0].mxu0 %v6304
        %v6938 = vpop.f32.mrb[0].mxu0
        %v6939 = vadd.f32 %v6714, %v6938
        %v6940 = vpop.f32.mrb[0].mxu0
        %6941 = vmatprep.mubr.f32.mxu0 0.0
        %6942 = vmatmul.mubr.f32.gmra.mrb[0].mxu0 %v6306
        %v6943 = vpop.f32.mrb[0].mxu0
        %v6944 = vadd.f32 %v6719, %v6943
        %v6945 = vpop.f32.mrb[0].mxu0
        %6946 = vmatprep.mubr.f32.mxu0 0.0
        %6947 = vmatmul.mubr.f32.gmra.mrb[0].mxu0 %v6308
        %v6948 = vpop.f32.mrb[0].mxu0
        %v6949 = vadd.f32 %v6724, %v6948
        %v6950 = vpop.f32.mrb[0].mxu0
        %6951 = vmatprep.mubr.f32.mxu0 0.0
        %6952 = vmatmul.mubr.f32.gmra.mrb[0].mxu0 %v6310
        %v6953 = vpop.f32.mrb[0].mxu0
        %v6954 = vadd.f32 %v6729, %v6953
        %v6955 = vpop.f32.mrb[0].mxu0
        %6956 = vmatprep.mubr.f32.mxu0 0.0
        %6957 = vmatmul.mubr.f32.gmra.mrb[0].mxu0 %v6312
        %v6958 = vpop.f32.mrb[0].mxu0
        %v6959 = vadd.f32 %v6734, %v6958
        %v6960 = vpop.f32.mrb[0].mxu0
        %6961 = vmatprep.mubr.f32.mxu0 0.0
        %6962 = vmatmul.mubr.f32.gmra.mrb[0].mxu0 %v6314
        %v6963 = vpop.f32.mrb[0].mxu0
        %v6964 = vadd.f32 %v6739, %v6963
        %v6965 = vpop.f32.mrb[0].mxu0
        %6966 = vmatprep.mubr.f32.mxu0 0.0
        %6967 = vmatmul.mubr.f32.gmra.mrb[0].mxu0 %v6316
        %v6968 = vpop.f32.mrb[0].mxu0
        %v6969 = vadd.f32 %v6744, %v6968
        %v6970 = vpop.f32.mrb[0].mxu0
        %6971 = vmatprep.mubr.f32.mxu0 0.0
        %6972 = vmatmul.mubr.f32.gmra.mrb[0].mxu0 %v6318
        %v6973 = vpop.f32.mrb[0].mxu0
        %v6974 = vadd.f32 %v6749, %v6973
        %v6975 = vpop.f32.mrb[0].mxu0
        %6976 = vmatprep.mubr.f32.mxu0 0.0
        %6977 = vmatmul.mubr.f32.gmra.mrb[0].mxu0 %v6320
        %v6978 = vpop.f32.mrb[0].mxu0
        %v6979 = vadd.f32 %v6754, %v6978
        %v6980 = vpop.f32.mrb[0].mxu0
        %6981 = vmatprep.mubr.f32.mxu0 0.0
        %6982 = vmatmul.mubr.f32.gmra.mrb[0].mxu0 %v6322
        %v6983 = vpop.f32.mrb[0].mxu0
        %v6984 = vadd.f32 %v6759, %v6983
        %v6985 = vpop.f32.mrb[0].mxu0
        %6986 = vmatprep.mubr.f32.mxu0 0.0
        %6987 = vmatmul.mubr.f32.gmra.mrb[0].mxu0 %v6324
        %v6988 = vpop.f32.mrb[0].mxu0
        %v6989 = vadd.f32 %v6764, %v6988
        %v6990 = vpop.f32.mrb[0].mxu0
        %6991 = vmatprep.mubr.f32.mxu0 0.0
        %6992 = vmatmul.mubr.f32.gmra.mrb[0].mxu0 %v6326
        %v6993 = vpop.f32.mrb[0].mxu0
        %v6994 = vadd.f32 %v6769, %v6993
        %v6995 = vpop.f32.mrb[0].mxu0
        %6996 = vmatprep.mubr.f32.mxu0 0.0
        %6997 = vmatmul.mubr.f32.gmra.mrb[0].mxu0 %v6328
        %v6998 = vpop.f32.mrb[0].mxu0
        %v6999 = vadd.f32 %v6774, %v6998
        %v7000 = vpop.f32.mrb[0].mxu0
        %7001 = vmatprep.mubr.f32.mxu0 0.0
        %7002 = vmatmul.mubr.f32.gmra.mrb[0].mxu0 %v6330
        %v7003 = vpop.f32.mrb[0].mxu0
        %v7004 = vadd.f32 %v6779, %v7003
        %v7005 = vpop.f32.mrb[0].mxu0
        %7006 = vdwg.mxu0
        %vm7007 = vcmp.ge.f32.partialorder %v6849, 0.0
        %vm7008 = vcmp.ge.f32.partialorder %v6854, 0.0
        %vm7009 = vcmp.ge.f32.partialorder %v6859, 0.0
        %vm7010 = vcmp.ge.f32.partialorder %v6864, 0.0
        %vm7011 = vcmp.ge.f32.partialorder %v6869, 0.0
        %vm7012 = vcmp.ge.f32.partialorder %v6874, 0.0
        %vm7013 = vcmp.ge.f32.partialorder %v6879, 0.0
        %vm7014 = vcmp.ge.f32.partialorder %v6884, 0.0
        %vm7015 = vcmp.ge.f32.partialorder %v6889, 0.0
        %vm7016 = vcmp.ge.f32.partialorder %v6894, 0.0
        %vm7017 = vcmp.ge.f32.partialorder %v6899, 0.0
        %vm7018 = vcmp.ge.f32.partialorder %v6904, 0.0
        %vm7019 = vcmp.ge.f32.partialorder %v6909, 0.0
        %vm7020 = vcmp.ge.f32.partialorder %v6914, 0.0
        %vm7021 = vcmp.ge.f32.partialorder %v6919, 0.0
        %vm7022 = vcmp.ge.f32.partialorder %v6924, 0.0
        %vm7023 = vcmp.ge.f32.partialorder %v6929, 0.0
        %vm7024 = vcmp.ge.f32.partialorder %v6934, 0.0
        %vm7025 = vcmp.ge.f32.partialorder %v6939, 0.0
        %vm7026 = vcmp.ge.f32.partialorder %v6944, 0.0
        %vm7027 = vcmp.ge.f32.partialorder %v6949, 0.0
        %vm7028 = vcmp.ge.f32.partialorder %v6954, 0.0
        %vm7029 = vcmp.ge.f32.partialorder %v6959, 0.0
        %vm7030 = vcmp.ge.f32.partialorder %v6964, 0.0
        %vm7031 = vcmp.ge.f32.partialorder %v6969, 0.0
        %vm7032 = vcmp.ge.f32.partialorder %v6974, 0.0
        %vm7033 = vcmp.ge.f32.partialorder %v6979, 0.0
        %vm7034 = vcmp.ge.f32.partialorder %v6984, 0.0
        %vm7035 = vcmp.ge.f32.partialorder %v6989, 0.0
        %vm7036 = vcmp.ge.f32.partialorder %v6994, 0.0
        %vm7037 = vcmp.ge.f32.partialorder %v6999, 0.0
        %vm7038 = vcmp.ge.f32.partialorder %v7004, 0.0
        %v7039 = vmul.f32 %v3640, %v6849
        %v7040 = vmul.f32 %v3640, %v6854
        %v7041 = vmul.f32 %v3640, %v6859
        %v7042 = vmul.f32 %v3640, %v6864
        %v7043 = vmul.f32 %v3640, %v6869
        %v7044 = vmul.f32 %v3640, %v6874
        %v7045 = vmul.f32 %v3640, %v6879
        %v7046 = vmul.f32 %v3640, %v6884
        %v7047 = vmul.f32 %v3640, %v6889
        %v7048 = vmul.f32 %v3640, %v6894
        %v7049 = vmul.f32 %v3640, %v6899
        %v7050 = vmul.f32 %v3640, %v6904
        %v7051 = vmul.f32 %v3640, %v6909
        %v7052 = vmul.f32 %v3640, %v6914
        %v7053 = vmul.f32 %v3640, %v6919
        %v7054 = vmul.f32 %v3640, %v6924
        %v7055 = vmul.f32 %v3640, %v6929
        %v7056 = vmul.f32 %v3640, %v6934
        %v7057 = vmul.f32 %v3640, %v6939
        %v7058 = vmul.f32 %v3640, %v6944
        %v7059 = vmul.f32 %v3640, %v6949
        %v7060 = vmul.f32 %v3640, %v6954
        %v7061 = vmul.f32 %v3640, %v6959
        %v7062 = vmul.f32 %v3640, %v6964
        %v7063 = vmul.f32 %v3640, %v6969
        %v7064 = vmul.f32 %v3640, %v6974
        %v7065 = vmul.f32 %v3640, %v6979
        %v7066 = vmul.f32 %v3640, %v6984
        %v7067 = vmul.f32 %v3640, %v6989
        %v7068 = vmul.f32 %v3640, %v6994
        %v7069 = vmul.f32 %v3640, %v6999
        %v7070 = vmul.f32 %v3640, %v7004
        %v7071 = vsel %vm7007, %v6849, %v7039
        %v7072 = vsel %vm7008, %v6854, %v7040
        %v7073 = vsel %vm7009, %v6859, %v7041
        %v7074 = vsel %vm7010, %v6864, %v7042
        %v7075 = vsel %vm7011, %v6869, %v7043
        %v7076 = vsel %vm7012, %v6874, %v7044
        %v7077 = vsel %vm7013, %v6879, %v7045
        %v7078 = vsel %vm7014, %v6884, %v7046
        %v7079 = vsel %vm7015, %v6889, %v7047
        %v7080 = vsel %vm7016, %v6894, %v7048
        %v7081 = vsel %vm7017, %v6899, %v7049
        %v7082 = vsel %vm7018, %v6904, %v7050
        %v7083 = vsel %vm7019, %v6909, %v7051
        %v7084 = vsel %vm7020, %v6914, %v7052
        %v7085 = vsel %vm7021, %v6919, %v7053
        %v7086 = vsel %vm7022, %v6924, %v7054
        %v7087 = vsel %vm7023, %v6929, %v7055
        %v7088 = vsel %vm7024, %v6934, %v7056
        %v7089 = vsel %vm7025, %v6939, %v7057
        %v7090 = vsel %vm7026, %v6944, %v7058
        %v7091 = vsel %vm7027, %v6949, %v7059
        %v7092 = vsel %vm7028, %v6954, %v7060
        %v7093 = vsel %vm7029, %v6959, %v7061
        %v7094 = vsel %vm7030, %v6964, %v7062
        %v7095 = vsel %vm7031, %v6969, %v7063
        %v7096 = vsel %vm7032, %v6974, %v7064
        %v7097 = vsel %vm7033, %v6979, %v7065
        %v7098 = vsel %vm7034, %v6984, %v7066
        %v7099 = vsel %vm7035, %v6989, %v7067
        %v7100 = vsel %vm7036, %v6994, %v7068
        %v7101 = vsel %vm7037, %v6999, %v7069
        %v7102 = vsel %vm7038, %v7004, %v7070
        %7103 = vst.msk [vmem:[%s3705 + $0x1] sm:$0xff] %vm508, %v7071
        %7104 = vst.msk [vmem:[%s3705 + $0x9] sm:$0xff] %vm508, %v7072
        %7105 = vst.msk [vmem:[%s3705 + $0x19] sm:$0xff] %vm508, %v7073
        %7106 = vst.msk [vmem:[%s3705 + $0x21] sm:$0xff] %vm508, %v7074
        %7107 = vst.msk [vmem:[%s3705 + $0x31] sm:$0xff] %vm508, %v7075
        %7108 = vst.msk [vmem:[%s3705 + $0x39] sm:$0xff] %vm508, %v7076
        %7109 = vst.msk [vmem:[%s3705 + $0x49] sm:$0xff] %vm508, %v7077
        %7110 = vst.msk [vmem:[%s3705 + $0x51] sm:$0xff] %vm508, %v7078
        %7111 = vst.msk [vmem:[%s3705 + $0x61] sm:$0xff] %vm508, %v7079
        %7112 = vst.msk [vmem:[%s3705 + $0x69] sm:$0xff] %vm508, %v7080
        %7113 = vst.msk [vmem:[%s3705 + $0x79] sm:$0xff] %vm508, %v7081
        %7114 = vst.msk [vmem:[%s3705 + $0x81] sm:$0xff] %vm508, %v7082
        %7115 = vst.msk [vmem:[%s3705 + $0x91] sm:$0xff] %vm508, %v7083
        %7116 = vst.msk [vmem:[%s3705 + $0x99] sm:$0xff] %vm508, %v7084
        %7117 = vst.msk [vmem:[%s3705 + $0xa9] sm:$0xff] %vm508, %v7085
        %7118 = vst.msk [vmem:[%s3705 + $0xb1] sm:$0xff] %vm508, %v7086
        %7119 = vst.msk [vmem:[%s3705 + $0xc1] sm:$0xff] %vm508, %v7087
        %7120 = vst.msk [vmem:[%s3705 + $0xc9] sm:$0xff] %vm508, %v7088
        %7121 = vst.msk [vmem:[%s3705 + $0xd9] sm:$0xff] %vm508, %v7089
        %7122 = vst.msk [vmem:[%s3705 + $0xe1] sm:$0xff] %vm508, %v7090
        %7123 = vst.msk [vmem:[%s3705 + $0xf1] sm:$0xff] %vm508, %v7091
        %7124 = vst.msk [vmem:[%s3705 + $0xf9] sm:$0xff] %vm508, %v7092
        %7125 = vst.msk [vmem:[%s3705 + $0x109] sm:$0xff] %vm508, %v7093
        %7126 = vst.msk [vmem:[%s3705 + $0x111] sm:$0xff] %vm508, %v7094
        %7127 = vst.msk [vmem:[%s3705 + $0x121] sm:$0xff] %vm508, %v7095
        %7128 = vst.msk [vmem:[%s3705 + $0x129] sm:$0xff] %vm508, %v7096
        %7129 = vst.msk [vmem:[%s3705 + $0x139] sm:$0xff] %vm508, %v7097
        %7130 = vst.msk [vmem:[%s3705 + $0x141] sm:$0xff] %vm508, %v7098
        %7131 = vst.msk [vmem:[%s3705 + $0x151] sm:$0xff] %vm508, %v7099
        %7132 = vst.msk [vmem:[%s3705 + $0x159] sm:$0xff] %vm508, %v7100
        %7133 = vst.msk [vmem:[%s3705 + $0x169] sm:$0xff] %vm508, %v7101
        %7134 = vst.msk [vmem:[%s3705 + $0x171] sm:$0xff] %vm508, %v7102
        %v7135 = vld [vmem:[#allocation3] sm:$0xff]
        %v7136 = vld [vmem:[#allocation3 + $0x8] sm:$0xff]
        %v7137 = vld [vmem:[#allocation3 + $0x10] sm:$0x3]
        %v7138 = vld [vmem:[#allocation3 + $0x18] sm:$0xff]
        %v7139 = vld [vmem:[#allocation3 + $0x20] sm:$0xff]
        %v7140 = vld [vmem:[#allocation3 + $0x28] sm:$0x3]
        %v7141 = vld [vmem:[#allocation3 + $0x30] sm:$0xff]
        %v7142 = vld [vmem:[#allocation3 + $0x38] sm:$0xff]
        %v7143 = vld [vmem:[#allocation3 + $0x40] sm:$0x3]
        %v7144 = vld [vmem:[#allocation3 + $0x48] sm:$0xff]
        %v7145 = vld [vmem:[#allocation3 + $0x50] sm:$0xff]
        %v7146 = vld [vmem:[#allocation3 + $0x58] sm:$0x3]
        %v7147 = vld [vmem:[#allocation3 + $0x60] sm:$0xff]
        %v7148 = vld [vmem:[#allocation3 + $0x68] sm:$0xff]
        %v7149 = vld [vmem:[#allocation3 + $0x70] sm:$0x3]
        %v7150 = vld [vmem:[#allocation3 + $0x78] sm:$0xff]
        %v7151 = vld [vmem:[#allocation3 + $0x80] sm:$0xff]
        %v7152 = vld [vmem:[#allocation3 + $0x88] sm:$0x3]
        %v7153 = vld [vmem:[#allocation3 + $0x90] sm:$0xff]
        %v7154 = vld [vmem:[#allocation3 + $0x98] sm:$0xff]
        %v7155 = vld [vmem:[#allocation3 + $0xa0] sm:$0x3]
        %v7156 = vld [vmem:[#allocation3 + $0xa8] sm:$0xff]
        %v7157 = vld [vmem:[#allocation3 + $0xb0] sm:$0xff]
        %v7158 = vld [vmem:[#allocation3 + $0xb8] sm:$0x3]
        %v7159 = vld [vmem:[#allocation3 + $0xc0] sm:$0xff]
        %v7160 = vld [vmem:[#allocation3 + $0xc8] sm:$0xff]
        %v7161 = vld [vmem:[#allocation3 + $0xd0] sm:$0x3]
        %v7162 = vld [vmem:[#allocation3 + $0xd8] sm:$0xff]
        %v7163 = vld [vmem:[#allocation3 + $0xe0] sm:$0xff]
        %v7164 = vld [vmem:[#allocation3 + $0xe8] sm:$0x3]
        %v7165 = vld [vmem:[#allocation3 + $0xf0] sm:$0xff]
        %v7166 = vld [vmem:[#allocation3 + $0xf8] sm:$0xff]
        %v7167 = vld [vmem:[#allocation3 + $0x100] sm:$0x3]
        %v7168 = vld [vmem:[#allocation3 + $0x108] sm:$0xff]
        %v7169 = vld [vmem:[#allocation3 + $0x110] sm:$0xff]
        %v7170 = vld [vmem:[#allocation3 + $0x118] sm:$0x3]
        %v7171 = vld [vmem:[#allocation3 + $0x120] sm:$0xff]
        %v7172 = vld [vmem:[#allocation3 + $0x128] sm:$0xff]
        %v7173 = vld [vmem:[#allocation3 + $0x130] sm:$0x3]
        %v7174 = vld [vmem:[#allocation3 + $0x138] sm:$0xff]
        %v7175 = vld [vmem:[#allocation3 + $0x140] sm:$0xff]
        %v7176 = vld [vmem:[#allocation3 + $0x148] sm:$0x3]
        %v7177 = vld [vmem:[#allocation3 + $0x150] sm:$0xff]
        %v7178 = vld [vmem:[#allocation3 + $0x158] sm:$0xff]
        %v7179 = vld [vmem:[#allocation3 + $0x160] sm:$0x3]
        %v7180 = vld [vmem:[#allocation3 + $0x168] sm:$0xff]
        %v7181 = vld [vmem:[#allocation3 + $0x170] sm:$0xff]
        %v7182 = vld [vmem:[#allocation3 + $0x178] sm:$0x3]
        %v7183 = vld [vmem:[#allocation3 + $0x180] sm:$0xff]
        %v7184 = vld [vmem:[#allocation3 + $0x188] sm:$0xff]
        %v7185 = vld [vmem:[#allocation3 + $0x190] sm:$0x3]
        %v7186 = vld [vmem:[#allocation3 + $0x198] sm:$0xff]
        %v7187 = vld [vmem:[#allocation3 + $0x1a0] sm:$0xff]
        %v7188 = vld [vmem:[#allocation3 + $0x1a8] sm:$0x3]
        %v7237 = vrot.slane %v7135, 1
        %v7238 = vrot.slane %v7136, 1
        %v7239 = vsel %vm1172, %v7237, %v7238
        %v7240 = vrot.slane %v7137, 1
        %v7241 = vsel %vm1172, %v7238, %v7240
        %v7242 = vrot.slane %v7138, 1
        %v7243 = vrot.slane %v7139, 1
        %v7244 = vsel %vm1172, %v7242, %v7243
        %v7245 = vrot.slane %v7140, 1
        %v7246 = vsel %vm1172, %v7243, %v7245
        %v7247 = vrot.slane %v7141, 1
        %v7248 = vrot.slane %v7142, 1
        %v7249 = vsel %vm1172, %v7247, %v7248
        %v7250 = vrot.slane %v7143, 1
        %v7251 = vsel %vm1172, %v7248, %v7250
        %v7252 = vrot.slane %v7144, 1
        %v7253 = vrot.slane %v7145, 1
        %v7254 = vsel %vm1172, %v7252, %v7253
        %v7255 = vrot.slane %v7146, 1
        %v7256 = vsel %vm1172, %v7253, %v7255
        %v7257 = vrot.slane %v7147, 1
        %v7258 = vrot.slane %v7148, 1
        %v7259 = vsel %vm1172, %v7257, %v7258
        %v7260 = vrot.slane %v7149, 1
        %v7261 = vsel %vm1172, %v7258, %v7260
        %v7262 = vrot.slane %v7150, 1
        %v7263 = vrot.slane %v7151, 1
        %v7264 = vsel %vm1172, %v7262, %v7263
        %v7265 = vrot.slane %v7152, 1
        %v7266 = vsel %vm1172, %v7263, %v7265
        %v7267 = vrot.slane %v7153, 1
        %v7268 = vrot.slane %v7154, 1
        %v7269 = vsel %vm1172, %v7267, %v7268
        %v7270 = vrot.slane %v7155, 1
        %v7271 = vsel %vm1172, %v7268, %v7270
        %v7272 = vrot.slane %v7156, 1
        %v7273 = vrot.slane %v7157, 1
        %v7274 = vsel %vm1172, %v7272, %v7273
        %v7275 = vrot.slane %v7158, 1
        %v7276 = vsel %vm1172, %v7273, %v7275
        %v7277 = vrot.slane %v7159, 1
        %v7278 = vrot.slane %v7160, 1
        %v7279 = vsel %vm1172, %v7277, %v7278
        %v7280 = vrot.slane %v7161, 1
        %v7281 = vsel %vm1172, %v7278, %v7280
        %v7282 = vrot.slane %v7162, 1
        %v7283 = vrot.slane %v7163, 1
        %v7284 = vsel %vm1172, %v7282, %v7283
        %v7285 = vrot.slane %v7164, 1
        %v7286 = vsel %vm1172, %v7283, %v7285
        %v7287 = vrot.slane %v7165, 1
        %v7288 = vrot.slane %v7166, 1
        %v7289 = vsel %vm1172, %v7287, %v7288
        %v7290 = vrot.slane %v7167, 1
        %v7291 = vsel %vm1172, %v7288, %v7290
        %v7292 = vrot.slane %v7168, 1
        %v7293 = vrot.slane %v7169, 1
        %v7294 = vsel %vm1172, %v7292, %v7293
        %v7295 = vrot.slane %v7170, 1
        %v7296 = vsel %vm1172, %v7293, %v7295
        %v7297 = vrot.slane %v7171, 1
        %v7298 = vrot.slane %v7172, 1
        %v7299 = vsel %vm1172, %v7297, %v7298
        %v7300 = vrot.slane %v7173, 1
        %v7301 = vsel %vm1172, %v7298, %v7300
        %v7302 = vrot.slane %v7174, 1
        %v7303 = vrot.slane %v7175, 1
        %v7304 = vsel %vm1172, %v7302, %v7303
        %v7305 = vrot.slane %v7176, 1
        %v7306 = vsel %vm1172, %v7303, %v7305
        %v7307 = vrot.slane %v7177, 1
        %v7308 = vrot.slane %v7178, 1
        %v7309 = vsel %vm1172, %v7307, %v7308
        %v7310 = vrot.slane %v7179, 1
        %v7311 = vsel %vm1172, %v7308, %v7310
        %v7312 = vrot.slane %v7180, 1
        %v7313 = vrot.slane %v7181, 1
        %v7314 = vsel %vm1172, %v7312, %v7313
        %v7315 = vrot.slane %v7182, 1
        %v7316 = vsel %vm1172, %v7313, %v7315
        %v7317 = vrot.slane %v7135, 2
        %v7318 = vrot.slane %v7136, 2
        %v7319 = vsel %vm1579, %v7317, %v7318
        %v7320 = vrot.slane %v7137, 2
        %v7321 = vsel %vm1579, %v7318, %v7320
        %v7322 = vrot.slane %v7138, 2
        %v7323 = vrot.slane %v7139, 2
        %v7324 = vsel %vm1579, %v7322, %v7323
        %v7325 = vrot.slane %v7140, 2
        %v7326 = vsel %vm1579, %v7323, %v7325
        %v7327 = vrot.slane %v7141, 2
        %v7328 = vrot.slane %v7142, 2
        %v7329 = vsel %vm1579, %v7327, %v7328
        %v7330 = vrot.slane %v7143, 2
        %v7331 = vsel %vm1579, %v7328, %v7330
        %v7332 = vrot.slane %v7144, 2
        %v7333 = vrot.slane %v7145, 2
        %v7334 = vsel %vm1579, %v7332, %v7333
        %v7335 = vrot.slane %v7146, 2
        %v7336 = vsel %vm1579, %v7333, %v7335
        %v7337 = vrot.slane %v7147, 2
        %v7338 = vrot.slane %v7148, 2
        %v7339 = vsel %vm1579, %v7337, %v7338
        %v7340 = vrot.slane %v7149, 2
        %v7341 = vsel %vm1579, %v7338, %v7340
        %v7342 = vrot.slane %v7150, 2
        %v7343 = vrot.slane %v7151, 2
        %v7344 = vsel %vm1579, %v7342, %v7343
        %v7345 = vrot.slane %v7152, 2
        %v7346 = vsel %vm1579, %v7343, %v7345
        %v7347 = vrot.slane %v7153, 2
        %v7348 = vrot.slane %v7154, 2
        %v7349 = vsel %vm1579, %v7347, %v7348
        %v7350 = vrot.slane %v7155, 2
        %v7351 = vsel %vm1579, %v7348, %v7350
        %v7352 = vrot.slane %v7156, 2
        %v7353 = vrot.slane %v7157, 2
        %v7354 = vsel %vm1579, %v7352, %v7353
        %v7355 = vrot.slane %v7158, 2
        %v7356 = vsel %vm1579, %v7353, %v7355
        %v7357 = vrot.slane %v7159, 2
        %v7358 = vrot.slane %v7160, 2
        %v7359 = vsel %vm1579, %v7357, %v7358
        %v7360 = vrot.slane %v7161, 2
        %v7361 = vsel %vm1579, %v7358, %v7360
        %v7362 = vrot.slane %v7162, 2
        %v7363 = vrot.slane %v7163, 2
        %v7364 = vsel %vm1579, %v7362, %v7363
        %v7365 = vrot.slane %v7164, 2
        %v7366 = vsel %vm1579, %v7363, %v7365
        %v7367 = vrot.slane %v7165, 2
        %v7368 = vrot.slane %v7166, 2
        %v7369 = vsel %vm1579, %v7367, %v7368
        %v7370 = vrot.slane %v7167, 2
        %v7371 = vsel %vm1579, %v7368, %v7370
        %v7372 = vrot.slane %v7168, 2
        %v7373 = vrot.slane %v7169, 2
        %v7374 = vsel %vm1579, %v7372, %v7373
        %v7375 = vrot.slane %v7170, 2
        %v7376 = vsel %vm1579, %v7373, %v7375
        %v7377 = vrot.slane %v7171, 2
        %v7378 = vrot.slane %v7172, 2
        %v7379 = vsel %vm1579, %v7377, %v7378
        %v7380 = vrot.slane %v7173, 2
        %v7381 = vsel %vm1579, %v7378, %v7380
        %v7382 = vrot.slane %v7174, 2
        %v7383 = vrot.slane %v7175, 2
        %v7384 = vsel %vm1579, %v7382, %v7383
        %v7385 = vrot.slane %v7176, 2
        %v7386 = vsel %vm1579, %v7383, %v7385
        %v7387 = vrot.slane %v7177, 2
        %v7388 = vrot.slane %v7178, 2
        %v7389 = vsel %vm1579, %v7387, %v7388
        %v7390 = vrot.slane %v7179, 2
        %v7391 = vsel %vm1579, %v7388, %v7390
        %v7392 = vrot.slane %v7180, 2
        %v7393 = vrot.slane %v7181, 2
        %v7394 = vsel %vm1579, %v7392, %v7393
        %v7395 = vrot.slane %v7182, 2
        %v7396 = vsel %vm1579, %v7393, %v7395
        %v7432 = vrot.slane %v7183, 1
        %v7433 = vrot.slane %v7184, 1
        %v7434 = vsel %vm1172, %v7432, %v7433
        %v7435 = vrot.slane %v7185, 1
        %v7436 = vsel %vm1172, %v7433, %v7435
        %v7469 = vrot.slane %v7183, 2
        %v7470 = vrot.slane %v7184, 2
        %v7471 = vsel %vm1579, %v7469, %v7470
        %v7472 = vrot.slane %v7185, 2
        %v7473 = vsel %vm1579, %v7470, %v7472
        %v7477 = vrot.slane %v7186, 1
        %v7478 = vrot.slane %v7187, 1
        %v7479 = vsel %vm1172, %v7477, %v7478
        %v7480 = vrot.slane %v7188, 1
        %v7481 = vsel %vm1172, %v7478, %v7480
        %v7482 = vrot.slane %v7186, 2
        %v7483 = vrot.slane %v7187, 2
        %v7484 = vsel %vm1579, %v7482, %v7483
        %v7485 = vrot.slane %v7188, 2
        %v7486 = vsel %vm1579, %v7483, %v7485
        %7487 = vrot.lane.b32.xlu0 %v7239, 64
        %v7488 = vpop.permute.xlu0 %7487
        %7489 = vrot.lane.b32.xlu0 %v7241, 64
        %v7490 = vpop.permute.xlu0 %7489
        %7491 = vrot.lane.b32.xlu0 %v7244, 64
        %v7492 = vpop.permute.xlu0 %7491
        %7493 = vrot.lane.b32.xlu0 %v7246, 64
        %v7494 = vpop.permute.xlu0 %7493
        %7495 = vrot.lane.b32.xlu0 %v7249, 64
        %v7496 = vpop.permute.xlu0 %7495
        %7497 = vrot.lane.b32.xlu0 %v7251, 64
        %v7498 = vpop.permute.xlu0 %7497
        %7499 = vrot.lane.b32.xlu0 %v7254, 64
        %v7500 = vpop.permute.xlu0 %7499
        %7501 = vrot.lane.b32.xlu0 %v7256, 64
        %v7502 = vpop.permute.xlu0 %7501
        %7503 = vrot.lane.b32.xlu0 %v7259, 64
        %v7504 = vpop.permute.xlu0 %7503
        %7505 = vrot.lane.b32.xlu0 %v7261, 64
        %v7506 = vpop.permute.xlu0 %7505
        %7507 = vrot.lane.b32.xlu0 %v7264, 64
        %v7508 = vpop.permute.xlu0 %7507
        %7509 = vrot.lane.b32.xlu0 %v7266, 64
        %v7510 = vpop.permute.xlu0 %7509
        %7511 = vrot.lane.b32.xlu0 %v7269, 64
        %v7512 = vpop.permute.xlu0 %7511
        %7513 = vrot.lane.b32.xlu0 %v7271, 64
        %v7514 = vpop.permute.xlu0 %7513
        %7515 = vrot.lane.b32.xlu0 %v7274, 64
        %v7516 = vpop.permute.xlu0 %7515
        %7517 = vrot.lane.b32.xlu0 %v7276, 64
        %v7518 = vpop.permute.xlu0 %7517
        %7519 = vrot.lane.b32.xlu0 %v7279, 64
        %v7520 = vpop.permute.xlu0 %7519
        %7521 = vrot.lane.b32.xlu0 %v7281, 64
        %v7522 = vpop.permute.xlu0 %7521
        %7523 = vrot.lane.b32.xlu0 %v7284, 64
        %v7524 = vpop.permute.xlu0 %7523
        %7525 = vrot.lane.b32.xlu0 %v7286, 64
        %v7526 = vpop.permute.xlu0 %7525
        %7527 = vrot.lane.b32.xlu0 %v7289, 64
        %v7528 = vpop.permute.xlu0 %7527
        %7529 = vrot.lane.b32.xlu0 %v7291, 64
        %v7530 = vpop.permute.xlu0 %7529
        %7531 = vrot.lane.b32.xlu0 %v7294, 64
        %v7532 = vpop.permute.xlu0 %7531
        %7533 = vrot.lane.b32.xlu0 %v7296, 64
        %v7534 = vpop.permute.xlu0 %7533
        %7535 = vrot.lane.b32.xlu0 %v7299, 64
        %v7536 = vpop.permute.xlu0 %7535
        %7537 = vrot.lane.b32.xlu0 %v7301, 64
        %v7538 = vpop.permute.xlu0 %7537
        %7539 = vrot.lane.b32.xlu0 %v7304, 64
        %v7540 = vpop.permute.xlu0 %7539
        %7541 = vrot.lane.b32.xlu0 %v7306, 64
        %v7542 = vpop.permute.xlu0 %7541
        %7543 = vrot.lane.b32.xlu0 %v7309, 64
        %v7544 = vpop.permute.xlu0 %7543
        %7545 = vrot.lane.b32.xlu0 %v7311, 64
        %v7546 = vpop.permute.xlu0 %7545
        %7547 = vrot.lane.b32.xlu0 %v7314, 64
        %v7548 = vpop.permute.xlu0 %7547
        %7549 = vrot.lane.b32.xlu0 %v7316, 64
        %v7550 = vpop.permute.xlu0 %7549
        %7583 = vrot.lane.b32.xlu0 %v7138, 64
        %v7584 = vpop.permute.xlu0 %7583
        %7585 = vrot.lane.b32.xlu0 %v7139, 64
        %v7586 = vpop.permute.xlu0 %7585
        %7587 = vrot.lane.b32.xlu0 %v7141, 64
        %v7588 = vpop.permute.xlu0 %7587
        %7589 = vrot.lane.b32.xlu0 %v7142, 64
        %v7590 = vpop.permute.xlu0 %7589
        %7591 = vrot.lane.b32.xlu0 %v7144, 64
        %v7592 = vpop.permute.xlu0 %7591
        %7593 = vrot.lane.b32.xlu0 %v7145, 64
        %v7594 = vpop.permute.xlu0 %7593
        %7595 = vrot.lane.b32.xlu0 %v7147, 64
        %v7596 = vpop.permute.xlu0 %7595
        %7597 = vrot.lane.b32.xlu0 %v7148, 64
        %v7598 = vpop.permute.xlu0 %7597
        %7599 = vrot.lane.b32.xlu0 %v7150, 64
        %v7600 = vpop.permute.xlu0 %7599
        %7601 = vrot.lane.b32.xlu0 %v7151, 64
        %v7602 = vpop.permute.xlu0 %7601
        %7603 = vrot.lane.b32.xlu0 %v7153, 64
        %v7604 = vpop.permute.xlu0 %7603
        %7605 = vrot.lane.b32.xlu0 %v7154, 64
        %v7606 = vpop.permute.xlu0 %7605
        %7607 = vrot.lane.b32.xlu0 %v7156, 64
        %v7608 = vpop.permute.xlu0 %7607
        %7609 = vrot.lane.b32.xlu0 %v7157, 64
        %v7610 = vpop.permute.xlu0 %7609
        %7611 = vrot.lane.b32.xlu0 %v7159, 64
        %v7612 = vpop.permute.xlu0 %7611
        %7613 = vrot.lane.b32.xlu0 %v7160, 64
        %v7614 = vpop.permute.xlu0 %7613
        %7615 = vrot.lane.b32.xlu0 %v7162, 64
        %v7616 = vpop.permute.xlu0 %7615
        %7617 = vrot.lane.b32.xlu0 %v7163, 64
        %v7618 = vpop.permute.xlu0 %7617
        %7619 = vrot.lane.b32.xlu0 %v7165, 64
        %v7620 = vpop.permute.xlu0 %7619
        %7621 = vrot.lane.b32.xlu0 %v7166, 64
        %v7622 = vpop.permute.xlu0 %7621
        %7623 = vrot.lane.b32.xlu0 %v7168, 64
        %v7624 = vpop.permute.xlu0 %7623
        %7625 = vrot.lane.b32.xlu0 %v7169, 64
        %v7626 = vpop.permute.xlu0 %7625
        %7627 = vrot.lane.b32.xlu0 %v7171, 64
        %v7628 = vpop.permute.xlu0 %7627
        %7629 = vrot.lane.b32.xlu0 %v7172, 64
        %v7630 = vpop.permute.xlu0 %7629
        %7631 = vrot.lane.b32.xlu0 %v7174, 64
        %v7632 = vpop.permute.xlu0 %7631
        %7633 = vrot.lane.b32.xlu0 %v7175, 64
        %v7634 = vpop.permute.xlu0 %7633
        %7635 = vrot.lane.b32.xlu0 %v7177, 64
        %v7636 = vpop.permute.xlu0 %7635
        %7637 = vrot.lane.b32.xlu0 %v7178, 64
        %v7638 = vpop.permute.xlu0 %7637
        %7639 = vrot.lane.b32.xlu0 %v7180, 64
        %v7640 = vpop.permute.xlu0 %7639
        %7641 = vrot.lane.b32.xlu0 %v7181, 64
        %v7642 = vpop.permute.xlu0 %7641
        %7643 = vrot.lane.b32.xlu0 %v7183, 64
        %v7644 = vpop.permute.xlu0 %7643
        %7645 = vrot.lane.b32.xlu0 %v7184, 64
        %v7646 = vpop.permute.xlu0 %7645
        %7679 = vrot.lane.b32.xlu0 %v7324, 64
        %v7680 = vpop.permute.xlu0 %7679
        %7681 = vrot.lane.b32.xlu0 %v7326, 64
        %v7682 = vpop.permute.xlu0 %7681
        %7683 = vrot.lane.b32.xlu0 %v7329, 64
        %v7684 = vpop.permute.xlu0 %7683
        %7685 = vrot.lane.b32.xlu0 %v7331, 64
        %v7686 = vpop.permute.xlu0 %7685
        %7687 = vrot.lane.b32.xlu0 %v7334, 64
        %v7688 = vpop.permute.xlu0 %7687
        %7689 = vrot.lane.b32.xlu0 %v7336, 64
        %v7690 = vpop.permute.xlu0 %7689
        %7691 = vrot.lane.b32.xlu0 %v7339, 64
        %v7692 = vpop.permute.xlu0 %7691
        %7693 = vrot.lane.b32.xlu0 %v7341, 64
        %v7694 = vpop.permute.xlu0 %7693
        %7695 = vrot.lane.b32.xlu0 %v7344, 64
        %v7696 = vpop.permute.xlu0 %7695
        %7697 = vrot.lane.b32.xlu0 %v7346, 64
        %v7698 = vpop.permute.xlu0 %7697
        %7699 = vrot.lane.b32.xlu0 %v7349, 64
        %v7700 = vpop.permute.xlu0 %7699
        %7701 = vrot.lane.b32.xlu0 %v7351, 64
        %v7702 = vpop.permute.xlu0 %7701
        %7703 = vrot.lane.b32.xlu0 %v7354, 64
        %v7704 = vpop.permute.xlu0 %7703
        %7705 = vrot.lane.b32.xlu0 %v7356, 64
        %v7706 = vpop.permute.xlu0 %7705
        %7707 = vrot.lane.b32.xlu0 %v7359, 64
        %v7708 = vpop.permute.xlu0 %7707
        %7709 = vrot.lane.b32.xlu0 %v7361, 64
        %v7710 = vpop.permute.xlu0 %7709
        %7711 = vrot.lane.b32.xlu0 %v7364, 64
        %v7712 = vpop.permute.xlu0 %7711
        %7713 = vrot.lane.b32.xlu0 %v7366, 64
        %v7714 = vpop.permute.xlu0 %7713
        %7715 = vrot.lane.b32.xlu0 %v7369, 64
        %v7716 = vpop.permute.xlu0 %7715
        %7717 = vrot.lane.b32.xlu0 %v7371, 64
        %v7718 = vpop.permute.xlu0 %7717
        %7719 = vrot.lane.b32.xlu0 %v7374, 64
        %v7720 = vpop.permute.xlu0 %7719
        %7721 = vrot.lane.b32.xlu0 %v7376, 64
        %v7722 = vpop.permute.xlu0 %7721
        %7723 = vrot.lane.b32.xlu0 %v7379, 64
        %v7724 = vpop.permute.xlu0 %7723
        %7725 = vrot.lane.b32.xlu0 %v7381, 64
        %v7726 = vpop.permute.xlu0 %7725
        %7727 = vrot.lane.b32.xlu0 %v7384, 64
        %v7728 = vpop.permute.xlu0 %7727
        %7729 = vrot.lane.b32.xlu0 %v7386, 64
        %v7730 = vpop.permute.xlu0 %7729
        %7731 = vrot.lane.b32.xlu0 %v7389, 64
        %v7732 = vpop.permute.xlu0 %7731
        %7733 = vrot.lane.b32.xlu0 %v7391, 64
        %v7734 = vpop.permute.xlu0 %7733
        %7735 = vrot.lane.b32.xlu0 %v7394, 64
        %v7736 = vpop.permute.xlu0 %7735
        %7737 = vrot.lane.b32.xlu0 %v7396, 64
        %v7738 = vpop.permute.xlu0 %7737
        %7739 = vrot.lane.b32.xlu0 %v7471, 64
        %v7740 = vpop.permute.xlu0 %7739
        %7741 = vrot.lane.b32.xlu0 %v7473, 64
        %v7742 = vpop.permute.xlu0 %7741
        %7775 = vrot.lane.b32.xlu0 %v7434, 64
        %v7776 = vpop.permute.xlu0 %7775
        %7777 = vrot.lane.b32.xlu0 %v7436, 64
        %v7778 = vpop.permute.xlu0 %7777
        %7779 = vrot.lane.b32.xlu0 %v7479, 64
        %v7780 = vpop.permute.xlu0 %7779
        %7781 = vrot.lane.b32.xlu0 %v7481, 64
        %v7782 = vpop.permute.xlu0 %7781
        %v7787 = vsel %vm508, %v7135, %v7488
        %v7788 = vsel %vm508, %v7136, %v7490
        %v7789 = vsel %vm508, %v7138, %v7492
        %v7790 = vsel %vm508, %v7139, %v7494
        %v7791 = vsel %vm508, %v7141, %v7496
        %v7792 = vsel %vm508, %v7142, %v7498
        %v7793 = vsel %vm508, %v7144, %v7500
        %v7794 = vsel %vm508, %v7145, %v7502
        %v7795 = vsel %vm508, %v7147, %v7504
        %v7796 = vsel %vm508, %v7148, %v7506
        %v7797 = vsel %vm508, %v7150, %v7508
        %v7798 = vsel %vm508, %v7151, %v7510
        %v7799 = vsel %vm508, %v7153, %v7512
        %v7800 = vsel %vm508, %v7154, %v7514
        %v7801 = vsel %vm508, %v7156, %v7516
        %v7802 = vsel %vm508, %v7157, %v7518
        %v7803 = vsel %vm508, %v7159, %v7520
        %v7804 = vsel %vm508, %v7160, %v7522
        %v7805 = vsel %vm508, %v7162, %v7524
        %v7806 = vsel %vm508, %v7163, %v7526
        %v7807 = vsel %vm508, %v7165, %v7528
        %v7808 = vsel %vm508, %v7166, %v7530
        %v7809 = vsel %vm508, %v7168, %v7532
        %v7810 = vsel %vm508, %v7169, %v7534
        %v7811 = vsel %vm508, %v7171, %v7536
        %v7812 = vsel %vm508, %v7172, %v7538
        %v7813 = vsel %vm508, %v7174, %v7540
        %v7814 = vsel %vm508, %v7175, %v7542
        %v7815 = vsel %vm508, %v7177, %v7544
        %v7816 = vsel %vm508, %v7178, %v7546
        %v7817 = vsel %vm508, %v7180, %v7548
        %v7818 = vsel %vm508, %v7181, %v7550
        %v7819 = vsel %vm508, %v7319, %v7584
        %v7820 = vsel %vm508, %v7321, %v7586
        %v7821 = vsel %vm508, %v7324, %v7588
        %v7822 = vsel %vm508, %v7326, %v7590
        %v7823 = vsel %vm508, %v7329, %v7592
        %v7824 = vsel %vm508, %v7331, %v7594
        %v7825 = vsel %vm508, %v7334, %v7596
        %v7826 = vsel %vm508, %v7336, %v7598
        %v7827 = vsel %vm508, %v7339, %v7600
        %v7828 = vsel %vm508, %v7341, %v7602
        %v7829 = vsel %vm508, %v7344, %v7604
        %v7830 = vsel %vm508, %v7346, %v7606
        %v7831 = vsel %vm508, %v7349, %v7608
        %v7832 = vsel %vm508, %v7351, %v7610
        %v7833 = vsel %vm508, %v7354, %v7612
        %v7834 = vsel %vm508, %v7356, %v7614
        %v7835 = vsel %vm508, %v7359, %v7616
        %v7836 = vsel %vm508, %v7361, %v7618
        %v7837 = vsel %vm508, %v7364, %v7620
        %v7838 = vsel %vm508, %v7366, %v7622
        %v7839 = vsel %vm508, %v7369, %v7624
        %v7840 = vsel %vm508, %v7371, %v7626
        %v7841 = vsel %vm508, %v7374, %v7628
        %v7842 = vsel %vm508, %v7376, %v7630
        %v7843 = vsel %vm508, %v7379, %v7632
        %v7844 = vsel %vm508, %v7381, %v7634
        %v7845 = vsel %vm508, %v7384, %v7636
        %v7846 = vsel %vm508, %v7386, %v7638
        %v7847 = vsel %vm508, %v7389, %v7640
        %v7848 = vsel %vm508, %v7391, %v7642
        %v7849 = vsel %vm508, %v7394, %v7644
        %v7850 = vsel %vm508, %v7396, %v7646
        %v7851 = vsel %vm508, %v7244, %v7680
        %v7852 = vsel %vm508, %v7246, %v7682
        %v7853 = vsel %vm508, %v7249, %v7684
        %v7854 = vsel %vm508, %v7251, %v7686
        %v7855 = vsel %vm508, %v7254, %v7688
        %v7856 = vsel %vm508, %v7256, %v7690
        %v7857 = vsel %vm508, %v7259, %v7692
        %v7858 = vsel %vm508, %v7261, %v7694
        %v7859 = vsel %vm508, %v7264, %v7696
        %v7860 = vsel %vm508, %v7266, %v7698
        %v7861 = vsel %vm508, %v7269, %v7700
        %v7862 = vsel %vm508, %v7271, %v7702
        %v7863 = vsel %vm508, %v7274, %v7704
        %v7864 = vsel %vm508, %v7276, %v7706
        %v7865 = vsel %vm508, %v7279, %v7708
        %v7866 = vsel %vm508, %v7281, %v7710
        %v7867 = vsel %vm508, %v7284, %v7712
        %v7868 = vsel %vm508, %v7286, %v7714
        %v7869 = vsel %vm508, %v7289, %v7716
        %v7870 = vsel %vm508, %v7291, %v7718
        %v7871 = vsel %vm508, %v7294, %v7720
        %v7872 = vsel %vm508, %v7296, %v7722
        %v7873 = vsel %vm508, %v7299, %v7724
        %v7874 = vsel %vm508, %v7301, %v7726
        %v7875 = vsel %vm508, %v7304, %v7728
        %v7876 = vsel %vm508, %v7306, %v7730
        %v7877 = vsel %vm508, %v7309, %v7732
        %v7878 = vsel %vm508, %v7311, %v7734
        %v7879 = vsel %vm508, %v7314, %v7736
        %v7880 = vsel %vm508, %v7316, %v7738
        %v7881 = vsel %vm508, %v7434, %v7740
        %v7882 = vsel %vm508, %v7436, %v7742
        %v7883 = vsel %vm508, %v7183, %v7776
        %v7884 = vsel %vm508, %v7184, %v7778
        %v7885 = vsel %vm508, %v7186, %v7780
        %v7886 = vsel %vm508, %v7187, %v7782
        %v7887 = vld [vmem:[%s8] sm:$0xff]
        %v7888 = vld [vmem:[%s8 + $0x8] sm:$0xff]
        %v7889 = vld [vmem:[%s8 + $0x10] sm:$0xff]
        %v7890 = vld [vmem:[%s8 + $0x18] sm:$0xff]
        %v7891 = vld [vmem:[%s8 + $0x20] sm:$0xff]
        %v7892 = vld [vmem:[%s8 + $0x28] sm:$0xff]
        %v7893 = vld [vmem:[%s8 + $0x30] sm:$0xff]
        %v7894 = vld [vmem:[%s8 + $0x38] sm:$0xff]
        %v7895 = vld [vmem:[%s8 + $0x40] sm:$0xff]
        %v7896 = vld [vmem:[%s8 + $0x48] sm:$0xff]
        %v7897 = vld [vmem:[%s8 + $0x50] sm:$0xff]
        %v7898 = vld [vmem:[%s8 + $0x58] sm:$0xff]
        %v7899 = vld [vmem:[%s8 + $0x60] sm:$0xff]
        %v7900 = vld [vmem:[%s8 + $0x68] sm:$0xff]
        %v7901 = vld [vmem:[%s8 + $0x70] sm:$0xff]
        %v7902 = vld [vmem:[%s8 + $0x78] sm:$0xff]
        %v7903 = vld [vmem:[%s8 + $0x80] sm:$0xff]
        %v7904 = vld [vmem:[%s8 + $0x88] sm:$0xff]
        %v7905 = vld [vmem:[%s8 + $0x90] sm:$0xff]
        %v7906 = vld [vmem:[%s8 + $0x98] sm:$0xff]
        %v7907 = vld [vmem:[%s8 + $0xa0] sm:$0xff]
        %v7908 = vld [vmem:[%s8 + $0xa8] sm:$0xff]
        %v7909 = vld [vmem:[%s8 + $0xb0] sm:$0xff]
        %v7910 = vld [vmem:[%s8 + $0xb8] sm:$0xff]
        %v7911 = vld [vmem:[%s8 + $0xc0] sm:$0xff]
        %v7912 = vld [vmem:[%s8 + $0xc8] sm:$0xff]
        %v7913 = vld [vmem:[%s8 + $0xd0] sm:$0xff]
        %v7914 = vld [vmem:[%s8 + $0xd8] sm:$0xff]
        %v7915 = vld [vmem:[%s8 + $0xe0] sm:$0xff]
        %v7916 = vld [vmem:[%s8 + $0xe8] sm:$0xff]
        %v7917 = vld [vmem:[%s8 + $0xf0] sm:$0xff]
        %v7918 = vld [vmem:[%s8 + $0xf8] sm:$0xff]
        %v7919 = vld [vmem:[%s8 + $0x100] sm:$0xff]
        %v7920 = vld [vmem:[%s8 + $0x108] sm:$0xff]
        %v7921 = vld [vmem:[%s8 + $0x110] sm:$0xff]
        %v7922 = vld [vmem:[%s8 + $0x118] sm:$0xff]
        %v7923 = vld [vmem:[%s8 + $0x120] sm:$0xff]
        %v7924 = vld [vmem:[%s8 + $0x128] sm:$0xff]
        %v7925 = vld [vmem:[%s8 + $0x130] sm:$0xff]
        %v7926 = vld [vmem:[%s8 + $0x138] sm:$0xff]
        %v7927 = vld [vmem:[%s8 + $0x140] sm:$0xff]
        %v7928 = vld [vmem:[%s8 + $0x148] sm:$0xff]
        %v7929 = vld [vmem:[%s8 + $0x150] sm:$0xff]
        %v7930 = vld [vmem:[%s8 + $0x158] sm:$0xff]
        %v7931 = vld [vmem:[%s8 + $0x160] sm:$0xff]
        %v7932 = vld [vmem:[%s8 + $0x168] sm:$0xff]
        %v7933 = vld [vmem:[%s8 + $0x170] sm:$0xff]
        %v7934 = vld [vmem:[%s8 + $0x178] sm:$0xff]
        %v7935 = vld [vmem:[%s8 + $0x180] sm:$0xff]
        %v7936 = vld [vmem:[%s8 + $0x188] sm:$0xff]
        %v7937 = vld [vmem:[%s8 + $0x190] sm:$0xff]
        %v7938 = vld [vmem:[%s8 + $0x198] sm:$0xff]
        %v7939 = vld [vmem:[%s8 + $0x1a0] sm:$0xff]
        %v7940 = vld [vmem:[%s8 + $0x1a8] sm:$0xff]
        %v7941 = vld [vmem:[%s8 + $0x1b0] sm:$0xff]
        %v7942 = vld [vmem:[%s8 + $0x1b8] sm:$0xff]
        %v7943 = vld [vmem:[%s8 + $0x1c0] sm:$0xff]
        %v7944 = vld [vmem:[%s8 + $0x1c8] sm:$0xff]
        %v7945 = vld [vmem:[%s8 + $0x1d0] sm:$0xff]
        %v7946 = vld [vmem:[%s8 + $0x1d8] sm:$0xff]
        %v7947 = vld [vmem:[%s8 + $0x1e0] sm:$0xff]
        %v7948 = vld [vmem:[%s8 + $0x1e8] sm:$0xff]
        %v7949 = vld [vmem:[%s8 + $0x1f0] sm:$0xff]
        %v7950 = vld [vmem:[%s8 + $0x1f8] sm:$0xff]
        %v7951 = vld [vmem:[%s8 + $0x200] sm:$0xff]
        %v7952 = vld [vmem:[%s8 + $0x208] sm:$0xff]
        %v7953 = vld [vmem:[%s8 + $0x210] sm:$0xff]
        %v7954 = vld [vmem:[%s8 + $0x218] sm:$0xff]
        %v7955 = vld [vmem:[%s8 + $0x220] sm:$0xff]
        %v7956 = vld [vmem:[%s8 + $0x228] sm:$0xff]
        %v7957 = vld [vmem:[%s8 + $0x230] sm:$0xff]
        %v7958 = vld [vmem:[%s8 + $0x238] sm:$0xff]
        %v7959 = vld [vmem:[%s9] sm:$0x1]
        %v7961 = vlaneseq
        %v7962 = vshrl.u32 %v7961, 7
        %v7963 = vsub.s32 0, %v7962
        %v7964 = vrot.slane %v7959, %v7963
        %v7966 = vsel %vm508, %v7329, 0
        %v7968 = vsel %vm508, %v7331, 0
        %v7970 = vsel %vm508, %v7334, 0
        %v7972 = vsel %vm508, %v7336, 0
        %v7974 = vsel %vm508, %v7339, 0
        %v7976 = vsel %vm508, %v7341, 0
        %v7978 = vsel %vm508, %v7344, 0
        %v7980 = vsel %vm508, %v7346, 0
        %v7982 = vsel %vm508, %v7349, 0
        %v7984 = vsel %vm508, %v7351, 0
        %v7986 = vsel %vm508, %v7354, 0
        %v7988 = vsel %vm508, %v7356, 0
        %v7990 = vsel %vm508, %v7359, 0
        %v7992 = vsel %vm508, %v7361, 0
        %v7994 = vsel %vm508, %v7364, 0
        %v7996 = vsel %vm508, %v7366, 0
        %v7998 = vsel %vm508, %v7369, 0
        %v8000 = vsel %vm508, %v7371, 0
        %v8002 = vsel %vm508, %v7374, 0
        %v8004 = vsel %vm508, %v7376, 0
        %v8006 = vsel %vm508, %v7379, 0
        %v8008 = vsel %vm508, %v7381, 0
        %v8010 = vsel %vm508, %v7384, 0
        %v8012 = vsel %vm508, %v7386, 0
        %v8014 = vsel %vm508, %v7389, 0
        %v8016 = vsel %vm508, %v7391, 0
        %v8018 = vsel %vm508, %v7394, 0
        %v8020 = vsel %vm508, %v7396, 0
        %v8022 = vsel %vm508, %v7471, 0
        %v8024 = vsel %vm508, %v7473, 0
        %v8026 = vsel %vm508, %v7484, 0
        %v8028 = vsel %vm508, %v7486, 0
        %8030 = vmatprep.subr.mxu0 0.0
        %8031 = vmatpush1.msra.mxu0 %v7887
        %8032 = vmatprep.subr.mxu0 0.0
        %8033 = vmatpush1.msra.mxu0 %v7888
        %8034 = vmatprep.subr.mxu0 0.0
        %8035 = vmatpush1.msra.mxu0 %v7889
        %8036 = vmatprep.subr.mxu0 0.0
        %8037 = vmatpush1.msra.mxu0 %v7890
        %8038 = vmatprep.subr.mxu0 0.0
        %8039 = vmatpush1.msra.mxu0 %v7891
        %8040 = vmatprep.subr.mxu0 0.0
        %8041 = vmatpush1.msra.mxu0 %v7892
        %8042 = vmatprep.subr.mxu0 0.0
        %8043 = vmatpush1.msra.mxu0 %v7893
        %8044 = vmatprep.subr.mxu0 0.0
        %8045 = vmatpush1.msra.mxu0 %v7894
        %8046 = vmatprep.subr.mxu0 0.0
        %8047 = vmatpush1.msra.mxu0 %v7895
        %8048 = vmatprep.subr.mxu0 0.0
        %8049 = vmatpush1.msra.mxu0 %v7896
        %8050 = vmatprep.subr.mxu0 0.0
        %8051 = vmatpush1.msra.mxu0 %v7897
        %8052 = vmatprep.subr.mxu0 0.0
        %8053 = vmatpush1.msra.mxu0 %v7898
        %8054 = vmatprep.subr.mxu0 0.0
        %8055 = vmatpush1.msra.mxu0 %v7899
        %8056 = vmatprep.subr.mxu0 0.0
        %8057 = vmatpush1.msra.mxu0 %v7900
        %8058 = vmatprep.subr.mxu0 0.0
        %8059 = vmatpush1.msra.mxu0 %v7901
        %8060 = vmatprep.subr.mxu0 0.0
        %8061 = vmatpush1.msra.mxu0 %v7902
        %8062 = vmatprep.subr.mxu0 0.0
        %8063 = vmatpush1.msra.mxu0 %v7903
        %8064 = vmatprep.subr.mxu0 0.0
        %8065 = vmatpush1.msra.mxu0 %v7904
        %8066 = vmatprep.subr.mxu0 0.0
        %8067 = vmatpush1.msra.mxu0 %v7905
        %8068 = vmatprep.subr.mxu0 0.0
        %8069 = vmatpush1.msra.mxu0 %v7906
        %8070 = vmatprep.subr.mxu0 0.0
        %8071 = vmatpush1.msra.mxu0 %v7907
        %8072 = vmatprep.subr.mxu0 0.0
        %8073 = vmatpush1.msra.mxu0 %v7908
        %8074 = vmatprep.subr.mxu0 0.0
        %8075 = vmatpush1.msra.mxu0 %v7909
        %8076 = vmatprep.subr.mxu0 0.0
        %8077 = vmatpush1.msra.mxu0 %v7910
        %8078 = vmatprep.subr.mxu0 0.0
        %8079 = vmatpush1.msra.mxu0 %v7911
        %8080 = vmatprep.subr.mxu0 0.0
        %8081 = vmatpush1.msra.mxu0 %v7912
        %8082 = vmatprep.subr.mxu0 0.0
        %8083 = vmatpush1.msra.mxu0 %v7913
        %8084 = vmatprep.subr.mxu0 0.0
        %8085 = vmatpush1.msra.mxu0 %v7914
        %8086 = vmatprep.subr.mxu0 0.0
        %8087 = vmatpush1.msra.mxu0 %v7915
        %8088 = vmatprep.subr.mxu0 0.0
        %8089 = vmatpush1.msra.mxu0 %v7916
        %8090 = vmatprep.subr.mxu0 0.0
        %8091 = vmatpush1.msra.mxu0 %v7917
        %8092 = vmatprep.subr.mxu0 0.0
        %8093 = vmatpush1.msra.mxu0 %v7918
        %8094 = vmatprep.mubr.f32.mxu0 %v7819
        %8095 = vmatmul.mubr.f32.gmra.mrb[0].mxu0 %v7787
        %v8096 = vpop.f32.mrb[0].mxu0
        %v8097 = vadd.f32 %v7964, %v8096
        %v8098 = vpop.f32.mrb[0].mxu0
        %8099 = vmatprep.mubr.f32.mxu0 %v7820
        %8100 = vmatmul.mubr.f32.gmra.mrb[0].mxu0 %v7788
        %v8101 = vpop.f32.mrb[0].mxu0
        %v8102 = vadd.f32 %v7964, %v8101
        %v8103 = vpop.f32.mrb[0].mxu0
        %8104 = vmatprep.mubr.f32.mxu0 %v7821
        %8105 = vmatmul.mubr.f32.gmra.mrb[0].mxu0 %v7789
        %v8106 = vpop.f32.mrb[0].mxu0
        %v8107 = vadd.f32 %v7964, %v8106
        %v8108 = vpop.f32.mrb[0].mxu0
        %8109 = vmatprep.mubr.f32.mxu0 %v7822
        %8110 = vmatmul.mubr.f32.gmra.mrb[0].mxu0 %v7790
        %v8111 = vpop.f32.mrb[0].mxu0
        %v8112 = vadd.f32 %v7964, %v8111
        %v8113 = vpop.f32.mrb[0].mxu0
        %8114 = vmatprep.mubr.f32.mxu0 %v7823
        %8115 = vmatmul.mubr.f32.gmra.mrb[0].mxu0 %v7791
        %v8116 = vpop.f32.mrb[0].mxu0
        %v8117 = vadd.f32 %v7964, %v8116
        %v8118 = vpop.f32.mrb[0].mxu0
        %8119 = vmatprep.mubr.f32.mxu0 %v7824
        %8120 = vmatmul.mubr.f32.gmra.mrb[0].mxu0 %v7792
        %v8121 = vpop.f32.mrb[0].mxu0
        %v8122 = vadd.f32 %v7964, %v8121
        %v8123 = vpop.f32.mrb[0].mxu0
        %8124 = vmatprep.mubr.f32.mxu0 %v7825
        %8125 = vmatmul.mubr.f32.gmra.mrb[0].mxu0 %v7793
        %v8126 = vpop.f32.mrb[0].mxu0
        %v8127 = vadd.f32 %v7964, %v8126
        %v8128 = vpop.f32.mrb[0].mxu0
        %8129 = vmatprep.mubr.f32.mxu0 %v7826
        %8130 = vmatmul.mubr.f32.gmra.mrb[0].mxu0 %v7794
        %v8131 = vpop.f32.mrb[0].mxu0
        %v8132 = vadd.f32 %v7964, %v8131
        %v8133 = vpop.f32.mrb[0].mxu0
        %8134 = vmatprep.mubr.f32.mxu0 %v7827
        %8135 = vmatmul.mubr.f32.gmra.mrb[0].mxu0 %v7795
        %v8136 = vpop.f32.mrb[0].mxu0
        %v8137 = vadd.f32 %v7964, %v8136
        %v8138 = vpop.f32.mrb[0].mxu0
        %8139 = vmatprep.mubr.f32.mxu0 %v7828
        %8140 = vmatmul.mubr.f32.gmra.mrb[0].mxu0 %v7796
        %v8141 = vpop.f32.mrb[0].mxu0
        %v8142 = vadd.f32 %v7964, %v8141
        %v8143 = vpop.f32.mrb[0].mxu0
        %8144 = vmatprep.mubr.f32.mxu0 %v7829
        %8145 = vmatmul.mubr.f32.gmra.mrb[0].mxu0 %v7797
        %v8146 = vpop.f32.mrb[0].mxu0
        %v8147 = vadd.f32 %v7964, %v8146
        %v8148 = vpop.f32.mrb[0].mxu0
        %8149 = vmatprep.mubr.f32.mxu0 %v7830
        %8150 = vmatmul.mubr.f32.gmra.mrb[0].mxu0 %v7798
        %v8151 = vpop.f32.mrb[0].mxu0
        %v8152 = vadd.f32 %v7964, %v8151
        %v8153 = vpop.f32.mrb[0].mxu0
        %8154 = vmatprep.mubr.f32.mxu0 %v7831
        %8155 = vmatmul.mubr.f32.gmra.mrb[0].mxu0 %v7799
        %v8156 = vpop.f32.mrb[0].mxu0
        %v8157 = vadd.f32 %v7964, %v8156
        %v8158 = vpop.f32.mrb[0].mxu0
        %8159 = vmatprep.mubr.f32.mxu0 %v7832
        %8160 = vmatmul.mubr.f32.gmra.mrb[0].mxu0 %v7800
        %v8161 = vpop.f32.mrb[0].mxu0
        %v8162 = vadd.f32 %v7964, %v8161
        %v8163 = vpop.f32.mrb[0].mxu0
        %8164 = vmatprep.mubr.f32.mxu0 %v7833
        %8165 = vmatmul.mubr.f32.gmra.mrb[0].mxu0 %v7801
        %v8166 = vpop.f32.mrb[0].mxu0
        %v8167 = vadd.f32 %v7964, %v8166
        %v8168 = vpop.f32.mrb[0].mxu0
        %8169 = vmatprep.mubr.f32.mxu0 %v7834
        %8170 = vmatmul.mubr.f32.gmra.mrb[0].mxu0 %v7802
        %v8171 = vpop.f32.mrb[0].mxu0
        %v8172 = vadd.f32 %v7964, %v8171
        %v8173 = vpop.f32.mrb[0].mxu0
        %8174 = vmatprep.mubr.f32.mxu0 %v7835
        %8175 = vmatmul.mubr.f32.gmra.mrb[0].mxu0 %v7803
        %v8176 = vpop.f32.mrb[0].mxu0
        %v8177 = vadd.f32 %v7964, %v8176
        %v8178 = vpop.f32.mrb[0].mxu0
        %8179 = vmatprep.mubr.f32.mxu0 %v7836
        %8180 = vmatmul.mubr.f32.gmra.mrb[0].mxu0 %v7804
        %v8181 = vpop.f32.mrb[0].mxu0
        %v8182 = vadd.f32 %v7964, %v8181
        %v8183 = vpop.f32.mrb[0].mxu0
        %8184 = vmatprep.mubr.f32.mxu0 %v7837
        %8185 = vmatmul.mubr.f32.gmra.mrb[0].mxu0 %v7805
        %v8186 = vpop.f32.mrb[0].mxu0
        %v8187 = vadd.f32 %v7964, %v8186
        %v8188 = vpop.f32.mrb[0].mxu0
        %8189 = vmatprep.mubr.f32.mxu0 %v7838
        %8190 = vmatmul.mubr.f32.gmra.mrb[0].mxu0 %v7806
        %v8191 = vpop.f32.mrb[0].mxu0
        %v8192 = vadd.f32 %v7964, %v8191
        %v8193 = vpop.f32.mrb[0].mxu0
        %8194 = vmatprep.mubr.f32.mxu0 %v7839
        %8195 = vmatmul.mubr.f32.gmra.mrb[0].mxu0 %v7807
        %v8196 = vpop.f32.mrb[0].mxu0
        %v8197 = vadd.f32 %v7964, %v8196
        %v8198 = vpop.f32.mrb[0].mxu0
        %8199 = vmatprep.mubr.f32.mxu0 %v7840
        %8200 = vmatmul.mubr.f32.gmra.mrb[0].mxu0 %v7808
        %v8201 = vpop.f32.mrb[0].mxu0
        %v8202 = vadd.f32 %v7964, %v8201
        %v8203 = vpop.f32.mrb[0].mxu0
        %8204 = vmatprep.mubr.f32.mxu0 %v7841
        %8205 = vmatmul.mubr.f32.gmra.mrb[0].mxu0 %v7809
        %v8206 = vpop.f32.mrb[0].mxu0
        %v8207 = vadd.f32 %v7964, %v8206
        %v8208 = vpop.f32.mrb[0].mxu0
        %8209 = vmatprep.mubr.f32.mxu0 %v7842
        %8210 = vmatmul.mubr.f32.gmra.mrb[0].mxu0 %v7810
        %v8211 = vpop.f32.mrb[0].mxu0
        %v8212 = vadd.f32 %v7964, %v8211
        %v8213 = vpop.f32.mrb[0].mxu0
        %8214 = vmatprep.mubr.f32.mxu0 %v7843
        %8215 = vmatmul.mubr.f32.gmra.mrb[0].mxu0 %v7811
        %v8216 = vpop.f32.mrb[0].mxu0
        %v8217 = vadd.f32 %v7964, %v8216
        %v8218 = vpop.f32.mrb[0].mxu0
        %8219 = vmatprep.mubr.f32.mxu0 %v7844
        %8220 = vmatmul.mubr.f32.gmra.mrb[0].mxu0 %v7812
        %v8221 = vpop.f32.mrb[0].mxu0
        %v8222 = vadd.f32 %v7964, %v8221
        %v8223 = vpop.f32.mrb[0].mxu0
        %8224 = vmatprep.mubr.f32.mxu0 %v7845
        %8225 = vmatmul.mubr.f32.gmra.mrb[0].mxu0 %v7813
        %v8226 = vpop.f32.mrb[0].mxu0
        %v8227 = vadd.f32 %v7964, %v8226
        %v8228 = vpop.f32.mrb[0].mxu0
        %8229 = vmatprep.mubr.f32.mxu0 %v7846
        %8230 = vmatmul.mubr.f32.gmra.mrb[0].mxu0 %v7814
        %v8231 = vpop.f32.mrb[0].mxu0
        %v8232 = vadd.f32 %v7964, %v8231
        %v8233 = vpop.f32.mrb[0].mxu0
        %8234 = vmatprep.mubr.f32.mxu0 %v7847
        %8235 = vmatmul.mubr.f32.gmra.mrb[0].mxu0 %v7815
        %v8236 = vpop.f32.mrb[0].mxu0
        %v8237 = vadd.f32 %v7964, %v8236
        %v8238 = vpop.f32.mrb[0].mxu0
        %8239 = vmatprep.mubr.f32.mxu0 %v7848
        %8240 = vmatmul.mubr.f32.gmra.mrb[0].mxu0 %v7816
        %v8241 = vpop.f32.mrb[0].mxu0
        %v8242 = vadd.f32 %v7964, %v8241
        %v8243 = vpop.f32.mrb[0].mxu0
        %8244 = vmatprep.mubr.f32.mxu0 %v7849
        %8245 = vmatmul.mubr.f32.gmra.mrb[0].mxu0 %v7817
        %v8246 = vpop.f32.mrb[0].mxu0
        %v8247 = vadd.f32 %v7964, %v8246
        %v8248 = vpop.f32.mrb[0].mxu0
        %8249 = vmatprep.mubr.f32.mxu0 %v7850
        %8250 = vmatmul.mubr.f32.gmra.mrb[0].mxu0 %v7818
        %v8251 = vpop.f32.mrb[0].mxu0
        %v8252 = vadd.f32 %v7964, %v8251
        %v8253 = vpop.f32.mrb[0].mxu0
        %8254 = vdwg.mxu0
        %8255 = vmatprep.subr.mxu0 0.0
        %8256 = vmatpush1.msra.mxu0 %v7919
        %8257 = vmatprep.subr.mxu0 0.0
        %8258 = vmatpush1.msra.mxu0 %v7920
        %8259 = vmatprep.subr.mxu0 0.0
        %8260 = vmatpush1.msra.mxu0 %v7921
        %8261 = vmatprep.subr.mxu0 0.0
        %8262 = vmatpush1.msra.mxu0 %v7922
        %8263 = vmatprep.subr.mxu0 0.0
        %8264 = vmatpush1.msra.mxu0 %v7923
        %8265 = vmatprep.subr.mxu0 0.0
        %8266 = vmatpush1.msra.mxu0 %v7924
        %8267 = vmatprep.subr.mxu0 0.0
        %8268 = vmatpush1.msra.mxu0 %v7925
        %8269 = vmatprep.subr.mxu0 0.0
        %8270 = vmatpush1.msra.mxu0 %v7926
        %8271 = vmatprep.subr.mxu0 0.0
        %8272 = vmatpush1.msra.mxu0 %v7927
        %8273 = vmatprep.subr.mxu0 0.0
        %8274 = vmatpush1.msra.mxu0 %v7928
        %8275 = vmatprep.subr.mxu0 0.0
        %8276 = vmatpush1.msra.mxu0 %v7929
        %8277 = vmatprep.subr.mxu0 0.0
        %8278 = vmatpush1.msra.mxu0 %v7930
        %8279 = vmatprep.subr.mxu0 0.0
        %8280 = vmatpush1.msra.mxu0 %v7931
        %8281 = vmatprep.subr.mxu0 0.0
        %8282 = vmatpush1.msra.mxu0 %v7932
        %8283 = vmatprep.subr.mxu0 0.0
        %8284 = vmatpush1.msra.mxu0 %v7933
        %8285 = vmatprep.subr.mxu0 0.0
        %8286 = vmatpush1.msra.mxu0 %v7934
        %8287 = vmatprep.subr.mxu0 0.0
        %8288 = vmatpush1.msra.mxu0 %v7935
        %8289 = vmatprep.subr.mxu0 0.0
        %8290 = vmatpush1.msra.mxu0 %v7936
        %8291 = vmatprep.subr.mxu0 0.0
        %8292 = vmatpush1.msra.mxu0 %v7937
        %8293 = vmatprep.subr.mxu0 0.0
        %8294 = vmatpush1.msra.mxu0 %v7938
        %8295 = vmatprep.subr.mxu0 0.0
        %8296 = vmatpush1.msra.mxu0 %v7939
        %8297 = vmatprep.subr.mxu0 0.0
        %8298 = vmatpush1.msra.mxu0 %v7940
        %8299 = vmatprep.subr.mxu0 0.0
        %8300 = vmatpush1.msra.mxu0 %v7941
        %8301 = vmatprep.subr.mxu0 0.0
        %8302 = vmatpush1.msra.mxu0 %v7942
        %8303 = vmatprep.subr.mxu0 0.0
        %8304 = vmatpush1.msra.mxu0 %v7943
        %8305 = vmatprep.subr.mxu0 0.0
        %8306 = vmatpush1.msra.mxu0 %v7944
        %8307 = vmatprep.subr.mxu0 0.0
        %8308 = vmatpush1.msra.mxu0 %v7945
        %8309 = vmatprep.subr.mxu0 0.0
        %8310 = vmatpush1.msra.mxu0 %v7946
        %8311 = vmatprep.subr.mxu0 0.0
        %8312 = vmatpush1.msra.mxu0 %v7947
        %8313 = vmatprep.subr.mxu0 0.0
        %8314 = vmatpush1.msra.mxu0 %v7948
        %8315 = vmatprep.subr.mxu0 0.0
        %8316 = vmatpush1.msra.mxu0 %v7949
        %8317 = vmatprep.subr.mxu0 0.0
        %8318 = vmatpush1.msra.mxu0 %v7950
        %8319 = vmatprep.mubr.f32.mxu0 %v7791
        %8320 = vmatmul.mubr.f32.gmra.mrb[0].mxu0 %v7851
        %v8321 = vpop.f32.mrb[0].mxu0
        %v8322 = vadd.f32 %v8097, %v8321
        %v8323 = vpop.f32.mrb[0].mxu0
        %8324 = vmatprep.mubr.f32.mxu0 %v7792
        %8325 = vmatmul.mubr.f32.gmra.mrb[0].mxu0 %v7852
        %v8326 = vpop.f32.mrb[0].mxu0
        %v8327 = vadd.f32 %v8102, %v8326
        %v8328 = vpop.f32.mrb[0].mxu0
        %8329 = vmatprep.mubr.f32.mxu0 %v7793
        %8330 = vmatmul.mubr.f32.gmra.mrb[0].mxu0 %v7853
        %v8331 = vpop.f32.mrb[0].mxu0
        %v8332 = vadd.f32 %v8107, %v8331
        %v8333 = vpop.f32.mrb[0].mxu0
        %8334 = vmatprep.mubr.f32.mxu0 %v7794
        %8335 = vmatmul.mubr.f32.gmra.mrb[0].mxu0 %v7854
        %v8336 = vpop.f32.mrb[0].mxu0
        %v8337 = vadd.f32 %v8112, %v8336
        %v8338 = vpop.f32.mrb[0].mxu0
        %8339 = vmatprep.mubr.f32.mxu0 %v7795
        %8340 = vmatmul.mubr.f32.gmra.mrb[0].mxu0 %v7855
        %v8341 = vpop.f32.mrb[0].mxu0
        %v8342 = vadd.f32 %v8117, %v8341
        %v8343 = vpop.f32.mrb[0].mxu0
        %8344 = vmatprep.mubr.f32.mxu0 %v7796
        %8345 = vmatmul.mubr.f32.gmra.mrb[0].mxu0 %v7856
        %v8346 = vpop.f32.mrb[0].mxu0
        %v8347 = vadd.f32 %v8122, %v8346
        %v8348 = vpop.f32.mrb[0].mxu0
        %8349 = vmatprep.mubr.f32.mxu0 %v7797
        %8350 = vmatmul.mubr.f32.gmra.mrb[0].mxu0 %v7857
        %v8351 = vpop.f32.mrb[0].mxu0
        %v8352 = vadd.f32 %v8127, %v8351
        %v8353 = vpop.f32.mrb[0].mxu0
        %8354 = vmatprep.mubr.f32.mxu0 %v7798
        %8355 = vmatmul.mubr.f32.gmra.mrb[0].mxu0 %v7858
        %v8356 = vpop.f32.mrb[0].mxu0
        %v8357 = vadd.f32 %v8132, %v8356
        %v8358 = vpop.f32.mrb[0].mxu0
        %8359 = vmatprep.mubr.f32.mxu0 %v7799
        %8360 = vmatmul.mubr.f32.gmra.mrb[0].mxu0 %v7859
        %v8361 = vpop.f32.mrb[0].mxu0
        %v8362 = vadd.f32 %v8137, %v8361
        %v8363 = vpop.f32.mrb[0].mxu0
        %8364 = vmatprep.mubr.f32.mxu0 %v7800
        %8365 = vmatmul.mubr.f32.gmra.mrb[0].mxu0 %v7860
        %v8366 = vpop.f32.mrb[0].mxu0
        %v8367 = vadd.f32 %v8142, %v8366
        %v8368 = vpop.f32.mrb[0].mxu0
        %8369 = vmatprep.mubr.f32.mxu0 %v7801
        %8370 = vmatmul.mubr.f32.gmra.mrb[0].mxu0 %v7861
        %v8371 = vpop.f32.mrb[0].mxu0
        %v8372 = vadd.f32 %v8147, %v8371
        %v8373 = vpop.f32.mrb[0].mxu0
        %8374 = vmatprep.mubr.f32.mxu0 %v7802
        %8375 = vmatmul.mubr.f32.gmra.mrb[0].mxu0 %v7862
        %v8376 = vpop.f32.mrb[0].mxu0
        %v8377 = vadd.f32 %v8152, %v8376
        %v8378 = vpop.f32.mrb[0].mxu0
        %8379 = vmatprep.mubr.f32.mxu0 %v7803
        %8380 = vmatmul.mubr.f32.gmra.mrb[0].mxu0 %v7863
        %v8381 = vpop.f32.mrb[0].mxu0
        %v8382 = vadd.f32 %v8157, %v8381
        %v8383 = vpop.f32.mrb[0].mxu0
        %8384 = vmatprep.mubr.f32.mxu0 %v7804
        %8385 = vmatmul.mubr.f32.gmra.mrb[0].mxu0 %v7864
        %v8386 = vpop.f32.mrb[0].mxu0
        %v8387 = vadd.f32 %v8162, %v8386
        %v8388 = vpop.f32.mrb[0].mxu0
        %8389 = vmatprep.mubr.f32.mxu0 %v7805
        %8390 = vmatmul.mubr.f32.gmra.mrb[0].mxu0 %v7865
        %v8391 = vpop.f32.mrb[0].mxu0
        %v8392 = vadd.f32 %v8167, %v8391
        %v8393 = vpop.f32.mrb[0].mxu0
        %8394 = vmatprep.mubr.f32.mxu0 %v7806
        %8395 = vmatmul.mubr.f32.gmra.mrb[0].mxu0 %v7866
        %v8396 = vpop.f32.mrb[0].mxu0
        %v8397 = vadd.f32 %v8172, %v8396
        %v8398 = vpop.f32.mrb[0].mxu0
        %8399 = vmatprep.mubr.f32.mxu0 %v7807
        %8400 = vmatmul.mubr.f32.gmra.mrb[0].mxu0 %v7867
        %v8401 = vpop.f32.mrb[0].mxu0
        %v8402 = vadd.f32 %v8177, %v8401
        %v8403 = vpop.f32.mrb[0].mxu0
        %8404 = vmatprep.mubr.f32.mxu0 %v7808
        %8405 = vmatmul.mubr.f32.gmra.mrb[0].mxu0 %v7868
        %v8406 = vpop.f32.mrb[0].mxu0
        %v8407 = vadd.f32 %v8182, %v8406
        %v8408 = vpop.f32.mrb[0].mxu0
        %8409 = vmatprep.mubr.f32.mxu0 %v7809
        %8410 = vmatmul.mubr.f32.gmra.mrb[0].mxu0 %v7869
        %v8411 = vpop.f32.mrb[0].mxu0
        %v8412 = vadd.f32 %v8187, %v8411
        %v8413 = vpop.f32.mrb[0].mxu0
        %8414 = vmatprep.mubr.f32.mxu0 %v7810
        %8415 = vmatmul.mubr.f32.gmra.mrb[0].mxu0 %v7870
        %v8416 = vpop.f32.mrb[0].mxu0
        %v8417 = vadd.f32 %v8192, %v8416
        %v8418 = vpop.f32.mrb[0].mxu0
        %8419 = vmatprep.mubr.f32.mxu0 %v7811
        %8420 = vmatmul.mubr.f32.gmra.mrb[0].mxu0 %v7871
        %v8421 = vpop.f32.mrb[0].mxu0
        %v8422 = vadd.f32 %v8197, %v8421
        %v8423 = vpop.f32.mrb[0].mxu0
        %8424 = vmatprep.mubr.f32.mxu0 %v7812
        %8425 = vmatmul.mubr.f32.gmra.mrb[0].mxu0 %v7872
        %v8426 = vpop.f32.mrb[0].mxu0
        %v8427 = vadd.f32 %v8202, %v8426
        %v8428 = vpop.f32.mrb[0].mxu0
        %8429 = vmatprep.mubr.f32.mxu0 %v7813
        %8430 = vmatmul.mubr.f32.gmra.mrb[0].mxu0 %v7873
        %v8431 = vpop.f32.mrb[0].mxu0
        %v8432 = vadd.f32 %v8207, %v8431
        %v8433 = vpop.f32.mrb[0].mxu0
        %8434 = vmatprep.mubr.f32.mxu0 %v7814
        %8435 = vmatmul.mubr.f32.gmra.mrb[0].mxu0 %v7874
        %v8436 = vpop.f32.mrb[0].mxu0
        %v8437 = vadd.f32 %v8212, %v8436
        %v8438 = vpop.f32.mrb[0].mxu0
        %8439 = vmatprep.mubr.f32.mxu0 %v7815
        %8440 = vmatmul.mubr.f32.gmra.mrb[0].mxu0 %v7875
        %v8441 = vpop.f32.mrb[0].mxu0
        %v8442 = vadd.f32 %v8217, %v8441
        %v8443 = vpop.f32.mrb[0].mxu0
        %8444 = vmatprep.mubr.f32.mxu0 %v7816
        %8445 = vmatmul.mubr.f32.gmra.mrb[0].mxu0 %v7876
        %v8446 = vpop.f32.mrb[0].mxu0
        %v8447 = vadd.f32 %v8222, %v8446
        %v8448 = vpop.f32.mrb[0].mxu0
        %8449 = vmatprep.mubr.f32.mxu0 %v7817
        %8450 = vmatmul.mubr.f32.gmra.mrb[0].mxu0 %v7877
        %v8451 = vpop.f32.mrb[0].mxu0
        %v8452 = vadd.f32 %v8227, %v8451
        %v8453 = vpop.f32.mrb[0].mxu0
        %8454 = vmatprep.mubr.f32.mxu0 %v7818
        %8455 = vmatmul.mubr.f32.gmra.mrb[0].mxu0 %v7878
        %v8456 = vpop.f32.mrb[0].mxu0
        %v8457 = vadd.f32 %v8232, %v8456
        %v8458 = vpop.f32.mrb[0].mxu0
        %8459 = vmatprep.mubr.f32.mxu0 %v7883
        %8460 = vmatmul.mubr.f32.gmra.mrb[0].mxu0 %v7879
        %v8461 = vpop.f32.mrb[0].mxu0
        %v8462 = vadd.f32 %v8237, %v8461
        %v8463 = vpop.f32.mrb[0].mxu0
        %8464 = vmatprep.mubr.f32.mxu0 %v7884
        %8465 = vmatmul.mubr.f32.gmra.mrb[0].mxu0 %v7880
        %v8466 = vpop.f32.mrb[0].mxu0
        %v8467 = vadd.f32 %v8242, %v8466
        %v8468 = vpop.f32.mrb[0].mxu0
        %8469 = vmatprep.mubr.f32.mxu0 %v7885
        %8470 = vmatmul.mubr.f32.gmra.mrb[0].mxu0 %v7881
        %v8471 = vpop.f32.mrb[0].mxu0
        %v8472 = vadd.f32 %v8247, %v8471
        %v8473 = vpop.f32.mrb[0].mxu0
        %8474 = vmatprep.mubr.f32.mxu0 %v7886
        %8475 = vmatmul.mubr.f32.gmra.mrb[0].mxu0 %v7882
        %v8476 = vpop.f32.mrb[0].mxu0
        %v8477 = vadd.f32 %v8252, %v8476
        %v8478 = vpop.f32.mrb[0].mxu0
        %8479 = vdwg.mxu0
        %8480 = vmatprep.subr.mxu0 0.0
        %8481 = vmatpush1.msra.mxu0 %v7951
        %8482 = vmatprep.subr.mxu0 0.0
        %8483 = vmatpush1.msra.mxu0 %v7952
        %8484 = vmatprep.subr.mxu0 0.0
        %8485 = vmatpush1.msra.mxu0 %v7953
        %8486 = vmatprep.subr.mxu0 0.0
        %8487 = vmatpush1.msra.mxu0 %v7954
        %8488 = vmatprep.subr.mxu0 0.0
        %8489 = vmatpush1.msra.mxu0 %v7955
        %8490 = vmatprep.subr.mxu0 0.0
        %8491 = vmatpush1.msra.mxu0 %v7956
        %8492 = vmatprep.subr.mxu0 0.0
        %8493 = vmatpush1.msra.mxu0 %v7957
        %8494 = vmatprep.subr.mxu0 0.0
        %8495 = vmatpush1.msra.mxu0 %v7958
        %8496 = vmatprep.subr.mxu0 0.0
        %8497 = vmatpush1.msra.mxu0 0.0
        %8498 = vmatprep.subr.mxu0 0.0
        %8499 = vmatpush1.msra.mxu0 0.0
        %8500 = vmatprep.subr.mxu0 0.0
        %8501 = vmatpush1.msra.mxu0 0.0
        %8502 = vmatprep.subr.mxu0 0.0
        %8503 = vmatpush1.msra.mxu0 0.0
        %8504 = vmatprep.subr.mxu0 0.0
        %8505 = vmatpush1.msra.mxu0 0.0
        %8506 = vmatprep.subr.mxu0 0.0
        %8507 = vmatpush1.msra.mxu0 0.0
        %8508 = vmatprep.subr.mxu0 0.0
        %8509 = vmatpush1.msra.mxu0 0.0
        %8510 = vmatprep.subr.mxu0 0.0
        %8511 = vmatpush1.msra.mxu0 0.0
        %8512 = vmatprep.subr.mxu0 0.0
        %8513 = vmatpush1.msra.mxu0 0.0
        %8514 = vmatprep.subr.mxu0 0.0
        %8515 = vmatpush1.msra.mxu0 0.0
        %8516 = vmatprep.subr.mxu0 0.0
        %8517 = vmatpush1.msra.mxu0 0.0
        %8518 = vmatprep.subr.mxu0 0.0
        %8519 = vmatpush1.msra.mxu0 0.0
        %8520 = vmatprep.subr.mxu0 0.0
        %8521 = vmatpush1.msra.mxu0 0.0
        %8522 = vmatprep.subr.mxu0 0.0
        %8523 = vmatpush1.msra.mxu0 0.0
        %8524 = vmatprep.subr.mxu0 0.0
        %8525 = vmatpush1.msra.mxu0 0.0
        %8526 = vmatprep.subr.mxu0 0.0
        %8527 = vmatpush1.msra.mxu0 0.0
        %8528 = vmatprep.subr.mxu0 0.0
        %8529 = vmatpush1.msra.mxu0 0.0
        %8530 = vmatprep.subr.mxu0 0.0
        %8531 = vmatpush1.msra.mxu0 0.0
        %8532 = vmatprep.subr.mxu0 0.0
        %8533 = vmatpush1.msra.mxu0 0.0
        %8534 = vmatprep.subr.mxu0 0.0
        %8535 = vmatpush1.msra.mxu0 0.0
        %8536 = vmatprep.subr.mxu0 0.0
        %8537 = vmatpush1.msra.mxu0 0.0
        %8538 = vmatprep.subr.mxu0 0.0
        %8539 = vmatpush1.msra.mxu0 0.0
        %8540 = vmatprep.subr.mxu0 0.0
        %8541 = vmatpush1.msra.mxu0 0.0
        %8542 = vmatprep.subr.mxu0 0.0
        %8543 = vmatpush1.msra.mxu0 0.0
        %8544 = vmatprep.mubr.f32.mxu0 0.0
        %8545 = vmatmul.mubr.f32.gmra.mrb[0].mxu0 %v7966
        %v8546 = vpop.f32.mrb[0].mxu0
        %v8547 = vadd.f32 %v8322, %v8546
        %v8548 = vpop.f32.mrb[0].mxu0
        %8549 = vmatprep.mubr.f32.mxu0 0.0
        %8550 = vmatmul.mubr.f32.gmra.mrb[0].mxu0 %v7968
        %v8551 = vpop.f32.mrb[0].mxu0
        %v8552 = vadd.f32 %v8327, %v8551
        %v8553 = vpop.f32.mrb[0].mxu0
        %8554 = vmatprep.mubr.f32.mxu0 0.0
        %8555 = vmatmul.mubr.f32.gmra.mrb[0].mxu0 %v7970
        %v8556 = vpop.f32.mrb[0].mxu0
        %v8557 = vadd.f32 %v8332, %v8556
        %v8558 = vpop.f32.mrb[0].mxu0
        %8559 = vmatprep.mubr.f32.mxu0 0.0
        %8560 = vmatmul.mubr.f32.gmra.mrb[0].mxu0 %v7972
        %v8561 = vpop.f32.mrb[0].mxu0
        %v8562 = vadd.f32 %v8337, %v8561
        %v8563 = vpop.f32.mrb[0].mxu0
        %8564 = vmatprep.mubr.f32.mxu0 0.0
        %8565 = vmatmul.mubr.f32.gmra.mrb[0].mxu0 %v7974
        %v8566 = vpop.f32.mrb[0].mxu0
        %v8567 = vadd.f32 %v8342, %v8566
        %v8568 = vpop.f32.mrb[0].mxu0
        %8569 = vmatprep.mubr.f32.mxu0 0.0
        %8570 = vmatmul.mubr.f32.gmra.mrb[0].mxu0 %v7976
        %v8571 = vpop.f32.mrb[0].mxu0
        %v8572 = vadd.f32 %v8347, %v8571
        %v8573 = vpop.f32.mrb[0].mxu0
        %8574 = vmatprep.mubr.f32.mxu0 0.0
        %8575 = vmatmul.mubr.f32.gmra.mrb[0].mxu0 %v7978
        %v8576 = vpop.f32.mrb[0].mxu0
        %v8577 = vadd.f32 %v8352, %v8576
        %v8578 = vpop.f32.mrb[0].mxu0
        %8579 = vmatprep.mubr.f32.mxu0 0.0
        %8580 = vmatmul.mubr.f32.gmra.mrb[0].mxu0 %v7980
        %v8581 = vpop.f32.mrb[0].mxu0
        %v8582 = vadd.f32 %v8357, %v8581
        %v8583 = vpop.f32.mrb[0].mxu0
        %8584 = vmatprep.mubr.f32.mxu0 0.0
        %8585 = vmatmul.mubr.f32.gmra.mrb[0].mxu0 %v7982
        %v8586 = vpop.f32.mrb[0].mxu0
        %v8587 = vadd.f32 %v8362, %v8586
        %v8588 = vpop.f32.mrb[0].mxu0
        %8589 = vmatprep.mubr.f32.mxu0 0.0
        %8590 = vmatmul.mubr.f32.gmra.mrb[0].mxu0 %v7984
        %v8591 = vpop.f32.mrb[0].mxu0
        %v8592 = vadd.f32 %v8367, %v8591
        %v8593 = vpop.f32.mrb[0].mxu0
        %8594 = vmatprep.mubr.f32.mxu0 0.0
        %8595 = vmatmul.mubr.f32.gmra.mrb[0].mxu0 %v7986
        %v8596 = vpop.f32.mrb[0].mxu0
        %v8597 = vadd.f32 %v8372, %v8596
        %v8598 = vpop.f32.mrb[0].mxu0
        %8599 = vmatprep.mubr.f32.mxu0 0.0
        %8600 = vmatmul.mubr.f32.gmra.mrb[0].mxu0 %v7988
        %v8601 = vpop.f32.mrb[0].mxu0
        %v8602 = vadd.f32 %v8377, %v8601
        %v8603 = vpop.f32.mrb[0].mxu0
        %8604 = vmatprep.mubr.f32.mxu0 0.0
        %8605 = vmatmul.mubr.f32.gmra.mrb[0].mxu0 %v7990
        %v8606 = vpop.f32.mrb[0].mxu0
        %v8607 = vadd.f32 %v8382, %v8606
        %v8608 = vpop.f32.mrb[0].mxu0
        %8609 = vmatprep.mubr.f32.mxu0 0.0
        %8610 = vmatmul.mubr.f32.gmra.mrb[0].mxu0 %v7992
        %v8611 = vpop.f32.mrb[0].mxu0
        %v8612 = vadd.f32 %v8387, %v8611
        %v8613 = vpop.f32.mrb[0].mxu0
        %8614 = vmatprep.mubr.f32.mxu0 0.0
        %8615 = vmatmul.mubr.f32.gmra.mrb[0].mxu0 %v7994
        %v8616 = vpop.f32.mrb[0].mxu0
        %v8617 = vadd.f32 %v8392, %v8616
        %v8618 = vpop.f32.mrb[0].mxu0
        %8619 = vmatprep.mubr.f32.mxu0 0.0
        %8620 = vmatmul.mubr.f32.gmra.mrb[0].mxu0 %v7996
        %v8621 = vpop.f32.mrb[0].mxu0
        %v8622 = vadd.f32 %v8397, %v8621
        %v8623 = vpop.f32.mrb[0].mxu0
        %8624 = vmatprep.mubr.f32.mxu0 0.0
        %8625 = vmatmul.mubr.f32.gmra.mrb[0].mxu0 %v7998
        %v8626 = vpop.f32.mrb[0].mxu0
        %v8627 = vadd.f32 %v8402, %v8626
        %v8628 = vpop.f32.mrb[0].mxu0
        %8629 = vmatprep.mubr.f32.mxu0 0.0
        %8630 = vmatmul.mubr.f32.gmra.mrb[0].mxu0 %v8000
        %v8631 = vpop.f32.mrb[0].mxu0
        %v8632 = vadd.f32 %v8407, %v8631
        %v8633 = vpop.f32.mrb[0].mxu0
        %8634 = vmatprep.mubr.f32.mxu0 0.0
        %8635 = vmatmul.mubr.f32.gmra.mrb[0].mxu0 %v8002
        %v8636 = vpop.f32.mrb[0].mxu0
        %v8637 = vadd.f32 %v8412, %v8636
        %v8638 = vpop.f32.mrb[0].mxu0
        %8639 = vmatprep.mubr.f32.mxu0 0.0
        %8640 = vmatmul.mubr.f32.gmra.mrb[0].mxu0 %v8004
        %v8641 = vpop.f32.mrb[0].mxu0
        %v8642 = vadd.f32 %v8417, %v8641
        %v8643 = vpop.f32.mrb[0].mxu0
        %8644 = vmatprep.mubr.f32.mxu0 0.0
        %8645 = vmatmul.mubr.f32.gmra.mrb[0].mxu0 %v8006
        %v8646 = vpop.f32.mrb[0].mxu0
        %v8647 = vadd.f32 %v8422, %v8646
        %v8648 = vpop.f32.mrb[0].mxu0
        %8649 = vmatprep.mubr.f32.mxu0 0.0
        %8650 = vmatmul.mubr.f32.gmra.mrb[0].mxu0 %v8008
        %v8651 = vpop.f32.mrb[0].mxu0
        %v8652 = vadd.f32 %v8427, %v8651
        %v8653 = vpop.f32.mrb[0].mxu0
        %8654 = vmatprep.mubr.f32.mxu0 0.0
        %8655 = vmatmul.mubr.f32.gmra.mrb[0].mxu0 %v8010
        %v8656 = vpop.f32.mrb[0].mxu0
        %v8657 = vadd.f32 %v8432, %v8656
        %v8658 = vpop.f32.mrb[0].mxu0
        %8659 = vmatprep.mubr.f32.mxu0 0.0
        %8660 = vmatmul.mubr.f32.gmra.mrb[0].mxu0 %v8012
        %v8661 = vpop.f32.mrb[0].mxu0
        %v8662 = vadd.f32 %v8437, %v8661
        %v8663 = vpop.f32.mrb[0].mxu0
        %8664 = vmatprep.mubr.f32.mxu0 0.0
        %8665 = vmatmul.mubr.f32.gmra.mrb[0].mxu0 %v8014
        %v8666 = vpop.f32.mrb[0].mxu0
        %v8667 = vadd.f32 %v8442, %v8666
        %v8668 = vpop.f32.mrb[0].mxu0
        %8669 = vmatprep.mubr.f32.mxu0 0.0
        %8670 = vmatmul.mubr.f32.gmra.mrb[0].mxu0 %v8016
        %v8671 = vpop.f32.mrb[0].mxu0
        %v8672 = vadd.f32 %v8447, %v8671
        %v8673 = vpop.f32.mrb[0].mxu0
        %8674 = vmatprep.mubr.f32.mxu0 0.0
        %8675 = vmatmul.mubr.f32.gmra.mrb[0].mxu0 %v8018
        %v8676 = vpop.f32.mrb[0].mxu0
        %v8677 = vadd.f32 %v8452, %v8676
        %v8678 = vpop.f32.mrb[0].mxu0
        %8679 = vmatprep.mubr.f32.mxu0 0.0
        %8680 = vmatmul.mubr.f32.gmra.mrb[0].mxu0 %v8020
        %v8681 = vpop.f32.mrb[0].mxu0
        %v8682 = vadd.f32 %v8457, %v8681
        %v8683 = vpop.f32.mrb[0].mxu0
        %8684 = vmatprep.mubr.f32.mxu0 0.0
        %8685 = vmatmul.mubr.f32.gmra.mrb[0].mxu0 %v8022
        %v8686 = vpop.f32.mrb[0].mxu0
        %v8687 = vadd.f32 %v8462, %v8686
        %v8688 = vpop.f32.mrb[0].mxu0
        %8689 = vmatprep.mubr.f32.mxu0 0.0
        %8690 = vmatmul.mubr.f32.gmra.mrb[0].mxu0 %v8024
        %v8691 = vpop.f32.mrb[0].mxu0
        %v8692 = vadd.f32 %v8467, %v8691
        %v8693 = vpop.f32.mrb[0].mxu0
        %8694 = vmatprep.mubr.f32.mxu0 0.0
        %8695 = vmatmul.mubr.f32.gmra.mrb[0].mxu0 %v8026
        %v8696 = vpop.f32.mrb[0].mxu0
        %v8697 = vadd.f32 %v8472, %v8696
        %v8698 = vpop.f32.mrb[0].mxu0
        %8699 = vmatprep.mubr.f32.mxu0 0.0
        %8700 = vmatmul.mubr.f32.gmra.mrb[0].mxu0 %v8028
        %v8701 = vpop.f32.mrb[0].mxu0
        %v8702 = vadd.f32 %v8477, %v8701
        %v8703 = vpop.f32.mrb[0].mxu0
        %8704 = vdwg.mxu0
        %8705 = vst [vmem:[%s438] sm:$0xff] %v8547
        %8706 = vst [vmem:[%s438 + $0x8] sm:$0xff] %v8552
        %8707 = vst [vmem:[%s438 + $0x10] sm:$0xff] %v8557
        %8708 = vst [vmem:[%s438 + $0x18] sm:$0xff] %v8562
        %8709 = vst [vmem:[%s438 + $0x20] sm:$0xff] %v8567
        %8710 = vst [vmem:[%s438 + $0x28] sm:$0xff] %v8572
        %8711 = vst [vmem:[%s438 + $0x30] sm:$0xff] %v8577
        %8712 = vst [vmem:[%s438 + $0x38] sm:$0xff] %v8582
        %8713 = vst [vmem:[%s438 + $0x40] sm:$0xff] %v8587
        %8714 = vst [vmem:[%s438 + $0x48] sm:$0xff] %v8592
        %8715 = vst [vmem:[%s438 + $0x50] sm:$0xff] %v8597
        %8716 = vst [vmem:[%s438 + $0x58] sm:$0xff] %v8602
        %8717 = vst [vmem:[%s438 + $0x60] sm:$0xff] %v8607
        %8718 = vst [vmem:[%s438 + $0x68] sm:$0xff] %v8612
        %8719 = vst [vmem:[%s438 + $0x70] sm:$0xff] %v8617
        %8720 = vst [vmem:[%s438 + $0x78] sm:$0xff] %v8622
        %8721 = vst [vmem:[%s438 + $0x80] sm:$0xff] %v8627
        %8722 = vst [vmem:[%s438 + $0x88] sm:$0xff] %v8632
        %8723 = vst [vmem:[%s438 + $0x90] sm:$0xff] %v8637
        %8724 = vst [vmem:[%s438 + $0x98] sm:$0xff] %v8642
        %8725 = vst [vmem:[%s438 + $0xa0] sm:$0xff] %v8647
        %8726 = vst [vmem:[%s438 + $0xa8] sm:$0xff] %v8652
        %8727 = vst [vmem:[%s438 + $0xb0] sm:$0xff] %v8657
        %8728 = vst [vmem:[%s438 + $0xb8] sm:$0xff] %v8662
        %8729 = vst [vmem:[%s438 + $0xc0] sm:$0xff] %v8667
        %8730 = vst [vmem:[%s438 + $0xc8] sm:$0xff] %v8672
        %8731 = vst [vmem:[%s438 + $0xd0] sm:$0xff] %v8677
        %8732 = vst [vmem:[%s438 + $0xd8] sm:$0xff] %v8682
        %8733 = vst [vmem:[%s438 + $0xe0] sm:$0xff] %v8687
        %8734 = vst [vmem:[%s438 + $0xe8] sm:$0xff] %v8692
        %8735 = vst [vmem:[%s438 + $0xf0] sm:$0xff] %v8697
        %8736 = vst [vmem:[%s438 + $0xf8] sm:$0xff] %v8702
        %s8737 = scalar_lea.vmem [#allocation5], 24
        %8738 = vst [vmem:[%s8737 + $0x1] sm:$0xff] %v8547
        %8739 = vst [vmem:[%s8737 + $0x9] sm:$0xff] %v8552
        %8740 = vst [vmem:[%s8737 + $0x19] sm:$0xff] %v8557
        %8741 = vst [vmem:[%s8737 + $0x21] sm:$0xff] %v8562
        %8742 = vst [vmem:[%s8737 + $0x31] sm:$0xff] %v8567
        %8743 = vst [vmem:[%s8737 + $0x39] sm:$0xff] %v8572
        %8744 = vst [vmem:[%s8737 + $0x49] sm:$0xff] %v8577
        %8745 = vst [vmem:[%s8737 + $0x51] sm:$0xff] %v8582
        %8746 = vst [vmem:[%s8737 + $0x61] sm:$0xff] %v8587
        %8747 = vst [vmem:[%s8737 + $0x69] sm:$0xff] %v8592
        %8748 = vst [vmem:[%s8737 + $0x79] sm:$0xff] %v8597
        %8749 = vst [vmem:[%s8737 + $0x81] sm:$0xff] %v8602
        %8750 = vst [vmem:[%s8737 + $0x91] sm:$0xff] %v8607
        %8751 = vst [vmem:[%s8737 + $0x99] sm:$0xff] %v8612
        %8752 = vst [vmem:[%s8737 + $0xa9] sm:$0xff] %v8617
        %8753 = vst [vmem:[%s8737 + $0xb1] sm:$0xff] %v8622
        %8754 = vst [vmem:[%s8737 + $0xc1] sm:$0xff] %v8627
        %8755 = vst [vmem:[%s8737 + $0xc9] sm:$0xff] %v8632
        %8756 = vst [vmem:[%s8737 + $0xd9] sm:$0xff] %v8637
        %8757 = vst [vmem:[%s8737 + $0xe1] sm:$0xff] %v8642
        %8758 = vst [vmem:[%s8737 + $0xf1] sm:$0xff] %v8647
        %8759 = vst [vmem:[%s8737 + $0xf9] sm:$0xff] %v8652
        %8760 = vst [vmem:[%s8737 + $0x109] sm:$0xff] %v8657
        %8761 = vst [vmem:[%s8737 + $0x111] sm:$0xff] %v8662
        %8762 = vst [vmem:[%s8737 + $0x121] sm:$0xff] %v8667
        %8763 = vst [vmem:[%s8737 + $0x129] sm:$0xff] %v8672
        %8764 = vst [vmem:[%s8737 + $0x139] sm:$0xff] %v8677
        %8765 = vst [vmem:[%s8737 + $0x141] sm:$0xff] %v8682
        %8766 = vst [vmem:[%s8737 + $0x151] sm:$0xff] %v8687
        %8767 = vst [vmem:[%s8737 + $0x159] sm:$0xff] %v8692
        %8768 = vst [vmem:[%s8737 + $0x169] sm:$0xff] %v8697
        %8769 = vst [vmem:[%s8737 + $0x171] sm:$0xff] %v8702
        %v8770 = vld [vmem:[#allocation5] ss:$2 sm:$0xff]
        %s8771 = scalar_lea.vmem [#allocation5], 24
        %v8772 = vld [vmem:[%s8771] ss:$2 sm:$0xff]
        %s8773 = scalar_lea.vmem [#allocation5], 48
        %v8774 = vld [vmem:[%s8773] ss:$2 sm:$0xff]
        %s8775 = scalar_lea.vmem [#allocation5], 72
        %v8776 = vld [vmem:[%s8775] ss:$2 sm:$0xff]
        %s8777 = scalar_lea.vmem [#allocation5], 96
        %v8778 = vld [vmem:[%s8777] ss:$2 sm:$0xff]
        %s8779 = scalar_lea.vmem [#allocation5], 120
        %v8780 = vld [vmem:[%s8779] ss:$2 sm:$0xff]
        %s8781 = scalar_lea.vmem [#allocation5], 144
        %v8782 = vld [vmem:[%s8781] ss:$2 sm:$0xff]
        %s8783 = scalar_lea.vmem [#allocation5], 168
        %v8784 = vld [vmem:[%s8783] ss:$2 sm:$0xff]
        %s8785 = scalar_lea.vmem [#allocation5], 192
        %v8786 = vld [vmem:[%s8785] ss:$2 sm:$0xff]
        %s8787 = scalar_lea.vmem [#allocation5], 216
        %v8788 = vld [vmem:[%s8787] ss:$2 sm:$0xff]
        %s8789 = scalar_lea.vmem [#allocation5], 240
        %v8790 = vld [vmem:[%s8789] ss:$2 sm:$0xff]
        %s8791 = scalar_lea.vmem [#allocation5], 264
        %v8792 = vld [vmem:[%s8791] ss:$2 sm:$0xff]
        %s8793 = scalar_lea.vmem [#allocation5], 288
        %v8794 = vld [vmem:[%s8793] ss:$2 sm:$0xff]
        %s8795 = scalar_lea.vmem [#allocation5], 312
        %v8796 = vld [vmem:[%s8795] ss:$2 sm:$0xff]
        %s8797 = scalar_lea.vmem [#allocation5], 336
        %v8798 = vld [vmem:[%s8797] ss:$2 sm:$0xff]
        %s8799 = scalar_lea.vmem [#allocation5], 360
        %v8800 = vld [vmem:[%s8799] ss:$2 sm:$0xff]
        %s8801 = scalar_lea.vmem [#allocation5], 384
        %v8802 = vld [vmem:[%s8801] ss:$2 sm:$0xff]
        %s8803 = scalar_lea.vmem [#allocation5], 1
        %v8804 = vld [vmem:[%s8803] ss:$2 sm:$0xff]
        %s8805 = scalar_lea.vmem [#allocation5], 25
        %v8806 = vld [vmem:[%s8805] ss:$2 sm:$0xff]
        %s8807 = scalar_lea.vmem [#allocation5], 49
        %v8808 = vld [vmem:[%s8807] ss:$2 sm:$0xff]
        %s8809 = scalar_lea.vmem [#allocation5], 73
        %v8810 = vld [vmem:[%s8809] ss:$2 sm:$0xff]
        %s8811 = scalar_lea.vmem [#allocation5], 97
        %v8812 = vld [vmem:[%s8811] ss:$2 sm:$0xff]
        %s8813 = scalar_lea.vmem [#allocation5], 121
        %v8814 = vld [vmem:[%s8813] ss:$2 sm:$0xff]
        %s8815 = scalar_lea.vmem [#allocation5], 145
        %v8816 = vld [vmem:[%s8815] ss:$2 sm:$0xff]
        %s8817 = scalar_lea.vmem [#allocation5], 169
        %v8818 = vld [vmem:[%s8817] ss:$2 sm:$0xff]
        %s8819 = scalar_lea.vmem [#allocation5], 193
        %v8820 = vld [vmem:[%s8819] ss:$2 sm:$0xff]
        %s8821 = scalar_lea.vmem [#allocation5], 217
        %v8822 = vld [vmem:[%s8821] ss:$2 sm:$0xff]
        %s8823 = scalar_lea.vmem [#allocation5], 241
        %v8824 = vld [vmem:[%s8823] ss:$2 sm:$0xff]
        %s8825 = scalar_lea.vmem [#allocation5], 265
        %v8826 = vld [vmem:[%s8825] ss:$2 sm:$0xff]
        %s8827 = scalar_lea.vmem [#allocation5], 289
        %v8828 = vld [vmem:[%s8827] ss:$2 sm:$0xff]
        %s8829 = scalar_lea.vmem [#allocation5], 313
        %v8830 = vld [vmem:[%s8829] ss:$2 sm:$0xff]
        %s8831 = scalar_lea.vmem [#allocation5], 337
        %v8832 = vld [vmem:[%s8831] ss:$2 sm:$0xff]
        %s8833 = scalar_lea.vmem [#allocation5], 361
        %v8834 = vld [vmem:[%s8833] ss:$2 sm:$0xff]
        %s8835 = scalar_lea.vmem [#allocation5], 385
        %v8836 = vld [vmem:[%s8835] ss:$2 sm:$0xff]
        %s8837 = scalar_lea.vmem [#allocation5], 2
        %v8838 = vld [vmem:[%s8837] ss:$2 sm:$0xff]
        %s8839 = scalar_lea.vmem [#allocation5], 26
        %v8840 = vld [vmem:[%s8839] ss:$2 sm:$0xff]
        %s8841 = scalar_lea.vmem [#allocation5], 50
        %v8842 = vld [vmem:[%s8841] ss:$2 sm:$0xff]
        %s8843 = scalar_lea.vmem [#allocation5], 74
        %v8844 = vld [vmem:[%s8843] ss:$2 sm:$0xff]
        %s8845 = scalar_lea.vmem [#allocation5], 98
        %v8846 = vld [vmem:[%s8845] ss:$2 sm:$0xff]
        %s8847 = scalar_lea.vmem [#allocation5], 122
        %v8848 = vld [vmem:[%s8847] ss:$2 sm:$0xff]
        %s8849 = scalar_lea.vmem [#allocation5], 146
        %v8850 = vld [vmem:[%s8849] ss:$2 sm:$0xff]
        %s8851 = scalar_lea.vmem [#allocation5], 170
        %v8852 = vld [vmem:[%s8851] ss:$2 sm:$0xff]
        %s8853 = scalar_lea.vmem [#allocation5], 194
        %v8854 = vld [vmem:[%s8853] ss:$2 sm:$0xff]
        %s8855 = scalar_lea.vmem [#allocation5], 218
        %v8856 = vld [vmem:[%s8855] ss:$2 sm:$0xff]
        %s8857 = scalar_lea.vmem [#allocation5], 242
        %v8858 = vld [vmem:[%s8857] ss:$2 sm:$0xff]
        %s8859 = scalar_lea.vmem [#allocation5], 266
        %v8860 = vld [vmem:[%s8859] ss:$2 sm:$0xff]
        %s8861 = scalar_lea.vmem [#allocation5], 290
        %v8862 = vld [vmem:[%s8861] ss:$2 sm:$0xff]
        %s8863 = scalar_lea.vmem [#allocation5], 314
        %v8864 = vld [vmem:[%s8863] ss:$2 sm:$0xff]
        %s8865 = scalar_lea.vmem [#allocation5], 338
        %v8866 = vld [vmem:[%s8865] ss:$2 sm:$0xff]
        %s8867 = scalar_lea.vmem [#allocation5], 362
        %v8868 = vld [vmem:[%s8867] ss:$2 sm:$0xff]
        %s8869 = scalar_lea.vmem [#allocation5], 386
        %v8870 = vld [vmem:[%s8869] ss:$2 sm:$0xff]
        %v8871 = vld [vmem:[%s10] sm:$0xff]
        %v8872 = vld [vmem:[%s10 + $0x8] sm:$0xff]
        %v8873 = vld [vmem:[%s10 + $0x10] sm:$0xff]
        %v8874 = vld [vmem:[%s10 + $0x18] sm:$0xff]
        %v8875 = vld [vmem:[%s10 + $0x20] sm:$0xff]
        %v8876 = vld [vmem:[%s10 + $0x28] sm:$0xff]
        %v8877 = vld [vmem:[%s10 + $0x30] sm:$0xff]
        %v8878 = vld [vmem:[%s10 + $0x38] sm:$0xff]
        %v8879 = vld [vmem:[%s10 + $0x40] sm:$0xff]
        %v8880 = vld [vmem:[%s10 + $0x48] sm:$0xff]
        %v8881 = vld [vmem:[%s10 + $0x50] sm:$0xff]
        %v8882 = vld [vmem:[%s10 + $0x58] sm:$0xff]
        %v8883 = vld [vmem:[%s10 + $0x60] sm:$0xff]
        %v8884 = vld [vmem:[%s10 + $0x68] sm:$0xff]
        %v8885 = vld [vmem:[%s10 + $0x70] sm:$0xff]
        %v8886 = vld [vmem:[%s10 + $0x78] sm:$0xff]
        %v8887 = vld [vmem:[%s10 + $0x80] sm:$0xff]
        %v8888 = vld [vmem:[%s10 + $0x88] sm:$0xff]
        %v8889 = vld [vmem:[%s10 + $0x90] sm:$0xff]
        %v8890 = vld [vmem:[%s10 + $0x98] sm:$0xff]
        %v8891 = vld [vmem:[%s10 + $0xa0] sm:$0xff]
        %v8892 = vld [vmem:[%s10 + $0xa8] sm:$0xff]
        %v8893 = vld [vmem:[%s10 + $0xb0] sm:$0xff]
        %v8894 = vld [vmem:[%s10 + $0xb8] sm:$0xff]
        %v8895 = vld [vmem:[%s10 + $0xc0] sm:$0xff]
        %v8896 = vld [vmem:[%s10 + $0xc8] sm:$0xff]
        %v8897 = vld [vmem:[%s10 + $0xd0] sm:$0xff]
        %v8898 = vld [vmem:[%s10 + $0xd8] sm:$0xff]
        %v8899 = vld [vmem:[%s10 + $0xe0] sm:$0xff]
        %v8900 = vld [vmem:[%s10 + $0xe8] sm:$0xff]
        %v8901 = vld [vmem:[%s10 + $0xf0] sm:$0xff]
        %v8902 = vld [vmem:[%s10 + $0xf8] sm:$0xff]
        %v8903 = vld [vmem:[%s10 + $0x100] sm:$0xff]
        %v8904 = vld [vmem:[%s10 + $0x108] sm:$0xff]
        %v8905 = vld [vmem:[%s10 + $0x110] sm:$0xff]
        %v8906 = vld [vmem:[%s10 + $0x118] sm:$0xff]
        %v8907 = vld [vmem:[%s10 + $0x120] sm:$0xff]
        %v8908 = vld [vmem:[%s10 + $0x128] sm:$0xff]
        %v8909 = vld [vmem:[%s10 + $0x130] sm:$0xff]
        %v8910 = vld [vmem:[%s10 + $0x138] sm:$0xff]
        %v8911 = vld [vmem:[%s10 + $0x140] sm:$0xff]
        %v8912 = vld [vmem:[%s10 + $0x148] sm:$0xff]
        %v8913 = vld [vmem:[%s10 + $0x150] sm:$0xff]
        %v8914 = vld [vmem:[%s10 + $0x158] sm:$0xff]
        %v8915 = vld [vmem:[%s10 + $0x160] sm:$0xff]
        %v8916 = vld [vmem:[%s10 + $0x168] sm:$0xff]
        %v8917 = vld [vmem:[%s10 + $0x170] sm:$0xff]
        %v8918 = vld [vmem:[%s10 + $0x178] sm:$0xff]
        %v8919 = vld [vmem:[%s10 + $0x180] sm:$0xff]
        %v8920 = vld [vmem:[%s10 + $0x188] sm:$0xff]
        %v8921 = vld [vmem:[%s10 + $0x190] sm:$0xff]
        %v8922 = vld [vmem:[%s10 + $0x198] sm:$0xff]
        %v8923 = vld [vmem:[%s10 + $0x1a0] sm:$0xff]
        %v8924 = vld [vmem:[%s10 + $0x1a8] sm:$0xff]
        %v8925 = vld [vmem:[%s10 + $0x1b0] sm:$0xff]
        %v8926 = vld [vmem:[%s10 + $0x1b8] sm:$0xff]
        %v8927 = vld [vmem:[%s10 + $0x1c0] sm:$0xff]
        %v8928 = vld [vmem:[%s10 + $0x1c8] sm:$0xff]
        %v8929 = vld [vmem:[%s10 + $0x1d0] sm:$0xff]
        %v8930 = vld [vmem:[%s10 + $0x1d8] sm:$0xff]
        %v8931 = vld [vmem:[%s10 + $0x1e0] sm:$0xff]
        %v8932 = vld [vmem:[%s10 + $0x1e8] sm:$0xff]
        %v8933 = vld [vmem:[%s10 + $0x1f0] sm:$0xff]
        %v8934 = vld [vmem:[%s10 + $0x1f8] sm:$0xff]
        %v8935 = vld [vmem:[%s10 + $0x200] sm:$0xff]
        %v8936 = vld [vmem:[%s10 + $0x208] sm:$0xff]
        %v8937 = vld [vmem:[%s10 + $0x210] sm:$0xff]
        %v8938 = vld [vmem:[%s10 + $0x218] sm:$0xff]
        %v8939 = vld [vmem:[%s10 + $0x220] sm:$0xff]
        %v8940 = vld [vmem:[%s10 + $0x228] sm:$0xff]
        %v8941 = vld [vmem:[%s10 + $0x230] sm:$0xff]
        %v8942 = vld [vmem:[%s10 + $0x238] sm:$0xff]
        %v8943 = vld [vmem:[%s10 + $0x240] sm:$0xff]
        %v8944 = vld [vmem:[%s10 + $0x248] sm:$0xff]
        %v8945 = vld [vmem:[%s10 + $0x250] sm:$0xff]
        %v8946 = vld [vmem:[%s10 + $0x258] sm:$0xff]
        %v8947 = vld [vmem:[%s10 + $0x260] sm:$0xff]
        %v8948 = vld [vmem:[%s10 + $0x268] sm:$0xff]
        %v8949 = vld [vmem:[%s10 + $0x270] sm:$0xff]
        %v8950 = vld [vmem:[%s10 + $0x278] sm:$0xff]
        %v8951 = vld [vmem:[%s10 + $0x280] sm:$0xff]
        %v8952 = vld [vmem:[%s10 + $0x288] sm:$0xff]
        %v8953 = vld [vmem:[%s10 + $0x290] sm:$0xff]
        %v8954 = vld [vmem:[%s10 + $0x298] sm:$0xff]
        %v8955 = vld [vmem:[%s10 + $0x2a0] sm:$0xff]
        %v8956 = vld [vmem:[%s10 + $0x2a8] sm:$0xff]
        %v8957 = vld [vmem:[%s10 + $0x2b0] sm:$0xff]
        %v8958 = vld [vmem:[%s10 + $0x2b8] sm:$0xff]
        %v8959 = vld [vmem:[%s10 + $0x2c0] sm:$0xff]
        %v8960 = vld [vmem:[%s10 + $0x2c8] sm:$0xff]
        %v8961 = vld [vmem:[%s10 + $0x2d0] sm:$0xff]
        %v8962 = vld [vmem:[%s10 + $0x2d8] sm:$0xff]
        %v8963 = vld [vmem:[%s10 + $0x2e0] sm:$0xff]
        %v8964 = vld [vmem:[%s10 + $0x2e8] sm:$0xff]
        %v8965 = vld [vmem:[%s10 + $0x2f0] sm:$0xff]
        %v8966 = vld [vmem:[%s10 + $0x2f8] sm:$0xff]
        %v8967 = vld [vmem:[%s10 + $0x300] sm:$0xff]
        %v8968 = vld [vmem:[%s10 + $0x308] sm:$0xff]
        %v8969 = vld [vmem:[%s10 + $0x310] sm:$0xff]
        %v8970 = vld [vmem:[%s10 + $0x318] sm:$0xff]
        %v8971 = vld [vmem:[%s10 + $0x320] sm:$0xff]
        %v8972 = vld [vmem:[%s10 + $0x328] sm:$0xff]
        %v8973 = vld [vmem:[%s10 + $0x330] sm:$0xff]
        %v8974 = vld [vmem:[%s10 + $0x338] sm:$0xff]
        %v8975 = vld [vmem:[%s10 + $0x340] sm:$0xff]
        %v8976 = vld [vmem:[%s10 + $0x348] sm:$0xff]
        %v8977 = vld [vmem:[%s10 + $0x350] sm:$0xff]
        %v8978 = vld [vmem:[%s10 + $0x358] sm:$0xff]
        %v8979 = vld [vmem:[%s10 + $0x360] sm:$0xff]
        %v8980 = vld [vmem:[%s10 + $0x368] sm:$0xff]
        %v8981 = vld [vmem:[%s10 + $0x370] sm:$0xff]
        %v8982 = vld [vmem:[%s10 + $0x378] sm:$0xff]
        %v8983 = vld [vmem:[%s10 + $0x380] sm:$0xff]
        %v8984 = vld [vmem:[%s10 + $0x388] sm:$0xff]
        %v8985 = vld [vmem:[%s10 + $0x390] sm:$0xff]
        %v8986 = vld [vmem:[%s10 + $0x398] sm:$0xff]
        %v8987 = vld [vmem:[%s10 + $0x3a0] sm:$0xff]
        %v8988 = vld [vmem:[%s10 + $0x3a8] sm:$0xff]
        %v8989 = vld [vmem:[%s10 + $0x3b0] sm:$0xff]
        %v8990 = vld [vmem:[%s10 + $0x3b8] sm:$0xff]
        %v8991 = vld [vmem:[%s10 + $0x3c0] sm:$0xff]
        %v8992 = vld [vmem:[%s10 + $0x3c8] sm:$0xff]
        %v8993 = vld [vmem:[%s10 + $0x3d0] sm:$0xff]
        %v8994 = vld [vmem:[%s10 + $0x3d8] sm:$0xff]
        %v8995 = vld [vmem:[%s10 + $0x3e0] sm:$0xff]
        %v8996 = vld [vmem:[%s10 + $0x3e8] sm:$0xff]
        %v8997 = vld [vmem:[%s10 + $0x3f0] sm:$0xff]
        %v8998 = vld [vmem:[%s10 + $0x3f8] sm:$0xff]
        %v8999 = vld [vmem:[%s10 + $0x400] sm:$0xff]
        %v9000 = vld [vmem:[%s10 + $0x408] sm:$0xff]
        %v9001 = vld [vmem:[%s10 + $0x410] sm:$0xff]
        %v9002 = vld [vmem:[%s10 + $0x418] sm:$0xff]
        %v9003 = vld [vmem:[%s10 + $0x420] sm:$0xff]
        %v9004 = vld [vmem:[%s10 + $0x428] sm:$0xff]
        %v9005 = vld [vmem:[%s10 + $0x430] sm:$0xff]
        %v9006 = vld [vmem:[%s10 + $0x438] sm:$0xff]
        %v9007 = vld [vmem:[%s10 + $0x440] sm:$0xff]
        %v9008 = vld [vmem:[%s10 + $0x448] sm:$0xff]
        %v9009 = vld [vmem:[%s10 + $0x450] sm:$0xff]
        %v9010 = vld [vmem:[%s10 + $0x458] sm:$0xff]
        %v9011 = vld [vmem:[%s10 + $0x460] sm:$0xff]
        %v9012 = vld [vmem:[%s10 + $0x468] sm:$0xff]
        %v9013 = vld [vmem:[%s10 + $0x470] sm:$0xff]
        %v9014 = vld [vmem:[%s10 + $0x478] sm:$0xff]
        %v9015 = vld [vmem:[%s11] sm:$0x1]
        %v9017 = vlaneseq
        %v9018 = vshrl.u32 %v9017, 7
        %v9019 = vsub.s32 0, %v9018
        %v9020 = vrot.slane %v9015, %v9019
        %9022 = vmatprep.subr.mxu0 0.0
        %9023 = vmatpush1.msra.mxu0 %v8871
        %9024 = vmatprep.subr.mxu0 0.0
        %9025 = vmatpush1.msra.mxu0 %v8872
        %9026 = vmatprep.subr.mxu0 0.0
        %9027 = vmatpush1.msra.mxu0 %v8873
        %9028 = vmatprep.subr.mxu0 0.0
        %9029 = vmatpush1.msra.mxu0 %v8874
        %9030 = vmatprep.subr.mxu0 0.0
        %9031 = vmatpush1.msra.mxu0 %v8875
        %9032 = vmatprep.subr.mxu0 0.0
        %9033 = vmatpush1.msra.mxu0 %v8876
        %9034 = vmatprep.subr.mxu0 0.0
        %9035 = vmatpush1.msra.mxu0 %v8877
        %9036 = vmatprep.subr.mxu0 0.0
        %9037 = vmatpush1.msra.mxu0 %v8878
        %9038 = vmatprep.subr.mxu0 0.0
        %9039 = vmatpush1.msra.mxu0 %v8879
        %9040 = vmatprep.subr.mxu0 0.0
        %9041 = vmatpush1.msra.mxu0 %v8880
        %9042 = vmatprep.subr.mxu0 0.0
        %9043 = vmatpush1.msra.mxu0 %v8881
        %9044 = vmatprep.subr.mxu0 0.0
        %9045 = vmatpush1.msra.mxu0 %v8882
        %9046 = vmatprep.subr.mxu0 0.0
        %9047 = vmatpush1.msra.mxu0 %v8883
        %9048 = vmatprep.subr.mxu0 0.0
        %9049 = vmatpush1.msra.mxu0 %v8884
        %9050 = vmatprep.subr.mxu0 0.0
        %9051 = vmatpush1.msra.mxu0 %v8885
        %9052 = vmatprep.subr.mxu0 0.0
        %9053 = vmatpush1.msra.mxu0 %v8886
        %9054 = vmatprep.subr.mxu0 0.0
        %9055 = vmatpush1.msra.mxu0 %v8887
        %9056 = vmatprep.subr.mxu0 0.0
        %9057 = vmatpush1.msra.mxu0 %v8888
        %9058 = vmatprep.subr.mxu0 0.0
        %9059 = vmatpush1.msra.mxu0 %v8889
        %9060 = vmatprep.subr.mxu0 0.0
        %9061 = vmatpush1.msra.mxu0 %v8890
        %9062 = vmatprep.subr.mxu0 0.0
        %9063 = vmatpush1.msra.mxu0 %v8891
        %9064 = vmatprep.subr.mxu0 0.0
        %9065 = vmatpush1.msra.mxu0 %v8892
        %9066 = vmatprep.subr.mxu0 0.0
        %9067 = vmatpush1.msra.mxu0 %v8893
        %9068 = vmatprep.subr.mxu0 0.0
        %9069 = vmatpush1.msra.mxu0 %v8894
        %9070 = vmatprep.subr.mxu0 0.0
        %9071 = vmatpush1.msra.mxu0 %v8895
        %9072 = vmatprep.subr.mxu0 0.0
        %9073 = vmatpush1.msra.mxu0 %v8896
        %9074 = vmatprep.subr.mxu0 0.0
        %9075 = vmatpush1.msra.mxu0 %v8897
        %9076 = vmatprep.subr.mxu0 0.0
        %9077 = vmatpush1.msra.mxu0 %v8898
        %9078 = vmatprep.subr.mxu0 0.0
        %9079 = vmatpush1.msra.mxu0 %v8899
        %9080 = vmatprep.subr.mxu0 0.0
        %9081 = vmatpush1.msra.mxu0 %v8900
        %9082 = vmatprep.subr.mxu0 0.0
        %9083 = vmatpush1.msra.mxu0 %v8901
        %9084 = vmatprep.subr.mxu0 0.0
        %9085 = vmatpush1.msra.mxu0 %v8902
        %9086 = vmatprep.mubr.f32.mxu0 %v8804
        %9087 = vmatmul.mubr.f32.gmra.mrb[0].mxu0 %v8770
        %v9088 = vpop.f32.mrb[0].mxu0
        %v9089 = vadd.f32 %v9020, %v9088
        %v9090 = vpop.f32.mrb[0].mxu0
        %9091 = vmatprep.mubr.f32.mxu0 %v8808
        %9092 = vmatmul.mubr.f32.gmra.mrb[0].mxu0 %v8774
        %v9093 = vpop.f32.mrb[0].mxu0
        %v9094 = vadd.f32 %v9020, %v9093
        %v9095 = vpop.f32.mrb[0].mxu0
        %9096 = vmatprep.mubr.f32.mxu0 %v8812
        %9097 = vmatmul.mubr.f32.gmra.mrb[0].mxu0 %v8778
        %v9098 = vpop.f32.mrb[0].mxu0
        %v9099 = vadd.f32 %v9020, %v9098
        %v9100 = vpop.f32.mrb[0].mxu0
        %9101 = vmatprep.mubr.f32.mxu0 %v8816
        %9102 = vmatmul.mubr.f32.gmra.mrb[0].mxu0 %v8782
        %v9103 = vpop.f32.mrb[0].mxu0
        %v9104 = vadd.f32 %v9020, %v9103
        %v9105 = vpop.f32.mrb[0].mxu0
        %9106 = vmatprep.mubr.f32.mxu0 %v8820
        %9107 = vmatmul.mubr.f32.gmra.mrb[0].mxu0 %v8786
        %v9108 = vpop.f32.mrb[0].mxu0
        %v9109 = vadd.f32 %v9020, %v9108
        %v9110 = vpop.f32.mrb[0].mxu0
        %9111 = vmatprep.mubr.f32.mxu0 %v8824
        %9112 = vmatmul.mubr.f32.gmra.mrb[0].mxu0 %v8790
        %v9113 = vpop.f32.mrb[0].mxu0
        %v9114 = vadd.f32 %v9020, %v9113
        %v9115 = vpop.f32.mrb[0].mxu0
        %9116 = vmatprep.mubr.f32.mxu0 %v8828
        %9117 = vmatmul.mubr.f32.gmra.mrb[0].mxu0 %v8794
        %v9118 = vpop.f32.mrb[0].mxu0
        %v9119 = vadd.f32 %v9020, %v9118
        %v9120 = vpop.f32.mrb[0].mxu0
        %9121 = vmatprep.mubr.f32.mxu0 %v8832
        %9122 = vmatmul.mubr.f32.gmra.mrb[0].mxu0 %v8798
        %v9123 = vpop.f32.mrb[0].mxu0
        %v9124 = vadd.f32 %v9020, %v9123
        %v9125 = vpop.f32.mrb[0].mxu0
        %9126 = vdwg.mxu0
        %9127 = vmatprep.subr.mxu0 0.0
        %9128 = vmatpush1.msra.mxu0 %v8903
        %9129 = vmatprep.subr.mxu0 0.0
        %9130 = vmatpush1.msra.mxu0 %v8904
        %9131 = vmatprep.subr.mxu0 0.0
        %9132 = vmatpush1.msra.mxu0 %v8905
        %9133 = vmatprep.subr.mxu0 0.0
        %9134 = vmatpush1.msra.mxu0 %v8906
        %9135 = vmatprep.subr.mxu0 0.0
        %9136 = vmatpush1.msra.mxu0 %v8907
        %9137 = vmatprep.subr.mxu0 0.0
        %9138 = vmatpush1.msra.mxu0 %v8908
        %9139 = vmatprep.subr.mxu0 0.0
        %9140 = vmatpush1.msra.mxu0 %v8909
        %9141 = vmatprep.subr.mxu0 0.0
        %9142 = vmatpush1.msra.mxu0 %v8910
        %9143 = vmatprep.subr.mxu0 0.0
        %9144 = vmatpush1.msra.mxu0 %v8911
        %9145 = vmatprep.subr.mxu0 0.0
        %9146 = vmatpush1.msra.mxu0 %v8912
        %9147 = vmatprep.subr.mxu0 0.0
        %9148 = vmatpush1.msra.mxu0 %v8913
        %9149 = vmatprep.subr.mxu0 0.0
        %9150 = vmatpush1.msra.mxu0 %v8914
        %9151 = vmatprep.subr.mxu0 0.0
        %9152 = vmatpush1.msra.mxu0 %v8915
        %9153 = vmatprep.subr.mxu0 0.0
        %9154 = vmatpush1.msra.mxu0 %v8916
        %9155 = vmatprep.subr.mxu0 0.0
        %9156 = vmatpush1.msra.mxu0 %v8917
        %9157 = vmatprep.subr.mxu0 0.0
        %9158 = vmatpush1.msra.mxu0 %v8918
        %9159 = vmatprep.subr.mxu0 0.0
        %9160 = vmatpush1.msra.mxu0 %v8919
        %9161 = vmatprep.subr.mxu0 0.0
        %9162 = vmatpush1.msra.mxu0 %v8920
        %9163 = vmatprep.subr.mxu0 0.0
        %9164 = vmatpush1.msra.mxu0 %v8921
        %9165 = vmatprep.subr.mxu0 0.0
        %9166 = vmatpush1.msra.mxu0 %v8922
        %9167 = vmatprep.subr.mxu0 0.0
        %9168 = vmatpush1.msra.mxu0 %v8923
        %9169 = vmatprep.subr.mxu0 0.0
        %9170 = vmatpush1.msra.mxu0 %v8924
        %9171 = vmatprep.subr.mxu0 0.0
        %9172 = vmatpush1.msra.mxu0 %v8925
        %9173 = vmatprep.subr.mxu0 0.0
        %9174 = vmatpush1.msra.mxu0 %v8926
        %9175 = vmatprep.subr.mxu0 0.0
        %9176 = vmatpush1.msra.mxu0 %v8927
        %9177 = vmatprep.subr.mxu0 0.0
        %9178 = vmatpush1.msra.mxu0 %v8928
        %9179 = vmatprep.subr.mxu0 0.0
        %9180 = vmatpush1.msra.mxu0 %v8929
        %9181 = vmatprep.subr.mxu0 0.0
        %9182 = vmatpush1.msra.mxu0 %v8930
        %9183 = vmatprep.subr.mxu0 0.0
        %9184 = vmatpush1.msra.mxu0 %v8931
        %9185 = vmatprep.subr.mxu0 0.0
        %9186 = vmatpush1.msra.mxu0 %v8932
        %9187 = vmatprep.subr.mxu0 0.0
        %9188 = vmatpush1.msra.mxu0 %v8933
        %9189 = vmatprep.subr.mxu0 0.0
        %9190 = vmatpush1.msra.mxu0 %v8934
        %9191 = vmatprep.mubr.f32.mxu0 %v8772
        %9192 = vmatmul.mubr.f32.gmra.mrb[0].mxu0 %v8838
        %v9193 = vpop.f32.mrb[0].mxu0
        %v9194 = vadd.f32 %v9089, %v9193
        %v9195 = vpop.f32.mrb[0].mxu0
        %9196 = vmatprep.mubr.f32.mxu0 %v8776
        %9197 = vmatmul.mubr.f32.gmra.mrb[0].mxu0 %v8842
        %v9198 = vpop.f32.mrb[0].mxu0
        %v9199 = vadd.f32 %v9094, %v9198
        %v9200 = vpop.f32.mrb[0].mxu0
        %9201 = vmatprep.mubr.f32.mxu0 %v8780
        %9202 = vmatmul.mubr.f32.gmra.mrb[0].mxu0 %v8846
        %v9203 = vpop.f32.mrb[0].mxu0
        %v9204 = vadd.f32 %v9099, %v9203
        %v9205 = vpop.f32.mrb[0].mxu0
        %9206 = vmatprep.mubr.f32.mxu0 %v8784
        %9207 = vmatmul.mubr.f32.gmra.mrb[0].mxu0 %v8850
        %v9208 = vpop.f32.mrb[0].mxu0
        %v9209 = vadd.f32 %v9104, %v9208
        %v9210 = vpop.f32.mrb[0].mxu0
        %9211 = vmatprep.mubr.f32.mxu0 %v8788
        %9212 = vmatmul.mubr.f32.gmra.mrb[0].mxu0 %v8854
        %v9213 = vpop.f32.mrb[0].mxu0
        %v9214 = vadd.f32 %v9109, %v9213
        %v9215 = vpop.f32.mrb[0].mxu0
        %9216 = vmatprep.mubr.f32.mxu0 %v8792
        %9217 = vmatmul.mubr.f32.gmra.mrb[0].mxu0 %v8858
        %v9218 = vpop.f32.mrb[0].mxu0
        %v9219 = vadd.f32 %v9114, %v9218
        %v9220 = vpop.f32.mrb[0].mxu0
        %9221 = vmatprep.mubr.f32.mxu0 %v8796
        %9222 = vmatmul.mubr.f32.gmra.mrb[0].mxu0 %v8862
        %v9223 = vpop.f32.mrb[0].mxu0
        %v9224 = vadd.f32 %v9119, %v9223
        %v9225 = vpop.f32.mrb[0].mxu0
        %9226 = vmatprep.mubr.f32.mxu0 %v8800
        %9227 = vmatmul.mubr.f32.gmra.mrb[0].mxu0 %v8866
        %v9228 = vpop.f32.mrb[0].mxu0
        %v9229 = vadd.f32 %v9124, %v9228
        %v9230 = vpop.f32.mrb[0].mxu0
        %9231 = vdwg.mxu0
        %9232 = vmatprep.subr.mxu0 0.0
        %9233 = vmatpush1.msra.mxu0 %v8935
        %9234 = vmatprep.subr.mxu0 0.0
        %9235 = vmatpush1.msra.mxu0 %v8936
        %9236 = vmatprep.subr.mxu0 0.0
        %9237 = vmatpush1.msra.mxu0 %v8937
        %9238 = vmatprep.subr.mxu0 0.0
        %9239 = vmatpush1.msra.mxu0 %v8938
        %9240 = vmatprep.subr.mxu0 0.0
        %9241 = vmatpush1.msra.mxu0 %v8939
        %9242 = vmatprep.subr.mxu0 0.0
        %9243 = vmatpush1.msra.mxu0 %v8940
        %9244 = vmatprep.subr.mxu0 0.0
        %9245 = vmatpush1.msra.mxu0 %v8941
        %9246 = vmatprep.subr.mxu0 0.0
        %9247 = vmatpush1.msra.mxu0 %v8942
        %9248 = vmatprep.subr.mxu0 0.0
        %9249 = vmatpush1.msra.mxu0 %v8943
        %9250 = vmatprep.subr.mxu0 0.0
        %9251 = vmatpush1.msra.mxu0 %v8944
        %9252 = vmatprep.subr.mxu0 0.0
        %9253 = vmatpush1.msra.mxu0 %v8945
        %9254 = vmatprep.subr.mxu0 0.0
        %9255 = vmatpush1.msra.mxu0 %v8946
        %9256 = vmatprep.subr.mxu0 0.0
        %9257 = vmatpush1.msra.mxu0 %v8947
        %9258 = vmatprep.subr.mxu0 0.0
        %9259 = vmatpush1.msra.mxu0 %v8948
        %9260 = vmatprep.subr.mxu0 0.0
        %9261 = vmatpush1.msra.mxu0 %v8949
        %9262 = vmatprep.subr.mxu0 0.0
        %9263 = vmatpush1.msra.mxu0 %v8950
        %9264 = vmatprep.subr.mxu0 0.0
        %9265 = vmatpush1.msra.mxu0 %v8951
        %9266 = vmatprep.subr.mxu0 0.0
        %9267 = vmatpush1.msra.mxu0 %v8952
        %9268 = vmatprep.subr.mxu0 0.0
        %9269 = vmatpush1.msra.mxu0 %v8953
        %9270 = vmatprep.subr.mxu0 0.0
        %9271 = vmatpush1.msra.mxu0 %v8954
        %9272 = vmatprep.subr.mxu0 0.0
        %9273 = vmatpush1.msra.mxu0 %v8955
        %9274 = vmatprep.subr.mxu0 0.0
        %9275 = vmatpush1.msra.mxu0 %v8956
        %9276 = vmatprep.subr.mxu0 0.0
        %9277 = vmatpush1.msra.mxu0 %v8957
        %9278 = vmatprep.subr.mxu0 0.0
        %9279 = vmatpush1.msra.mxu0 %v8958
        %9280 = vmatprep.subr.mxu0 0.0
        %9281 = vmatpush1.msra.mxu0 %v8959
        %9282 = vmatprep.subr.mxu0 0.0
        %9283 = vmatpush1.msra.mxu0 %v8960
        %9284 = vmatprep.subr.mxu0 0.0
        %9285 = vmatpush1.msra.mxu0 %v8961
        %9286 = vmatprep.subr.mxu0 0.0
        %9287 = vmatpush1.msra.mxu0 %v8962
        %9288 = vmatprep.subr.mxu0 0.0
        %9289 = vmatpush1.msra.mxu0 %v8963
        %9290 = vmatprep.subr.mxu0 0.0
        %9291 = vmatpush1.msra.mxu0 %v8964
        %9292 = vmatprep.subr.mxu0 0.0
        %9293 = vmatpush1.msra.mxu0 %v8965
        %9294 = vmatprep.subr.mxu0 0.0
        %9295 = vmatpush1.msra.mxu0 %v8966
        %9296 = vmatprep.mubr.f32.mxu0 %v8840
        %9297 = vmatmul.mubr.f32.gmra.mrb[0].mxu0 %v8806
        %v9298 = vpop.f32.mrb[0].mxu0
        %v9299 = vadd.f32 %v9194, %v9298
        %v9300 = vpop.f32.mrb[0].mxu0
        %9301 = vmatprep.mubr.f32.mxu0 %v8844
        %9302 = vmatmul.mubr.f32.gmra.mrb[0].mxu0 %v8810
        %v9303 = vpop.f32.mrb[0].mxu0
        %v9304 = vadd.f32 %v9199, %v9303
        %v9305 = vpop.f32.mrb[0].mxu0
        %9306 = vmatprep.mubr.f32.mxu0 %v8848
        %9307 = vmatmul.mubr.f32.gmra.mrb[0].mxu0 %v8814
        %v9308 = vpop.f32.mrb[0].mxu0
        %v9309 = vadd.f32 %v9204, %v9308
        %v9310 = vpop.f32.mrb[0].mxu0
        %9311 = vmatprep.mubr.f32.mxu0 %v8852
        %9312 = vmatmul.mubr.f32.gmra.mrb[0].mxu0 %v8818
        %v9313 = vpop.f32.mrb[0].mxu0
        %v9314 = vadd.f32 %v9209, %v9313
        %v9315 = vpop.f32.mrb[0].mxu0
        %9316 = vmatprep.mubr.f32.mxu0 %v8856
        %9317 = vmatmul.mubr.f32.gmra.mrb[0].mxu0 %v8822
        %v9318 = vpop.f32.mrb[0].mxu0
        %v9319 = vadd.f32 %v9214, %v9318
        %v9320 = vpop.f32.mrb[0].mxu0
        %9321 = vmatprep.mubr.f32.mxu0 %v8860
        %9322 = vmatmul.mubr.f32.gmra.mrb[0].mxu0 %v8826
        %v9323 = vpop.f32.mrb[0].mxu0
        %v9324 = vadd.f32 %v9219, %v9323
        %v9325 = vpop.f32.mrb[0].mxu0
        %9326 = vmatprep.mubr.f32.mxu0 %v8864
        %9327 = vmatmul.mubr.f32.gmra.mrb[0].mxu0 %v8830
        %v9328 = vpop.f32.mrb[0].mxu0
        %v9329 = vadd.f32 %v9224, %v9328
        %v9330 = vpop.f32.mrb[0].mxu0
        %9331 = vmatprep.mubr.f32.mxu0 %v8868
        %9332 = vmatmul.mubr.f32.gmra.mrb[0].mxu0 %v8834
        %v9333 = vpop.f32.mrb[0].mxu0
        %v9334 = vadd.f32 %v9229, %v9333
        %v9335 = vpop.f32.mrb[0].mxu0
        %9336 = vdwg.mxu0
        %9337 = vmatprep.subr.mxu0 0.0
        %9338 = vmatpush1.msra.mxu0 %v8967
        %9339 = vmatprep.subr.mxu0 0.0
        %9340 = vmatpush1.msra.mxu0 %v8968
        %9341 = vmatprep.subr.mxu0 0.0
        %9342 = vmatpush1.msra.mxu0 %v8969
        %9343 = vmatprep.subr.mxu0 0.0
        %9344 = vmatpush1.msra.mxu0 %v8970
        %9345 = vmatprep.subr.mxu0 0.0
        %9346 = vmatpush1.msra.mxu0 %v8971
        %9347 = vmatprep.subr.mxu0 0.0
        %9348 = vmatpush1.msra.mxu0 %v8972
        %9349 = vmatprep.subr.mxu0 0.0
        %9350 = vmatpush1.msra.mxu0 %v8973
        %9351 = vmatprep.subr.mxu0 0.0
        %9352 = vmatpush1.msra.mxu0 %v8974
        %9353 = vmatprep.subr.mxu0 0.0
        %9354 = vmatpush1.msra.mxu0 %v8975
        %9355 = vmatprep.subr.mxu0 0.0
        %9356 = vmatpush1.msra.mxu0 %v8976
        %9357 = vmatprep.subr.mxu0 0.0
        %9358 = vmatpush1.msra.mxu0 %v8977
        %9359 = vmatprep.subr.mxu0 0.0
        %9360 = vmatpush1.msra.mxu0 %v8978
        %9361 = vmatprep.subr.mxu0 0.0
        %9362 = vmatpush1.msra.mxu0 %v8979
        %9363 = vmatprep.subr.mxu0 0.0
        %9364 = vmatpush1.msra.mxu0 %v8980
        %9365 = vmatprep.subr.mxu0 0.0
        %9366 = vmatpush1.msra.mxu0 %v8981
        %9367 = vmatprep.subr.mxu0 0.0
        %9368 = vmatpush1.msra.mxu0 %v8982
        %9369 = vmatprep.subr.mxu0 0.0
        %9370 = vmatpush1.msra.mxu0 %v8983
        %9371 = vmatprep.subr.mxu0 0.0
        %9372 = vmatpush1.msra.mxu0 %v8984
        %9373 = vmatprep.subr.mxu0 0.0
        %9374 = vmatpush1.msra.mxu0 %v8985
        %9375 = vmatprep.subr.mxu0 0.0
        %9376 = vmatpush1.msra.mxu0 %v8986
        %9377 = vmatprep.subr.mxu0 0.0
        %9378 = vmatpush1.msra.mxu0 %v8987
        %9379 = vmatprep.subr.mxu0 0.0
        %9380 = vmatpush1.msra.mxu0 %v8988
        %9381 = vmatprep.subr.mxu0 0.0
        %9382 = vmatpush1.msra.mxu0 %v8989
        %9383 = vmatprep.subr.mxu0 0.0
        %9384 = vmatpush1.msra.mxu0 %v8990
        %9385 = vmatprep.subr.mxu0 0.0
        %9386 = vmatpush1.msra.mxu0 %v8991
        %9387 = vmatprep.subr.mxu0 0.0
        %9388 = vmatpush1.msra.mxu0 %v8992
        %9389 = vmatprep.subr.mxu0 0.0
        %9390 = vmatpush1.msra.mxu0 %v8993
        %9391 = vmatprep.subr.mxu0 0.0
        %9392 = vmatpush1.msra.mxu0 %v8994
        %9393 = vmatprep.subr.mxu0 0.0
        %9394 = vmatpush1.msra.mxu0 %v8995
        %9395 = vmatprep.subr.mxu0 0.0
        %9396 = vmatpush1.msra.mxu0 %v8996
        %9397 = vmatprep.subr.mxu0 0.0
        %9398 = vmatpush1.msra.mxu0 %v8997
        %9399 = vmatprep.subr.mxu0 0.0
        %9400 = vmatpush1.msra.mxu0 %v8998
        %9401 = vmatprep.mubr.f32.mxu0 %v8808
        %9402 = vmatmul.mubr.f32.gmra.mrb[0].mxu0 %v8774
        %v9403 = vpop.f32.mrb[0].mxu0
        %v9404 = vadd.f32 %v9299, %v9403
        %v9405 = vpop.f32.mrb[0].mxu0
        %9406 = vmatprep.mubr.f32.mxu0 %v8812
        %9407 = vmatmul.mubr.f32.gmra.mrb[0].mxu0 %v8778
        %v9408 = vpop.f32.mrb[0].mxu0
        %v9409 = vadd.f32 %v9304, %v9408
        %v9410 = vpop.f32.mrb[0].mxu0
        %9411 = vmatprep.mubr.f32.mxu0 %v8816
        %9412 = vmatmul.mubr.f32.gmra.mrb[0].mxu0 %v8782
        %v9413 = vpop.f32.mrb[0].mxu0
        %v9414 = vadd.f32 %v9309, %v9413
        %v9415 = vpop.f32.mrb[0].mxu0
        %9416 = vmatprep.mubr.f32.mxu0 %v8820
        %9417 = vmatmul.mubr.f32.gmra.mrb[0].mxu0 %v8786
        %v9418 = vpop.f32.mrb[0].mxu0
        %v9419 = vadd.f32 %v9314, %v9418
        %v9420 = vpop.f32.mrb[0].mxu0
        %9421 = vmatprep.mubr.f32.mxu0 %v8824
        %9422 = vmatmul.mubr.f32.gmra.mrb[0].mxu0 %v8790
        %v9423 = vpop.f32.mrb[0].mxu0
        %v9424 = vadd.f32 %v9319, %v9423
        %v9425 = vpop.f32.mrb[0].mxu0
        %9426 = vmatprep.mubr.f32.mxu0 %v8828
        %9427 = vmatmul.mubr.f32.gmra.mrb[0].mxu0 %v8794
        %v9428 = vpop.f32.mrb[0].mxu0
        %v9429 = vadd.f32 %v9324, %v9428
        %v9430 = vpop.f32.mrb[0].mxu0
        %9431 = vmatprep.mubr.f32.mxu0 %v8832
        %9432 = vmatmul.mubr.f32.gmra.mrb[0].mxu0 %v8798
        %v9433 = vpop.f32.mrb[0].mxu0
        %v9434 = vadd.f32 %v9329, %v9433
        %v9435 = vpop.f32.mrb[0].mxu0
        %9436 = vmatprep.mubr.f32.mxu0 %v8836
        %9437 = vmatmul.mubr.f32.gmra.mrb[0].mxu0 %v8802
        %v9438 = vpop.f32.mrb[0].mxu0
        %v9439 = vadd.f32 %v9334, %v9438
        %v9440 = vpop.f32.mrb[0].mxu0
        %9441 = vdwg.mxu0
        %9442 = vmatprep.subr.mxu0 0.0
        %9443 = vmatpush1.msra.mxu0 %v8999
        %9444 = vmatprep.subr.mxu0 0.0
        %9445 = vmatpush1.msra.mxu0 %v9000
        %9446 = vmatprep.subr.mxu0 0.0
        %9447 = vmatpush1.msra.mxu0 %v9001
        %9448 = vmatprep.subr.mxu0 0.0
        %9449 = vmatpush1.msra.mxu0 %v9002
        %9450 = vmatprep.subr.mxu0 0.0
        %9451 = vmatpush1.msra.mxu0 %v9003
        %9452 = vmatprep.subr.mxu0 0.0
        %9453 = vmatpush1.msra.mxu0 %v9004
        %9454 = vmatprep.subr.mxu0 0.0
        %9455 = vmatpush1.msra.mxu0 %v9005
        %9456 = vmatprep.subr.mxu0 0.0
        %9457 = vmatpush1.msra.mxu0 %v9006
        %9458 = vmatprep.subr.mxu0 0.0
        %9459 = vmatpush1.msra.mxu0 %v9007
        %9460 = vmatprep.subr.mxu0 0.0
        %9461 = vmatpush1.msra.mxu0 %v9008
        %9462 = vmatprep.subr.mxu0 0.0
        %9463 = vmatpush1.msra.mxu0 %v9009
        %9464 = vmatprep.subr.mxu0 0.0
        %9465 = vmatpush1.msra.mxu0 %v9010
        %9466 = vmatprep.subr.mxu0 0.0
        %9467 = vmatpush1.msra.mxu0 %v9011
        %9468 = vmatprep.subr.mxu0 0.0
        %9469 = vmatpush1.msra.mxu0 %v9012
        %9470 = vmatprep.subr.mxu0 0.0
        %9471 = vmatpush1.msra.mxu0 %v9013
        %9472 = vmatprep.subr.mxu0 0.0
        %9473 = vmatpush1.msra.mxu0 %v9014
        %9474 = vmatprep.subr.mxu0 0.0
        %9475 = vmatpush1.msra.mxu0 0.0
        %9476 = vmatprep.subr.mxu0 0.0
        %9477 = vmatpush1.msra.mxu0 0.0
        %9478 = vmatprep.subr.mxu0 0.0
        %9479 = vmatpush1.msra.mxu0 0.0
        %9480 = vmatprep.subr.mxu0 0.0
        %9481 = vmatpush1.msra.mxu0 0.0
        %9482 = vmatprep.subr.mxu0 0.0
        %9483 = vmatpush1.msra.mxu0 0.0
        %9484 = vmatprep.subr.mxu0 0.0
        %9485 = vmatpush1.msra.mxu0 0.0
        %9486 = vmatprep.subr.mxu0 0.0
        %9487 = vmatpush1.msra.mxu0 0.0
        %9488 = vmatprep.subr.mxu0 0.0
        %9489 = vmatpush1.msra.mxu0 0.0
        %9490 = vmatprep.subr.mxu0 0.0
        %9491 = vmatpush1.msra.mxu0 0.0
        %9492 = vmatprep.subr.mxu0 0.0
        %9493 = vmatpush1.msra.mxu0 0.0
        %9494 = vmatprep.subr.mxu0 0.0
        %9495 = vmatpush1.msra.mxu0 0.0
        %9496 = vmatprep.subr.mxu0 0.0
        %9497 = vmatpush1.msra.mxu0 0.0
        %9498 = vmatprep.subr.mxu0 0.0
        %9499 = vmatpush1.msra.mxu0 0.0
        %9500 = vmatprep.subr.mxu0 0.0
        %9501 = vmatpush1.msra.mxu0 0.0
        %9502 = vmatprep.subr.mxu0 0.0
        %9503 = vmatpush1.msra.mxu0 0.0
        %9504 = vmatprep.subr.mxu0 0.0
        %9505 = vmatpush1.msra.mxu0 0.0
        %9506 = vmatprep.mubr.f32.mxu0 0.0
        %9507 = vmatmul.mubr.f32.gmra.mrb[0].mxu0 %v8842
        %v9508 = vpop.f32.mrb[0].mxu0
        %v9509 = vadd.f32 %v9404, %v9508
        %v9510 = vpop.f32.mrb[0].mxu0
        %9511 = vmatprep.mubr.f32.mxu0 0.0
        %9512 = vmatmul.mubr.f32.gmra.mrb[0].mxu0 %v8846
        %v9513 = vpop.f32.mrb[0].mxu0
        %v9514 = vadd.f32 %v9409, %v9513
        %v9515 = vpop.f32.mrb[0].mxu0
        %9516 = vmatprep.mubr.f32.mxu0 0.0
        %9517 = vmatmul.mubr.f32.gmra.mrb[0].mxu0 %v8850
        %v9518 = vpop.f32.mrb[0].mxu0
        %v9519 = vadd.f32 %v9414, %v9518
        %v9520 = vpop.f32.mrb[0].mxu0
        %9521 = vmatprep.mubr.f32.mxu0 0.0
        %9522 = vmatmul.mubr.f32.gmra.mrb[0].mxu0 %v8854
        %v9523 = vpop.f32.mrb[0].mxu0
        %v9524 = vadd.f32 %v9419, %v9523
        %v9525 = vpop.f32.mrb[0].mxu0
        %9526 = vmatprep.mubr.f32.mxu0 0.0
        %9527 = vmatmul.mubr.f32.gmra.mrb[0].mxu0 %v8858
        %v9528 = vpop.f32.mrb[0].mxu0
        %v9529 = vadd.f32 %v9424, %v9528
        %v9530 = vpop.f32.mrb[0].mxu0
        %9531 = vmatprep.mubr.f32.mxu0 0.0
        %9532 = vmatmul.mubr.f32.gmra.mrb[0].mxu0 %v8862
        %v9533 = vpop.f32.mrb[0].mxu0
        %v9534 = vadd.f32 %v9429, %v9533
        %v9535 = vpop.f32.mrb[0].mxu0
        %9536 = vmatprep.mubr.f32.mxu0 0.0
        %9537 = vmatmul.mubr.f32.gmra.mrb[0].mxu0 %v8866
        %v9538 = vpop.f32.mrb[0].mxu0
        %v9539 = vadd.f32 %v9434, %v9538
        %v9540 = vpop.f32.mrb[0].mxu0
        %9541 = vmatprep.mubr.f32.mxu0 0.0
        %9542 = vmatmul.mubr.f32.gmra.mrb[0].mxu0 %v8870
        %v9543 = vpop.f32.mrb[0].mxu0
        %v9544 = vadd.f32 %v9439, %v9543
        %v9545 = vpop.f32.mrb[0].mxu0
        %9546 = vdwg.mxu0
        %vm9547 = vcmp.ge.f32.partialorder %v9509, 0.0
        %vm9548 = vcmp.ge.f32.partialorder %v9514, 0.0
        %vm9549 = vcmp.ge.f32.partialorder %v9519, 0.0
        %vm9550 = vcmp.ge.f32.partialorder %v9524, 0.0
        %vm9551 = vcmp.ge.f32.partialorder %v9529, 0.0
        %vm9552 = vcmp.ge.f32.partialorder %v9534, 0.0
        %vm9553 = vcmp.ge.f32.partialorder %v9539, 0.0
        %vm9554 = vcmp.ge.f32.partialorder %v9544, 0.0
        %v9555 = vmul.f32 %v3640, %v9509
        %v9556 = vmul.f32 %v3640, %v9514
        %v9557 = vmul.f32 %v3640, %v9519
        %v9558 = vmul.f32 %v3640, %v9524
        %v9559 = vmul.f32 %v3640, %v9529
        %v9560 = vmul.f32 %v3640, %v9534
        %v9561 = vmul.f32 %v3640, %v9539
        %v9562 = vmul.f32 %v3640, %v9544
        %v9563 = vsel %vm9547, %v9509, %v9555
        %v9564 = vsel %vm9548, %v9514, %v9556
        %v9565 = vsel %vm9549, %v9519, %v9557
        %v9566 = vsel %vm9550, %v9524, %v9558
        %v9567 = vsel %vm9551, %v9529, %v9559
        %v9568 = vsel %vm9552, %v9534, %v9560
        %v9569 = vsel %vm9553, %v9539, %v9561
        %v9570 = vsel %vm9554, %v9544, %v9562
        %9571 = vst.msk [vmem:[%s445] sm:$0xff] %vm508, %v9563
        %9572 = vst.msk [vmem:[%s445 + $0x8] sm:$0xff] %vm508, %v9564
        %9573 = vst.msk [vmem:[%s445 + $0x10] sm:$0xff] %vm508, %v9565
        %9574 = vst.msk [vmem:[%s445 + $0x18] sm:$0xff] %vm508, %v9566
        %9575 = vst.msk [vmem:[%s445 + $0x20] sm:$0xff] %vm508, %v9567
        %9576 = vst.msk [vmem:[%s445 + $0x28] sm:$0xff] %vm508, %v9568
        %9577 = vst.msk [vmem:[%s445 + $0x30] sm:$0xff] %vm508, %v9569
        %9578 = vst.msk [vmem:[%s445 + $0x38] sm:$0xff] %vm508, %v9570
        %s9579 = sand.u32 %s297, 1
        %s9580 = scalar_lea.sflag [#allocation8], %s9579
        %s9581 = sand.u32 %s297, 1
        %s9582 = smul.addr %s9581, 256
        %s9583 = scalar_lea.vmem [#allocation7], %s9582
        %s9584 = sand.u32 %s323, 1
        %s9585 = scalar_lea.sflag [#allocation10], %s9584
        %s9586 = sand.u32 %s323, 1
        %s9587 = smul.addr %s9586, 64
        %s9588 = scalar_lea.vmem [#allocation9], %s9587
        // Predicated region
        $region69: #{encoding_block_forward.1} parent=67 // pred_check
          %p9589 = pneg %p307
        $region70: #{encoding_block_forward.1} parent=67 // pred_check_branch
          %9591 = sbr.rel (%p9589) target = $region72
        $region71: #{encoding_block_forward.1} parent=67 // pred_region
          %s9593 = ssub.s32 4096, 4096
          %9594 = vsyncadd %s9580, %s9593
          %s9595 = smul.addr %s32, 32
          %s9596 = smul.addr %s9595, 128
          %s9597 = scalar_lea.hbm %s12, %s9596
          %s9598 = sshll.u32 %s9583, 4
          %s9599 = int_to_ptr.vmem [resolvable:$true] %s9598
          %9604 = dma.vmem_to_hbm [thread:$0]  %s9599, 4096, %s9597, %s9580, 128, 128, 8
        $region72: #{encoding_block_forward.1} parent=67 // pred_fallthru
          _
        // Predicated region
        $region73: #{encoding_block_forward.1} parent=67 // pred_check
          %p9605 = pneg %p333
        $region74: #{encoding_block_forward.1} parent=67 // pred_check_branch
          %9607 = sbr.rel (%p9605) target = $region76
        $region75: #{encoding_block_forward.1} parent=67 // pred_region
          %s9609 = ssub.s32 1024, 1024
          %9610 = vsyncadd %s9585, %s9609
          %s9611 = smul.addr %s32, 8
          %s9612 = smul.addr %s9611, 128
          %s9613 = scalar_lea.hbm %s13, %s9612
          %s9614 = sshll.u32 %s9588, 4
          %s9615 = int_to_ptr.vmem [resolvable:$true] %s9614
          %9620 = dma.vmem_to_hbm [thread:$0]  %s9615, 1024, %s9613, %s9585, 128, 128, 8
        $region76: #{encoding_block_forward.1} parent=67 // pred_fallthru
          _
      $region68: #{encoding_block_forward.1} parent=5 // pred_fallthru
        _
      %p9621 = scmp.le.s32.totalorder 2, %s27
      // Predicated region
      $region77: #{encoding_block_forward.1} parent=5 // pred_check
        %p9622 = pneg %p9621
      $region78: #{encoding_block_forward.1} parent=5 // pred_check_branch
        %9624 = sbr.rel (%p9622) target = $region80
      $region79: #{encoding_block_forward.1} parent=5 // pred_region
        %s9625 = ssub.s32 %s27, 2
        // Predicated region
        $region81: #{encoding_block_forward.1} parent=79 // pred_check
          %p9626 = pneg %p313
        $region82: #{encoding_block_forward.1} parent=79 // pred_check_branch
          %9628 = sbr.rel (%p9626) target = $region84
        $region83: #{encoding_block_forward.1} parent=79 // pred_region
          %s9629 = sand.u32 %s298, 1
          %s9630 = scalar_lea.sflag [#allocation8], %s9629
          %s9631 = sand.u32 %s298, 1
          %s9632 = smul.addr %s9631, 256
          %s9633 = scalar_lea.vmem [#allocation7], %s9632
          %9634 = dma.done %s9630, 4096
        $region84: #{encoding_block_forward.1} parent=79 // pred_fallthru
          _
        // Predicated region
        $region85: #{encoding_block_forward.1} parent=79 // pred_check
          %p9635 = pneg %p339
        $region86: #{encoding_block_forward.1} parent=79 // pred_check_branch
          %9637 = sbr.rel (%p9635) target = $region88
        $region87: #{encoding_block_forward.1} parent=79 // pred_region
          %s9638 = sand.u32 %s324, 1
          %s9639 = scalar_lea.sflag [#allocation10], %s9638
          %s9640 = sand.u32 %s324, 1
          %s9641 = smul.addr %s9640, 64
          %s9642 = scalar_lea.vmem [#allocation9], %s9641
          %9643 = dma.done %s9639, 1024
        $region88: #{encoding_block_forward.1} parent=79 // pred_fallthru
          _
      $region80: #{encoding_block_forward.1} parent=5 // pred_fallthru
        _
    $region6: #{encoding_block_forward.1} parent=1 // loop_footer
      %s31 = sadd.s32 1, %s27
    $region7: #{encoding_block_forward.1} parent=1 // loop_footer_branch
      %26 = sbr.rel target = $region3
    $region8: #{encoding_block_forward.1} parent=1 // loop_exit
      _
    %9644 = vsyncpa [#allocation8], 1
    %s9645 = scalar_lea.sflag [#allocation8], 1
    %9646 = vsyncpa %s9645, 1
    %9647 = vsyncpa [#allocation10], 1
    %s9648 = scalar_lea.sflag [#allocation10], 1
    %9649 = vsyncpa %s9648, 1

</llo_original>
